<compile_context>
chip_gen: v6e
topology: v6e:2x2x1
jax: 0.10.0
libtpu: 0.0.40
codegen_flags: <defaults>
</compile_context>

<pallas_src>
import jax
import jax.numpy as jnp
from jax.experimental import pallas as pl
from jax.experimental.pallas import tpu as pltpu

EPS = 1e-5

_VMEM = pl.BlockSpec(memory_space=pltpu.MemorySpace.VMEM)


def _bn_fold(y, gamma, beta, m):
    """Train-mode BatchNorm over axis 0 (per-channel), folded affine.

    y: (M, C) f32 (already ReLU'd); gamma/beta: (1, C).
    Uses sum / sum-of-squares so the normalize step is one mul + one add.
    """
    inv_m = 1.0 / float(m)
    s = jnp.sum(y, axis=0, keepdims=True)
    ss = jnp.sum(y * y, axis=0, keepdims=True)
    mean = s * inv_m
    var = jnp.maximum(ss * inv_m - mean * mean, 0.0)   # biased var, PyTorch fwd
    scale = gamma * jax.lax.rsqrt(var + EPS)           # EUP rsqrt
    shift = beta - mean * scale
    return y * scale + shift


def _pre_residual_kernel(x_ref, w1_ref, w2_ref, g1_ref, b1_ref, g2_ref, b2_ref,
                         out_ref, pad_ref):
    """Fused: conv3x3 -> ReLU -> BN -> conv3x3 -> ReLU -> BN -> + input."""
    N, H, W, Cin = x_ref.shape
    M = N * H * W

    # Zero the halo scratch once; only the interior is ever overwritten, so the
    # 1-pixel border stays zero for both padded 3x3 convs.
    pad_ref[...] = jnp.zeros_like(pad_ref)

    x = x_ref[...].astype(jnp.float32)                       # (N, H, W, Cin)

    def conv3x3_relu_bn(inp_nhwc, w_ref_, gamma, beta):
        pad_ref[:, 1:H + 1, 1:W + 1, :] = inp_nhwc           # in-kernel padding
        # im2col: 9 shifted windows concatenated along lanes -> one MXU matmul.
        taps = []
        for kh in range(3):
            for kw in range(3):
                taps.append(
                    pad_ref[:, kh:kh + H, kw:kw + W, :].reshape(M, Cin))
        patches = jnp.concatenate(taps, axis=-1)             # (M, 9*Cin)
        acc = jnp.dot(patches, w_ref_[...],
                      preferred_element_type=jnp.float32)    # (M, Cin)
        return _bn_fold(jnp.maximum(acc, 0.0), gamma, beta, M)

    y1 = conv3x3_relu_bn(x, w1_ref, g1_ref[...], b1_ref[...])
    y2 = conv3x3_relu_bn(y1.reshape(N, H, W, Cin),
                         w2_ref, g2_ref[...], b2_ref[...])
    y2 = y2 + x.reshape(M, Cin)                              # residual add
    out_ref[...] = y2.reshape(N, H, W, Cin).astype(out_ref.dtype)


def _post_residual_kernel(y_ref, w3_ref, g3_ref, b3_ref, out_ref):
    """2x2 stride-2 conv -> ReLU -> BN, as one patch matmul.

    y_ref: (N, Ho, 2, Wo, 2*Cin) -- a free reinterpretation of the (N,H,W,Cin)
    pre-residual output. Dim 2 is the row parity (kh); the last dim packs
    (column parity kw, Cin), so the space-to-depth is two leading-dim reads
    plus one lane-axis concat.
    """
    N, Ho, _, Wo, C2 = y_ref.shape                           # C2 = 2*Cin
    Cout = w3_ref.shape[-1]
    M3 = N * Ho * Wo

    top = y_ref[:, :, 0, :, :].reshape(M3, C2)               # taps (0,0),(0,1)
    bot = y_ref[:, :, 1, :, :].reshape(M3, C2)               # taps (1,0),(1,1)
    patches = jnp.concatenate([top, bot], axis=-1)           # (M3, 4*Cin)

    acc = jnp.dot(patches, w3_ref[...], preferred_element_type=jnp.float32)
    y = _bn_fold(jnp.maximum(acc, 0.0), g3_ref[...], b3_ref[...], M3)
    out_ref[...] = y.reshape(N, Ho, Wo, Cout).astype(out_ref.dtype)


def _prep_conv_weight(w_pt, k):
    """(Cout, Cin, k, k) PyTorch conv weight -> (k*k*Cin, Cout) im2col weight
    with row order (kh, kw, cin) matching the in-kernel patch layout."""
    cout, cin = w_pt.shape[0], w_pt.shape[1]
    return (jnp.transpose(w_pt, (2, 3, 1, 0))
            .reshape(k * k * cin, cout).astype(jnp.float32))


def block_forward_nhwc(x_nhwc, params):
    """Core NHWC forward (keeps the model NHWC end-to-end)."""
    N, H, W, Cin = x_nhwc.shape
    assert H % 2 == 0 and W % 2 == 0, \
        "stride-2 stage assumes even spatial dims (PyTorch would floor)"
    Ho, Wo = H // 2, W // 2
    Cout = params["w3"].shape[0]

    w1 = _prep_conv_weight(params["w1"], 3)                  # (9*Cin, Cin)
    w2 = _prep_conv_weight(params["w2"], 3)                  # (9*Cin, Cin)
    w3 = _prep_conv_weight(params["w3"], 2)                  # (4*Cin, Cout)
    g1 = params["g1"].reshape(1, Cin).astype(jnp.float32)
    b1 = params["b1"].reshape(1, Cin).astype(jnp.float32)
    g2 = params["g2"].reshape(1, Cin).astype(jnp.float32)
    b2 = params["b2"].reshape(1, Cin).astype(jnp.float32)
    g3 = params["g3"].reshape(1, Cout).astype(jnp.float32)
    b3 = params["b3"].reshape(1, Cout).astype(jnp.float32)

    # Fused pre-residual stage (conv1+BN1+conv2+BN2+residual), one pallas_call.
    y2 = pl.pallas_call(
        _pre_residual_kernel,
        out_shape=jax.ShapeDtypeStruct((N, H, W, Cin), jnp.float32),
        in_specs=[_VMEM] * 7,
        out_specs=_VMEM,
        scratch_shapes=[pltpu.VMEM((N, H + 2, W + 2, Cin), jnp.float32)],
    )(x_nhwc.astype(jnp.float32), w1, w2, g1, b1, g2, b2)

    # Free (row-major preserving) reinterpretation for the stride-2 stage.
    y2_r = y2.reshape(N, Ho, 2, Wo, 2 * Cin)

    out = pl.pallas_call(
        _post_residual_kernel,
        out_shape=jax.ShapeDtypeStruct((N, Ho, Wo, Cout), jnp.float32),
        in_specs=[_VMEM] * 4,
        out_specs=_VMEM,
    )(y2_r, w3, g3, b3)
    return out


@jax.jit
def block_forward(x_nchw, params):
    """PyTorch-parity interface: NCHW in, NCHW out."""
    x = jnp.transpose(x_nchw, (0, 2, 3, 1))
    out = block_forward_nhwc(x, params)
    return jnp.transpose(out, (0, 3, 1, 2))


def init_block_params(key, ch_in, ch_out):
    k1, k2, k3 = jax.random.split(key, 3)
    scale = 0.1
    return {
        "w1": scale * jax.random.normal(k1, (ch_in, ch_in, 3, 3), jnp.float32),
        "g1": jnp.ones((ch_in,), jnp.float32),
        "b1": jnp.zeros((ch_in,), jnp.float32),
        "w2": scale * jax.random.normal(k2, (ch_in, ch_in, 3, 3), jnp.float32),
        "g2": jnp.ones((ch_in,), jnp.float32),
        "b2": jnp.zeros((ch_in,), jnp.float32),
        "w3": scale * jax.random.normal(k3, (ch_out, ch_in, 2, 2), jnp.float32),
        "g3": jnp.ones((ch_out,), jnp.float32),
        "b3": jnp.zeros((ch_out,), jnp.float32),
    }


if __name__ == "__main__":
    key = jax.random.PRNGKey(0)
    kx, kp = jax.random.split(key)
    N, CH_IN, CH_OUT, H, W = 2, 4, 8, 16, 16
    x = jax.random.normal(kx, (N, CH_IN, H, W), jnp.float32)   # NCHW (PyTorch)
    params = init_block_params(kp, CH_IN, CH_OUT)

    out = block_forward(x, params)
    jax.block_until_ready(out)
    assert out.shape == (N, CH_OUT, H // 2, W // 2), out.shape
    assert bool(jnp.all(jnp.isfinite(out)))
    print("KERNEL_OK")
</pallas_src>

<mosaic_0001>
module attributes {stable_mosaic.version = 11 : i64} {
  func.func @_pre_residual_kernel(%arg0: memref<2x16x16x4xf32, #tpu.memory_space<vmem>>, %arg1: memref<36x4xf32, #tpu.memory_space<vmem>>, %arg2: memref<36x4xf32, #tpu.memory_space<vmem>>, %arg3: memref<1x4xf32, #tpu.memory_space<vmem>>, %arg4: memref<1x4xf32, #tpu.memory_space<vmem>>, %arg5: memref<1x4xf32, #tpu.memory_space<vmem>>, %arg6: memref<1x4xf32, #tpu.memory_space<vmem>>, %arg7: memref<2x16x16x4xf32, #tpu.memory_space<vmem>>, %arg8: memref<2x18x18x4xf32, #tpu.memory_space<vmem>>) attributes {dimension_semantics = [], scalar_prefetch = 0 : i64, scratch_operands = 1 : i64, tpu.core_type = #tpu.core_type<tc>} {
    %cst = arith.constant 0.000000e+00 : f32
    %0 = vector.broadcast %cst : f32 to vector<2x18x18x4xf32>
    %c0 = arith.constant 0 : index
    %c0_0 = arith.constant 0 : index
    %c0_1 = arith.constant 0 : index
    %c0_2 = arith.constant 0 : index
    %1 = vector.load %arg8[%c0, %c0_0, %c0_1, %c0_2] : memref<2x18x18x4xf32, #tpu.memory_space<vmem>>, vector<2x18x18x4xf32>
    tpu.vector_store %arg8[%c0, %c0_0, %c0_1, %c0_2], %0 {strides = array<i32>} : memref<2x18x18x4xf32, #tpu.memory_space<vmem>>, vector<2x18x18x4xf32>,
    %c0_3 = arith.constant 0 : index
    %c0_4 = arith.constant 0 : index
    %c0_5 = arith.constant 0 : index
    %c0_6 = arith.constant 0 : index
    %2 = vector.load %arg0[%c0_3, %c0_4, %c0_5, %c0_6] : memref<2x16x16x4xf32, #tpu.memory_space<vmem>>, vector<2x16x16x4xf32>
    %c0_7 = arith.constant 0 : index
    %c0_8 = arith.constant 0 : index
    %3 = vector.load %arg3[%c0_7, %c0_8] : memref<1x4xf32, #tpu.memory_space<vmem>>, vector<1x4xf32>
    %c0_9 = arith.constant 0 : index
    %c0_10 = arith.constant 0 : index
    %4 = vector.load %arg4[%c0_9, %c0_10] : memref<1x4xf32, #tpu.memory_space<vmem>>, vector<1x4xf32>
    %c0_11 = arith.constant 0 : index
    %c1 = arith.constant 1 : index
    %c1_12 = arith.constant 1 : index
    %c0_13 = arith.constant 0 : index
    %5 = vector.load %arg8[%c0_11, %c1, %c1_12, %c0_13] : memref<2x18x18x4xf32, #tpu.memory_space<vmem>>, vector<2x16x16x4xf32>
    tpu.vector_store %arg8[%c0_11, %c1, %c1_12, %c0_13], %2 {strides = array<i32>} : memref<2x18x18x4xf32, #tpu.memory_space<vmem>>, vector<2x16x16x4xf32>,
    %c0_14 = arith.constant 0 : index
    %c0_15 = arith.constant 0 : index
    %c0_16 = arith.constant 0 : index
    %c0_17 = arith.constant 0 : index
    %6 = vector.load %arg8[%c0_14, %c0_15, %c0_16, %c0_17] : memref<2x18x18x4xf32, #tpu.memory_space<vmem>>, vector<2x16x16x4xf32>
    %7 = vector.shape_cast %6 : vector<2x16x16x4xf32> to vector<512x4xf32>
    %c0_18 = arith.constant 0 : index
    %c0_19 = arith.constant 0 : index
    %c1_20 = arith.constant 1 : index
    %c0_21 = arith.constant 0 : index
    %8 = vector.load %arg8[%c0_18, %c0_19, %c1_20, %c0_21] : memref<2x18x18x4xf32, #tpu.memory_space<vmem>>, vector<2x16x16x4xf32>
    %9 = vector.shape_cast %8 : vector<2x16x16x4xf32> to vector<512x4xf32>
    %c0_22 = arith.constant 0 : index
    %c0_23 = arith.constant 0 : index
    %c2 = arith.constant 2 : index
    %c0_24 = arith.constant 0 : index
    %10 = vector.load %arg8[%c0_22, %c0_23, %c2, %c0_24] : memref<2x18x18x4xf32, #tpu.memory_space<vmem>>, vector<2x16x16x4xf32>
    %11 = vector.shape_cast %10 : vector<2x16x16x4xf32> to vector<512x4xf32>
    %c0_25 = arith.constant 0 : index
    %c1_26 = arith.constant 1 : index
    %c0_27 = arith.constant 0 : index
    %c0_28 = arith.constant 0 : index
    %12 = vector.load %arg8[%c0_25, %c1_26, %c0_27, %c0_28] : memref<2x18x18x4xf32, #tpu.memory_space<vmem>>, vector<2x16x16x4xf32>
    %13 = vector.shape_cast %12 : vector<2x16x16x4xf32> to vector<512x4xf32>
    %c0_29 = arith.constant 0 : index
    %c1_30 = arith.constant 1 : index
    %c1_31 = arith.constant 1 : index
    %c0_32 = arith.constant 0 : index
    %14 = vector.load %arg8[%c0_29, %c1_30, %c1_31, %c0_32] : memref<2x18x18x4xf32, #tpu.memory_space<vmem>>, vector<2x16x16x4xf32>
    %15 = vector.shape_cast %14 : vector<2x16x16x4xf32> to vector<512x4xf32>
    %c0_33 = arith.constant 0 : index
    %c1_34 = arith.constant 1 : index
    %c2_35 = arith.constant 2 : index
    %c0_36 = arith.constant 0 : index
    %16 = vector.load %arg8[%c0_33, %c1_34, %c2_35, %c0_36] : memref<2x18x18x4xf32, #tpu.memory_space<vmem>>, vector<2x16x16x4xf32>
    %17 = vector.shape_cast %16 : vector<2x16x16x4xf32> to vector<512x4xf32>
    %c0_37 = arith.constant 0 : index
    %c2_38 = arith.constant 2 : index
    %c0_39 = arith.constant 0 : index
    %c0_40 = arith.constant 0 : index
    %18 = vector.load %arg8[%c0_37, %c2_38, %c0_39, %c0_40] : memref<2x18x18x4xf32, #tpu.memory_space<vmem>>, vector<2x16x16x4xf32>
    %19 = vector.shape_cast %18 : vector<2x16x16x4xf32> to vector<512x4xf32>
    %c0_41 = arith.constant 0 : index
    %c2_42 = arith.constant 2 : index
    %c1_43 = arith.constant 1 : index
    %c0_44 = arith.constant 0 : index
    %20 = vector.load %arg8[%c0_41, %c2_42, %c1_43, %c0_44] : memref<2x18x18x4xf32, #tpu.memory_space<vmem>>, vector<2x16x16x4xf32>
    %21 = vector.shape_cast %20 : vector<2x16x16x4xf32> to vector<512x4xf32>
    %c0_45 = arith.constant 0 : index
    %c2_46 = arith.constant 2 : index
    %c2_47 = arith.constant 2 : index
    %c0_48 = arith.constant 0 : index
    %22 = vector.load %arg8[%c0_45, %c2_46, %c2_47, %c0_48] : memref<2x18x18x4xf32, #tpu.memory_space<vmem>>, vector<2x16x16x4xf32>
    %23 = vector.shape_cast %22 : vector<2x16x16x4xf32> to vector<512x4xf32>
    %24 = tpu.concatenate %7, %9, %11, %13, %15, %17, %19, %21, %23 in 1 : vector<512x4xf32>, vector<512x4xf32>, vector<512x4xf32>, vector<512x4xf32>, vector<512x4xf32>, vector<512x4xf32>, vector<512x4xf32>, vector<512x4xf32>, vector<512x4xf32> -> vector<512x36xf32>
    %c0_49 = arith.constant 0 : index
    %c0_50 = arith.constant 0 : index
    %25 = vector.load %arg1[%c0_49, %c0_50] : memref<36x4xf32, #tpu.memory_space<vmem>>, vector<36x4xf32>
    %cst_51 = arith.constant dense<0.000000e+00> : vector<512x4xf32>
    %26 = tpu.matmul %24, %25, %cst_51 {dimension_numbers = #tpu.dot_dimension_numbers<[1], [0], [0], [1], [0, 0, 1, 1], [], []>} : vector<512x36xf32>, vector<36x4xf32>, vector<512x4xf32> -> vector<512x4xf32>
    %cst_52 = arith.constant 0.000000e+00 : f32
    %27 = vector.broadcast %cst_52 : f32 to vector<512x4xf32>
    %28 = arith.maximumf %26, %27 : vector<512x4xf32>
    %cst_53 = arith.constant dense<0.000000e+00> : vector<4xf32>
    %29 = vector.multi_reduction <add>, %28, %cst_53 [0] : vector<512x4xf32> to vector<4xf32>
    %30 = vector.shape_cast %29 : vector<4xf32> to vector<1x4xf32>
    %31 = arith.mulf %28, %28 : vector<512x4xf32>
    %cst_54 = arith.constant dense<0.000000e+00> : vector<4xf32>
    %32 = vector.multi_reduction <add>, %31, %cst_54 [0] : vector<512x4xf32> to vector<4xf32>
    %33 = vector.shape_cast %32 : vector<4xf32> to vector<1x4xf32>
    %cst_55 = arith.constant 0.001953125 : f32
    %34 = vector.broadcast %cst_55 : f32 to vector<1x4xf32>
    %35 = arith.mulf %30, %34 : vector<1x4xf32>
    %cst_56 = arith.constant 0.001953125 : f32
    %36 = vector.broadcast %cst_56 : f32 to vector<1x4xf32>
    %37 = arith.mulf %33, %36 : vector<1x4xf32>
    %38 = arith.mulf %35, %35 : vector<1x4xf32>
    %39 = arith.subf %37, %38 : vector<1x4xf32>
    %cst_57 = arith.constant 0.000000e+00 : f32
    %40 = vector.broadcast %cst_57 : f32 to vector<1x4xf32>
    %41 = arith.maximumf %39, %40 : vector<1x4xf32>
    %cst_58 = arith.constant 9.99999974E-6 : f32
    %42 = vector.broadcast %cst_58 : f32 to vector<1x4xf32>
    %43 = arith.addf %41, %42 : vector<1x4xf32>
    %44 = math.rsqrt %43 : vector<1x4xf32>
    %45 = arith.mulf %3, %44 : vector<1x4xf32>
    %46 = arith.mulf %35, %45 : vector<1x4xf32>
    %47 = arith.subf %4, %46 : vector<1x4xf32>
    %48 = vector.broadcast %45 : vector<1x4xf32> to vector<512x4xf32>
    %49 = arith.mulf %28, %48 : vector<512x4xf32>
    %50 = vector.broadcast %47 : vector<1x4xf32> to vector<512x4xf32>
    %51 = arith.addf %49, %50 : vector<512x4xf32>
    %52 = vector.shape_cast %51 : vector<512x4xf32> to vector<2x16x16x4xf32>
    %c0_59 = arith.constant 0 : index
    %c0_60 = arith.constant 0 : index
    %53 = vector.load %arg5[%c0_59, %c0_60] : memref<1x4xf32, #tpu.memory_space<vmem>>, vector<1x4xf32>
    %c0_61 = arith.constant 0 : index
    %c0_62 = arith.constant 0 : index
    %54 = vector.load %arg6[%c0_61, %c0_62] : memref<1x4xf32, #tpu.memory_space<vmem>>, vector<1x4xf32>
    %c0_63 = arith.constant 0 : index
    %c1_64 = arith.constant 1 : index
    %c1_65 = arith.constant 1 : index
    %c0_66 = arith.constant 0 : index
    %55 = vector.load %arg8[%c0_63, %c1_64, %c1_65, %c0_66] : memref<2x18x18x4xf32, #tpu.memory_space<vmem>>, vector<2x16x16x4xf32>
    tpu.vector_store %arg8[%c0_63, %c1_64, %c1_65, %c0_66], %52 {strides = array<i32>} : memref<2x18x18x4xf32, #tpu.memory_space<vmem>>, vector<2x16x16x4xf32>,
    %c0_67 = arith.constant 0 : index
    %c0_68 = arith.constant 0 : index
    %c0_69 = arith.constant 0 : index
    %c0_70 = arith.constant 0 : index
    %56 = vector.load %arg8[%c0_67, %c0_68, %c0_69, %c0_70] : memref<2x18x18x4xf32, #tpu.memory_space<vmem>>, vector<2x16x16x4xf32>
    %57 = vector.shape_cast %56 : vector<2x16x16x4xf32> to vector<512x4xf32>
    %c0_71 = arith.constant 0 : index
    %c0_72 = arith.constant 0 : index
    %c1_73 = arith.constant 1 : index
    %c0_74 = arith.constant 0 : index
    %58 = vector.load %arg8[%c0_71, %c0_72, %c1_73, %c0_74] : memref<2x18x18x4xf32, #tpu.memory_space<vmem>>, vector<2x16x16x4xf32>
    %59 = vector.shape_cast %58 : vector<2x16x16x4xf32> to vector<512x4xf32>
    %c0_75 = arith.constant 0 : index
    %c0_76 = arith.constant 0 : index
    %c2_77 = arith.constant 2 : index
    %c0_78 = arith.constant 0 : index
    %60 = vector.load %arg8[%c0_75, %c0_76, %c2_77, %c0_78] : memref<2x18x18x4xf32, #tpu.memory_space<vmem>>, vector<2x16x16x4xf32>
    %61 = vector.shape_cast %60 : vector<2x16x16x4xf32> to vector<512x4xf32>
    %c0_79 = arith.constant 0 : index
    %c1_80 = arith.constant 1 : index
    %c0_81 = arith.constant 0 : index
    %c0_82 = arith.constant 0 : index
    %62 = vector.load %arg8[%c0_79, %c1_80, %c0_81, %c0_82] : memref<2x18x18x4xf32, #tpu.memory_space<vmem>>, vector<2x16x16x4xf32>
    %63 = vector.shape_cast %62 : vector<2x16x16x4xf32> to vector<512x4xf32>
    %c0_83 = arith.constant 0 : index
    %c1_84 = arith.constant 1 : index
    %c1_85 = arith.constant 1 : index
    %c0_86 = arith.constant 0 : index
    %64 = vector.load %arg8[%c0_83, %c1_84, %c1_85, %c0_86] : memref<2x18x18x4xf32, #tpu.memory_space<vmem>>, vector<2x16x16x4xf32>
    %65 = vector.shape_cast %64 : vector<2x16x16x4xf32> to vector<512x4xf32>
    %c0_87 = arith.constant 0 : index
    %c1_88 = arith.constant 1 : index
    %c2_89 = arith.constant 2 : index
    %c0_90 = arith.constant 0 : index
    %66 = vector.load %arg8[%c0_87, %c1_88, %c2_89, %c0_90] : memref<2x18x18x4xf32, #tpu.memory_space<vmem>>, vector<2x16x16x4xf32>
    %67 = vector.shape_cast %66 : vector<2x16x16x4xf32> to vector<512x4xf32>
    %c0_91 = arith.constant 0 : index
    %c2_92 = arith.constant 2 : index
    %c0_93 = arith.constant 0 : index
    %c0_94 = arith.constant 0 : index
    %68 = vector.load %arg8[%c0_91, %c2_92, %c0_93, %c0_94] : memref<2x18x18x4xf32, #tpu.memory_space<vmem>>, vector<2x16x16x4xf32>
    %69 = vector.shape_cast %68 : vector<2x16x16x4xf32> to vector<512x4xf32>
    %c0_95 = arith.constant 0 : index
    %c2_96 = arith.constant 2 : index
    %c1_97 = arith.constant 1 : index
    %c0_98 = arith.constant 0 : index
    %70 = vector.load %arg8[%c0_95, %c2_96, %c1_97, %c0_98] : memref<2x18x18x4xf32, #tpu.memory_space<vmem>>, vector<2x16x16x4xf32>
    %71 = vector.shape_cast %70 : vector<2x16x16x4xf32> to vector<512x4xf32>
    %c0_99 = arith.constant 0 : index
    %c2_100 = arith.constant 2 : index
    %c2_101 = arith.constant 2 : index
    %c0_102 = arith.constant 0 : index
    %72 = vector.load %arg8[%c0_99, %c2_100, %c2_101, %c0_102] : memref<2x18x18x4xf32, #tpu.memory_space<vmem>>, vector<2x16x16x4xf32>
    %73 = vector.shape_cast %72 : vector<2x16x16x4xf32> to vector<512x4xf32>
    %74 = tpu.concatenate %57, %59, %61, %63, %65, %67, %69, %71, %73 in 1 : vector<512x4xf32>, vector<512x4xf32>, vector<512x4xf32>, vector<512x4xf32>, vector<512x4xf32>, vector<512x4xf32>, vector<512x4xf32>, vector<512x4xf32>, vector<512x4xf32> -> vector<512x36xf32>
    %c0_103 = arith.constant 0 : index
    %c0_104 = arith.constant 0 : index
    %75 = vector.load %arg2[%c0_103, %c0_104] : memref<36x4xf32, #tpu.memory_space<vmem>>, vector<36x4xf32>
    %cst_105 = arith.constant dense<0.000000e+00> : vector<512x4xf32>
    %76 = tpu.matmul %74, %75, %cst_105 {dimension_numbers = #tpu.dot_dimension_numbers<[1], [0], [0], [1], [0, 0, 1, 1], [], []>} : vector<512x36xf32>, vector<36x4xf32>, vector<512x4xf32> -> vector<512x4xf32>
    %cst_106 = arith.constant 0.000000e+00 : f32
    %77 = vector.broadcast %cst_106 : f32 to vector<512x4xf32>
    %78 = arith.maximumf %76, %77 : vector<512x4xf32>
    %cst_107 = arith.constant dense<0.000000e+00> : vector<4xf32>
    %79 = vector.multi_reduction <add>, %78, %cst_107 [0] : vector<512x4xf32> to vector<4xf32>
    %80 = vector.shape_cast %79 : vector<4xf32> to vector<1x4xf32>
    %81 = arith.mulf %78, %78 : vector<512x4xf32>
    %cst_108 = arith.constant dense<0.000000e+00> : vector<4xf32>
    %82 = vector.multi_reduction <add>, %81, %cst_108 [0] : vector<512x4xf32> to vector<4xf32>
    %83 = vector.shape_cast %82 : vector<4xf32> to vector<1x4xf32>
    %cst_109 = arith.constant 0.001953125 : f32
    %84 = vector.broadcast %cst_109 : f32 to vector<1x4xf32>
    %85 = arith.mulf %80, %84 : vector<1x4xf32>
    %cst_110 = arith.constant 0.001953125 : f32
    %86 = vector.broadcast %cst_110 : f32 to vector<1x4xf32>
    %87 = arith.mulf %83, %86 : vector<1x4xf32>
    %88 = arith.mulf %85, %85 : vector<1x4xf32>
    %89 = arith.subf %87, %88 : vector<1x4xf32>
    %cst_111 = arith.constant 0.000000e+00 : f32
    %90 = vector.broadcast %cst_111 : f32 to vector<1x4xf32>
    %91 = arith.maximumf %89, %90 : vector<1x4xf32>
    %cst_112 = arith.constant 9.99999974E-6 : f32
    %92 = vector.broadcast %cst_112 : f32 to vector<1x4xf32>
    %93 = arith.addf %91, %92 : vector<1x4xf32>
    %94 = math.rsqrt %93 : vector<1x4xf32>
    %95 = arith.mulf %53, %94 : vector<1x4xf32>
    %96 = arith.mulf %85, %95 : vector<1x4xf32>
    %97 = arith.subf %54, %96 : vector<1x4xf32>
    %98 = vector.broadcast %95 : vector<1x4xf32> to vector<512x4xf32>
    %99 = arith.mulf %78, %98 : vector<512x4xf32>
    %100 = vector.broadcast %97 : vector<1x4xf32> to vector<512x4xf32>
    %101 = arith.addf %99, %100 : vector<512x4xf32>
    %102 = vector.shape_cast %2 : vector<2x16x16x4xf32> to vector<512x4xf32>
    %103 = arith.addf %101, %102 : vector<512x4xf32>
    %104 = vector.shape_cast %103 : vector<512x4xf32> to vector<2x16x16x4xf32>
    %c0_113 = arith.constant 0 : index
    %c0_114 = arith.constant 0 : index
    %c0_115 = arith.constant 0 : index
    %c0_116 = arith.constant 0 : index
    %105 = vector.load %arg7[%c0_113, %c0_114, %c0_115, %c0_116] : memref<2x16x16x4xf32, #tpu.memory_space<vmem>>, vector<2x16x16x4xf32>
    tpu.vector_store %arg7[%c0_113, %c0_114, %c0_115, %c0_116], %104 {strides = array<i32>} : memref<2x16x16x4xf32, #tpu.memory_space<vmem>>, vector<2x16x16x4xf32>,
    return
  }
}

module attributes {stable_mosaic.version = 11 : i64} {
  func.func @_post_residual_kernel(%arg0: memref<2x8x2x8x8xf32, #tpu.memory_space<vmem>>, %arg1: memref<16x8xf32, #tpu.memory_space<vmem>>, %arg2: memref<1x8xf32, #tpu.memory_space<vmem>>, %arg3: memref<1x8xf32, #tpu.memory_space<vmem>>, %arg4: memref<2x8x8x8xf32, #tpu.memory_space<vmem>>) attributes {dimension_semantics = [], scalar_prefetch = 0 : i64, scratch_operands = 0 : i64, tpu.core_type = #tpu.core_type<tc>} {
    %c0 = arith.constant 0 : index
    %c0_0 = arith.constant 0 : index
    %c0_1 = arith.constant 0 : index
    %c0_2 = arith.constant 0 : index
    %c0_3 = arith.constant 0 : index
    %0 = vector.load %arg0[%c0, %c0_0, %c0_1, %c0_2, %c0_3] : memref<2x8x2x8x8xf32, #tpu.memory_space<vmem>>, vector<2x8x1x8x8xf32>
    %1 = vector.shape_cast %0 : vector<2x8x1x8x8xf32> to vector<2x8x8x8xf32>
    %2 = vector.shape_cast %1 : vector<2x8x8x8xf32> to vector<128x8xf32>
    %c0_4 = arith.constant 0 : index
    %c0_5 = arith.constant 0 : index
    %c1 = arith.constant 1 : index
    %c0_6 = arith.constant 0 : index
    %c0_7 = arith.constant 0 : index
    %3 = vector.load %arg0[%c0_4, %c0_5, %c1, %c0_6, %c0_7] : memref<2x8x2x8x8xf32, #tpu.memory_space<vmem>>, vector<2x8x1x8x8xf32>
    %4 = vector.shape_cast %3 : vector<2x8x1x8x8xf32> to vector<2x8x8x8xf32>
    %5 = vector.shape_cast %4 : vector<2x8x8x8xf32> to vector<128x8xf32>
    %6 = tpu.concatenate %2, %5 in 1 : vector<128x8xf32>, vector<128x8xf32> -> vector<128x16xf32>
    %c0_8 = arith.constant 0 : index
    %c0_9 = arith.constant 0 : index
    %7 = vector.load %arg1[%c0_8, %c0_9] : memref<16x8xf32, #tpu.memory_space<vmem>>, vector<16x8xf32>
    %cst = arith.constant dense<0.000000e+00> : vector<128x8xf32>
    %8 = tpu.matmul %6, %7, %cst {dimension_numbers = #tpu.dot_dimension_numbers<[1], [0], [0], [1], [0, 0, 1, 1], [], []>} : vector<128x16xf32>, vector<16x8xf32>, vector<128x8xf32> -> vector<128x8xf32>
    %cst_10 = arith.constant 0.000000e+00 : f32
    %9 = vector.broadcast %cst_10 : f32 to vector<128x8xf32>
    %10 = arith.maximumf %8, %9 : vector<128x8xf32>
    %c0_11 = arith.constant 0 : index
    %c0_12 = arith.constant 0 : index
    %11 = vector.load %arg2[%c0_11, %c0_12] : memref<1x8xf32, #tpu.memory_space<vmem>>, vector<1x8xf32>
    %c0_13 = arith.constant 0 : index
    %c0_14 = arith.constant 0 : index
    %12 = vector.load %arg3[%c0_13, %c0_14] : memref<1x8xf32, #tpu.memory_space<vmem>>, vector<1x8xf32>
    %cst_15 = arith.constant dense<0.000000e+00> : vector<8xf32>
    %13 = vector.multi_reduction <add>, %10, %cst_15 [0] : vector<128x8xf32> to vector<8xf32>
    %14 = vector.shape_cast %13 : vector<8xf32> to vector<1x8xf32>
    %15 = arith.mulf %10, %10 : vector<128x8xf32>
    %cst_16 = arith.constant dense<0.000000e+00> : vector<8xf32>
    %16 = vector.multi_reduction <add>, %15, %cst_16 [0] : vector<128x8xf32> to vector<8xf32>
    %17 = vector.shape_cast %16 : vector<8xf32> to vector<1x8xf32>
    %cst_17 = arith.constant 7.812500e-03 : f32
    %18 = vector.broadcast %cst_17 : f32 to vector<1x8xf32>
    %19 = arith.mulf %14, %18 : vector<1x8xf32>
    %cst_18 = arith.constant 7.812500e-03 : f32
    %20 = vector.broadcast %cst_18 : f32 to vector<1x8xf32>
    %21 = arith.mulf %17, %20 : vector<1x8xf32>
    %22 = arith.mulf %19, %19 : vector<1x8xf32>
    %23 = arith.subf %21, %22 : vector<1x8xf32>
    %cst_19 = arith.constant 0.000000e+00 : f32
    %24 = vector.broadcast %cst_19 : f32 to vector<1x8xf32>
    %25 = arith.maximumf %23, %24 : vector<1x8xf32>
    %cst_20 = arith.constant 9.99999974E-6 : f32
    %26 = vector.broadcast %cst_20 : f32 to vector<1x8xf32>
    %27 = arith.addf %25, %26 : vector<1x8xf32>
    %28 = math.rsqrt %27 : vector<1x8xf32>
    %29 = arith.mulf %11, %28 : vector<1x8xf32>
    %30 = arith.mulf %19, %29 : vector<1x8xf32>
    %31 = arith.subf %12, %30 : vector<1x8xf32>
    %32 = vector.broadcast %29 : vector<1x8xf32> to vector<128x8xf32>
    %33 = arith.mulf %10, %32 : vector<128x8xf32>
    %34 = vector.broadcast %31 : vector<1x8xf32> to vector<128x8xf32>
    %35 = arith.addf %33, %34 : vector<128x8xf32>
    %36 = vector.shape_cast %35 : vector<128x8xf32> to vector<2x8x8x8xf32>
    %c0_21 = arith.constant 0 : index
    %c0_22 = arith.constant 0 : index
    %c0_23 = arith.constant 0 : index
    %c0_24 = arith.constant 0 : index
    %37 = vector.load %arg4[%c0_21, %c0_22, %c0_23, %c0_24] : memref<2x8x8x8xf32, #tpu.memory_space<vmem>>, vector<2x8x8x8xf32>
    tpu.vector_store %arg4[%c0_21, %c0_22, %c0_23, %c0_24], %36 {strides = array<i32>} : memref<2x8x8x8xf32, #tpu.memory_space<vmem>>, vector<2x8x8x8xf32>,
    return
  }
}

</mosaic_0001>

<llo_original>
// kernel: block_forward.3
$region0: #{block_forward.3}
  #allocation0 [shape = 'u32[]', space=smem, size = 0x4, offset = 0x4, fixed_abs, tag = 'smem constant byte address 0x4 - core index']
  #allocation1 [shape = 'u32[144,128]{1,0:T(1,128)}', space=vmem, size = 0x12000, scoped, tag = 'internal scratch']
  %s0 = inlined_call_operand.vmem [shape: f32[2,8,2,8,8], index: 0, kind: input, shape index: {}]
  %s1 = inlined_call_operand.vmem [shape: f32[16,8], index: 1, kind: input, shape index: {}]
  %s2 = inlined_call_operand.vmem [shape: f32[1,8], index: 2, kind: input, shape index: {}]
  %s3 = inlined_call_operand.vmem [shape: f32[1,8], index: 3, kind: input, shape index: {}]
  %s4 = inlined_call_operand.vmem [shape: f32[2,8,8,8], index: 4, kind: output, shape index: {}]
  %s5 = sld [smem:[#allocation0]]
  $region26: #{block_forward.3} parent=0
    _
  %s7 = ssub.s32 1, %s5
  %s8 = scalar_select 0, %s7, %s5
  // Predicated region
  $region2: #{block_forward.3} parent=0 // pred_check
    _
  $region3: #{block_forward.3} parent=0 // pred_check_branch
    %10 = sbr.rel (0) target = $region5
  $region4: #{block_forward.3} parent=0 // pred_region
    _
  $region5: #{block_forward.3} parent=0 // pred_fallthru
    _
  // Predicated region
  $region6: #{block_forward.3} parent=0 // pred_check
    _
  $region7: #{block_forward.3} parent=0 // pred_check_branch
    %12 = sbr.rel (0) target = $region9
  $region8: #{block_forward.3} parent=0 // pred_region
    _
  $region9: #{block_forward.3} parent=0 // pred_fallthru
    _
  // Predicated region
  $region10: #{block_forward.3} parent=0 // pred_check
    _
  $region11: #{block_forward.3} parent=0 // pred_check_branch
    %14 = sbr.rel (0) target = $region13
  $region12: #{block_forward.3} parent=0 // pred_region
    _
  $region13: #{block_forward.3} parent=0 // pred_fallthru
    _
  // Predicated region
  $region14: #{block_forward.3} parent=0 // pred_check
    _
  $region15: #{block_forward.3} parent=0 // pred_check_branch
    %16 = sbr.rel (0) target = $region17
  $region16: #{block_forward.3} parent=0 // pred_region
    _
  $region17: #{block_forward.3} parent=0 // pred_fallthru
    _
  %v17 = vld [vmem:[%s0] sm:$0xff]
  %v18 = vld [vmem:[%s0 + $0x10] sm:$0xff]
  %v19 = vld [vmem:[%s0 + $0x20] sm:$0xff]
  %v20 = vld [vmem:[%s0 + $0x30] sm:$0xff]
  %v21 = vld [vmem:[%s0 + $0x40] sm:$0xff]
  %v22 = vld [vmem:[%s0 + $0x50] sm:$0xff]
  %v23 = vld [vmem:[%s0 + $0x60] sm:$0xff]
  %v24 = vld [vmem:[%s0 + $0x70] sm:$0xff]
  %v25 = vld [vmem:[%s0 + $0x80] sm:$0xff]
  %v26 = vld [vmem:[%s0 + $0x90] sm:$0xff]
  %v27 = vld [vmem:[%s0 + $0xa0] sm:$0xff]
  %v28 = vld [vmem:[%s0 + $0xb0] sm:$0xff]
  %v29 = vld [vmem:[%s0 + $0xc0] sm:$0xff]
  %v30 = vld [vmem:[%s0 + $0xd0] sm:$0xff]
  %v31 = vld [vmem:[%s0 + $0xe0] sm:$0xff]
  %v32 = vld [vmem:[%s0 + $0xf0] sm:$0xff]
  %s33 = scalar_lea.vmem %s0, 8
  %v34 = vld [vmem:[%s33] sm:$0xff]
  %v35 = vld [vmem:[%s33 + $0x10] sm:$0xff]
  %v36 = vld [vmem:[%s33 + $0x20] sm:$0xff]
  %v37 = vld [vmem:[%s33 + $0x30] sm:$0xff]
  %v38 = vld [vmem:[%s33 + $0x40] sm:$0xff]
  %v39 = vld [vmem:[%s33 + $0x50] sm:$0xff]
  %v40 = vld [vmem:[%s33 + $0x60] sm:$0xff]
  %v41 = vld [vmem:[%s33 + $0x70] sm:$0xff]
  %v42 = vld [vmem:[%s33 + $0x80] sm:$0xff]
  %v43 = vld [vmem:[%s33 + $0x90] sm:$0xff]
  %v44 = vld [vmem:[%s33 + $0xa0] sm:$0xff]
  %v45 = vld [vmem:[%s33 + $0xb0] sm:$0xff]
  %v46 = vld [vmem:[%s33 + $0xc0] sm:$0xff]
  %v47 = vld [vmem:[%s33 + $0xd0] sm:$0xff]
  %v48 = vld [vmem:[%s33 + $0xe0] sm:$0xff]
  %v49 = vld [vmem:[%s33 + $0xf0] sm:$0xff]
  %66 = vrot.lane.b32.xlu0 %v34, 8
  %v67 = vpop.permute.xlu0 %66
  %68 = vrot.lane.b32.xlu0 %v35, 8
  %v69 = vpop.permute.xlu0 %68
  %70 = vrot.lane.b32.xlu0 %v36, 8
  %v71 = vpop.permute.xlu0 %70
  %72 = vrot.lane.b32.xlu0 %v37, 8
  %v73 = vpop.permute.xlu0 %72
  %74 = vrot.lane.b32.xlu0 %v38, 8
  %v75 = vpop.permute.xlu0 %74
  %76 = vrot.lane.b32.xlu0 %v39, 8
  %v77 = vpop.permute.xlu0 %76
  %78 = vrot.lane.b32.xlu0 %v40, 8
  %v79 = vpop.permute.xlu0 %78
  %80 = vrot.lane.b32.xlu0 %v41, 8
  %v81 = vpop.permute.xlu0 %80
  %82 = vrot.lane.b32.xlu0 %v42, 8
  %v83 = vpop.permute.xlu0 %82
  %84 = vrot.lane.b32.xlu0 %v43, 8
  %v85 = vpop.permute.xlu0 %84
  %86 = vrot.lane.b32.xlu0 %v44, 8
  %v87 = vpop.permute.xlu0 %86
  %88 = vrot.lane.b32.xlu0 %v45, 8
  %v89 = vpop.permute.xlu0 %88
  %90 = vrot.lane.b32.xlu0 %v46, 8
  %v91 = vpop.permute.xlu0 %90
  %92 = vrot.lane.b32.xlu0 %v47, 8
  %v93 = vpop.permute.xlu0 %92
  %94 = vrot.lane.b32.xlu0 %v48, 8
  %v95 = vpop.permute.xlu0 %94
  %96 = vrot.lane.b32.xlu0 %v49, 8
  %v97 = vpop.permute.xlu0 %96
  %vm114 = vcmask 64512
  %v115 = vsel %vm114, %v17, %v67
  %v116 = vsel %vm114, %v18, %v69
  %v117 = vsel %vm114, %v19, %v71
  %v118 = vsel %vm114, %v20, %v73
  %v119 = vsel %vm114, %v21, %v75
  %v120 = vsel %vm114, %v22, %v77
  %v121 = vsel %vm114, %v23, %v79
  %v122 = vsel %vm114, %v24, %v81
  %v123 = vsel %vm114, %v25, %v83
  %v124 = vsel %vm114, %v26, %v85
  %v125 = vsel %vm114, %v27, %v87
  %v126 = vsel %vm114, %v28, %v89
  %v127 = vsel %vm114, %v29, %v91
  %v128 = vsel %vm114, %v30, %v93
  %v129 = vsel %vm114, %v31, %v95
  %v130 = vsel %vm114, %v32, %v97
  %v131 = vld [vmem:[%s1] sm:$0xff]
  %v132 = vld [vmem:[%s1 + $0x8] sm:$0xff]
  %vm133 = vcmask 130048
  %v135 = vsel %vm133, %v115, 0
  %v138 = vsel %vm133, %v116, 0
  %v141 = vsel %vm133, %v117, 0
  %v144 = vsel %vm133, %v118, 0
  %v147 = vsel %vm133, %v119, 0
  %v150 = vsel %vm133, %v120, 0
  %v153 = vsel %vm133, %v121, 0
  %v156 = vsel %vm133, %v122, 0
  %v159 = vsel %vm133, %v123, 0
  %v162 = vsel %vm133, %v124, 0
  %v165 = vsel %vm133, %v125, 0
  %v168 = vsel %vm133, %v126, 0
  %v171 = vsel %vm133, %v127, 0
  %v174 = vsel %vm133, %v128, 0
  %v177 = vsel %vm133, %v129, 0
  %v180 = vsel %vm133, %v130, 0
  %182 = vmatprep.subr.mxu0 0.0
  %183 = vmatpush1.msra.mxu0 0.0
  %184 = vmatprep.subr.mxu0 0.0
  %185 = vmatpush1.msra.mxu0 0.0
  %186 = vmatprep.subr.mxu0 0.0
  %187 = vmatpush1.msra.mxu0 0.0
  %188 = vmatprep.subr.mxu0 0.0
  %189 = vmatpush1.msra.mxu0 0.0
  %190 = vmatprep.subr.mxu0 0.0
  %191 = vmatpush1.msra.mxu0 0.0
  %192 = vmatprep.subr.mxu0 0.0
  %193 = vmatpush1.msra.mxu0 0.0
  %194 = vmatprep.subr.mxu0 0.0
  %195 = vmatpush1.msra.mxu0 0.0
  %196 = vmatprep.subr.mxu0 0.0
  %197 = vmatpush1.msra.mxu0 0.0
  %198 = vmatprep.subr.mxu0 0.0
  %199 = vmatpush1.msra.mxu0 0.0
  %200 = vmatprep.subr.mxu0 0.0
  %201 = vmatpush1.msra.mxu0 0.0
  %202 = vmatprep.subr.mxu0 0.0
  %203 = vmatpush1.msra.mxu0 0.0
  %204 = vmatprep.subr.mxu0 0.0
  %205 = vmatpush1.msra.mxu0 0.0
  %206 = vmatprep.subr.mxu0 0.0
  %207 = vmatpush1.msra.mxu0 0.0
  %208 = vmatprep.subr.mxu0 0.0
  %209 = vmatpush1.msra.mxu0 0.0
  %210 = vmatprep.subr.mxu0 0.0
  %211 = vmatpush1.msra.mxu0 %v132
  %212 = vmatprep.subr.mxu0 0.0
  %213 = vmatpush1.msra.mxu0 %v131
  %214 = vmatprep.subr.mxu0 0.0
  %215 = vmatpush2.msra.mxu0 0.0
  %216 = vmatprep.subr.mxu0 0.0
  %217 = vmatpush2.msra.mxu0 0.0
  %218 = vmatprep.subr.mxu0 0.0
  %219 = vmatpush2.msra.mxu0 0.0
  %220 = vmatprep.subr.mxu0 0.0
  %221 = vmatpush2.msra.mxu0 0.0
  %222 = vmatprep.subr.mxu0 0.0
  %223 = vmatpush2.msra.mxu0 0.0
  %224 = vmatprep.subr.mxu0 0.0
  %225 = vmatpush2.msra.mxu0 0.0
  %226 = vmatprep.subr.mxu0 0.0
  %227 = vmatpush2.msra.mxu0 0.0
  %228 = vmatprep.subr.mxu0 0.0
  %229 = vmatpush2.msra.mxu0 0.0
  %230 = vmatprep.subr.mxu0 0.0
  %231 = vmatpush2.msra.mxu0 0.0
  %232 = vmatprep.subr.mxu0 0.0
  %233 = vmatpush2.msra.mxu0 0.0
  %234 = vmatprep.subr.mxu0 0.0
  %235 = vmatpush2.msra.mxu0 0.0
  %236 = vmatprep.subr.mxu0 0.0
  %237 = vmatpush2.msra.mxu0 0.0
  %238 = vmatprep.subr.mxu0 0.0
  %239 = vmatpush2.msra.mxu0 0.0
  %240 = vmatprep.subr.mxu0 0.0
  %241 = vmatpush2.msra.mxu0 0.0
  %242 = vmatprep.subr.mxu0 0.0
  %243 = vmatpush2.msra.mxu0 0.0
  %244 = vmatprep.subr.mxu0 0.0
  %245 = vmatpush2.msra.mxu0 0.0
  %246 = vmatprep.mubr.f32.mxu0 0.0
  %247 = vmatmul.mubr.f32.gmra.mxu0 %v135
  %v248 = vpop.f32.mrf.mxu0
  %v249 = vadd.f32 0.0, %v248
  %v250 = vpop.f32.mrf.mxu0
  %251 = vmatprep.mubr.f32.mxu0 0.0
  %252 = vmatmul.mubr.f32.gmra.mxu0 %v138
  %v253 = vpop.f32.mrf.mxu0
  %v254 = vadd.f32 0.0, %v253
  %v255 = vpop.f32.mrf.mxu0
  %256 = vmatprep.mubr.f32.mxu0 0.0
  %257 = vmatmul.mubr.f32.gmra.mxu0 %v141
  %v258 = vpop.f32.mrf.mxu0
  %v259 = vadd.f32 0.0, %v258
  %v260 = vpop.f32.mrf.mxu0
  %261 = vmatprep.mubr.f32.mxu0 0.0
  %262 = vmatmul.mubr.f32.gmra.mxu0 %v144
  %v263 = vpop.f32.mrf.mxu0
  %v264 = vadd.f32 0.0, %v263
  %v265 = vpop.f32.mrf.mxu0
  %266 = vmatprep.mubr.f32.mxu0 0.0
  %267 = vmatmul.mubr.f32.gmra.mxu0 %v147
  %v268 = vpop.f32.mrf.mxu0
  %v269 = vadd.f32 0.0, %v268
  %v270 = vpop.f32.mrf.mxu0
  %271 = vmatprep.mubr.f32.mxu0 0.0
  %272 = vmatmul.mubr.f32.gmra.mxu0 %v150
  %v273 = vpop.f32.mrf.mxu0
  %v274 = vadd.f32 0.0, %v273
  %v275 = vpop.f32.mrf.mxu0
  %276 = vmatprep.mubr.f32.mxu0 0.0
  %277 = vmatmul.mubr.f32.gmra.mxu0 %v153
  %v278 = vpop.f32.mrf.mxu0
  %v279 = vadd.f32 0.0, %v278
  %v280 = vpop.f32.mrf.mxu0
  %281 = vmatprep.mubr.f32.mxu0 0.0
  %282 = vmatmul.mubr.f32.gmra.mxu0 %v156
  %v283 = vpop.f32.mrf.mxu0
  %v284 = vadd.f32 0.0, %v283
  %v285 = vpop.f32.mrf.mxu0
  %286 = vmatprep.mubr.f32.mxu0 0.0
  %287 = vmatmul.mubr.f32.gmra.mxu0 %v159
  %v288 = vpop.f32.mrf.mxu0
  %v289 = vadd.f32 0.0, %v288
  %v290 = vpop.f32.mrf.mxu0
  %291 = vmatprep.mubr.f32.mxu0 0.0
  %292 = vmatmul.mubr.f32.gmra.mxu0 %v162
  %v293 = vpop.f32.mrf.mxu0
  %v294 = vadd.f32 0.0, %v293
  %v295 = vpop.f32.mrf.mxu0
  %296 = vmatprep.mubr.f32.mxu0 0.0
  %297 = vmatmul.mubr.f32.gmra.mxu0 %v165
  %v298 = vpop.f32.mrf.mxu0
  %v299 = vadd.f32 0.0, %v298
  %v300 = vpop.f32.mrf.mxu0
  %301 = vmatprep.mubr.f32.mxu0 0.0
  %302 = vmatmul.mubr.f32.gmra.mxu0 %v168
  %v303 = vpop.f32.mrf.mxu0
  %v304 = vadd.f32 0.0, %v303
  %v305 = vpop.f32.mrf.mxu0
  %306 = vmatprep.mubr.f32.mxu0 0.0
  %307 = vmatmul.mubr.f32.gmra.mxu0 %v171
  %v308 = vpop.f32.mrf.mxu0
  %v309 = vadd.f32 0.0, %v308
  %v310 = vpop.f32.mrf.mxu0
  %311 = vmatprep.mubr.f32.mxu0 0.0
  %312 = vmatmul.mubr.f32.gmra.mxu0 %v174
  %v313 = vpop.f32.mrf.mxu0
  %v314 = vadd.f32 0.0, %v313
  %v315 = vpop.f32.mrf.mxu0
  %316 = vmatprep.mubr.f32.mxu0 0.0
  %317 = vmatmul.mubr.f32.gmra.mxu0 %v177
  %v318 = vpop.f32.mrf.mxu0
  %v319 = vadd.f32 0.0, %v318
  %v320 = vpop.f32.mrf.mxu0
  %321 = vmatprep.mubr.f32.mxu0 0.0
  %322 = vmatmul.mubr.f32.gmra.mxu0 %v180
  %v323 = vpop.f32.mrf.mxu0
  %v324 = vadd.f32 0.0, %v323
  %v325 = vpop.f32.mrf.mxu0
  %326 = vdwg.mxu0
  %v327 = vmax.f32 %v249, 0.0
  %v328 = vmax.f32 %v254, 0.0
  %v329 = vmax.f32 %v259, 0.0
  %v330 = vmax.f32 %v264, 0.0
  %v331 = vmax.f32 %v269, 0.0
  %v332 = vmax.f32 %v274, 0.0
  %v333 = vmax.f32 %v279, 0.0
  %v334 = vmax.f32 %v284, 0.0
  %v335 = vmax.f32 %v289, 0.0
  %v336 = vmax.f32 %v294, 0.0
  %v337 = vmax.f32 %v299, 0.0
  %v338 = vmax.f32 %v304, 0.0
  %v339 = vmax.f32 %v309, 0.0
  %v340 = vmax.f32 %v314, 0.0
  %v341 = vmax.f32 %v319, 0.0
  %v342 = vmax.f32 %v324, 0.0
  %v343 = vld [vmem:[%s2] sm:$0x1]
  %v344 = vld [vmem:[%s3] sm:$0x1]
  %v345 = vsel %vm114, %v327, 0.0
  %v346 = vsel %vm114, %v328, 0.0
  %v347 = vadd.f32 %v345, %v346
  %v348 = vsel %vm114, %v329, 0.0
  %v349 = vadd.f32 %v347, %v348
  %v350 = vsel %vm114, %v330, 0.0
  %v351 = vadd.f32 %v349, %v350
  %v352 = vsel %vm114, %v331, 0.0
  %v353 = vadd.f32 %v351, %v352
  %v354 = vsel %vm114, %v332, 0.0
  %v355 = vadd.f32 %v353, %v354
  %v356 = vsel %vm114, %v333, 0.0
  %v357 = vadd.f32 %v355, %v356
  %v358 = vsel %vm114, %v334, 0.0
  %v359 = vadd.f32 %v357, %v358
  %v360 = vsel %vm114, %v335, 0.0
  %v361 = vadd.f32 %v359, %v360
  %v362 = vsel %vm114, %v336, 0.0
  %v363 = vadd.f32 %v361, %v362
  %v364 = vsel %vm114, %v337, 0.0
  %v365 = vadd.f32 %v363, %v364
  %v366 = vsel %vm114, %v338, 0.0
  %v367 = vadd.f32 %v365, %v366
  %v368 = vsel %vm114, %v339, 0.0
  %v369 = vadd.f32 %v367, %v368
  %v370 = vsel %vm114, %v340, 0.0
  %v371 = vadd.f32 %v369, %v370
  %v372 = vsel %vm114, %v341, 0.0
  %v373 = vadd.f32 %v371, %v372
  %v374 = vsel %vm114, %v342, 0.0
  %v375 = vadd.f32 %v373, %v374
  %v376 = vrot.slane %v375, 4
  %v377 = vadd.f32 %v375, %v376
  %v378 = vrot.slane %v377, 2
  %v379 = vadd.f32 %v377, %v378
  %v380 = vrot.slane %v379, 1
  %v381 = vadd.f32 %v379, %v380
  %v382 = vmul.f32 %v327, %v327
  %v383 = vmul.f32 %v328, %v328
  %v384 = vmul.f32 %v329, %v329
  %v385 = vmul.f32 %v330, %v330
  %v386 = vmul.f32 %v331, %v331
  %v387 = vmul.f32 %v332, %v332
  %v388 = vmul.f32 %v333, %v333
  %v389 = vmul.f32 %v334, %v334
  %v390 = vmul.f32 %v335, %v335
  %v391 = vmul.f32 %v336, %v336
  %v392 = vmul.f32 %v337, %v337
  %v393 = vmul.f32 %v338, %v338
  %v394 = vmul.f32 %v339, %v339
  %v395 = vmul.f32 %v340, %v340
  %v396 = vmul.f32 %v341, %v341
  %v397 = vmul.f32 %v342, %v342
  %v398 = vsel %vm114, %v382, 0.0
  %v399 = vsel %vm114, %v383, 0.0
  %v400 = vadd.f32 %v398, %v399
  %v401 = vsel %vm114, %v384, 0.0
  %v402 = vadd.f32 %v400, %v401
  %v403 = vsel %vm114, %v385, 0.0
  %v404 = vadd.f32 %v402, %v403
  %v405 = vsel %vm114, %v386, 0.0
  %v406 = vadd.f32 %v404, %v405
  %v407 = vsel %vm114, %v387, 0.0
  %v408 = vadd.f32 %v406, %v407
  %v409 = vsel %vm114, %v388, 0.0
  %v410 = vadd.f32 %v408, %v409
  %v411 = vsel %vm114, %v389, 0.0
  %v412 = vadd.f32 %v410, %v411
  %v413 = vsel %vm114, %v390, 0.0
  %v414 = vadd.f32 %v412, %v413
  %v415 = vsel %vm114, %v391, 0.0
  %v416 = vadd.f32 %v414, %v415
  %v417 = vsel %vm114, %v392, 0.0
  %v418 = vadd.f32 %v416, %v417
  %v419 = vsel %vm114, %v393, 0.0
  %v420 = vadd.f32 %v418, %v419
  %v421 = vsel %vm114, %v394, 0.0
  %v422 = vadd.f32 %v420, %v421
  %v423 = vsel %vm114, %v395, 0.0
  %v424 = vadd.f32 %v422, %v423
  %v425 = vsel %vm114, %v396, 0.0
  %v426 = vadd.f32 %v424, %v425
  %v427 = vsel %vm114, %v397, 0.0
  %v428 = vadd.f32 %v426, %v427
  %v429 = vrot.slane %v428, 4
  %v430 = vadd.f32 %v428, %v429
  %v431 = vrot.slane %v430, 2
  %v432 = vadd.f32 %v430, %v431
  %v433 = vrot.slane %v432, 1
  %v434 = vadd.f32 %v432, %v433
  %v435 = vmul.f32 %v381, 0.0078125
  %v436 = vmul.f32 %v434, 0.0078125
  %v437 = vmul.f32 %v435, %v435
  %v438 = vsub.f32 %v436, %v437
  %v439 = vmax.f32 %v438, 0.0
  %v440 = vadd.f32 %v439, 1e-05
  %v441 = vrsqrt.pop %v440
  %v442 = vmul.f32 %v343, %v441
  %v443 = vmul.f32 %v435, %v442
  %v444 = vsub.f32 %v344, %v443
  %v446 = vlaneseq
  %v447 = vshrl.u32 %v446, 7
  %v448 = vsub.s32 0, %v447
  %v449 = vrot.slane %v442, %v448
  %v451 = vmul.f32 %v327, %v449
  %v452 = vmul.f32 %v328, %v449
  %v453 = vmul.f32 %v329, %v449
  %v454 = vmul.f32 %v330, %v449
  %v455 = vmul.f32 %v331, %v449
  %v456 = vmul.f32 %v332, %v449
  %v457 = vmul.f32 %v333, %v449
  %v458 = vmul.f32 %v334, %v449
  %v459 = vmul.f32 %v335, %v449
  %v460 = vmul.f32 %v336, %v449
  %v461 = vmul.f32 %v337, %v449
  %v462 = vmul.f32 %v338, %v449
  %v463 = vmul.f32 %v339, %v449
  %v464 = vmul.f32 %v340, %v449
  %v465 = vmul.f32 %v341, %v449
  %v466 = vmul.f32 %v342, %v449
  %v468 = vlaneseq
  %v469 = vshrl.u32 %v468, 7
  %v470 = vsub.s32 0, %v469
  %v471 = vrot.slane %v444, %v470
  %v473 = vadd.f32 %v451, %v471
  %v474 = vadd.f32 %v452, %v471
  %v475 = vadd.f32 %v453, %v471
  %v476 = vadd.f32 %v454, %v471
  %v477 = vadd.f32 %v455, %v471
  %v478 = vadd.f32 %v456, %v471
  %v479 = vadd.f32 %v457, %v471
  %v480 = vadd.f32 %v458, %v471
  %v481 = vadd.f32 %v459, %v471
  %v482 = vadd.f32 %v460, %v471
  %v483 = vadd.f32 %v461, %v471
  %v484 = vadd.f32 %v462, %v471
  %v485 = vadd.f32 %v463, %v471
  %v486 = vadd.f32 %v464, %v471
  %v487 = vadd.f32 %v465, %v471
  %v488 = vadd.f32 %v466, %v471
  %489 = vst.msk [vmem:[%s4] sm:$0xff] %vm114, %v473
  %490 = vst.msk [vmem:[%s4 + $0x8] sm:$0xff] %vm114, %v474
  %491 = vst.msk [vmem:[%s4 + $0x10] sm:$0xff] %vm114, %v475
  %492 = vst.msk [vmem:[%s4 + $0x18] sm:$0xff] %vm114, %v476
  %493 = vst.msk [vmem:[%s4 + $0x20] sm:$0xff] %vm114, %v477
  %494 = vst.msk [vmem:[%s4 + $0x28] sm:$0xff] %vm114, %v478
  %495 = vst.msk [vmem:[%s4 + $0x30] sm:$0xff] %vm114, %v479
  %496 = vst.msk [vmem:[%s4 + $0x38] sm:$0xff] %vm114, %v480
  %497 = vst.msk [vmem:[%s4 + $0x40] sm:$0xff] %vm114, %v481
  %498 = vst.msk [vmem:[%s4 + $0x48] sm:$0xff] %vm114, %v482
  %499 = vst.msk [vmem:[%s4 + $0x50] sm:$0xff] %vm114, %v483
  %500 = vst.msk [vmem:[%s4 + $0x58] sm:$0xff] %vm114, %v484
  %501 = vst.msk [vmem:[%s4 + $0x60] sm:$0xff] %vm114, %v485
  %502 = vst.msk [vmem:[%s4 + $0x68] sm:$0xff] %vm114, %v486
  %503 = vst.msk [vmem:[%s4 + $0x70] sm:$0xff] %vm114, %v487
  %504 = vst.msk [vmem:[%s4 + $0x78] sm:$0xff] %vm114, %v488
  // Predicated region
  $region18: #{block_forward.3} parent=0 // pred_check
    _
  $region19: #{block_forward.3} parent=0 // pred_check_branch
    %506 = sbr.rel (0) target = $region21
  $region20: #{block_forward.3} parent=0 // pred_region
    _
  $region21: #{block_forward.3} parent=0 // pred_fallthru
    _
  // Predicated region
  $region22: #{block_forward.3} parent=0 // pred_check
    _
  $region23: #{block_forward.3} parent=0 // pred_check_branch
    %508 = sbr.rel (0) target = $region25
  $region24: #{block_forward.3} parent=0 // pred_region
    _
  $region25: #{block_forward.3} parent=0 // pred_fallthru
    _

// kernel: block_forward.2
$region0: #{block_forward.2}
  #allocation0 [shape = 'u32[]', space=smem, size = 0x4, offset = 0x4, fixed_abs, tag = 'smem constant byte address 0x4 - core index']
  #allocation1 [shape = 'u32[144,128]{1,0:T(1,128)}', space=vmem, size = 0x12000, scoped, tag = 'internal scratch']
  #allocation2 [shape = 'f32[2,18,18,4]{3,2,1,0:T(8,128)}', space=vmem, size = 0x6c000, scoped, tag = 'scratch operand']
  %s0 = inlined_call_operand.vmem [shape: f32[2,16,16,4], index: 0, kind: input, shape index: {}]
  %s1 = inlined_call_operand.vmem [shape: f32[36,4], index: 1, kind: input, shape index: {}]
  %s2 = inlined_call_operand.vmem [shape: f32[36,4], index: 2, kind: input, shape index: {}]
  %s3 = inlined_call_operand.vmem [shape: f32[1,4], index: 3, kind: input, shape index: {}]
  %s4 = inlined_call_operand.vmem [shape: f32[1,4], index: 4, kind: input, shape index: {}]
  %s5 = inlined_call_operand.vmem [shape: f32[1,4], index: 5, kind: input, shape index: {}]
  %s6 = inlined_call_operand.vmem [shape: f32[1,4], index: 6, kind: input, shape index: {}]
  %s7 = inlined_call_operand.vmem [shape: f32[2,16,16,4], index: 7, kind: output, shape index: {}]
  %s8 = sld [smem:[#allocation0]]
  $region38: #{block_forward.2} parent=0
    _
  %s10 = ssub.s32 1, %s8
  %s11 = scalar_select 0, %s10, %s8
  // Predicated region
  $region2: #{block_forward.2} parent=0 // pred_check
    _
  $region3: #{block_forward.2} parent=0 // pred_check_branch
    %13 = sbr.rel (0) target = $region5
  $region4: #{block_forward.2} parent=0 // pred_region
    _
  $region5: #{block_forward.2} parent=0 // pred_fallthru
    _
  // Predicated region
  $region6: #{block_forward.2} parent=0 // pred_check
    _
  $region7: #{block_forward.2} parent=0 // pred_check_branch
    %15 = sbr.rel (0) target = $region9
  $region8: #{block_forward.2} parent=0 // pred_region
    _
  $region9: #{block_forward.2} parent=0 // pred_fallthru
    _
  // Predicated region
  $region10: #{block_forward.2} parent=0 // pred_check
    _
  $region11: #{block_forward.2} parent=0 // pred_check_branch
    %17 = sbr.rel (0) target = $region13
  $region12: #{block_forward.2} parent=0 // pred_region
    _
  $region13: #{block_forward.2} parent=0 // pred_fallthru
    _
  // Predicated region
  $region14: #{block_forward.2} parent=0 // pred_check
    _
  $region15: #{block_forward.2} parent=0 // pred_check_branch
    %19 = sbr.rel (0) target = $region17
  $region16: #{block_forward.2} parent=0 // pred_region
    _
  $region17: #{block_forward.2} parent=0 // pred_fallthru
    _
  // Predicated region
  $region18: #{block_forward.2} parent=0 // pred_check
    _
  $region19: #{block_forward.2} parent=0 // pred_check_branch
    %21 = sbr.rel (0) target = $region21
  $region20: #{block_forward.2} parent=0 // pred_region
    _
  $region21: #{block_forward.2} parent=0 // pred_fallthru
    _
  // Predicated region
  $region22: #{block_forward.2} parent=0 // pred_check
    _
  $region23: #{block_forward.2} parent=0 // pred_check_branch
    %23 = sbr.rel (0) target = $region25
  $region24: #{block_forward.2} parent=0 // pred_region
    _
  $region25: #{block_forward.2} parent=0 // pred_fallthru
    _
  // Predicated region
  $region26: #{block_forward.2} parent=0 // pred_check
    _
  $region27: #{block_forward.2} parent=0 // pred_check_branch
    %25 = sbr.rel (0) target = $region29
  $region28: #{block_forward.2} parent=0 // pred_region
    _
  $region29: #{block_forward.2} parent=0 // pred_fallthru
    _
  %vm26 = vcmask 31744
  %27 = vst.msk [vmem:[#allocation2] sm:$0xff] %vm26, 0.0
  %28 = vst.msk [vmem:[#allocation2 + $0x8] sm:$0xff] %vm26, 0.0
  %vm29 = vcmask 25600
  %30 = vst.msk [vmem:[#allocation2 + $0x10] sm:$0x3] %vm29, 0.0
  %31 = vst.msk [vmem:[#allocation2 + $0x18] sm:$0xff] %vm26, 0.0
  %32 = vst.msk [vmem:[#allocation2 + $0x20] sm:$0xff] %vm26, 0.0
  %33 = vst.msk [vmem:[#allocation2 + $0x28] sm:$0x3] %vm29, 0.0
  %34 = vst.msk [vmem:[#allocation2 + $0x30] sm:$0xff] %vm26, 0.0
  %35 = vst.msk [vmem:[#allocation2 + $0x38] sm:$0xff] %vm26, 0.0
  %36 = vst.msk [vmem:[#allocation2 + $0x40] sm:$0x3] %vm29, 0.0
  %37 = vst.msk [vmem:[#allocation2 + $0x48] sm:$0xff] %vm26, 0.0
  %38 = vst.msk [vmem:[#allocation2 + $0x50] sm:$0xff] %vm26, 0.0
  %39 = vst.msk [vmem:[#allocation2 + $0x58] sm:$0x3] %vm29, 0.0
  %40 = vst.msk [vmem:[#allocation2 + $0x60] sm:$0xff] %vm26, 0.0
  %41 = vst.msk [vmem:[#allocation2 + $0x68] sm:$0xff] %vm26, 0.0
  %42 = vst.msk [vmem:[#allocation2 + $0x70] sm:$0x3] %vm29, 0.0
  %43 = vst.msk [vmem:[#allocation2 + $0x78] sm:$0xff] %vm26, 0.0
  %44 = vst.msk [vmem:[#allocation2 + $0x80] sm:$0xff] %vm26, 0.0
  %45 = vst.msk [vmem:[#allocation2 + $0x88] sm:$0x3] %vm29, 0.0
  %46 = vst.msk [vmem:[#allocation2 + $0x90] sm:$0xff] %vm26, 0.0
  %47 = vst.msk [vmem:[#allocation2 + $0x98] sm:$0xff] %vm26, 0.0
  %48 = vst.msk [vmem:[#allocation2 + $0xa0] sm:$0x3] %vm29, 0.0
  %49 = vst.msk [vmem:[#allocation2 + $0xa8] sm:$0xff] %vm26, 0.0
  %50 = vst.msk [vmem:[#allocation2 + $0xb0] sm:$0xff] %vm26, 0.0
  %51 = vst.msk [vmem:[#allocation2 + $0xb8] sm:$0x3] %vm29, 0.0
  %52 = vst.msk [vmem:[#allocation2 + $0xc0] sm:$0xff] %vm26, 0.0
  %53 = vst.msk [vmem:[#allocation2 + $0xc8] sm:$0xff] %vm26, 0.0
  %54 = vst.msk [vmem:[#allocation2 + $0xd0] sm:$0x3] %vm29, 0.0
  %55 = vst.msk [vmem:[#allocation2 + $0xd8] sm:$0xff] %vm26, 0.0
  %56 = vst.msk [vmem:[#allocation2 + $0xe0] sm:$0xff] %vm26, 0.0
  %57 = vst.msk [vmem:[#allocation2 + $0xe8] sm:$0x3] %vm29, 0.0
  %58 = vst.msk [vmem:[#allocation2 + $0xf0] sm:$0xff] %vm26, 0.0
  %59 = vst.msk [vmem:[#allocation2 + $0xf8] sm:$0xff] %vm26, 0.0
  %60 = vst.msk [vmem:[#allocation2 + $0x100] sm:$0x3] %vm29, 0.0
  %61 = vst.msk [vmem:[#allocation2 + $0x108] sm:$0xff] %vm26, 0.0
  %62 = vst.msk [vmem:[#allocation2 + $0x110] sm:$0xff] %vm26, 0.0
  %63 = vst.msk [vmem:[#allocation2 + $0x118] sm:$0x3] %vm29, 0.0
  %64 = vst.msk [vmem:[#allocation2 + $0x120] sm:$0xff] %vm26, 0.0
  %65 = vst.msk [vmem:[#allocation2 + $0x128] sm:$0xff] %vm26, 0.0
  %66 = vst.msk [vmem:[#allocation2 + $0x130] sm:$0x3] %vm29, 0.0
  %67 = vst.msk [vmem:[#allocation2 + $0x138] sm:$0xff] %vm26, 0.0
  %68 = vst.msk [vmem:[#allocation2 + $0x140] sm:$0xff] %vm26, 0.0
  %69 = vst.msk [vmem:[#allocation2 + $0x148] sm:$0x3] %vm29, 0.0
  %70 = vst.msk [vmem:[#allocation2 + $0x150] sm:$0xff] %vm26, 0.0
  %71 = vst.msk [vmem:[#allocation2 + $0x158] sm:$0xff] %vm26, 0.0
  %72 = vst.msk [vmem:[#allocation2 + $0x160] sm:$0x3] %vm29, 0.0
  %73 = vst.msk [vmem:[#allocation2 + $0x168] sm:$0xff] %vm26, 0.0
  %74 = vst.msk [vmem:[#allocation2 + $0x170] sm:$0xff] %vm26, 0.0
  %75 = vst.msk [vmem:[#allocation2 + $0x178] sm:$0x3] %vm29, 0.0
  %76 = vst.msk [vmem:[#allocation2 + $0x180] sm:$0xff] %vm26, 0.0
  %77 = vst.msk [vmem:[#allocation2 + $0x188] sm:$0xff] %vm26, 0.0
  %78 = vst.msk [vmem:[#allocation2 + $0x190] sm:$0x3] %vm29, 0.0
  %79 = vst.msk [vmem:[#allocation2 + $0x198] sm:$0xff] %vm26, 0.0
  %80 = vst.msk [vmem:[#allocation2 + $0x1a0] sm:$0xff] %vm26, 0.0
  %81 = vst.msk [vmem:[#allocation2 + $0x1a8] sm:$0x3] %vm29, 0.0
  %82 = vst.msk [vmem:[#allocation2 + $0x1b0] sm:$0xff] %vm26, 0.0
  %83 = vst.msk [vmem:[#allocation2 + $0x1b8] sm:$0xff] %vm26, 0.0
  %84 = vst.msk [vmem:[#allocation2 + $0x1c0] sm:$0x3] %vm29, 0.0
  %85 = vst.msk [vmem:[#allocation2 + $0x1c8] sm:$0xff] %vm26, 0.0
  %86 = vst.msk [vmem:[#allocation2 + $0x1d0] sm:$0xff] %vm26, 0.0
  %87 = vst.msk [vmem:[#allocation2 + $0x1d8] sm:$0x3] %vm29, 0.0
  %88 = vst.msk [vmem:[#allocation2 + $0x1e0] sm:$0xff] %vm26, 0.0
  %89 = vst.msk [vmem:[#allocation2 + $0x1e8] sm:$0xff] %vm26, 0.0
  %90 = vst.msk [vmem:[#allocation2 + $0x1f0] sm:$0x3] %vm29, 0.0
  %91 = vst.msk [vmem:[#allocation2 + $0x1f8] sm:$0xff] %vm26, 0.0
  %92 = vst.msk [vmem:[#allocation2 + $0x200] sm:$0xff] %vm26, 0.0
  %93 = vst.msk [vmem:[#allocation2 + $0x208] sm:$0x3] %vm29, 0.0
  %94 = vst.msk [vmem:[#allocation2 + $0x210] sm:$0xff] %vm26, 0.0
  %95 = vst.msk [vmem:[#allocation2 + $0x218] sm:$0xff] %vm26, 0.0
  %96 = vst.msk [vmem:[#allocation2 + $0x220] sm:$0x3] %vm29, 0.0
  %97 = vst.msk [vmem:[#allocation2 + $0x228] sm:$0xff] %vm26, 0.0
  %98 = vst.msk [vmem:[#allocation2 + $0x230] sm:$0xff] %vm26, 0.0
  %99 = vst.msk [vmem:[#allocation2 + $0x238] sm:$0x3] %vm29, 0.0
  %100 = vst.msk [vmem:[#allocation2 + $0x240] sm:$0xff] %vm26, 0.0
  %101 = vst.msk [vmem:[#allocation2 + $0x248] sm:$0xff] %vm26, 0.0
  %102 = vst.msk [vmem:[#allocation2 + $0x250] sm:$0x3] %vm29, 0.0
  %103 = vst.msk [vmem:[#allocation2 + $0x258] sm:$0xff] %vm26, 0.0
  %104 = vst.msk [vmem:[#allocation2 + $0x260] sm:$0xff] %vm26, 0.0
  %105 = vst.msk [vmem:[#allocation2 + $0x268] sm:$0x3] %vm29, 0.0
  %106 = vst.msk [vmem:[#allocation2 + $0x270] sm:$0xff] %vm26, 0.0
  %107 = vst.msk [vmem:[#allocation2 + $0x278] sm:$0xff] %vm26, 0.0
  %108 = vst.msk [vmem:[#allocation2 + $0x280] sm:$0x3] %vm29, 0.0
  %109 = vst.msk [vmem:[#allocation2 + $0x288] sm:$0xff] %vm26, 0.0
  %110 = vst.msk [vmem:[#allocation2 + $0x290] sm:$0xff] %vm26, 0.0
  %111 = vst.msk [vmem:[#allocation2 + $0x298] sm:$0x3] %vm29, 0.0
  %112 = vst.msk [vmem:[#allocation2 + $0x2a0] sm:$0xff] %vm26, 0.0
  %113 = vst.msk [vmem:[#allocation2 + $0x2a8] sm:$0xff] %vm26, 0.0
  %114 = vst.msk [vmem:[#allocation2 + $0x2b0] sm:$0x3] %vm29, 0.0
  %115 = vst.msk [vmem:[#allocation2 + $0x2b8] sm:$0xff] %vm26, 0.0
  %116 = vst.msk [vmem:[#allocation2 + $0x2c0] sm:$0xff] %vm26, 0.0
  %117 = vst.msk [vmem:[#allocation2 + $0x2c8] sm:$0x3] %vm29, 0.0
  %118 = vst.msk [vmem:[#allocation2 + $0x2d0] sm:$0xff] %vm26, 0.0
  %119 = vst.msk [vmem:[#allocation2 + $0x2d8] sm:$0xff] %vm26, 0.0
  %120 = vst.msk [vmem:[#allocation2 + $0x2e0] sm:$0x3] %vm29, 0.0
  %121 = vst.msk [vmem:[#allocation2 + $0x2e8] sm:$0xff] %vm26, 0.0
  %122 = vst.msk [vmem:[#allocation2 + $0x2f0] sm:$0xff] %vm26, 0.0
  %123 = vst.msk [vmem:[#allocation2 + $0x2f8] sm:$0x3] %vm29, 0.0
  %124 = vst.msk [vmem:[#allocation2 + $0x300] sm:$0xff] %vm26, 0.0
  %125 = vst.msk [vmem:[#allocation2 + $0x308] sm:$0xff] %vm26, 0.0
  %126 = vst.msk [vmem:[#allocation2 + $0x310] sm:$0x3] %vm29, 0.0
  %127 = vst.msk [vmem:[#allocation2 + $0x318] sm:$0xff] %vm26, 0.0
  %128 = vst.msk [vmem:[#allocation2 + $0x320] sm:$0xff] %vm26, 0.0
  %129 = vst.msk [vmem:[#allocation2 + $0x328] sm:$0x3] %vm29, 0.0
  %130 = vst.msk [vmem:[#allocation2 + $0x330] sm:$0xff] %vm26, 0.0
  %131 = vst.msk [vmem:[#allocation2 + $0x338] sm:$0xff] %vm26, 0.0
  %132 = vst.msk [vmem:[#allocation2 + $0x340] sm:$0x3] %vm29, 0.0
  %133 = vst.msk [vmem:[#allocation2 + $0x348] sm:$0xff] %vm26, 0.0
  %134 = vst.msk [vmem:[#allocation2 + $0x350] sm:$0xff] %vm26, 0.0
  %135 = vst.msk [vmem:[#allocation2 + $0x358] sm:$0x3] %vm29, 0.0
  %v136 = vld [vmem:[%s0] sm:$0xff]
  %v137 = vld [vmem:[%s0 + $0x8] sm:$0xff]
  %v138 = vld [vmem:[%s0 + $0x10] sm:$0xff]
  %v139 = vld [vmem:[%s0 + $0x18] sm:$0xff]
  %v140 = vld [vmem:[%s0 + $0x20] sm:$0xff]
  %v141 = vld [vmem:[%s0 + $0x28] sm:$0xff]
  %v142 = vld [vmem:[%s0 + $0x30] sm:$0xff]
  %v143 = vld [vmem:[%s0 + $0x38] sm:$0xff]
  %v144 = vld [vmem:[%s0 + $0x40] sm:$0xff]
  %v145 = vld [vmem:[%s0 + $0x48] sm:$0xff]
  %v146 = vld [vmem:[%s0 + $0x50] sm:$0xff]
  %v147 = vld [vmem:[%s0 + $0x58] sm:$0xff]
  %v148 = vld [vmem:[%s0 + $0x60] sm:$0xff]
  %v149 = vld [vmem:[%s0 + $0x68] sm:$0xff]
  %v150 = vld [vmem:[%s0 + $0x70] sm:$0xff]
  %v151 = vld [vmem:[%s0 + $0x78] sm:$0xff]
  %v152 = vld [vmem:[%s0 + $0x80] sm:$0xff]
  %v153 = vld [vmem:[%s0 + $0x88] sm:$0xff]
  %v154 = vld [vmem:[%s0 + $0x90] sm:$0xff]
  %v155 = vld [vmem:[%s0 + $0x98] sm:$0xff]
  %v156 = vld [vmem:[%s0 + $0xa0] sm:$0xff]
  %v157 = vld [vmem:[%s0 + $0xa8] sm:$0xff]
  %v158 = vld [vmem:[%s0 + $0xb0] sm:$0xff]
  %v159 = vld [vmem:[%s0 + $0xb8] sm:$0xff]
  %v160 = vld [vmem:[%s0 + $0xc0] sm:$0xff]
  %v161 = vld [vmem:[%s0 + $0xc8] sm:$0xff]
  %v162 = vld [vmem:[%s0 + $0xd0] sm:$0xff]
  %v163 = vld [vmem:[%s0 + $0xd8] sm:$0xff]
  %v164 = vld [vmem:[%s0 + $0xe0] sm:$0xff]
  %v165 = vld [vmem:[%s0 + $0xe8] sm:$0xff]
  %v166 = vld [vmem:[%s0 + $0xf0] sm:$0xff]
  %v167 = vld [vmem:[%s0 + $0xf8] sm:$0xff]
  %v168 = vld [vmem:[%s0 + $0x100] sm:$0xff]
  %v169 = vld [vmem:[%s0 + $0x108] sm:$0xff]
  %v170 = vld [vmem:[%s0 + $0x110] sm:$0xff]
  %v171 = vld [vmem:[%s0 + $0x118] sm:$0xff]
  %v172 = vld [vmem:[%s0 + $0x120] sm:$0xff]
  %v173 = vld [vmem:[%s0 + $0x128] sm:$0xff]
  %v174 = vld [vmem:[%s0 + $0x130] sm:$0xff]
  %v175 = vld [vmem:[%s0 + $0x138] sm:$0xff]
  %v176 = vld [vmem:[%s0 + $0x140] sm:$0xff]
  %v177 = vld [vmem:[%s0 + $0x148] sm:$0xff]
  %v178 = vld [vmem:[%s0 + $0x150] sm:$0xff]
  %v179 = vld [vmem:[%s0 + $0x158] sm:$0xff]
  %v180 = vld [vmem:[%s0 + $0x160] sm:$0xff]
  %v181 = vld [vmem:[%s0 + $0x168] sm:$0xff]
  %v182 = vld [vmem:[%s0 + $0x170] sm:$0xff]
  %v183 = vld [vmem:[%s0 + $0x178] sm:$0xff]
  %v184 = vld [vmem:[%s0 + $0x180] sm:$0xff]
  %v185 = vld [vmem:[%s0 + $0x188] sm:$0xff]
  %v186 = vld [vmem:[%s0 + $0x190] sm:$0xff]
  %v187 = vld [vmem:[%s0 + $0x198] sm:$0xff]
  %v188 = vld [vmem:[%s0 + $0x1a0] sm:$0xff]
  %v189 = vld [vmem:[%s0 + $0x1a8] sm:$0xff]
  %v190 = vld [vmem:[%s0 + $0x1b0] sm:$0xff]
  %v191 = vld [vmem:[%s0 + $0x1b8] sm:$0xff]
  %v192 = vld [vmem:[%s0 + $0x1c0] sm:$0xff]
  %v193 = vld [vmem:[%s0 + $0x1c8] sm:$0xff]
  %v194 = vld [vmem:[%s0 + $0x1d0] sm:$0xff]
  %v195 = vld [vmem:[%s0 + $0x1d8] sm:$0xff]
  %v196 = vld [vmem:[%s0 + $0x1e0] sm:$0xff]
  %v197 = vld [vmem:[%s0 + $0x1e8] sm:$0xff]
  %v198 = vld [vmem:[%s0 + $0x1f0] sm:$0xff]
  %v199 = vld [vmem:[%s0 + $0x1f8] sm:$0xff]
  %v200 = vld [vmem:[%s3] sm:$0x1]
  %v201 = vld [vmem:[%s4] sm:$0x1]
  %s202 = scalar_lea.vmem [#allocation2], 24
  %203 = vst.msk [vmem:[%s202 + $0x1] sm:$0xff] %vm26, %v136
  %204 = vst.msk [vmem:[%s202 + $0x9] sm:$0xff] %vm26, %v137
  %205 = vst.msk [vmem:[%s202 + $0x19] sm:$0xff] %vm26, %v138
  %206 = vst.msk [vmem:[%s202 + $0x21] sm:$0xff] %vm26, %v139
  %207 = vst.msk [vmem:[%s202 + $0x31] sm:$0xff] %vm26, %v140
  %208 = vst.msk [vmem:[%s202 + $0x39] sm:$0xff] %vm26, %v141
  %209 = vst.msk [vmem:[%s202 + $0x49] sm:$0xff] %vm26, %v142
  %210 = vst.msk [vmem:[%s202 + $0x51] sm:$0xff] %vm26, %v143
  %211 = vst.msk [vmem:[%s202 + $0x61] sm:$0xff] %vm26, %v144
  %212 = vst.msk [vmem:[%s202 + $0x69] sm:$0xff] %vm26, %v145
  %213 = vst.msk [vmem:[%s202 + $0x79] sm:$0xff] %vm26, %v146
  %214 = vst.msk [vmem:[%s202 + $0x81] sm:$0xff] %vm26, %v147
  %215 = vst.msk [vmem:[%s202 + $0x91] sm:$0xff] %vm26, %v148
  %216 = vst.msk [vmem:[%s202 + $0x99] sm:$0xff] %vm26, %v149
  %217 = vst.msk [vmem:[%s202 + $0xa9] sm:$0xff] %vm26, %v150
  %218 = vst.msk [vmem:[%s202 + $0xb1] sm:$0xff] %vm26, %v151
  %219 = vst.msk [vmem:[%s202 + $0xc1] sm:$0xff] %vm26, %v152
  %220 = vst.msk [vmem:[%s202 + $0xc9] sm:$0xff] %vm26, %v153
  %221 = vst.msk [vmem:[%s202 + $0xd9] sm:$0xff] %vm26, %v154
  %222 = vst.msk [vmem:[%s202 + $0xe1] sm:$0xff] %vm26, %v155
  %223 = vst.msk [vmem:[%s202 + $0xf1] sm:$0xff] %vm26, %v156
  %224 = vst.msk [vmem:[%s202 + $0xf9] sm:$0xff] %vm26, %v157
  %225 = vst.msk [vmem:[%s202 + $0x109] sm:$0xff] %vm26, %v158
  %226 = vst.msk [vmem:[%s202 + $0x111] sm:$0xff] %vm26, %v159
  %227 = vst.msk [vmem:[%s202 + $0x121] sm:$0xff] %vm26, %v160
  %228 = vst.msk [vmem:[%s202 + $0x129] sm:$0xff] %vm26, %v161
  %229 = vst.msk [vmem:[%s202 + $0x139] sm:$0xff] %vm26, %v162
  %230 = vst.msk [vmem:[%s202 + $0x141] sm:$0xff] %vm26, %v163
  %231 = vst.msk [vmem:[%s202 + $0x151] sm:$0xff] %vm26, %v164
  %232 = vst.msk [vmem:[%s202 + $0x159] sm:$0xff] %vm26, %v165
  %233 = vst.msk [vmem:[%s202 + $0x169] sm:$0xff] %vm26, %v166
  %234 = vst.msk [vmem:[%s202 + $0x171] sm:$0xff] %vm26, %v167
  %235 = vst.msk [vmem:[%s202 + $0x1b1] sm:$0xff] %vm26, %v168
  %236 = vst.msk [vmem:[%s202 + $0x1b9] sm:$0xff] %vm26, %v169
  %237 = vst.msk [vmem:[%s202 + $0x1c9] sm:$0xff] %vm26, %v170
  %238 = vst.msk [vmem:[%s202 + $0x1d1] sm:$0xff] %vm26, %v171
  %239 = vst.msk [vmem:[%s202 + $0x1e1] sm:$0xff] %vm26, %v172
  %240 = vst.msk [vmem:[%s202 + $0x1e9] sm:$0xff] %vm26, %v173
  %241 = vst.msk [vmem:[%s202 + $0x1f9] sm:$0xff] %vm26, %v174
  %242 = vst.msk [vmem:[%s202 + $0x201] sm:$0xff] %vm26, %v175
  %243 = vst.msk [vmem:[%s202 + $0x211] sm:$0xff] %vm26, %v176
  %244 = vst.msk [vmem:[%s202 + $0x219] sm:$0xff] %vm26, %v177
  %245 = vst.msk [vmem:[%s202 + $0x229] sm:$0xff] %vm26, %v178
  %246 = vst.msk [vmem:[%s202 + $0x231] sm:$0xff] %vm26, %v179
  %247 = vst.msk [vmem:[%s202 + $0x241] sm:$0xff] %vm26, %v180
  %248 = vst.msk [vmem:[%s202 + $0x249] sm:$0xff] %vm26, %v181
  %249 = vst.msk [vmem:[%s202 + $0x259] sm:$0xff] %vm26, %v182
  %250 = vst.msk [vmem:[%s202 + $0x261] sm:$0xff] %vm26, %v183
  %251 = vst.msk [vmem:[%s202 + $0x271] sm:$0xff] %vm26, %v184
  %252 = vst.msk [vmem:[%s202 + $0x279] sm:$0xff] %vm26, %v185
  %253 = vst.msk [vmem:[%s202 + $0x289] sm:$0xff] %vm26, %v186
  %254 = vst.msk [vmem:[%s202 + $0x291] sm:$0xff] %vm26, %v187
  %255 = vst.msk [vmem:[%s202 + $0x2a1] sm:$0xff] %vm26, %v188
  %256 = vst.msk [vmem:[%s202 + $0x2a9] sm:$0xff] %vm26, %v189
  %257 = vst.msk [vmem:[%s202 + $0x2b9] sm:$0xff] %vm26, %v190
  %258 = vst.msk [vmem:[%s202 + $0x2c1] sm:$0xff] %vm26, %v191
  %259 = vst.msk [vmem:[%s202 + $0x2d1] sm:$0xff] %vm26, %v192
  %260 = vst.msk [vmem:[%s202 + $0x2d9] sm:$0xff] %vm26, %v193
  %261 = vst.msk [vmem:[%s202 + $0x2e9] sm:$0xff] %vm26, %v194
  %262 = vst.msk [vmem:[%s202 + $0x2f1] sm:$0xff] %vm26, %v195
  %263 = vst.msk [vmem:[%s202 + $0x301] sm:$0xff] %vm26, %v196
  %264 = vst.msk [vmem:[%s202 + $0x309] sm:$0xff] %vm26, %v197
  %265 = vst.msk [vmem:[%s202 + $0x319] sm:$0xff] %vm26, %v198
  %266 = vst.msk [vmem:[%s202 + $0x321] sm:$0xff] %vm26, %v199
  %v267 = vld [vmem:[#allocation2] sm:$0xff]
  %v268 = vld [vmem:[#allocation2 + $0x8] sm:$0xff]
  %v269 = vld [vmem:[#allocation2 + $0x18] sm:$0xff]
  %v270 = vld [vmem:[#allocation2 + $0x20] sm:$0xff]
  %v271 = vld [vmem:[#allocation2 + $0x30] sm:$0xff]
  %v272 = vld [vmem:[#allocation2 + $0x38] sm:$0xff]
  %v273 = vld [vmem:[#allocation2 + $0x48] sm:$0xff]
  %v274 = vld [vmem:[#allocation2 + $0x50] sm:$0xff]
  %v275 = vld [vmem:[#allocation2 + $0x60] sm:$0xff]
  %v276 = vld [vmem:[#allocation2 + $0x68] sm:$0xff]
  %v277 = vld [vmem:[#allocation2 + $0x78] sm:$0xff]
  %v278 = vld [vmem:[#allocation2 + $0x80] sm:$0xff]
  %v279 = vld [vmem:[#allocation2 + $0x90] sm:$0xff]
  %v280 = vld [vmem:[#allocation2 + $0x98] sm:$0xff]
  %v281 = vld [vmem:[#allocation2 + $0xa8] sm:$0xff]
  %v282 = vld [vmem:[#allocation2 + $0xb0] sm:$0xff]
  %v283 = vld [vmem:[#allocation2 + $0xc0] sm:$0xff]
  %v284 = vld [vmem:[#allocation2 + $0xc8] sm:$0xff]
  %v285 = vld [vmem:[#allocation2 + $0xd8] sm:$0xff]
  %v286 = vld [vmem:[#allocation2 + $0xe0] sm:$0xff]
  %v287 = vld [vmem:[#allocation2 + $0xf0] sm:$0xff]
  %v288 = vld [vmem:[#allocation2 + $0xf8] sm:$0xff]
  %v289 = vld [vmem:[#allocation2 + $0x108] sm:$0xff]
  %v290 = vld [vmem:[#allocation2 + $0x110] sm:$0xff]
  %v291 = vld [vmem:[#allocation2 + $0x120] sm:$0xff]
  %v292 = vld [vmem:[#allocation2 + $0x128] sm:$0xff]
  %v293 = vld [vmem:[#allocation2 + $0x138] sm:$0xff]
  %v294 = vld [vmem:[#allocation2 + $0x140] sm:$0xff]
  %v295 = vld [vmem:[#allocation2 + $0x150] sm:$0xff]
  %v296 = vld [vmem:[#allocation2 + $0x158] sm:$0xff]
  %v297 = vld [vmem:[#allocation2 + $0x168] sm:$0xff]
  %v298 = vld [vmem:[#allocation2 + $0x170] sm:$0xff]
  %v299 = vld [vmem:[#allocation2 + $0x1b0] sm:$0xff]
  %v300 = vld [vmem:[#allocation2 + $0x1b8] sm:$0xff]
  %v301 = vld [vmem:[#allocation2 + $0x1c8] sm:$0xff]
  %v302 = vld [vmem:[#allocation2 + $0x1d0] sm:$0xff]
  %v303 = vld [vmem:[#allocation2 + $0x1e0] sm:$0xff]
  %v304 = vld [vmem:[#allocation2 + $0x1e8] sm:$0xff]
  %v305 = vld [vmem:[#allocation2 + $0x1f8] sm:$0xff]
  %v306 = vld [vmem:[#allocation2 + $0x200] sm:$0xff]
  %v307 = vld [vmem:[#allocation2 + $0x210] sm:$0xff]
  %v308 = vld [vmem:[#allocation2 + $0x218] sm:$0xff]
  %v309 = vld [vmem:[#allocation2 + $0x228] sm:$0xff]
  %v310 = vld [vmem:[#allocation2 + $0x230] sm:$0xff]
  %v311 = vld [vmem:[#allocation2 + $0x240] sm:$0xff]
  %v312 = vld [vmem:[#allocation2 + $0x248] sm:$0xff]
  %v313 = vld [vmem:[#allocation2 + $0x258] sm:$0xff]
  %v314 = vld [vmem:[#allocation2 + $0x260] sm:$0xff]
  %v315 = vld [vmem:[#allocation2 + $0x270] sm:$0xff]
  %v316 = vld [vmem:[#allocation2 + $0x278] sm:$0xff]
  %v317 = vld [vmem:[#allocation2 + $0x288] sm:$0xff]
  %v318 = vld [vmem:[#allocation2 + $0x290] sm:$0xff]
  %v319 = vld [vmem:[#allocation2 + $0x2a0] sm:$0xff]
  %v320 = vld [vmem:[#allocation2 + $0x2a8] sm:$0xff]
  %v321 = vld [vmem:[#allocation2 + $0x2b8] sm:$0xff]
  %v322 = vld [vmem:[#allocation2 + $0x2c0] sm:$0xff]
  %v323 = vld [vmem:[#allocation2 + $0x2d0] sm:$0xff]
  %v324 = vld [vmem:[#allocation2 + $0x2d8] sm:$0xff]
  %v325 = vld [vmem:[#allocation2 + $0x2e8] sm:$0xff]
  %v326 = vld [vmem:[#allocation2 + $0x2f0] sm:$0xff]
  %v327 = vld [vmem:[#allocation2 + $0x300] sm:$0xff]
  %v328 = vld [vmem:[#allocation2 + $0x308] sm:$0xff]
  %v329 = vld [vmem:[#allocation2 + $0x318] sm:$0xff]
  %v330 = vld [vmem:[#allocation2 + $0x320] sm:$0xff]
  %v331 = vld [vmem:[#allocation2 + $0x1] sm:$0xff]
  %v332 = vld [vmem:[#allocation2 + $0x9] sm:$0xff]
  %v333 = vld [vmem:[#allocation2 + $0x19] sm:$0xff]
  %v334 = vld [vmem:[#allocation2 + $0x21] sm:$0xff]
  %v335 = vld [vmem:[#allocation2 + $0x31] sm:$0xff]
  %v336 = vld [vmem:[#allocation2 + $0x39] sm:$0xff]
  %v337 = vld [vmem:[#allocation2 + $0x49] sm:$0xff]
  %v338 = vld [vmem:[#allocation2 + $0x51] sm:$0xff]
  %v339 = vld [vmem:[#allocation2 + $0x61] sm:$0xff]
  %v340 = vld [vmem:[#allocation2 + $0x69] sm:$0xff]
  %v341 = vld [vmem:[#allocation2 + $0x79] sm:$0xff]
  %v342 = vld [vmem:[#allocation2 + $0x81] sm:$0xff]
  %v343 = vld [vmem:[#allocation2 + $0x91] sm:$0xff]
  %v344 = vld [vmem:[#allocation2 + $0x99] sm:$0xff]
  %v345 = vld [vmem:[#allocation2 + $0xa9] sm:$0xff]
  %v346 = vld [vmem:[#allocation2 + $0xb1] sm:$0xff]
  %v347 = vld [vmem:[#allocation2 + $0xc1] sm:$0xff]
  %v348 = vld [vmem:[#allocation2 + $0xc9] sm:$0xff]
  %v349 = vld [vmem:[#allocation2 + $0xd9] sm:$0xff]
  %v350 = vld [vmem:[#allocation2 + $0xe1] sm:$0xff]
  %v351 = vld [vmem:[#allocation2 + $0xf1] sm:$0xff]
  %v352 = vld [vmem:[#allocation2 + $0xf9] sm:$0xff]
  %v353 = vld [vmem:[#allocation2 + $0x109] sm:$0xff]
  %v354 = vld [vmem:[#allocation2 + $0x111] sm:$0xff]
  %v355 = vld [vmem:[#allocation2 + $0x121] sm:$0xff]
  %v356 = vld [vmem:[#allocation2 + $0x129] sm:$0xff]
  %v357 = vld [vmem:[#allocation2 + $0x139] sm:$0xff]
  %v358 = vld [vmem:[#allocation2 + $0x141] sm:$0xff]
  %v359 = vld [vmem:[#allocation2 + $0x151] sm:$0xff]
  %v360 = vld [vmem:[#allocation2 + $0x159] sm:$0xff]
  %v361 = vld [vmem:[#allocation2 + $0x169] sm:$0xff]
  %v362 = vld [vmem:[#allocation2 + $0x171] sm:$0xff]
  %v363 = vld [vmem:[#allocation2 + $0x1b1] sm:$0xff]
  %v364 = vld [vmem:[#allocation2 + $0x1b9] sm:$0xff]
  %v365 = vld [vmem:[#allocation2 + $0x1c9] sm:$0xff]
  %v366 = vld [vmem:[#allocation2 + $0x1d1] sm:$0xff]
  %v367 = vld [vmem:[#allocation2 + $0x1e1] sm:$0xff]
  %v368 = vld [vmem:[#allocation2 + $0x1e9] sm:$0xff]
  %v369 = vld [vmem:[#allocation2 + $0x1f9] sm:$0xff]
  %v370 = vld [vmem:[#allocation2 + $0x201] sm:$0xff]
  %v371 = vld [vmem:[#allocation2 + $0x211] sm:$0xff]
  %v372 = vld [vmem:[#allocation2 + $0x219] sm:$0xff]
  %v373 = vld [vmem:[#allocation2 + $0x229] sm:$0xff]
  %v374 = vld [vmem:[#allocation2 + $0x231] sm:$0xff]
  %v375 = vld [vmem:[#allocation2 + $0x241] sm:$0xff]
  %v376 = vld [vmem:[#allocation2 + $0x249] sm:$0xff]
  %v377 = vld [vmem:[#allocation2 + $0x259] sm:$0xff]
  %v378 = vld [vmem:[#allocation2 + $0x261] sm:$0xff]
  %v379 = vld [vmem:[#allocation2 + $0x271] sm:$0xff]
  %v380 = vld [vmem:[#allocation2 + $0x279] sm:$0xff]
  %v381 = vld [vmem:[#allocation2 + $0x289] sm:$0xff]
  %v382 = vld [vmem:[#allocation2 + $0x291] sm:$0xff]
  %v383 = vld [vmem:[#allocation2 + $0x2a1] sm:$0xff]
  %v384 = vld [vmem:[#allocation2 + $0x2a9] sm:$0xff]
  %v385 = vld [vmem:[#allocation2 + $0x2b9] sm:$0xff]
  %v386 = vld [vmem:[#allocation2 + $0x2c1] sm:$0xff]
  %v387 = vld [vmem:[#allocation2 + $0x2d1] sm:$0xff]
  %v388 = vld [vmem:[#allocation2 + $0x2d9] sm:$0xff]
  %v389 = vld [vmem:[#allocation2 + $0x2e9] sm:$0xff]
  %v390 = vld [vmem:[#allocation2 + $0x2f1] sm:$0xff]
  %v391 = vld [vmem:[#allocation2 + $0x301] sm:$0xff]
  %v392 = vld [vmem:[#allocation2 + $0x309] sm:$0xff]
  %v393 = vld [vmem:[#allocation2 + $0x319] sm:$0xff]
  %v394 = vld [vmem:[#allocation2 + $0x321] sm:$0xff]
  %v395 = vld [vmem:[#allocation2 + $0x2] sm:$0xff]
  %v396 = vld [vmem:[#allocation2 + $0xa] sm:$0xff]
  %v397 = vld [vmem:[#allocation2 + $0x1a] sm:$0xff]
  %v398 = vld [vmem:[#allocation2 + $0x22] sm:$0xff]
  %v399 = vld [vmem:[#allocation2 + $0x32] sm:$0xff]
  %v400 = vld [vmem:[#allocation2 + $0x3a] sm:$0xff]
  %v401 = vld [vmem:[#allocation2 + $0x4a] sm:$0xff]
  %v402 = vld [vmem:[#allocation2 + $0x52] sm:$0xff]
  %v403 = vld [vmem:[#allocation2 + $0x62] sm:$0xff]
  %v404 = vld [vmem:[#allocation2 + $0x6a] sm:$0xff]
  %v405 = vld [vmem:[#allocation2 + $0x7a] sm:$0xff]
  %v406 = vld [vmem:[#allocation2 + $0x82] sm:$0xff]
  %v407 = vld [vmem:[#allocation2 + $0x92] sm:$0xff]
  %v408 = vld [vmem:[#allocation2 + $0x9a] sm:$0xff]
  %v409 = vld [vmem:[#allocation2 + $0xaa] sm:$0xff]
  %v410 = vld [vmem:[#allocation2 + $0xb2] sm:$0xff]
  %v411 = vld [vmem:[#allocation2 + $0xc2] sm:$0xff]
  %v412 = vld [vmem:[#allocation2 + $0xca] sm:$0xff]
  %v413 = vld [vmem:[#allocation2 + $0xda] sm:$0xff]
  %v414 = vld [vmem:[#allocation2 + $0xe2] sm:$0xff]
  %v415 = vld [vmem:[#allocation2 + $0xf2] sm:$0xff]
  %v416 = vld [vmem:[#allocation2 + $0xfa] sm:$0xff]
  %v417 = vld [vmem:[#allocation2 + $0x10a] sm:$0xff]
  %v418 = vld [vmem:[#allocation2 + $0x112] sm:$0xff]
  %v419 = vld [vmem:[#allocation2 + $0x122] sm:$0xff]
  %v420 = vld [vmem:[#allocation2 + $0x12a] sm:$0xff]
  %v421 = vld [vmem:[#allocation2 + $0x13a] sm:$0xff]
  %v422 = vld [vmem:[#allocation2 + $0x142] sm:$0xff]
  %v423 = vld [vmem:[#allocation2 + $0x152] sm:$0xff]
  %v424 = vld [vmem:[#allocation2 + $0x15a] sm:$0xff]
  %v425 = vld [vmem:[#allocation2 + $0x16a] sm:$0xff]
  %v426 = vld [vmem:[#allocation2 + $0x172] sm:$0xff]
  %v427 = vld [vmem:[#allocation2 + $0x1b2] sm:$0xff]
  %v428 = vld [vmem:[#allocation2 + $0x1ba] sm:$0xff]
  %v429 = vld [vmem:[#allocation2 + $0x1ca] sm:$0xff]
  %v430 = vld [vmem:[#allocation2 + $0x1d2] sm:$0xff]
  %v431 = vld [vmem:[#allocation2 + $0x1e2] sm:$0xff]
  %v432 = vld [vmem:[#allocation2 + $0x1ea] sm:$0xff]
  %v433 = vld [vmem:[#allocation2 + $0x1fa] sm:$0xff]
  %v434 = vld [vmem:[#allocation2 + $0x202] sm:$0xff]
  %v435 = vld [vmem:[#allocation2 + $0x212] sm:$0xff]
  %v436 = vld [vmem:[#allocation2 + $0x21a] sm:$0xff]
  %v437 = vld [vmem:[#allocation2 + $0x22a] sm:$0xff]
  %v438 = vld [vmem:[#allocation2 + $0x232] sm:$0xff]
  %v439 = vld [vmem:[#allocation2 + $0x242] sm:$0xff]
  %v440 = vld [vmem:[#allocation2 + $0x24a] sm:$0xff]
  %v441 = vld [vmem:[#allocation2 + $0x25a] sm:$0xff]
  %v442 = vld [vmem:[#allocation2 + $0x262] sm:$0xff]
  %v443 = vld [vmem:[#allocation2 + $0x272] sm:$0xff]
  %v444 = vld [vmem:[#allocation2 + $0x27a] sm:$0xff]
  %v445 = vld [vmem:[#allocation2 + $0x28a] sm:$0xff]
  %v446 = vld [vmem:[#allocation2 + $0x292] sm:$0xff]
  %v447 = vld [vmem:[#allocation2 + $0x2a2] sm:$0xff]
  %v448 = vld [vmem:[#allocation2 + $0x2aa] sm:$0xff]
  %v449 = vld [vmem:[#allocation2 + $0x2ba] sm:$0xff]
  %v450 = vld [vmem:[#allocation2 + $0x2c2] sm:$0xff]
  %v451 = vld [vmem:[#allocation2 + $0x2d2] sm:$0xff]
  %v452 = vld [vmem:[#allocation2 + $0x2da] sm:$0xff]
  %v453 = vld [vmem:[#allocation2 + $0x2ea] sm:$0xff]
  %v454 = vld [vmem:[#allocation2 + $0x2f2] sm:$0xff]
  %v455 = vld [vmem:[#allocation2 + $0x302] sm:$0xff]
  %v456 = vld [vmem:[#allocation2 + $0x30a] sm:$0xff]
  %v457 = vld [vmem:[#allocation2 + $0x31a] sm:$0xff]
  %v458 = vld [vmem:[#allocation2 + $0x322] sm:$0xff]
  %v459 = vld [vmem:[%s202] sm:$0xff]
  %v460 = vld [vmem:[%s202 + $0x8] sm:$0xff]
  %v461 = vld [vmem:[%s202 + $0x18] sm:$0xff]
  %v462 = vld [vmem:[%s202 + $0x20] sm:$0xff]
  %v463 = vld [vmem:[%s202 + $0x30] sm:$0xff]
  %v464 = vld [vmem:[%s202 + $0x38] sm:$0xff]
  %v465 = vld [vmem:[%s202 + $0x48] sm:$0xff]
  %v466 = vld [vmem:[%s202 + $0x50] sm:$0xff]
  %v467 = vld [vmem:[%s202 + $0x60] sm:$0xff]
  %v468 = vld [vmem:[%s202 + $0x68] sm:$0xff]
  %v469 = vld [vmem:[%s202 + $0x78] sm:$0xff]
  %v470 = vld [vmem:[%s202 + $0x80] sm:$0xff]
  %v471 = vld [vmem:[%s202 + $0x90] sm:$0xff]
  %v472 = vld [vmem:[%s202 + $0x98] sm:$0xff]
  %v473 = vld [vmem:[%s202 + $0xa8] sm:$0xff]
  %v474 = vld [vmem:[%s202 + $0xb0] sm:$0xff]
  %v475 = vld [vmem:[%s202 + $0xc0] sm:$0xff]
  %v476 = vld [vmem:[%s202 + $0xc8] sm:$0xff]
  %v477 = vld [vmem:[%s202 + $0xd8] sm:$0xff]
  %v478 = vld [vmem:[%s202 + $0xe0] sm:$0xff]
  %v479 = vld [vmem:[%s202 + $0xf0] sm:$0xff]
  %v480 = vld [vmem:[%s202 + $0xf8] sm:$0xff]
  %v481 = vld [vmem:[%s202 + $0x108] sm:$0xff]
  %v482 = vld [vmem:[%s202 + $0x110] sm:$0xff]
  %v483 = vld [vmem:[%s202 + $0x120] sm:$0xff]
  %v484 = vld [vmem:[%s202 + $0x128] sm:$0xff]
  %v485 = vld [vmem:[%s202 + $0x138] sm:$0xff]
  %v486 = vld [vmem:[%s202 + $0x140] sm:$0xff]
  %v487 = vld [vmem:[%s202 + $0x150] sm:$0xff]
  %v488 = vld [vmem:[%s202 + $0x158] sm:$0xff]
  %v489 = vld [vmem:[%s202 + $0x168] sm:$0xff]
  %v490 = vld [vmem:[%s202 + $0x170] sm:$0xff]
  %v491 = vld [vmem:[%s202 + $0x1b0] sm:$0xff]
  %v492 = vld [vmem:[%s202 + $0x1b8] sm:$0xff]
  %v493 = vld [vmem:[%s202 + $0x1c8] sm:$0xff]
  %v494 = vld [vmem:[%s202 + $0x1d0] sm:$0xff]
  %v495 = vld [vmem:[%s202 + $0x1e0] sm:$0xff]
  %v496 = vld [vmem:[%s202 + $0x1e8] sm:$0xff]
  %v497 = vld [vmem:[%s202 + $0x1f8] sm:$0xff]
  %v498 = vld [vmem:[%s202 + $0x200] sm:$0xff]
  %v499 = vld [vmem:[%s202 + $0x210] sm:$0xff]
  %v500 = vld [vmem:[%s202 + $0x218] sm:$0xff]
  %v501 = vld [vmem:[%s202 + $0x228] sm:$0xff]
  %v502 = vld [vmem:[%s202 + $0x230] sm:$0xff]
  %v503 = vld [vmem:[%s202 + $0x240] sm:$0xff]
  %v504 = vld [vmem:[%s202 + $0x248] sm:$0xff]
  %v505 = vld [vmem:[%s202 + $0x258] sm:$0xff]
  %v506 = vld [vmem:[%s202 + $0x260] sm:$0xff]
  %v507 = vld [vmem:[%s202 + $0x270] sm:$0xff]
  %v508 = vld [vmem:[%s202 + $0x278] sm:$0xff]
  %v509 = vld [vmem:[%s202 + $0x288] sm:$0xff]
  %v510 = vld [vmem:[%s202 + $0x290] sm:$0xff]
  %v511 = vld [vmem:[%s202 + $0x2a0] sm:$0xff]
  %v512 = vld [vmem:[%s202 + $0x2a8] sm:$0xff]
  %v513 = vld [vmem:[%s202 + $0x2b8] sm:$0xff]
  %v514 = vld [vmem:[%s202 + $0x2c0] sm:$0xff]
  %v515 = vld [vmem:[%s202 + $0x2d0] sm:$0xff]
  %v516 = vld [vmem:[%s202 + $0x2d8] sm:$0xff]
  %v517 = vld [vmem:[%s202 + $0x2e8] sm:$0xff]
  %v518 = vld [vmem:[%s202 + $0x2f0] sm:$0xff]
  %v519 = vld [vmem:[%s202 + $0x300] sm:$0xff]
  %v520 = vld [vmem:[%s202 + $0x308] sm:$0xff]
  %v521 = vld [vmem:[%s202 + $0x318] sm:$0xff]
  %v522 = vld [vmem:[%s202 + $0x320] sm:$0xff]
  %v523 = vld [vmem:[%s202 + $0x1] sm:$0xff]
  %v524 = vld [vmem:[%s202 + $0x9] sm:$0xff]
  %v525 = vld [vmem:[%s202 + $0x19] sm:$0xff]
  %v526 = vld [vmem:[%s202 + $0x21] sm:$0xff]
  %v527 = vld [vmem:[%s202 + $0x31] sm:$0xff]
  %v528 = vld [vmem:[%s202 + $0x39] sm:$0xff]
  %v529 = vld [vmem:[%s202 + $0x49] sm:$0xff]
  %v530 = vld [vmem:[%s202 + $0x51] sm:$0xff]
  %v531 = vld [vmem:[%s202 + $0x61] sm:$0xff]
  %v532 = vld [vmem:[%s202 + $0x69] sm:$0xff]
  %v533 = vld [vmem:[%s202 + $0x79] sm:$0xff]
  %v534 = vld [vmem:[%s202 + $0x81] sm:$0xff]
  %v535 = vld [vmem:[%s202 + $0x91] sm:$0xff]
  %v536 = vld [vmem:[%s202 + $0x99] sm:$0xff]
  %v537 = vld [vmem:[%s202 + $0xa9] sm:$0xff]
  %v538 = vld [vmem:[%s202 + $0xb1] sm:$0xff]
  %v539 = vld [vmem:[%s202 + $0xc1] sm:$0xff]
  %v540 = vld [vmem:[%s202 + $0xc9] sm:$0xff]
  %v541 = vld [vmem:[%s202 + $0xd9] sm:$0xff]
  %v542 = vld [vmem:[%s202 + $0xe1] sm:$0xff]
  %v543 = vld [vmem:[%s202 + $0xf1] sm:$0xff]
  %v544 = vld [vmem:[%s202 + $0xf9] sm:$0xff]
  %v545 = vld [vmem:[%s202 + $0x109] sm:$0xff]
  %v546 = vld [vmem:[%s202 + $0x111] sm:$0xff]
  %v547 = vld [vmem:[%s202 + $0x121] sm:$0xff]
  %v548 = vld [vmem:[%s202 + $0x129] sm:$0xff]
  %v549 = vld [vmem:[%s202 + $0x139] sm:$0xff]
  %v550 = vld [vmem:[%s202 + $0x141] sm:$0xff]
  %v551 = vld [vmem:[%s202 + $0x151] sm:$0xff]
  %v552 = vld [vmem:[%s202 + $0x159] sm:$0xff]
  %v553 = vld [vmem:[%s202 + $0x169] sm:$0xff]
  %v554 = vld [vmem:[%s202 + $0x171] sm:$0xff]
  %v555 = vld [vmem:[%s202 + $0x1b1] sm:$0xff]
  %v556 = vld [vmem:[%s202 + $0x1b9] sm:$0xff]
  %v557 = vld [vmem:[%s202 + $0x1c9] sm:$0xff]
  %v558 = vld [vmem:[%s202 + $0x1d1] sm:$0xff]
  %v559 = vld [vmem:[%s202 + $0x1e1] sm:$0xff]
  %v560 = vld [vmem:[%s202 + $0x1e9] sm:$0xff]
  %v561 = vld [vmem:[%s202 + $0x1f9] sm:$0xff]
  %v562 = vld [vmem:[%s202 + $0x201] sm:$0xff]
  %v563 = vld [vmem:[%s202 + $0x211] sm:$0xff]
  %v564 = vld [vmem:[%s202 + $0x219] sm:$0xff]
  %v565 = vld [vmem:[%s202 + $0x229] sm:$0xff]
  %v566 = vld [vmem:[%s202 + $0x231] sm:$0xff]
  %v567 = vld [vmem:[%s202 + $0x241] sm:$0xff]
  %v568 = vld [vmem:[%s202 + $0x249] sm:$0xff]
  %v569 = vld [vmem:[%s202 + $0x259] sm:$0xff]
  %v570 = vld [vmem:[%s202 + $0x261] sm:$0xff]
  %v571 = vld [vmem:[%s202 + $0x271] sm:$0xff]
  %v572 = vld [vmem:[%s202 + $0x279] sm:$0xff]
  %v573 = vld [vmem:[%s202 + $0x289] sm:$0xff]
  %v574 = vld [vmem:[%s202 + $0x291] sm:$0xff]
  %v575 = vld [vmem:[%s202 + $0x2a1] sm:$0xff]
  %v576 = vld [vmem:[%s202 + $0x2a9] sm:$0xff]
  %v577 = vld [vmem:[%s202 + $0x2b9] sm:$0xff]
  %v578 = vld [vmem:[%s202 + $0x2c1] sm:$0xff]
  %v579 = vld [vmem:[%s202 + $0x2d1] sm:$0xff]
  %v580 = vld [vmem:[%s202 + $0x2d9] sm:$0xff]
  %v581 = vld [vmem:[%s202 + $0x2e9] sm:$0xff]
  %v582 = vld [vmem:[%s202 + $0x2f1] sm:$0xff]
  %v583 = vld [vmem:[%s202 + $0x301] sm:$0xff]
  %v584 = vld [vmem:[%s202 + $0x309] sm:$0xff]
  %v585 = vld [vmem:[%s202 + $0x319] sm:$0xff]
  %v586 = vld [vmem:[%s202 + $0x321] sm:$0xff]
  %v587 = vld [vmem:[%s202 + $0x2] sm:$0xff]
  %v588 = vld [vmem:[%s202 + $0xa] sm:$0xff]
  %v589 = vld [vmem:[%s202 + $0x1a] sm:$0xff]
  %v590 = vld [vmem:[%s202 + $0x22] sm:$0xff]
  %v591 = vld [vmem:[%s202 + $0x32] sm:$0xff]
  %v592 = vld [vmem:[%s202 + $0x3a] sm:$0xff]
  %v593 = vld [vmem:[%s202 + $0x4a] sm:$0xff]
  %v594 = vld [vmem:[%s202 + $0x52] sm:$0xff]
  %v595 = vld [vmem:[%s202 + $0x62] sm:$0xff]
  %v596 = vld [vmem:[%s202 + $0x6a] sm:$0xff]
  %v597 = vld [vmem:[%s202 + $0x7a] sm:$0xff]
  %v598 = vld [vmem:[%s202 + $0x82] sm:$0xff]
  %v599 = vld [vmem:[%s202 + $0x92] sm:$0xff]
  %v600 = vld [vmem:[%s202 + $0x9a] sm:$0xff]
  %v601 = vld [vmem:[%s202 + $0xaa] sm:$0xff]
  %v602 = vld [vmem:[%s202 + $0xb2] sm:$0xff]
  %v603 = vld [vmem:[%s202 + $0xc2] sm:$0xff]
  %v604 = vld [vmem:[%s202 + $0xca] sm:$0xff]
  %v605 = vld [vmem:[%s202 + $0xda] sm:$0xff]
  %v606 = vld [vmem:[%s202 + $0xe2] sm:$0xff]
  %v607 = vld [vmem:[%s202 + $0xf2] sm:$0xff]
  %v608 = vld [vmem:[%s202 + $0xfa] sm:$0xff]
  %v609 = vld [vmem:[%s202 + $0x10a] sm:$0xff]
  %v610 = vld [vmem:[%s202 + $0x112] sm:$0xff]
  %v611 = vld [vmem:[%s202 + $0x122] sm:$0xff]
  %v612 = vld [vmem:[%s202 + $0x12a] sm:$0xff]
  %v613 = vld [vmem:[%s202 + $0x13a] sm:$0xff]
  %v614 = vld [vmem:[%s202 + $0x142] sm:$0xff]
  %v615 = vld [vmem:[%s202 + $0x152] sm:$0xff]
  %v616 = vld [vmem:[%s202 + $0x15a] sm:$0xff]
  %v617 = vld [vmem:[%s202 + $0x16a] sm:$0xff]
  %v618 = vld [vmem:[%s202 + $0x172] sm:$0xff]
  %v619 = vld [vmem:[%s202 + $0x1b2] sm:$0xff]
  %v620 = vld [vmem:[%s202 + $0x1ba] sm:$0xff]
  %v621 = vld [vmem:[%s202 + $0x1ca] sm:$0xff]
  %v622 = vld [vmem:[%s202 + $0x1d2] sm:$0xff]
  %v623 = vld [vmem:[%s202 + $0x1e2] sm:$0xff]
  %v624 = vld [vmem:[%s202 + $0x1ea] sm:$0xff]
  %v625 = vld [vmem:[%s202 + $0x1fa] sm:$0xff]
  %v626 = vld [vmem:[%s202 + $0x202] sm:$0xff]
  %v627 = vld [vmem:[%s202 + $0x212] sm:$0xff]
  %v628 = vld [vmem:[%s202 + $0x21a] sm:$0xff]
  %v629 = vld [vmem:[%s202 + $0x22a] sm:$0xff]
  %v630 = vld [vmem:[%s202 + $0x232] sm:$0xff]
  %v631 = vld [vmem:[%s202 + $0x242] sm:$0xff]
  %v632 = vld [vmem:[%s202 + $0x24a] sm:$0xff]
  %v633 = vld [vmem:[%s202 + $0x25a] sm:$0xff]
  %v634 = vld [vmem:[%s202 + $0x262] sm:$0xff]
  %v635 = vld [vmem:[%s202 + $0x272] sm:$0xff]
  %v636 = vld [vmem:[%s202 + $0x27a] sm:$0xff]
  %v637 = vld [vmem:[%s202 + $0x28a] sm:$0xff]
  %v638 = vld [vmem:[%s202 + $0x292] sm:$0xff]
  %v639 = vld [vmem:[%s202 + $0x2a2] sm:$0xff]
  %v640 = vld [vmem:[%s202 + $0x2aa] sm:$0xff]
  %v641 = vld [vmem:[%s202 + $0x2ba] sm:$0xff]
  %v642 = vld [vmem:[%s202 + $0x2c2] sm:$0xff]
  %v643 = vld [vmem:[%s202 + $0x2d2] sm:$0xff]
  %v644 = vld [vmem:[%s202 + $0x2da] sm:$0xff]
  %v645 = vld [vmem:[%s202 + $0x2ea] sm:$0xff]
  %v646 = vld [vmem:[%s202 + $0x2f2] sm:$0xff]
  %v647 = vld [vmem:[%s202 + $0x302] sm:$0xff]
  %v648 = vld [vmem:[%s202 + $0x30a] sm:$0xff]
  %v649 = vld [vmem:[%s202 + $0x31a] sm:$0xff]
  %v650 = vld [vmem:[%s202 + $0x322] sm:$0xff]
  %s651 = scalar_lea.vmem [#allocation2], 48
  %v652 = vld [vmem:[%s651] sm:$0xff]
  %v653 = vld [vmem:[%s651 + $0x8] sm:$0xff]
  %v654 = vld [vmem:[%s651 + $0x18] sm:$0xff]
  %v655 = vld [vmem:[%s651 + $0x20] sm:$0xff]
  %v656 = vld [vmem:[%s651 + $0x30] sm:$0xff]
  %v657 = vld [vmem:[%s651 + $0x38] sm:$0xff]
  %v658 = vld [vmem:[%s651 + $0x48] sm:$0xff]
  %v659 = vld [vmem:[%s651 + $0x50] sm:$0xff]
  %v660 = vld [vmem:[%s651 + $0x60] sm:$0xff]
  %v661 = vld [vmem:[%s651 + $0x68] sm:$0xff]
  %v662 = vld [vmem:[%s651 + $0x78] sm:$0xff]
  %v663 = vld [vmem:[%s651 + $0x80] sm:$0xff]
  %v664 = vld [vmem:[%s651 + $0x90] sm:$0xff]
  %v665 = vld [vmem:[%s651 + $0x98] sm:$0xff]
  %v666 = vld [vmem:[%s651 + $0xa8] sm:$0xff]
  %v667 = vld [vmem:[%s651 + $0xb0] sm:$0xff]
  %v668 = vld [vmem:[%s651 + $0xc0] sm:$0xff]
  %v669 = vld [vmem:[%s651 + $0xc8] sm:$0xff]
  %v670 = vld [vmem:[%s651 + $0xd8] sm:$0xff]
  %v671 = vld [vmem:[%s651 + $0xe0] sm:$0xff]
  %v672 = vld [vmem:[%s651 + $0xf0] sm:$0xff]
  %v673 = vld [vmem:[%s651 + $0xf8] sm:$0xff]
  %v674 = vld [vmem:[%s651 + $0x108] sm:$0xff]
  %v675 = vld [vmem:[%s651 + $0x110] sm:$0xff]
  %v676 = vld [vmem:[%s651 + $0x120] sm:$0xff]
  %v677 = vld [vmem:[%s651 + $0x128] sm:$0xff]
  %v678 = vld [vmem:[%s651 + $0x138] sm:$0xff]
  %v679 = vld [vmem:[%s651 + $0x140] sm:$0xff]
  %v680 = vld [vmem:[%s651 + $0x150] sm:$0xff]
  %v681 = vld [vmem:[%s651 + $0x158] sm:$0xff]
  %v682 = vld [vmem:[%s651 + $0x168] sm:$0xff]
  %v683 = vld [vmem:[%s651 + $0x170] sm:$0xff]
  %v684 = vld [vmem:[%s651 + $0x1b0] sm:$0xff]
  %v685 = vld [vmem:[%s651 + $0x1b8] sm:$0xff]
  %v686 = vld [vmem:[%s651 + $0x1c8] sm:$0xff]
  %v687 = vld [vmem:[%s651 + $0x1d0] sm:$0xff]
  %v688 = vld [vmem:[%s651 + $0x1e0] sm:$0xff]
  %v689 = vld [vmem:[%s651 + $0x1e8] sm:$0xff]
  %v690 = vld [vmem:[%s651 + $0x1f8] sm:$0xff]
  %v691 = vld [vmem:[%s651 + $0x200] sm:$0xff]
  %v692 = vld [vmem:[%s651 + $0x210] sm:$0xff]
  %v693 = vld [vmem:[%s651 + $0x218] sm:$0xff]
  %v694 = vld [vmem:[%s651 + $0x228] sm:$0xff]
  %v695 = vld [vmem:[%s651 + $0x230] sm:$0xff]
  %v696 = vld [vmem:[%s651 + $0x240] sm:$0xff]
  %v697 = vld [vmem:[%s651 + $0x248] sm:$0xff]
  %v698 = vld [vmem:[%s651 + $0x258] sm:$0xff]
  %v699 = vld [vmem:[%s651 + $0x260] sm:$0xff]
  %v700 = vld [vmem:[%s651 + $0x270] sm:$0xff]
  %v701 = vld [vmem:[%s651 + $0x278] sm:$0xff]
  %v702 = vld [vmem:[%s651 + $0x288] sm:$0xff]
  %v703 = vld [vmem:[%s651 + $0x290] sm:$0xff]
  %v704 = vld [vmem:[%s651 + $0x2a0] sm:$0xff]
  %v705 = vld [vmem:[%s651 + $0x2a8] sm:$0xff]
  %v706 = vld [vmem:[%s651 + $0x2b8] sm:$0xff]
  %v707 = vld [vmem:[%s651 + $0x2c0] sm:$0xff]
  %v708 = vld [vmem:[%s651 + $0x2d0] sm:$0xff]
  %v709 = vld [vmem:[%s651 + $0x2d8] sm:$0xff]
  %v710 = vld [vmem:[%s651 + $0x2e8] sm:$0xff]
  %v711 = vld [vmem:[%s651 + $0x2f0] sm:$0xff]
  %v712 = vld [vmem:[%s651 + $0x300] sm:$0xff]
  %v713 = vld [vmem:[%s651 + $0x308] sm:$0xff]
  %v714 = vld [vmem:[%s651 + $0x318] sm:$0xff]
  %v715 = vld [vmem:[%s651 + $0x320] sm:$0xff]
  %v716 = vld [vmem:[%s651 + $0x1] sm:$0xff]
  %v717 = vld [vmem:[%s651 + $0x9] sm:$0xff]
  %v718 = vld [vmem:[%s651 + $0x19] sm:$0xff]
  %v719 = vld [vmem:[%s651 + $0x21] sm:$0xff]
  %v720 = vld [vmem:[%s651 + $0x31] sm:$0xff]
  %v721 = vld [vmem:[%s651 + $0x39] sm:$0xff]
  %v722 = vld [vmem:[%s651 + $0x49] sm:$0xff]
  %v723 = vld [vmem:[%s651 + $0x51] sm:$0xff]
  %v724 = vld [vmem:[%s651 + $0x61] sm:$0xff]
  %v725 = vld [vmem:[%s651 + $0x69] sm:$0xff]
  %v726 = vld [vmem:[%s651 + $0x79] sm:$0xff]
  %v727 = vld [vmem:[%s651 + $0x81] sm:$0xff]
  %v728 = vld [vmem:[%s651 + $0x91] sm:$0xff]
  %v729 = vld [vmem:[%s651 + $0x99] sm:$0xff]
  %v730 = vld [vmem:[%s651 + $0xa9] sm:$0xff]
  %v731 = vld [vmem:[%s651 + $0xb1] sm:$0xff]
  %v732 = vld [vmem:[%s651 + $0xc1] sm:$0xff]
  %v733 = vld [vmem:[%s651 + $0xc9] sm:$0xff]
  %v734 = vld [vmem:[%s651 + $0xd9] sm:$0xff]
  %v735 = vld [vmem:[%s651 + $0xe1] sm:$0xff]
  %v736 = vld [vmem:[%s651 + $0xf1] sm:$0xff]
  %v737 = vld [vmem:[%s651 + $0xf9] sm:$0xff]
  %v738 = vld [vmem:[%s651 + $0x109] sm:$0xff]
  %v739 = vld [vmem:[%s651 + $0x111] sm:$0xff]
  %v740 = vld [vmem:[%s651 + $0x121] sm:$0xff]
  %v741 = vld [vmem:[%s651 + $0x129] sm:$0xff]
  %v742 = vld [vmem:[%s651 + $0x139] sm:$0xff]
  %v743 = vld [vmem:[%s651 + $0x141] sm:$0xff]
  %v744 = vld [vmem:[%s651 + $0x151] sm:$0xff]
  %v745 = vld [vmem:[%s651 + $0x159] sm:$0xff]
  %v746 = vld [vmem:[%s651 + $0x169] sm:$0xff]
  %v747 = vld [vmem:[%s651 + $0x171] sm:$0xff]
  %v748 = vld [vmem:[%s651 + $0x1b1] sm:$0xff]
  %v749 = vld [vmem:[%s651 + $0x1b9] sm:$0xff]
  %v750 = vld [vmem:[%s651 + $0x1c9] sm:$0xff]
  %v751 = vld [vmem:[%s651 + $0x1d1] sm:$0xff]
  %v752 = vld [vmem:[%s651 + $0x1e1] sm:$0xff]
  %v753 = vld [vmem:[%s651 + $0x1e9] sm:$0xff]
  %v754 = vld [vmem:[%s651 + $0x1f9] sm:$0xff]
  %v755 = vld [vmem:[%s651 + $0x201] sm:$0xff]
  %v756 = vld [vmem:[%s651 + $0x211] sm:$0xff]
  %v757 = vld [vmem:[%s651 + $0x219] sm:$0xff]
  %v758 = vld [vmem:[%s651 + $0x229] sm:$0xff]
  %v759 = vld [vmem:[%s651 + $0x231] sm:$0xff]
  %v760 = vld [vmem:[%s651 + $0x241] sm:$0xff]
  %v761 = vld [vmem:[%s651 + $0x249] sm:$0xff]
  %v762 = vld [vmem:[%s651 + $0x259] sm:$0xff]
  %v763 = vld [vmem:[%s651 + $0x261] sm:$0xff]
  %v764 = vld [vmem:[%s651 + $0x271] sm:$0xff]
  %v765 = vld [vmem:[%s651 + $0x279] sm:$0xff]
  %v766 = vld [vmem:[%s651 + $0x289] sm:$0xff]
  %v767 = vld [vmem:[%s651 + $0x291] sm:$0xff]
  %v768 = vld [vmem:[%s651 + $0x2a1] sm:$0xff]
  %v769 = vld [vmem:[%s651 + $0x2a9] sm:$0xff]
  %v770 = vld [vmem:[%s651 + $0x2b9] sm:$0xff]
  %v771 = vld [vmem:[%s651 + $0x2c1] sm:$0xff]
  %v772 = vld [vmem:[%s651 + $0x2d1] sm:$0xff]
  %v773 = vld [vmem:[%s651 + $0x2d9] sm:$0xff]
  %v774 = vld [vmem:[%s651 + $0x2e9] sm:$0xff]
  %v775 = vld [vmem:[%s651 + $0x2f1] sm:$0xff]
  %v776 = vld [vmem:[%s651 + $0x301] sm:$0xff]
  %v777 = vld [vmem:[%s651 + $0x309] sm:$0xff]
  %v778 = vld [vmem:[%s651 + $0x319] sm:$0xff]
  %v779 = vld [vmem:[%s651 + $0x321] sm:$0xff]
  %v780 = vld [vmem:[%s651 + $0x2] sm:$0xff]
  %v781 = vld [vmem:[%s651 + $0xa] sm:$0xff]
  %v782 = vld [vmem:[%s651 + $0x1a] sm:$0xff]
  %v783 = vld [vmem:[%s651 + $0x22] sm:$0xff]
  %v784 = vld [vmem:[%s651 + $0x32] sm:$0xff]
  %v785 = vld [vmem:[%s651 + $0x3a] sm:$0xff]
  %v786 = vld [vmem:[%s651 + $0x4a] sm:$0xff]
  %v787 = vld [vmem:[%s651 + $0x52] sm:$0xff]
  %v788 = vld [vmem:[%s651 + $0x62] sm:$0xff]
  %v789 = vld [vmem:[%s651 + $0x6a] sm:$0xff]
  %v790 = vld [vmem:[%s651 + $0x7a] sm:$0xff]
  %v791 = vld [vmem:[%s651 + $0x82] sm:$0xff]
  %v792 = vld [vmem:[%s651 + $0x92] sm:$0xff]
  %v793 = vld [vmem:[%s651 + $0x9a] sm:$0xff]
  %v794 = vld [vmem:[%s651 + $0xaa] sm:$0xff]
  %v795 = vld [vmem:[%s651 + $0xb2] sm:$0xff]
  %v796 = vld [vmem:[%s651 + $0xc2] sm:$0xff]
  %v797 = vld [vmem:[%s651 + $0xca] sm:$0xff]
  %v798 = vld [vmem:[%s651 + $0xda] sm:$0xff]
  %v799 = vld [vmem:[%s651 + $0xe2] sm:$0xff]
  %v800 = vld [vmem:[%s651 + $0xf2] sm:$0xff]
  %v801 = vld [vmem:[%s651 + $0xfa] sm:$0xff]
  %v802 = vld [vmem:[%s651 + $0x10a] sm:$0xff]
  %v803 = vld [vmem:[%s651 + $0x112] sm:$0xff]
  %v804 = vld [vmem:[%s651 + $0x122] sm:$0xff]
  %v805 = vld [vmem:[%s651 + $0x12a] sm:$0xff]
  %v806 = vld [vmem:[%s651 + $0x13a] sm:$0xff]
  %v807 = vld [vmem:[%s651 + $0x142] sm:$0xff]
  %v808 = vld [vmem:[%s651 + $0x152] sm:$0xff]
  %v809 = vld [vmem:[%s651 + $0x15a] sm:$0xff]
  %v810 = vld [vmem:[%s651 + $0x16a] sm:$0xff]
  %v811 = vld [vmem:[%s651 + $0x172] sm:$0xff]
  %v812 = vld [vmem:[%s651 + $0x1b2] sm:$0xff]
  %v813 = vld [vmem:[%s651 + $0x1ba] sm:$0xff]
  %v814 = vld [vmem:[%s651 + $0x1ca] sm:$0xff]
  %v815 = vld [vmem:[%s651 + $0x1d2] sm:$0xff]
  %v816 = vld [vmem:[%s651 + $0x1e2] sm:$0xff]
  %v817 = vld [vmem:[%s651 + $0x1ea] sm:$0xff]
  %v818 = vld [vmem:[%s651 + $0x1fa] sm:$0xff]
  %v819 = vld [vmem:[%s651 + $0x202] sm:$0xff]
  %v820 = vld [vmem:[%s651 + $0x212] sm:$0xff]
  %v821 = vld [vmem:[%s651 + $0x21a] sm:$0xff]
  %v822 = vld [vmem:[%s651 + $0x22a] sm:$0xff]
  %v823 = vld [vmem:[%s651 + $0x232] sm:$0xff]
  %v824 = vld [vmem:[%s651 + $0x242] sm:$0xff]
  %v825 = vld [vmem:[%s651 + $0x24a] sm:$0xff]
  %v826 = vld [vmem:[%s651 + $0x25a] sm:$0xff]
  %v827 = vld [vmem:[%s651 + $0x262] sm:$0xff]
  %v828 = vld [vmem:[%s651 + $0x272] sm:$0xff]
  %v829 = vld [vmem:[%s651 + $0x27a] sm:$0xff]
  %v830 = vld [vmem:[%s651 + $0x28a] sm:$0xff]
  %v831 = vld [vmem:[%s651 + $0x292] sm:$0xff]
  %v832 = vld [vmem:[%s651 + $0x2a2] sm:$0xff]
  %v833 = vld [vmem:[%s651 + $0x2aa] sm:$0xff]
  %v834 = vld [vmem:[%s651 + $0x2ba] sm:$0xff]
  %v835 = vld [vmem:[%s651 + $0x2c2] sm:$0xff]
  %v836 = vld [vmem:[%s651 + $0x2d2] sm:$0xff]
  %v837 = vld [vmem:[%s651 + $0x2da] sm:$0xff]
  %v838 = vld [vmem:[%s651 + $0x2ea] sm:$0xff]
  %v839 = vld [vmem:[%s651 + $0x2f2] sm:$0xff]
  %v840 = vld [vmem:[%s651 + $0x302] sm:$0xff]
  %v841 = vld [vmem:[%s651 + $0x30a] sm:$0xff]
  %v842 = vld [vmem:[%s651 + $0x31a] sm:$0xff]
  %v843 = vld [vmem:[%s651 + $0x322] sm:$0xff]
  %908 = vrot.lane.b32.xlu0 %v331, 4
  %v909 = vpop.permute.xlu0 %908
  %910 = vrot.lane.b32.xlu0 %v332, 4
  %v911 = vpop.permute.xlu0 %910
  %912 = vrot.lane.b32.xlu0 %v333, 4
  %v913 = vpop.permute.xlu0 %912
  %914 = vrot.lane.b32.xlu0 %v334, 4
  %v915 = vpop.permute.xlu0 %914
  %916 = vrot.lane.b32.xlu0 %v335, 4
  %v917 = vpop.permute.xlu0 %916
  %918 = vrot.lane.b32.xlu0 %v336, 4
  %v919 = vpop.permute.xlu0 %918
  %920 = vrot.lane.b32.xlu0 %v337, 4
  %v921 = vpop.permute.xlu0 %920
  %922 = vrot.lane.b32.xlu0 %v338, 4
  %v923 = vpop.permute.xlu0 %922
  %924 = vrot.lane.b32.xlu0 %v339, 4
  %v925 = vpop.permute.xlu0 %924
  %926 = vrot.lane.b32.xlu0 %v340, 4
  %v927 = vpop.permute.xlu0 %926
  %928 = vrot.lane.b32.xlu0 %v341, 4
  %v929 = vpop.permute.xlu0 %928
  %930 = vrot.lane.b32.xlu0 %v342, 4
  %v931 = vpop.permute.xlu0 %930
  %932 = vrot.lane.b32.xlu0 %v343, 4
  %v933 = vpop.permute.xlu0 %932
  %934 = vrot.lane.b32.xlu0 %v344, 4
  %v935 = vpop.permute.xlu0 %934
  %936 = vrot.lane.b32.xlu0 %v345, 4
  %v937 = vpop.permute.xlu0 %936
  %938 = vrot.lane.b32.xlu0 %v346, 4
  %v939 = vpop.permute.xlu0 %938
  %940 = vrot.lane.b32.xlu0 %v347, 4
  %v941 = vpop.permute.xlu0 %940
  %942 = vrot.lane.b32.xlu0 %v348, 4
  %v943 = vpop.permute.xlu0 %942
  %944 = vrot.lane.b32.xlu0 %v349, 4
  %v945 = vpop.permute.xlu0 %944
  %946 = vrot.lane.b32.xlu0 %v350, 4
  %v947 = vpop.permute.xlu0 %946
  %948 = vrot.lane.b32.xlu0 %v351, 4
  %v949 = vpop.permute.xlu0 %948
  %950 = vrot.lane.b32.xlu0 %v352, 4
  %v951 = vpop.permute.xlu0 %950
  %952 = vrot.lane.b32.xlu0 %v353, 4
  %v953 = vpop.permute.xlu0 %952
  %954 = vrot.lane.b32.xlu0 %v354, 4
  %v955 = vpop.permute.xlu0 %954
  %956 = vrot.lane.b32.xlu0 %v355, 4
  %v957 = vpop.permute.xlu0 %956
  %958 = vrot.lane.b32.xlu0 %v356, 4
  %v959 = vpop.permute.xlu0 %958
  %960 = vrot.lane.b32.xlu0 %v357, 4
  %v961 = vpop.permute.xlu0 %960
  %962 = vrot.lane.b32.xlu0 %v358, 4
  %v963 = vpop.permute.xlu0 %962
  %964 = vrot.lane.b32.xlu0 %v359, 4
  %v965 = vpop.permute.xlu0 %964
  %966 = vrot.lane.b32.xlu0 %v360, 4
  %v967 = vpop.permute.xlu0 %966
  %968 = vrot.lane.b32.xlu0 %v361, 4
  %v969 = vpop.permute.xlu0 %968
  %970 = vrot.lane.b32.xlu0 %v362, 4
  %v971 = vpop.permute.xlu0 %970
  %972 = vrot.lane.b32.xlu0 %v363, 4
  %v973 = vpop.permute.xlu0 %972
  %974 = vrot.lane.b32.xlu0 %v364, 4
  %v975 = vpop.permute.xlu0 %974
  %976 = vrot.lane.b32.xlu0 %v365, 4
  %v977 = vpop.permute.xlu0 %976
  %978 = vrot.lane.b32.xlu0 %v366, 4
  %v979 = vpop.permute.xlu0 %978
  %980 = vrot.lane.b32.xlu0 %v367, 4
  %v981 = vpop.permute.xlu0 %980
  %982 = vrot.lane.b32.xlu0 %v368, 4
  %v983 = vpop.permute.xlu0 %982
  %984 = vrot.lane.b32.xlu0 %v369, 4
  %v985 = vpop.permute.xlu0 %984
  %986 = vrot.lane.b32.xlu0 %v370, 4
  %v987 = vpop.permute.xlu0 %986
  %988 = vrot.lane.b32.xlu0 %v371, 4
  %v989 = vpop.permute.xlu0 %988
  %990 = vrot.lane.b32.xlu0 %v372, 4
  %v991 = vpop.permute.xlu0 %990
  %992 = vrot.lane.b32.xlu0 %v373, 4
  %v993 = vpop.permute.xlu0 %992
  %994 = vrot.lane.b32.xlu0 %v374, 4
  %v995 = vpop.permute.xlu0 %994
  %996 = vrot.lane.b32.xlu0 %v375, 4
  %v997 = vpop.permute.xlu0 %996
  %998 = vrot.lane.b32.xlu0 %v376, 4
  %v999 = vpop.permute.xlu0 %998
  %1000 = vrot.lane.b32.xlu0 %v377, 4
  %v1001 = vpop.permute.xlu0 %1000
  %1002 = vrot.lane.b32.xlu0 %v378, 4
  %v1003 = vpop.permute.xlu0 %1002
  %1004 = vrot.lane.b32.xlu0 %v379, 4
  %v1005 = vpop.permute.xlu0 %1004
  %1006 = vrot.lane.b32.xlu0 %v380, 4
  %v1007 = vpop.permute.xlu0 %1006
  %1008 = vrot.lane.b32.xlu0 %v381, 4
  %v1009 = vpop.permute.xlu0 %1008
  %1010 = vrot.lane.b32.xlu0 %v382, 4
  %v1011 = vpop.permute.xlu0 %1010
  %1012 = vrot.lane.b32.xlu0 %v383, 4
  %v1013 = vpop.permute.xlu0 %1012
  %1014 = vrot.lane.b32.xlu0 %v384, 4
  %v1015 = vpop.permute.xlu0 %1014
  %1016 = vrot.lane.b32.xlu0 %v385, 4
  %v1017 = vpop.permute.xlu0 %1016
  %1018 = vrot.lane.b32.xlu0 %v386, 4
  %v1019 = vpop.permute.xlu0 %1018
  %1020 = vrot.lane.b32.xlu0 %v387, 4
  %v1021 = vpop.permute.xlu0 %1020
  %1022 = vrot.lane.b32.xlu0 %v388, 4
  %v1023 = vpop.permute.xlu0 %1022
  %1024 = vrot.lane.b32.xlu0 %v389, 4
  %v1025 = vpop.permute.xlu0 %1024
  %1026 = vrot.lane.b32.xlu0 %v390, 4
  %v1027 = vpop.permute.xlu0 %1026
  %1028 = vrot.lane.b32.xlu0 %v391, 4
  %v1029 = vpop.permute.xlu0 %1028
  %1030 = vrot.lane.b32.xlu0 %v392, 4
  %v1031 = vpop.permute.xlu0 %1030
  %1032 = vrot.lane.b32.xlu0 %v393, 4
  %v1033 = vpop.permute.xlu0 %1032
  %1034 = vrot.lane.b32.xlu0 %v394, 4
  %v1035 = vpop.permute.xlu0 %1034
  %1164 = vrot.lane.b32.xlu0 %v395, 8
  %v1165 = vpop.permute.xlu0 %1164
  %1166 = vrot.lane.b32.xlu0 %v396, 8
  %v1167 = vpop.permute.xlu0 %1166
  %1168 = vrot.lane.b32.xlu0 %v397, 8
  %v1169 = vpop.permute.xlu0 %1168
  %1170 = vrot.lane.b32.xlu0 %v398, 8
  %v1171 = vpop.permute.xlu0 %1170
  %1172 = vrot.lane.b32.xlu0 %v399, 8
  %v1173 = vpop.permute.xlu0 %1172
  %1174 = vrot.lane.b32.xlu0 %v400, 8
  %v1175 = vpop.permute.xlu0 %1174
  %1176 = vrot.lane.b32.xlu0 %v401, 8
  %v1177 = vpop.permute.xlu0 %1176
  %1178 = vrot.lane.b32.xlu0 %v402, 8
  %v1179 = vpop.permute.xlu0 %1178
  %1180 = vrot.lane.b32.xlu0 %v403, 8
  %v1181 = vpop.permute.xlu0 %1180
  %1182 = vrot.lane.b32.xlu0 %v404, 8
  %v1183 = vpop.permute.xlu0 %1182
  %1184 = vrot.lane.b32.xlu0 %v405, 8
  %v1185 = vpop.permute.xlu0 %1184
  %1186 = vrot.lane.b32.xlu0 %v406, 8
  %v1187 = vpop.permute.xlu0 %1186
  %1188 = vrot.lane.b32.xlu0 %v407, 8
  %v1189 = vpop.permute.xlu0 %1188
  %1190 = vrot.lane.b32.xlu0 %v408, 8
  %v1191 = vpop.permute.xlu0 %1190
  %1192 = vrot.lane.b32.xlu0 %v409, 8
  %v1193 = vpop.permute.xlu0 %1192
  %1194 = vrot.lane.b32.xlu0 %v410, 8
  %v1195 = vpop.permute.xlu0 %1194
  %1196 = vrot.lane.b32.xlu0 %v411, 8
  %v1197 = vpop.permute.xlu0 %1196
  %1198 = vrot.lane.b32.xlu0 %v412, 8
  %v1199 = vpop.permute.xlu0 %1198
  %1200 = vrot.lane.b32.xlu0 %v413, 8
  %v1201 = vpop.permute.xlu0 %1200
  %1202 = vrot.lane.b32.xlu0 %v414, 8
  %v1203 = vpop.permute.xlu0 %1202
  %1204 = vrot.lane.b32.xlu0 %v415, 8
  %v1205 = vpop.permute.xlu0 %1204
  %1206 = vrot.lane.b32.xlu0 %v416, 8
  %v1207 = vpop.permute.xlu0 %1206
  %1208 = vrot.lane.b32.xlu0 %v417, 8
  %v1209 = vpop.permute.xlu0 %1208
  %1210 = vrot.lane.b32.xlu0 %v418, 8
  %v1211 = vpop.permute.xlu0 %1210
  %1212 = vrot.lane.b32.xlu0 %v419, 8
  %v1213 = vpop.permute.xlu0 %1212
  %1214 = vrot.lane.b32.xlu0 %v420, 8
  %v1215 = vpop.permute.xlu0 %1214
  %1216 = vrot.lane.b32.xlu0 %v421, 8
  %v1217 = vpop.permute.xlu0 %1216
  %1218 = vrot.lane.b32.xlu0 %v422, 8
  %v1219 = vpop.permute.xlu0 %1218
  %1220 = vrot.lane.b32.xlu0 %v423, 8
  %v1221 = vpop.permute.xlu0 %1220
  %1222 = vrot.lane.b32.xlu0 %v424, 8
  %v1223 = vpop.permute.xlu0 %1222
  %1224 = vrot.lane.b32.xlu0 %v425, 8
  %v1225 = vpop.permute.xlu0 %1224
  %1226 = vrot.lane.b32.xlu0 %v426, 8
  %v1227 = vpop.permute.xlu0 %1226
  %1228 = vrot.lane.b32.xlu0 %v427, 8
  %v1229 = vpop.permute.xlu0 %1228
  %1230 = vrot.lane.b32.xlu0 %v428, 8
  %v1231 = vpop.permute.xlu0 %1230
  %1232 = vrot.lane.b32.xlu0 %v429, 8
  %v1233 = vpop.permute.xlu0 %1232
  %1234 = vrot.lane.b32.xlu0 %v430, 8
  %v1235 = vpop.permute.xlu0 %1234
  %1236 = vrot.lane.b32.xlu0 %v431, 8
  %v1237 = vpop.permute.xlu0 %1236
  %1238 = vrot.lane.b32.xlu0 %v432, 8
  %v1239 = vpop.permute.xlu0 %1238
  %1240 = vrot.lane.b32.xlu0 %v433, 8
  %v1241 = vpop.permute.xlu0 %1240
  %1242 = vrot.lane.b32.xlu0 %v434, 8
  %v1243 = vpop.permute.xlu0 %1242
  %1244 = vrot.lane.b32.xlu0 %v435, 8
  %v1245 = vpop.permute.xlu0 %1244
  %1246 = vrot.lane.b32.xlu0 %v436, 8
  %v1247 = vpop.permute.xlu0 %1246
  %1248 = vrot.lane.b32.xlu0 %v437, 8
  %v1249 = vpop.permute.xlu0 %1248
  %1250 = vrot.lane.b32.xlu0 %v438, 8
  %v1251 = vpop.permute.xlu0 %1250
  %1252 = vrot.lane.b32.xlu0 %v439, 8
  %v1253 = vpop.permute.xlu0 %1252
  %1254 = vrot.lane.b32.xlu0 %v440, 8
  %v1255 = vpop.permute.xlu0 %1254
  %1256 = vrot.lane.b32.xlu0 %v441, 8
  %v1257 = vpop.permute.xlu0 %1256
  %1258 = vrot.lane.b32.xlu0 %v442, 8
  %v1259 = vpop.permute.xlu0 %1258
  %1260 = vrot.lane.b32.xlu0 %v443, 8
  %v1261 = vpop.permute.xlu0 %1260
  %1262 = vrot.lane.b32.xlu0 %v444, 8
  %v1263 = vpop.permute.xlu0 %1262
  %1264 = vrot.lane.b32.xlu0 %v445, 8
  %v1265 = vpop.permute.xlu0 %1264
  %1266 = vrot.lane.b32.xlu0 %v446, 8
  %v1267 = vpop.permute.xlu0 %1266
  %1268 = vrot.lane.b32.xlu0 %v447, 8
  %v1269 = vpop.permute.xlu0 %1268
  %1270 = vrot.lane.b32.xlu0 %v448, 8
  %v1271 = vpop.permute.xlu0 %1270
  %1272 = vrot.lane.b32.xlu0 %v449, 8
  %v1273 = vpop.permute.xlu0 %1272
  %1274 = vrot.lane.b32.xlu0 %v450, 8
  %v1275 = vpop.permute.xlu0 %1274
  %1276 = vrot.lane.b32.xlu0 %v451, 8
  %v1277 = vpop.permute.xlu0 %1276
  %1278 = vrot.lane.b32.xlu0 %v452, 8
  %v1279 = vpop.permute.xlu0 %1278
  %1280 = vrot.lane.b32.xlu0 %v453, 8
  %v1281 = vpop.permute.xlu0 %1280
  %1282 = vrot.lane.b32.xlu0 %v454, 8
  %v1283 = vpop.permute.xlu0 %1282
  %1284 = vrot.lane.b32.xlu0 %v455, 8
  %v1285 = vpop.permute.xlu0 %1284
  %1286 = vrot.lane.b32.xlu0 %v456, 8
  %v1287 = vpop.permute.xlu0 %1286
  %1288 = vrot.lane.b32.xlu0 %v457, 8
  %v1289 = vpop.permute.xlu0 %1288
  %1290 = vrot.lane.b32.xlu0 %v458, 8
  %v1291 = vpop.permute.xlu0 %1290
  %1420 = vrot.lane.b32.xlu0 %v459, 12
  %v1421 = vpop.permute.xlu0 %1420
  %1422 = vrot.lane.b32.xlu0 %v460, 12
  %v1423 = vpop.permute.xlu0 %1422
  %1424 = vrot.lane.b32.xlu0 %v461, 12
  %v1425 = vpop.permute.xlu0 %1424
  %1426 = vrot.lane.b32.xlu0 %v462, 12
  %v1427 = vpop.permute.xlu0 %1426
  %1428 = vrot.lane.b32.xlu0 %v463, 12
  %v1429 = vpop.permute.xlu0 %1428
  %1430 = vrot.lane.b32.xlu0 %v464, 12
  %v1431 = vpop.permute.xlu0 %1430
  %1432 = vrot.lane.b32.xlu0 %v465, 12
  %v1433 = vpop.permute.xlu0 %1432
  %1434 = vrot.lane.b32.xlu0 %v466, 12
  %v1435 = vpop.permute.xlu0 %1434
  %1436 = vrot.lane.b32.xlu0 %v467, 12
  %v1437 = vpop.permute.xlu0 %1436
  %1438 = vrot.lane.b32.xlu0 %v468, 12
  %v1439 = vpop.permute.xlu0 %1438
  %1440 = vrot.lane.b32.xlu0 %v469, 12
  %v1441 = vpop.permute.xlu0 %1440
  %1442 = vrot.lane.b32.xlu0 %v470, 12
  %v1443 = vpop.permute.xlu0 %1442
  %1444 = vrot.lane.b32.xlu0 %v471, 12
  %v1445 = vpop.permute.xlu0 %1444
  %1446 = vrot.lane.b32.xlu0 %v472, 12
  %v1447 = vpop.permute.xlu0 %1446
  %1448 = vrot.lane.b32.xlu0 %v473, 12
  %v1449 = vpop.permute.xlu0 %1448
  %1450 = vrot.lane.b32.xlu0 %v474, 12
  %v1451 = vpop.permute.xlu0 %1450
  %1452 = vrot.lane.b32.xlu0 %v475, 12
  %v1453 = vpop.permute.xlu0 %1452
  %1454 = vrot.lane.b32.xlu0 %v476, 12
  %v1455 = vpop.permute.xlu0 %1454
  %1456 = vrot.lane.b32.xlu0 %v477, 12
  %v1457 = vpop.permute.xlu0 %1456
  %1458 = vrot.lane.b32.xlu0 %v478, 12
  %v1459 = vpop.permute.xlu0 %1458
  %1460 = vrot.lane.b32.xlu0 %v479, 12
  %v1461 = vpop.permute.xlu0 %1460
  %1462 = vrot.lane.b32.xlu0 %v480, 12
  %v1463 = vpop.permute.xlu0 %1462
  %1464 = vrot.lane.b32.xlu0 %v481, 12
  %v1465 = vpop.permute.xlu0 %1464
  %1466 = vrot.lane.b32.xlu0 %v482, 12
  %v1467 = vpop.permute.xlu0 %1466
  %1468 = vrot.lane.b32.xlu0 %v483, 12
  %v1469 = vpop.permute.xlu0 %1468
  %1470 = vrot.lane.b32.xlu0 %v484, 12
  %v1471 = vpop.permute.xlu0 %1470
  %1472 = vrot.lane.b32.xlu0 %v485, 12
  %v1473 = vpop.permute.xlu0 %1472
  %1474 = vrot.lane.b32.xlu0 %v486, 12
  %v1475 = vpop.permute.xlu0 %1474
  %1476 = vrot.lane.b32.xlu0 %v487, 12
  %v1477 = vpop.permute.xlu0 %1476
  %1478 = vrot.lane.b32.xlu0 %v488, 12
  %v1479 = vpop.permute.xlu0 %1478
  %1480 = vrot.lane.b32.xlu0 %v489, 12
  %v1481 = vpop.permute.xlu0 %1480
  %1482 = vrot.lane.b32.xlu0 %v490, 12
  %v1483 = vpop.permute.xlu0 %1482
  %1484 = vrot.lane.b32.xlu0 %v491, 12
  %v1485 = vpop.permute.xlu0 %1484
  %1486 = vrot.lane.b32.xlu0 %v492, 12
  %v1487 = vpop.permute.xlu0 %1486
  %1488 = vrot.lane.b32.xlu0 %v493, 12
  %v1489 = vpop.permute.xlu0 %1488
  %1490 = vrot.lane.b32.xlu0 %v494, 12
  %v1491 = vpop.permute.xlu0 %1490
  %1492 = vrot.lane.b32.xlu0 %v495, 12
  %v1493 = vpop.permute.xlu0 %1492
  %1494 = vrot.lane.b32.xlu0 %v496, 12
  %v1495 = vpop.permute.xlu0 %1494
  %1496 = vrot.lane.b32.xlu0 %v497, 12
  %v1497 = vpop.permute.xlu0 %1496
  %1498 = vrot.lane.b32.xlu0 %v498, 12
  %v1499 = vpop.permute.xlu0 %1498
  %1500 = vrot.lane.b32.xlu0 %v499, 12
  %v1501 = vpop.permute.xlu0 %1500
  %1502 = vrot.lane.b32.xlu0 %v500, 12
  %v1503 = vpop.permute.xlu0 %1502
  %1504 = vrot.lane.b32.xlu0 %v501, 12
  %v1505 = vpop.permute.xlu0 %1504
  %1506 = vrot.lane.b32.xlu0 %v502, 12
  %v1507 = vpop.permute.xlu0 %1506
  %1508 = vrot.lane.b32.xlu0 %v503, 12
  %v1509 = vpop.permute.xlu0 %1508
  %1510 = vrot.lane.b32.xlu0 %v504, 12
  %v1511 = vpop.permute.xlu0 %1510
  %1512 = vrot.lane.b32.xlu0 %v505, 12
  %v1513 = vpop.permute.xlu0 %1512
  %1514 = vrot.lane.b32.xlu0 %v506, 12
  %v1515 = vpop.permute.xlu0 %1514
  %1516 = vrot.lane.b32.xlu0 %v507, 12
  %v1517 = vpop.permute.xlu0 %1516
  %1518 = vrot.lane.b32.xlu0 %v508, 12
  %v1519 = vpop.permute.xlu0 %1518
  %1520 = vrot.lane.b32.xlu0 %v509, 12
  %v1521 = vpop.permute.xlu0 %1520
  %1522 = vrot.lane.b32.xlu0 %v510, 12
  %v1523 = vpop.permute.xlu0 %1522
  %1524 = vrot.lane.b32.xlu0 %v511, 12
  %v1525 = vpop.permute.xlu0 %1524
  %1526 = vrot.lane.b32.xlu0 %v512, 12
  %v1527 = vpop.permute.xlu0 %1526
  %1528 = vrot.lane.b32.xlu0 %v513, 12
  %v1529 = vpop.permute.xlu0 %1528
  %1530 = vrot.lane.b32.xlu0 %v514, 12
  %v1531 = vpop.permute.xlu0 %1530
  %1532 = vrot.lane.b32.xlu0 %v515, 12
  %v1533 = vpop.permute.xlu0 %1532
  %1534 = vrot.lane.b32.xlu0 %v516, 12
  %v1535 = vpop.permute.xlu0 %1534
  %1536 = vrot.lane.b32.xlu0 %v517, 12
  %v1537 = vpop.permute.xlu0 %1536
  %1538 = vrot.lane.b32.xlu0 %v518, 12
  %v1539 = vpop.permute.xlu0 %1538
  %1540 = vrot.lane.b32.xlu0 %v519, 12
  %v1541 = vpop.permute.xlu0 %1540
  %1542 = vrot.lane.b32.xlu0 %v520, 12
  %v1543 = vpop.permute.xlu0 %1542
  %1544 = vrot.lane.b32.xlu0 %v521, 12
  %v1545 = vpop.permute.xlu0 %1544
  %1546 = vrot.lane.b32.xlu0 %v522, 12
  %v1547 = vpop.permute.xlu0 %1546
  %1676 = vrot.lane.b32.xlu0 %v523, 16
  %v1677 = vpop.permute.xlu0 %1676
  %1678 = vrot.lane.b32.xlu0 %v524, 16
  %v1679 = vpop.permute.xlu0 %1678
  %1680 = vrot.lane.b32.xlu0 %v525, 16
  %v1681 = vpop.permute.xlu0 %1680
  %1682 = vrot.lane.b32.xlu0 %v526, 16
  %v1683 = vpop.permute.xlu0 %1682
  %1684 = vrot.lane.b32.xlu0 %v527, 16
  %v1685 = vpop.permute.xlu0 %1684
  %1686 = vrot.lane.b32.xlu0 %v528, 16
  %v1687 = vpop.permute.xlu0 %1686
  %1688 = vrot.lane.b32.xlu0 %v529, 16
  %v1689 = vpop.permute.xlu0 %1688
  %1690 = vrot.lane.b32.xlu0 %v530, 16
  %v1691 = vpop.permute.xlu0 %1690
  %1692 = vrot.lane.b32.xlu0 %v531, 16
  %v1693 = vpop.permute.xlu0 %1692
  %1694 = vrot.lane.b32.xlu0 %v532, 16
  %v1695 = vpop.permute.xlu0 %1694
  %1696 = vrot.lane.b32.xlu0 %v533, 16
  %v1697 = vpop.permute.xlu0 %1696
  %1698 = vrot.lane.b32.xlu0 %v534, 16
  %v1699 = vpop.permute.xlu0 %1698
  %1700 = vrot.lane.b32.xlu0 %v535, 16
  %v1701 = vpop.permute.xlu0 %1700
  %1702 = vrot.lane.b32.xlu0 %v536, 16
  %v1703 = vpop.permute.xlu0 %1702
  %1704 = vrot.lane.b32.xlu0 %v537, 16
  %v1705 = vpop.permute.xlu0 %1704
  %1706 = vrot.lane.b32.xlu0 %v538, 16
  %v1707 = vpop.permute.xlu0 %1706
  %1708 = vrot.lane.b32.xlu0 %v539, 16
  %v1709 = vpop.permute.xlu0 %1708
  %1710 = vrot.lane.b32.xlu0 %v540, 16
  %v1711 = vpop.permute.xlu0 %1710
  %1712 = vrot.lane.b32.xlu0 %v541, 16
  %v1713 = vpop.permute.xlu0 %1712
  %1714 = vrot.lane.b32.xlu0 %v542, 16
  %v1715 = vpop.permute.xlu0 %1714
  %1716 = vrot.lane.b32.xlu0 %v543, 16
  %v1717 = vpop.permute.xlu0 %1716
  %1718 = vrot.lane.b32.xlu0 %v544, 16
  %v1719 = vpop.permute.xlu0 %1718
  %1720 = vrot.lane.b32.xlu0 %v545, 16
  %v1721 = vpop.permute.xlu0 %1720
  %1722 = vrot.lane.b32.xlu0 %v546, 16
  %v1723 = vpop.permute.xlu0 %1722
  %1724 = vrot.lane.b32.xlu0 %v547, 16
  %v1725 = vpop.permute.xlu0 %1724
  %1726 = vrot.lane.b32.xlu0 %v548, 16
  %v1727 = vpop.permute.xlu0 %1726
  %1728 = vrot.lane.b32.xlu0 %v549, 16
  %v1729 = vpop.permute.xlu0 %1728
  %1730 = vrot.lane.b32.xlu0 %v550, 16
  %v1731 = vpop.permute.xlu0 %1730
  %1732 = vrot.lane.b32.xlu0 %v551, 16
  %v1733 = vpop.permute.xlu0 %1732
  %1734 = vrot.lane.b32.xlu0 %v552, 16
  %v1735 = vpop.permute.xlu0 %1734
  %1736 = vrot.lane.b32.xlu0 %v553, 16
  %v1737 = vpop.permute.xlu0 %1736
  %1738 = vrot.lane.b32.xlu0 %v554, 16
  %v1739 = vpop.permute.xlu0 %1738
  %1740 = vrot.lane.b32.xlu0 %v555, 16
  %v1741 = vpop.permute.xlu0 %1740
  %1742 = vrot.lane.b32.xlu0 %v556, 16
  %v1743 = vpop.permute.xlu0 %1742
  %1744 = vrot.lane.b32.xlu0 %v557, 16
  %v1745 = vpop.permute.xlu0 %1744
  %1746 = vrot.lane.b32.xlu0 %v558, 16
  %v1747 = vpop.permute.xlu0 %1746
  %1748 = vrot.lane.b32.xlu0 %v559, 16
  %v1749 = vpop.permute.xlu0 %1748
  %1750 = vrot.lane.b32.xlu0 %v560, 16
  %v1751 = vpop.permute.xlu0 %1750
  %1752 = vrot.lane.b32.xlu0 %v561, 16
  %v1753 = vpop.permute.xlu0 %1752
  %1754 = vrot.lane.b32.xlu0 %v562, 16
  %v1755 = vpop.permute.xlu0 %1754
  %1756 = vrot.lane.b32.xlu0 %v563, 16
  %v1757 = vpop.permute.xlu0 %1756
  %1758 = vrot.lane.b32.xlu0 %v564, 16
  %v1759 = vpop.permute.xlu0 %1758
  %1760 = vrot.lane.b32.xlu0 %v565, 16
  %v1761 = vpop.permute.xlu0 %1760
  %1762 = vrot.lane.b32.xlu0 %v566, 16
  %v1763 = vpop.permute.xlu0 %1762
  %1764 = vrot.lane.b32.xlu0 %v567, 16
  %v1765 = vpop.permute.xlu0 %1764
  %1766 = vrot.lane.b32.xlu0 %v568, 16
  %v1767 = vpop.permute.xlu0 %1766
  %1768 = vrot.lane.b32.xlu0 %v569, 16
  %v1769 = vpop.permute.xlu0 %1768
  %1770 = vrot.lane.b32.xlu0 %v570, 16
  %v1771 = vpop.permute.xlu0 %1770
  %1772 = vrot.lane.b32.xlu0 %v571, 16
  %v1773 = vpop.permute.xlu0 %1772
  %1774 = vrot.lane.b32.xlu0 %v572, 16
  %v1775 = vpop.permute.xlu0 %1774
  %1776 = vrot.lane.b32.xlu0 %v573, 16
  %v1777 = vpop.permute.xlu0 %1776
  %1778 = vrot.lane.b32.xlu0 %v574, 16
  %v1779 = vpop.permute.xlu0 %1778
  %1780 = vrot.lane.b32.xlu0 %v575, 16
  %v1781 = vpop.permute.xlu0 %1780
  %1782 = vrot.lane.b32.xlu0 %v576, 16
  %v1783 = vpop.permute.xlu0 %1782
  %1784 = vrot.lane.b32.xlu0 %v577, 16
  %v1785 = vpop.permute.xlu0 %1784
  %1786 = vrot.lane.b32.xlu0 %v578, 16
  %v1787 = vpop.permute.xlu0 %1786
  %1788 = vrot.lane.b32.xlu0 %v579, 16
  %v1789 = vpop.permute.xlu0 %1788
  %1790 = vrot.lane.b32.xlu0 %v580, 16
  %v1791 = vpop.permute.xlu0 %1790
  %1792 = vrot.lane.b32.xlu0 %v581, 16
  %v1793 = vpop.permute.xlu0 %1792
  %1794 = vrot.lane.b32.xlu0 %v582, 16
  %v1795 = vpop.permute.xlu0 %1794
  %1796 = vrot.lane.b32.xlu0 %v583, 16
  %v1797 = vpop.permute.xlu0 %1796
  %1798 = vrot.lane.b32.xlu0 %v584, 16
  %v1799 = vpop.permute.xlu0 %1798
  %1800 = vrot.lane.b32.xlu0 %v585, 16
  %v1801 = vpop.permute.xlu0 %1800
  %1802 = vrot.lane.b32.xlu0 %v586, 16
  %v1803 = vpop.permute.xlu0 %1802
  %1932 = vrot.lane.b32.xlu0 %v587, 20
  %v1933 = vpop.permute.xlu0 %1932
  %1934 = vrot.lane.b32.xlu0 %v588, 20
  %v1935 = vpop.permute.xlu0 %1934
  %1936 = vrot.lane.b32.xlu0 %v589, 20
  %v1937 = vpop.permute.xlu0 %1936
  %1938 = vrot.lane.b32.xlu0 %v590, 20
  %v1939 = vpop.permute.xlu0 %1938
  %1940 = vrot.lane.b32.xlu0 %v591, 20
  %v1941 = vpop.permute.xlu0 %1940
  %1942 = vrot.lane.b32.xlu0 %v592, 20
  %v1943 = vpop.permute.xlu0 %1942
  %1944 = vrot.lane.b32.xlu0 %v593, 20
  %v1945 = vpop.permute.xlu0 %1944
  %1946 = vrot.lane.b32.xlu0 %v594, 20
  %v1947 = vpop.permute.xlu0 %1946
  %1948 = vrot.lane.b32.xlu0 %v595, 20
  %v1949 = vpop.permute.xlu0 %1948
  %1950 = vrot.lane.b32.xlu0 %v596, 20
  %v1951 = vpop.permute.xlu0 %1950
  %1952 = vrot.lane.b32.xlu0 %v597, 20
  %v1953 = vpop.permute.xlu0 %1952
  %1954 = vrot.lane.b32.xlu0 %v598, 20
  %v1955 = vpop.permute.xlu0 %1954
  %1956 = vrot.lane.b32.xlu0 %v599, 20
  %v1957 = vpop.permute.xlu0 %1956
  %1958 = vrot.lane.b32.xlu0 %v600, 20
  %v1959 = vpop.permute.xlu0 %1958
  %1960 = vrot.lane.b32.xlu0 %v601, 20
  %v1961 = vpop.permute.xlu0 %1960
  %1962 = vrot.lane.b32.xlu0 %v602, 20
  %v1963 = vpop.permute.xlu0 %1962
  %1964 = vrot.lane.b32.xlu0 %v603, 20
  %v1965 = vpop.permute.xlu0 %1964
  %1966 = vrot.lane.b32.xlu0 %v604, 20
  %v1967 = vpop.permute.xlu0 %1966
  %1968 = vrot.lane.b32.xlu0 %v605, 20
  %v1969 = vpop.permute.xlu0 %1968
  %1970 = vrot.lane.b32.xlu0 %v606, 20
  %v1971 = vpop.permute.xlu0 %1970
  %1972 = vrot.lane.b32.xlu0 %v607, 20
  %v1973 = vpop.permute.xlu0 %1972
  %1974 = vrot.lane.b32.xlu0 %v608, 20
  %v1975 = vpop.permute.xlu0 %1974
  %1976 = vrot.lane.b32.xlu0 %v609, 20
  %v1977 = vpop.permute.xlu0 %1976
  %1978 = vrot.lane.b32.xlu0 %v610, 20
  %v1979 = vpop.permute.xlu0 %1978
  %1980 = vrot.lane.b32.xlu0 %v611, 20
  %v1981 = vpop.permute.xlu0 %1980
  %1982 = vrot.lane.b32.xlu0 %v612, 20
  %v1983 = vpop.permute.xlu0 %1982
  %1984 = vrot.lane.b32.xlu0 %v613, 20
  %v1985 = vpop.permute.xlu0 %1984
  %1986 = vrot.lane.b32.xlu0 %v614, 20
  %v1987 = vpop.permute.xlu0 %1986
  %1988 = vrot.lane.b32.xlu0 %v615, 20
  %v1989 = vpop.permute.xlu0 %1988
  %1990 = vrot.lane.b32.xlu0 %v616, 20
  %v1991 = vpop.permute.xlu0 %1990
  %1992 = vrot.lane.b32.xlu0 %v617, 20
  %v1993 = vpop.permute.xlu0 %1992
  %1994 = vrot.lane.b32.xlu0 %v618, 20
  %v1995 = vpop.permute.xlu0 %1994
  %1996 = vrot.lane.b32.xlu0 %v619, 20
  %v1997 = vpop.permute.xlu0 %1996
  %1998 = vrot.lane.b32.xlu0 %v620, 20
  %v1999 = vpop.permute.xlu0 %1998
  %2000 = vrot.lane.b32.xlu0 %v621, 20
  %v2001 = vpop.permute.xlu0 %2000
  %2002 = vrot.lane.b32.xlu0 %v622, 20
  %v2003 = vpop.permute.xlu0 %2002
  %2004 = vrot.lane.b32.xlu0 %v623, 20
  %v2005 = vpop.permute.xlu0 %2004
  %2006 = vrot.lane.b32.xlu0 %v624, 20
  %v2007 = vpop.permute.xlu0 %2006
  %2008 = vrot.lane.b32.xlu0 %v625, 20
  %v2009 = vpop.permute.xlu0 %2008
  %2010 = vrot.lane.b32.xlu0 %v626, 20
  %v2011 = vpop.permute.xlu0 %2010
  %2012 = vrot.lane.b32.xlu0 %v627, 20
  %v2013 = vpop.permute.xlu0 %2012
  %2014 = vrot.lane.b32.xlu0 %v628, 20
  %v2015 = vpop.permute.xlu0 %2014
  %2016 = vrot.lane.b32.xlu0 %v629, 20
  %v2017 = vpop.permute.xlu0 %2016
  %2018 = vrot.lane.b32.xlu0 %v630, 20
  %v2019 = vpop.permute.xlu0 %2018
  %2020 = vrot.lane.b32.xlu0 %v631, 20
  %v2021 = vpop.permute.xlu0 %2020
  %2022 = vrot.lane.b32.xlu0 %v632, 20
  %v2023 = vpop.permute.xlu0 %2022
  %2024 = vrot.lane.b32.xlu0 %v633, 20
  %v2025 = vpop.permute.xlu0 %2024
  %2026 = vrot.lane.b32.xlu0 %v634, 20
  %v2027 = vpop.permute.xlu0 %2026
  %2028 = vrot.lane.b32.xlu0 %v635, 20
  %v2029 = vpop.permute.xlu0 %2028
  %2030 = vrot.lane.b32.xlu0 %v636, 20
  %v2031 = vpop.permute.xlu0 %2030
  %2032 = vrot.lane.b32.xlu0 %v637, 20
  %v2033 = vpop.permute.xlu0 %2032
  %2034 = vrot.lane.b32.xlu0 %v638, 20
  %v2035 = vpop.permute.xlu0 %2034
  %2036 = vrot.lane.b32.xlu0 %v639, 20
  %v2037 = vpop.permute.xlu0 %2036
  %2038 = vrot.lane.b32.xlu0 %v640, 20
  %v2039 = vpop.permute.xlu0 %2038
  %2040 = vrot.lane.b32.xlu0 %v641, 20
  %v2041 = vpop.permute.xlu0 %2040
  %2042 = vrot.lane.b32.xlu0 %v642, 20
  %v2043 = vpop.permute.xlu0 %2042
  %2044 = vrot.lane.b32.xlu0 %v643, 20
  %v2045 = vpop.permute.xlu0 %2044
  %2046 = vrot.lane.b32.xlu0 %v644, 20
  %v2047 = vpop.permute.xlu0 %2046
  %2048 = vrot.lane.b32.xlu0 %v645, 20
  %v2049 = vpop.permute.xlu0 %2048
  %2050 = vrot.lane.b32.xlu0 %v646, 20
  %v2051 = vpop.permute.xlu0 %2050
  %2052 = vrot.lane.b32.xlu0 %v647, 20
  %v2053 = vpop.permute.xlu0 %2052
  %2054 = vrot.lane.b32.xlu0 %v648, 20
  %v2055 = vpop.permute.xlu0 %2054
  %2056 = vrot.lane.b32.xlu0 %v649, 20
  %v2057 = vpop.permute.xlu0 %2056
  %2058 = vrot.lane.b32.xlu0 %v650, 20
  %v2059 = vpop.permute.xlu0 %2058
  %2188 = vrot.lane.b32.xlu0 %v652, 24
  %v2189 = vpop.permute.xlu0 %2188
  %2190 = vrot.lane.b32.xlu0 %v653, 24
  %v2191 = vpop.permute.xlu0 %2190
  %2192 = vrot.lane.b32.xlu0 %v654, 24
  %v2193 = vpop.permute.xlu0 %2192
  %2194 = vrot.lane.b32.xlu0 %v655, 24
  %v2195 = vpop.permute.xlu0 %2194
  %2196 = vrot.lane.b32.xlu0 %v656, 24
  %v2197 = vpop.permute.xlu0 %2196
  %2198 = vrot.lane.b32.xlu0 %v657, 24
  %v2199 = vpop.permute.xlu0 %2198
  %2200 = vrot.lane.b32.xlu0 %v658, 24
  %v2201 = vpop.permute.xlu0 %2200
  %2202 = vrot.lane.b32.xlu0 %v659, 24
  %v2203 = vpop.permute.xlu0 %2202
  %2204 = vrot.lane.b32.xlu0 %v660, 24
  %v2205 = vpop.permute.xlu0 %2204
  %2206 = vrot.lane.b32.xlu0 %v661, 24
  %v2207 = vpop.permute.xlu0 %2206
  %2208 = vrot.lane.b32.xlu0 %v662, 24
  %v2209 = vpop.permute.xlu0 %2208
  %2210 = vrot.lane.b32.xlu0 %v663, 24
  %v2211 = vpop.permute.xlu0 %2210
  %2212 = vrot.lane.b32.xlu0 %v664, 24
  %v2213 = vpop.permute.xlu0 %2212
  %2214 = vrot.lane.b32.xlu0 %v665, 24
  %v2215 = vpop.permute.xlu0 %2214
  %2216 = vrot.lane.b32.xlu0 %v666, 24
  %v2217 = vpop.permute.xlu0 %2216
  %2218 = vrot.lane.b32.xlu0 %v667, 24
  %v2219 = vpop.permute.xlu0 %2218
  %2220 = vrot.lane.b32.xlu0 %v668, 24
  %v2221 = vpop.permute.xlu0 %2220
  %2222 = vrot.lane.b32.xlu0 %v669, 24
  %v2223 = vpop.permute.xlu0 %2222
  %2224 = vrot.lane.b32.xlu0 %v670, 24
  %v2225 = vpop.permute.xlu0 %2224
  %2226 = vrot.lane.b32.xlu0 %v671, 24
  %v2227 = vpop.permute.xlu0 %2226
  %2228 = vrot.lane.b32.xlu0 %v672, 24
  %v2229 = vpop.permute.xlu0 %2228
  %2230 = vrot.lane.b32.xlu0 %v673, 24
  %v2231 = vpop.permute.xlu0 %2230
  %2232 = vrot.lane.b32.xlu0 %v674, 24
  %v2233 = vpop.permute.xlu0 %2232
  %2234 = vrot.lane.b32.xlu0 %v675, 24
  %v2235 = vpop.permute.xlu0 %2234
  %2236 = vrot.lane.b32.xlu0 %v676, 24
  %v2237 = vpop.permute.xlu0 %2236
  %2238 = vrot.lane.b32.xlu0 %v677, 24
  %v2239 = vpop.permute.xlu0 %2238
  %2240 = vrot.lane.b32.xlu0 %v678, 24
  %v2241 = vpop.permute.xlu0 %2240
  %2242 = vrot.lane.b32.xlu0 %v679, 24
  %v2243 = vpop.permute.xlu0 %2242
  %2244 = vrot.lane.b32.xlu0 %v680, 24
  %v2245 = vpop.permute.xlu0 %2244
  %2246 = vrot.lane.b32.xlu0 %v681, 24
  %v2247 = vpop.permute.xlu0 %2246
  %2248 = vrot.lane.b32.xlu0 %v682, 24
  %v2249 = vpop.permute.xlu0 %2248
  %2250 = vrot.lane.b32.xlu0 %v683, 24
  %v2251 = vpop.permute.xlu0 %2250
  %2252 = vrot.lane.b32.xlu0 %v684, 24
  %v2253 = vpop.permute.xlu0 %2252
  %2254 = vrot.lane.b32.xlu0 %v685, 24
  %v2255 = vpop.permute.xlu0 %2254
  %2256 = vrot.lane.b32.xlu0 %v686, 24
  %v2257 = vpop.permute.xlu0 %2256
  %2258 = vrot.lane.b32.xlu0 %v687, 24
  %v2259 = vpop.permute.xlu0 %2258
  %2260 = vrot.lane.b32.xlu0 %v688, 24
  %v2261 = vpop.permute.xlu0 %2260
  %2262 = vrot.lane.b32.xlu0 %v689, 24
  %v2263 = vpop.permute.xlu0 %2262
  %2264 = vrot.lane.b32.xlu0 %v690, 24
  %v2265 = vpop.permute.xlu0 %2264
  %2266 = vrot.lane.b32.xlu0 %v691, 24
  %v2267 = vpop.permute.xlu0 %2266
  %2268 = vrot.lane.b32.xlu0 %v692, 24
  %v2269 = vpop.permute.xlu0 %2268
  %2270 = vrot.lane.b32.xlu0 %v693, 24
  %v2271 = vpop.permute.xlu0 %2270
  %2272 = vrot.lane.b32.xlu0 %v694, 24
  %v2273 = vpop.permute.xlu0 %2272
  %2274 = vrot.lane.b32.xlu0 %v695, 24
  %v2275 = vpop.permute.xlu0 %2274
  %2276 = vrot.lane.b32.xlu0 %v696, 24
  %v2277 = vpop.permute.xlu0 %2276
  %2278 = vrot.lane.b32.xlu0 %v697, 24
  %v2279 = vpop.permute.xlu0 %2278
  %2280 = vrot.lane.b32.xlu0 %v698, 24
  %v2281 = vpop.permute.xlu0 %2280
  %2282 = vrot.lane.b32.xlu0 %v699, 24
  %v2283 = vpop.permute.xlu0 %2282
  %2284 = vrot.lane.b32.xlu0 %v700, 24
  %v2285 = vpop.permute.xlu0 %2284
  %2286 = vrot.lane.b32.xlu0 %v701, 24
  %v2287 = vpop.permute.xlu0 %2286
  %2288 = vrot.lane.b32.xlu0 %v702, 24
  %v2289 = vpop.permute.xlu0 %2288
  %2290 = vrot.lane.b32.xlu0 %v703, 24
  %v2291 = vpop.permute.xlu0 %2290
  %2292 = vrot.lane.b32.xlu0 %v704, 24
  %v2293 = vpop.permute.xlu0 %2292
  %2294 = vrot.lane.b32.xlu0 %v705, 24
  %v2295 = vpop.permute.xlu0 %2294
  %2296 = vrot.lane.b32.xlu0 %v706, 24
  %v2297 = vpop.permute.xlu0 %2296
  %2298 = vrot.lane.b32.xlu0 %v707, 24
  %v2299 = vpop.permute.xlu0 %2298
  %2300 = vrot.lane.b32.xlu0 %v708, 24
  %v2301 = vpop.permute.xlu0 %2300
  %2302 = vrot.lane.b32.xlu0 %v709, 24
  %v2303 = vpop.permute.xlu0 %2302
  %2304 = vrot.lane.b32.xlu0 %v710, 24
  %v2305 = vpop.permute.xlu0 %2304
  %2306 = vrot.lane.b32.xlu0 %v711, 24
  %v2307 = vpop.permute.xlu0 %2306
  %2308 = vrot.lane.b32.xlu0 %v712, 24
  %v2309 = vpop.permute.xlu0 %2308
  %2310 = vrot.lane.b32.xlu0 %v713, 24
  %v2311 = vpop.permute.xlu0 %2310
  %2312 = vrot.lane.b32.xlu0 %v714, 24
  %v2313 = vpop.permute.xlu0 %2312
  %2314 = vrot.lane.b32.xlu0 %v715, 24
  %v2315 = vpop.permute.xlu0 %2314
  %2444 = vrot.lane.b32.xlu0 %v716, 28
  %v2445 = vpop.permute.xlu0 %2444
  %2446 = vrot.lane.b32.xlu0 %v717, 28
  %v2447 = vpop.permute.xlu0 %2446
  %2448 = vrot.lane.b32.xlu0 %v718, 28
  %v2449 = vpop.permute.xlu0 %2448
  %2450 = vrot.lane.b32.xlu0 %v719, 28
  %v2451 = vpop.permute.xlu0 %2450
  %2452 = vrot.lane.b32.xlu0 %v720, 28
  %v2453 = vpop.permute.xlu0 %2452
  %2454 = vrot.lane.b32.xlu0 %v721, 28
  %v2455 = vpop.permute.xlu0 %2454
  %2456 = vrot.lane.b32.xlu0 %v722, 28
  %v2457 = vpop.permute.xlu0 %2456
  %2458 = vrot.lane.b32.xlu0 %v723, 28
  %v2459 = vpop.permute.xlu0 %2458
  %2460 = vrot.lane.b32.xlu0 %v724, 28
  %v2461 = vpop.permute.xlu0 %2460
  %2462 = vrot.lane.b32.xlu0 %v725, 28
  %v2463 = vpop.permute.xlu0 %2462
  %2464 = vrot.lane.b32.xlu0 %v726, 28
  %v2465 = vpop.permute.xlu0 %2464
  %2466 = vrot.lane.b32.xlu0 %v727, 28
  %v2467 = vpop.permute.xlu0 %2466
  %2468 = vrot.lane.b32.xlu0 %v728, 28
  %v2469 = vpop.permute.xlu0 %2468
  %2470 = vrot.lane.b32.xlu0 %v729, 28
  %v2471 = vpop.permute.xlu0 %2470
  %2472 = vrot.lane.b32.xlu0 %v730, 28
  %v2473 = vpop.permute.xlu0 %2472
  %2474 = vrot.lane.b32.xlu0 %v731, 28
  %v2475 = vpop.permute.xlu0 %2474
  %2476 = vrot.lane.b32.xlu0 %v732, 28
  %v2477 = vpop.permute.xlu0 %2476
  %2478 = vrot.lane.b32.xlu0 %v733, 28
  %v2479 = vpop.permute.xlu0 %2478
  %2480 = vrot.lane.b32.xlu0 %v734, 28
  %v2481 = vpop.permute.xlu0 %2480
  %2482 = vrot.lane.b32.xlu0 %v735, 28
  %v2483 = vpop.permute.xlu0 %2482
  %2484 = vrot.lane.b32.xlu0 %v736, 28
  %v2485 = vpop.permute.xlu0 %2484
  %2486 = vrot.lane.b32.xlu0 %v737, 28
  %v2487 = vpop.permute.xlu0 %2486
  %2488 = vrot.lane.b32.xlu0 %v738, 28
  %v2489 = vpop.permute.xlu0 %2488
  %2490 = vrot.lane.b32.xlu0 %v739, 28
  %v2491 = vpop.permute.xlu0 %2490
  %2492 = vrot.lane.b32.xlu0 %v740, 28
  %v2493 = vpop.permute.xlu0 %2492
  %2494 = vrot.lane.b32.xlu0 %v741, 28
  %v2495 = vpop.permute.xlu0 %2494
  %2496 = vrot.lane.b32.xlu0 %v742, 28
  %v2497 = vpop.permute.xlu0 %2496
  %2498 = vrot.lane.b32.xlu0 %v743, 28
  %v2499 = vpop.permute.xlu0 %2498
  %2500 = vrot.lane.b32.xlu0 %v744, 28
  %v2501 = vpop.permute.xlu0 %2500
  %2502 = vrot.lane.b32.xlu0 %v745, 28
  %v2503 = vpop.permute.xlu0 %2502
  %2504 = vrot.lane.b32.xlu0 %v746, 28
  %v2505 = vpop.permute.xlu0 %2504
  %2506 = vrot.lane.b32.xlu0 %v747, 28
  %v2507 = vpop.permute.xlu0 %2506
  %2508 = vrot.lane.b32.xlu0 %v748, 28
  %v2509 = vpop.permute.xlu0 %2508
  %2510 = vrot.lane.b32.xlu0 %v749, 28
  %v2511 = vpop.permute.xlu0 %2510
  %2512 = vrot.lane.b32.xlu0 %v750, 28
  %v2513 = vpop.permute.xlu0 %2512
  %2514 = vrot.lane.b32.xlu0 %v751, 28
  %v2515 = vpop.permute.xlu0 %2514
  %2516 = vrot.lane.b32.xlu0 %v752, 28
  %v2517 = vpop.permute.xlu0 %2516
  %2518 = vrot.lane.b32.xlu0 %v753, 28
  %v2519 = vpop.permute.xlu0 %2518
  %2520 = vrot.lane.b32.xlu0 %v754, 28
  %v2521 = vpop.permute.xlu0 %2520
  %2522 = vrot.lane.b32.xlu0 %v755, 28
  %v2523 = vpop.permute.xlu0 %2522
  %2524 = vrot.lane.b32.xlu0 %v756, 28
  %v2525 = vpop.permute.xlu0 %2524
  %2526 = vrot.lane.b32.xlu0 %v757, 28
  %v2527 = vpop.permute.xlu0 %2526
  %2528 = vrot.lane.b32.xlu0 %v758, 28
  %v2529 = vpop.permute.xlu0 %2528
  %2530 = vrot.lane.b32.xlu0 %v759, 28
  %v2531 = vpop.permute.xlu0 %2530
  %2532 = vrot.lane.b32.xlu0 %v760, 28
  %v2533 = vpop.permute.xlu0 %2532
  %2534 = vrot.lane.b32.xlu0 %v761, 28
  %v2535 = vpop.permute.xlu0 %2534
  %2536 = vrot.lane.b32.xlu0 %v762, 28
  %v2537 = vpop.permute.xlu0 %2536
  %2538 = vrot.lane.b32.xlu0 %v763, 28
  %v2539 = vpop.permute.xlu0 %2538
  %2540 = vrot.lane.b32.xlu0 %v764, 28
  %v2541 = vpop.permute.xlu0 %2540
  %2542 = vrot.lane.b32.xlu0 %v765, 28
  %v2543 = vpop.permute.xlu0 %2542
  %2544 = vrot.lane.b32.xlu0 %v766, 28
  %v2545 = vpop.permute.xlu0 %2544
  %2546 = vrot.lane.b32.xlu0 %v767, 28
  %v2547 = vpop.permute.xlu0 %2546
  %2548 = vrot.lane.b32.xlu0 %v768, 28
  %v2549 = vpop.permute.xlu0 %2548
  %2550 = vrot.lane.b32.xlu0 %v769, 28
  %v2551 = vpop.permute.xlu0 %2550
  %2552 = vrot.lane.b32.xlu0 %v770, 28
  %v2553 = vpop.permute.xlu0 %2552
  %2554 = vrot.lane.b32.xlu0 %v771, 28
  %v2555 = vpop.permute.xlu0 %2554
  %2556 = vrot.lane.b32.xlu0 %v772, 28
  %v2557 = vpop.permute.xlu0 %2556
  %2558 = vrot.lane.b32.xlu0 %v773, 28
  %v2559 = vpop.permute.xlu0 %2558
  %2560 = vrot.lane.b32.xlu0 %v774, 28
  %v2561 = vpop.permute.xlu0 %2560
  %2562 = vrot.lane.b32.xlu0 %v775, 28
  %v2563 = vpop.permute.xlu0 %2562
  %2564 = vrot.lane.b32.xlu0 %v776, 28
  %v2565 = vpop.permute.xlu0 %2564
  %2566 = vrot.lane.b32.xlu0 %v777, 28
  %v2567 = vpop.permute.xlu0 %2566
  %2568 = vrot.lane.b32.xlu0 %v778, 28
  %v2569 = vpop.permute.xlu0 %2568
  %2570 = vrot.lane.b32.xlu0 %v779, 28
  %v2571 = vpop.permute.xlu0 %2570
  %2700 = vrot.lane.b32.xlu0 %v780, 32
  %v2701 = vpop.permute.xlu0 %2700
  %2702 = vrot.lane.b32.xlu0 %v781, 32
  %v2703 = vpop.permute.xlu0 %2702
  %2704 = vrot.lane.b32.xlu0 %v782, 32
  %v2705 = vpop.permute.xlu0 %2704
  %2706 = vrot.lane.b32.xlu0 %v783, 32
  %v2707 = vpop.permute.xlu0 %2706
  %2708 = vrot.lane.b32.xlu0 %v784, 32
  %v2709 = vpop.permute.xlu0 %2708
  %2710 = vrot.lane.b32.xlu0 %v785, 32
  %v2711 = vpop.permute.xlu0 %2710
  %2712 = vrot.lane.b32.xlu0 %v786, 32
  %v2713 = vpop.permute.xlu0 %2712
  %2714 = vrot.lane.b32.xlu0 %v787, 32
  %v2715 = vpop.permute.xlu0 %2714
  %2716 = vrot.lane.b32.xlu0 %v788, 32
  %v2717 = vpop.permute.xlu0 %2716
  %2718 = vrot.lane.b32.xlu0 %v789, 32
  %v2719 = vpop.permute.xlu0 %2718
  %2720 = vrot.lane.b32.xlu0 %v790, 32
  %v2721 = vpop.permute.xlu0 %2720
  %2722 = vrot.lane.b32.xlu0 %v791, 32
  %v2723 = vpop.permute.xlu0 %2722
  %2724 = vrot.lane.b32.xlu0 %v792, 32
  %v2725 = vpop.permute.xlu0 %2724
  %2726 = vrot.lane.b32.xlu0 %v793, 32
  %v2727 = vpop.permute.xlu0 %2726
  %2728 = vrot.lane.b32.xlu0 %v794, 32
  %v2729 = vpop.permute.xlu0 %2728
  %2730 = vrot.lane.b32.xlu0 %v795, 32
  %v2731 = vpop.permute.xlu0 %2730
  %2732 = vrot.lane.b32.xlu0 %v796, 32
  %v2733 = vpop.permute.xlu0 %2732
  %2734 = vrot.lane.b32.xlu0 %v797, 32
  %v2735 = vpop.permute.xlu0 %2734
  %2736 = vrot.lane.b32.xlu0 %v798, 32
  %v2737 = vpop.permute.xlu0 %2736
  %2738 = vrot.lane.b32.xlu0 %v799, 32
  %v2739 = vpop.permute.xlu0 %2738
  %2740 = vrot.lane.b32.xlu0 %v800, 32
  %v2741 = vpop.permute.xlu0 %2740
  %2742 = vrot.lane.b32.xlu0 %v801, 32
  %v2743 = vpop.permute.xlu0 %2742
  %2744 = vrot.lane.b32.xlu0 %v802, 32
  %v2745 = vpop.permute.xlu0 %2744
  %2746 = vrot.lane.b32.xlu0 %v803, 32
  %v2747 = vpop.permute.xlu0 %2746
  %2748 = vrot.lane.b32.xlu0 %v804, 32
  %v2749 = vpop.permute.xlu0 %2748
  %2750 = vrot.lane.b32.xlu0 %v805, 32
  %v2751 = vpop.permute.xlu0 %2750
  %2752 = vrot.lane.b32.xlu0 %v806, 32
  %v2753 = vpop.permute.xlu0 %2752
  %2754 = vrot.lane.b32.xlu0 %v807, 32
  %v2755 = vpop.permute.xlu0 %2754
  %2756 = vrot.lane.b32.xlu0 %v808, 32
  %v2757 = vpop.permute.xlu0 %2756
  %2758 = vrot.lane.b32.xlu0 %v809, 32
  %v2759 = vpop.permute.xlu0 %2758
  %2760 = vrot.lane.b32.xlu0 %v810, 32
  %v2761 = vpop.permute.xlu0 %2760
  %2762 = vrot.lane.b32.xlu0 %v811, 32
  %v2763 = vpop.permute.xlu0 %2762
  %2764 = vrot.lane.b32.xlu0 %v812, 32
  %v2765 = vpop.permute.xlu0 %2764
  %2766 = vrot.lane.b32.xlu0 %v813, 32
  %v2767 = vpop.permute.xlu0 %2766
  %2768 = vrot.lane.b32.xlu0 %v814, 32
  %v2769 = vpop.permute.xlu0 %2768
  %2770 = vrot.lane.b32.xlu0 %v815, 32
  %v2771 = vpop.permute.xlu0 %2770
  %2772 = vrot.lane.b32.xlu0 %v816, 32
  %v2773 = vpop.permute.xlu0 %2772
  %2774 = vrot.lane.b32.xlu0 %v817, 32
  %v2775 = vpop.permute.xlu0 %2774
  %2776 = vrot.lane.b32.xlu0 %v818, 32
  %v2777 = vpop.permute.xlu0 %2776
  %2778 = vrot.lane.b32.xlu0 %v819, 32
  %v2779 = vpop.permute.xlu0 %2778
  %2780 = vrot.lane.b32.xlu0 %v820, 32
  %v2781 = vpop.permute.xlu0 %2780
  %2782 = vrot.lane.b32.xlu0 %v821, 32
  %v2783 = vpop.permute.xlu0 %2782
  %2784 = vrot.lane.b32.xlu0 %v822, 32
  %v2785 = vpop.permute.xlu0 %2784
  %2786 = vrot.lane.b32.xlu0 %v823, 32
  %v2787 = vpop.permute.xlu0 %2786
  %2788 = vrot.lane.b32.xlu0 %v824, 32
  %v2789 = vpop.permute.xlu0 %2788
  %2790 = vrot.lane.b32.xlu0 %v825, 32
  %v2791 = vpop.permute.xlu0 %2790
  %2792 = vrot.lane.b32.xlu0 %v826, 32
  %v2793 = vpop.permute.xlu0 %2792
  %2794 = vrot.lane.b32.xlu0 %v827, 32
  %v2795 = vpop.permute.xlu0 %2794
  %2796 = vrot.lane.b32.xlu0 %v828, 32
  %v2797 = vpop.permute.xlu0 %2796
  %2798 = vrot.lane.b32.xlu0 %v829, 32
  %v2799 = vpop.permute.xlu0 %2798
  %2800 = vrot.lane.b32.xlu0 %v830, 32
  %v2801 = vpop.permute.xlu0 %2800
  %2802 = vrot.lane.b32.xlu0 %v831, 32
  %v2803 = vpop.permute.xlu0 %2802
  %2804 = vrot.lane.b32.xlu0 %v832, 32
  %v2805 = vpop.permute.xlu0 %2804
  %2806 = vrot.lane.b32.xlu0 %v833, 32
  %v2807 = vpop.permute.xlu0 %2806
  %2808 = vrot.lane.b32.xlu0 %v834, 32
  %v2809 = vpop.permute.xlu0 %2808
  %2810 = vrot.lane.b32.xlu0 %v835, 32
  %v2811 = vpop.permute.xlu0 %2810
  %2812 = vrot.lane.b32.xlu0 %v836, 32
  %v2813 = vpop.permute.xlu0 %2812
  %2814 = vrot.lane.b32.xlu0 %v837, 32
  %v2815 = vpop.permute.xlu0 %2814
  %2816 = vrot.lane.b32.xlu0 %v838, 32
  %v2817 = vpop.permute.xlu0 %2816
  %2818 = vrot.lane.b32.xlu0 %v839, 32
  %v2819 = vpop.permute.xlu0 %2818
  %2820 = vrot.lane.b32.xlu0 %v840, 32
  %v2821 = vpop.permute.xlu0 %2820
  %2822 = vrot.lane.b32.xlu0 %v841, 32
  %v2823 = vpop.permute.xlu0 %2822
  %2824 = vrot.lane.b32.xlu0 %v842, 32
  %v2825 = vpop.permute.xlu0 %2824
  %2826 = vrot.lane.b32.xlu0 %v843, 32
  %v2827 = vpop.permute.xlu0 %2826
  %v2892 = vsel %vm26, %v267, %v909
  %v2893 = vsel %vm26, %v268, %v911
  %v2894 = vsel %vm26, %v269, %v913
  %v2895 = vsel %vm26, %v270, %v915
  %v2896 = vsel %vm26, %v271, %v917
  %v2897 = vsel %vm26, %v272, %v919
  %v2898 = vsel %vm26, %v273, %v921
  %v2899 = vsel %vm26, %v274, %v923
  %v2900 = vsel %vm26, %v275, %v925
  %v2901 = vsel %vm26, %v276, %v927
  %v2902 = vsel %vm26, %v277, %v929
  %v2903 = vsel %vm26, %v278, %v931
  %v2904 = vsel %vm26, %v279, %v933
  %v2905 = vsel %vm26, %v280, %v935
  %v2906 = vsel %vm26, %v281, %v937
  %v2907 = vsel %vm26, %v282, %v939
  %v2908 = vsel %vm26, %v283, %v941
  %v2909 = vsel %vm26, %v284, %v943
  %v2910 = vsel %vm26, %v285, %v945
  %v2911 = vsel %vm26, %v286, %v947
  %v2912 = vsel %vm26, %v287, %v949
  %v2913 = vsel %vm26, %v288, %v951
  %v2914 = vsel %vm26, %v289, %v953
  %v2915 = vsel %vm26, %v290, %v955
  %v2916 = vsel %vm26, %v291, %v957
  %v2917 = vsel %vm26, %v292, %v959
  %v2918 = vsel %vm26, %v293, %v961
  %v2919 = vsel %vm26, %v294, %v963
  %v2920 = vsel %vm26, %v295, %v965
  %v2921 = vsel %vm26, %v296, %v967
  %v2922 = vsel %vm26, %v297, %v969
  %v2923 = vsel %vm26, %v298, %v971
  %v2924 = vsel %vm26, %v299, %v973
  %v2925 = vsel %vm26, %v300, %v975
  %v2926 = vsel %vm26, %v301, %v977
  %v2927 = vsel %vm26, %v302, %v979
  %v2928 = vsel %vm26, %v303, %v981
  %v2929 = vsel %vm26, %v304, %v983
  %v2930 = vsel %vm26, %v305, %v985
  %v2931 = vsel %vm26, %v306, %v987
  %v2932 = vsel %vm26, %v307, %v989
  %v2933 = vsel %vm26, %v308, %v991
  %v2934 = vsel %vm26, %v309, %v993
  %v2935 = vsel %vm26, %v310, %v995
  %v2936 = vsel %vm26, %v311, %v997
  %v2937 = vsel %vm26, %v312, %v999
  %v2938 = vsel %vm26, %v313, %v1001
  %v2939 = vsel %vm26, %v314, %v1003
  %v2940 = vsel %vm26, %v315, %v1005
  %v2941 = vsel %vm26, %v316, %v1007
  %v2942 = vsel %vm26, %v317, %v1009
  %v2943 = vsel %vm26, %v318, %v1011
  %v2944 = vsel %vm26, %v319, %v1013
  %v2945 = vsel %vm26, %v320, %v1015
  %v2946 = vsel %vm26, %v321, %v1017
  %v2947 = vsel %vm26, %v322, %v1019
  %v2948 = vsel %vm26, %v323, %v1021
  %v2949 = vsel %vm26, %v324, %v1023
  %v2950 = vsel %vm26, %v325, %v1025
  %v2951 = vsel %vm26, %v326, %v1027
  %v2952 = vsel %vm26, %v327, %v1029
  %v2953 = vsel %vm26, %v328, %v1031
  %v2954 = vsel %vm26, %v329, %v1033
  %v2955 = vsel %vm26, %v330, %v1035
  %vm2956 = vcmask 64512
  %v2957 = vsel %vm2956, %v2892, %v1165
  %v2958 = vsel %vm2956, %v2893, %v1167
  %v2959 = vsel %vm2956, %v2894, %v1169
  %v2960 = vsel %vm2956, %v2895, %v1171
  %v2961 = vsel %vm2956, %v2896, %v1173
  %v2962 = vsel %vm2956, %v2897, %v1175
  %v2963 = vsel %vm2956, %v2898, %v1177
  %v2964 = vsel %vm2956, %v2899, %v1179
  %v2965 = vsel %vm2956, %v2900, %v1181
  %v2966 = vsel %vm2956, %v2901, %v1183
  %v2967 = vsel %vm2956, %v2902, %v1185
  %v2968 = vsel %vm2956, %v2903, %v1187
  %v2969 = vsel %vm2956, %v2904, %v1189
  %v2970 = vsel %vm2956, %v2905, %v1191
  %v2971 = vsel %vm2956, %v2906, %v1193
  %v2972 = vsel %vm2956, %v2907, %v1195
  %v2973 = vsel %vm2956, %v2908, %v1197
  %v2974 = vsel %vm2956, %v2909, %v1199
  %v2975 = vsel %vm2956, %v2910, %v1201
  %v2976 = vsel %vm2956, %v2911, %v1203
  %v2977 = vsel %vm2956, %v2912, %v1205
  %v2978 = vsel %vm2956, %v2913, %v1207
  %v2979 = vsel %vm2956, %v2914, %v1209
  %v2980 = vsel %vm2956, %v2915, %v1211
  %v2981 = vsel %vm2956, %v2916, %v1213
  %v2982 = vsel %vm2956, %v2917, %v1215
  %v2983 = vsel %vm2956, %v2918, %v1217
  %v2984 = vsel %vm2956, %v2919, %v1219
  %v2985 = vsel %vm2956, %v2920, %v1221
  %v2986 = vsel %vm2956, %v2921, %v1223
  %v2987 = vsel %vm2956, %v2922, %v1225
  %v2988 = vsel %vm2956, %v2923, %v1227
  %v2989 = vsel %vm2956, %v2924, %v1229
  %v2990 = vsel %vm2956, %v2925, %v1231
  %v2991 = vsel %vm2956, %v2926, %v1233
  %v2992 = vsel %vm2956, %v2927, %v1235
  %v2993 = vsel %vm2956, %v2928, %v1237
  %v2994 = vsel %vm2956, %v2929, %v1239
  %v2995 = vsel %vm2956, %v2930, %v1241
  %v2996 = vsel %vm2956, %v2931, %v1243
  %v2997 = vsel %vm2956, %v2932, %v1245
  %v2998 = vsel %vm2956, %v2933, %v1247
  %v2999 = vsel %vm2956, %v2934, %v1249
  %v3000 = vsel %vm2956, %v2935, %v1251
  %v3001 = vsel %vm2956, %v2936, %v1253
  %v3002 = vsel %vm2956, %v2937, %v1255
  %v3003 = vsel %vm2956, %v2938, %v1257
  %v3004 = vsel %vm2956, %v2939, %v1259
  %v3005 = vsel %vm2956, %v2940, %v1261
  %v3006 = vsel %vm2956, %v2941, %v1263
  %v3007 = vsel %vm2956, %v2942, %v1265
  %v3008 = vsel %vm2956, %v2943, %v1267
  %v3009 = vsel %vm2956, %v2944, %v1269
  %v3010 = vsel %vm2956, %v2945, %v1271
  %v3011 = vsel %vm2956, %v2946, %v1273
  %v3012 = vsel %vm2956, %v2947, %v1275
  %v3013 = vsel %vm2956, %v2948, %v1277
  %v3014 = vsel %vm2956, %v2949, %v1279
  %v3015 = vsel %vm2956, %v2950, %v1281
  %v3016 = vsel %vm2956, %v2951, %v1283
  %v3017 = vsel %vm2956, %v2952, %v1285
  %v3018 = vsel %vm2956, %v2953, %v1287
  %v3019 = vsel %vm2956, %v2954, %v1289
  %v3020 = vsel %vm2956, %v2955, %v1291
  %vm3021 = vcmask 97280
  %v3022 = vsel %vm3021, %v2957, %v1421
  %v3023 = vsel %vm3021, %v2958, %v1423
  %v3024 = vsel %vm3021, %v2959, %v1425
  %v3025 = vsel %vm3021, %v2960, %v1427
  %v3026 = vsel %vm3021, %v2961, %v1429
  %v3027 = vsel %vm3021, %v2962, %v1431
  %v3028 = vsel %vm3021, %v2963, %v1433
  %v3029 = vsel %vm3021, %v2964, %v1435
  %v3030 = vsel %vm3021, %v2965, %v1437
  %v3031 = vsel %vm3021, %v2966, %v1439
  %v3032 = vsel %vm3021, %v2967, %v1441
  %v3033 = vsel %vm3021, %v2968, %v1443
  %v3034 = vsel %vm3021, %v2969, %v1445
  %v3035 = vsel %vm3021, %v2970, %v1447
  %v3036 = vsel %vm3021, %v2971, %v1449
  %v3037 = vsel %vm3021, %v2972, %v1451
  %v3038 = vsel %vm3021, %v2973, %v1453
  %v3039 = vsel %vm3021, %v2974, %v1455
  %v3040 = vsel %vm3021, %v2975, %v1457
  %v3041 = vsel %vm3021, %v2976, %v1459
  %v3042 = vsel %vm3021, %v2977, %v1461
  %v3043 = vsel %vm3021, %v2978, %v1463
  %v3044 = vsel %vm3021, %v2979, %v1465
  %v3045 = vsel %vm3021, %v2980, %v1467
  %v3046 = vsel %vm3021, %v2981, %v1469
  %v3047 = vsel %vm3021, %v2982, %v1471
  %v3048 = vsel %vm3021, %v2983, %v1473
  %v3049 = vsel %vm3021, %v2984, %v1475
  %v3050 = vsel %vm3021, %v2985, %v1477
  %v3051 = vsel %vm3021, %v2986, %v1479
  %v3052 = vsel %vm3021, %v2987, %v1481
  %v3053 = vsel %vm3021, %v2988, %v1483
  %v3054 = vsel %vm3021, %v2989, %v1485
  %v3055 = vsel %vm3021, %v2990, %v1487
  %v3056 = vsel %vm3021, %v2991, %v1489
  %v3057 = vsel %vm3021, %v2992, %v1491
  %v3058 = vsel %vm3021, %v2993, %v1493
  %v3059 = vsel %vm3021, %v2994, %v1495
  %v3060 = vsel %vm3021, %v2995, %v1497
  %v3061 = vsel %vm3021, %v2996, %v1499
  %v3062 = vsel %vm3021, %v2997, %v1501
  %v3063 = vsel %vm3021, %v2998, %v1503
  %v3064 = vsel %vm3021, %v2999, %v1505
  %v3065 = vsel %vm3021, %v3000, %v1507
  %v3066 = vsel %vm3021, %v3001, %v1509
  %v3067 = vsel %vm3021, %v3002, %v1511
  %v3068 = vsel %vm3021, %v3003, %v1513
  %v3069 = vsel %vm3021, %v3004, %v1515
  %v3070 = vsel %vm3021, %v3005, %v1517
  %v3071 = vsel %vm3021, %v3006, %v1519
  %v3072 = vsel %vm3021, %v3007, %v1521
  %v3073 = vsel %vm3021, %v3008, %v1523
  %v3074 = vsel %vm3021, %v3009, %v1525
  %v3075 = vsel %vm3021, %v3010, %v1527
  %v3076 = vsel %vm3021, %v3011, %v1529
  %v3077 = vsel %vm3021, %v3012, %v1531
  %v3078 = vsel %vm3021, %v3013, %v1533
  %v3079 = vsel %vm3021, %v3014, %v1535
  %v3080 = vsel %vm3021, %v3015, %v1537
  %v3081 = vsel %vm3021, %v3016, %v1539
  %v3082 = vsel %vm3021, %v3017, %v1541
  %v3083 = vsel %vm3021, %v3018, %v1543
  %v3084 = vsel %vm3021, %v3019, %v1545
  %v3085 = vsel %vm3021, %v3020, %v1547
  %vm3086 = vcmask 130048
  %v3087 = vsel %vm3086, %v3022, %v1677
  %v3088 = vsel %vm3086, %v3023, %v1679
  %v3089 = vsel %vm3086, %v3024, %v1681
  %v3090 = vsel %vm3086, %v3025, %v1683
  %v3091 = vsel %vm3086, %v3026, %v1685
  %v3092 = vsel %vm3086, %v3027, %v1687
  %v3093 = vsel %vm3086, %v3028, %v1689
  %v3094 = vsel %vm3086, %v3029, %v1691
  %v3095 = vsel %vm3086, %v3030, %v1693
  %v3096 = vsel %vm3086, %v3031, %v1695
  %v3097 = vsel %vm3086, %v3032, %v1697
  %v3098 = vsel %vm3086, %v3033, %v1699
  %v3099 = vsel %vm3086, %v3034, %v1701
  %v3100 = vsel %vm3086, %v3035, %v1703
  %v3101 = vsel %vm3086, %v3036, %v1705
  %v3102 = vsel %vm3086, %v3037, %v1707
  %v3103 = vsel %vm3086, %v3038, %v1709
  %v3104 = vsel %vm3086, %v3039, %v1711
  %v3105 = vsel %vm3086, %v3040, %v1713
  %v3106 = vsel %vm3086, %v3041, %v1715
  %v3107 = vsel %vm3086, %v3042, %v1717
  %v3108 = vsel %vm3086, %v3043, %v1719
  %v3109 = vsel %vm3086, %v3044, %v1721
  %v3110 = vsel %vm3086, %v3045, %v1723
  %v3111 = vsel %vm3086, %v3046, %v1725
  %v3112 = vsel %vm3086, %v3047, %v1727
  %v3113 = vsel %vm3086, %v3048, %v1729
  %v3114 = vsel %vm3086, %v3049, %v1731
  %v3115 = vsel %vm3086, %v3050, %v1733
  %v3116 = vsel %vm3086, %v3051, %v1735
  %v3117 = vsel %vm3086, %v3052, %v1737
  %v3118 = vsel %vm3086, %v3053, %v1739
  %v3119 = vsel %vm3086, %v3054, %v1741
  %v3120 = vsel %vm3086, %v3055, %v1743
  %v3121 = vsel %vm3086, %v3056, %v1745
  %v3122 = vsel %vm3086, %v3057, %v1747
  %v3123 = vsel %vm3086, %v3058, %v1749
  %v3124 = vsel %vm3086, %v3059, %v1751
  %v3125 = vsel %vm3086, %v3060, %v1753
  %v3126 = vsel %vm3086, %v3061, %v1755
  %v3127 = vsel %vm3086, %v3062, %v1757
  %v3128 = vsel %vm3086, %v3063, %v1759
  %v3129 = vsel %vm3086, %v3064, %v1761
  %v3130 = vsel %vm3086, %v3065, %v1763
  %v3131 = vsel %vm3086, %v3066, %v1765
  %v3132 = vsel %vm3086, %v3067, %v1767
  %v3133 = vsel %vm3086, %v3068, %v1769
  %v3134 = vsel %vm3086, %v3069, %v1771
  %v3135 = vsel %vm3086, %v3070, %v1773
  %v3136 = vsel %vm3086, %v3071, %v1775
  %v3137 = vsel %vm3086, %v3072, %v1777
  %v3138 = vsel %vm3086, %v3073, %v1779
  %v3139 = vsel %vm3086, %v3074, %v1781
  %v3140 = vsel %vm3086, %v3075, %v1783
  %v3141 = vsel %vm3086, %v3076, %v1785
  %v3142 = vsel %vm3086, %v3077, %v1787
  %v3143 = vsel %vm3086, %v3078, %v1789
  %v3144 = vsel %vm3086, %v3079, %v1791
  %v3145 = vsel %vm3086, %v3080, %v1793
  %v3146 = vsel %vm3086, %v3081, %v1795
  %v3147 = vsel %vm3086, %v3082, %v1797
  %v3148 = vsel %vm3086, %v3083, %v1799
  %v3149 = vsel %vm3086, %v3084, %v1801
  %v3150 = vsel %vm3086, %v3085, %v1803
  %vm3151 = vcmask 162816
  %v3152 = vsel %vm3151, %v3087, %v1933
  %v3153 = vsel %vm3151, %v3088, %v1935
  %v3154 = vsel %vm3151, %v3089, %v1937
  %v3155 = vsel %vm3151, %v3090, %v1939
  %v3156 = vsel %vm3151, %v3091, %v1941
  %v3157 = vsel %vm3151, %v3092, %v1943
  %v3158 = vsel %vm3151, %v3093, %v1945
  %v3159 = vsel %vm3151, %v3094, %v1947
  %v3160 = vsel %vm3151, %v3095, %v1949
  %v3161 = vsel %vm3151, %v3096, %v1951
  %v3162 = vsel %vm3151, %v3097, %v1953
  %v3163 = vsel %vm3151, %v3098, %v1955
  %v3164 = vsel %vm3151, %v3099, %v1957
  %v3165 = vsel %vm3151, %v3100, %v1959
  %v3166 = vsel %vm3151, %v3101, %v1961
  %v3167 = vsel %vm3151, %v3102, %v1963
  %v3168 = vsel %vm3151, %v3103, %v1965
  %v3169 = vsel %vm3151, %v3104, %v1967
  %v3170 = vsel %vm3151, %v3105, %v1969
  %v3171 = vsel %vm3151, %v3106, %v1971
  %v3172 = vsel %vm3151, %v3107, %v1973
  %v3173 = vsel %vm3151, %v3108, %v1975
  %v3174 = vsel %vm3151, %v3109, %v1977
  %v3175 = vsel %vm3151, %v3110, %v1979
  %v3176 = vsel %vm3151, %v3111, %v1981
  %v3177 = vsel %vm3151, %v3112, %v1983
  %v3178 = vsel %vm3151, %v3113, %v1985
  %v3179 = vsel %vm3151, %v3114, %v1987
  %v3180 = vsel %vm3151, %v3115, %v1989
  %v3181 = vsel %vm3151, %v3116, %v1991
  %v3182 = vsel %vm3151, %v3117, %v1993
  %v3183 = vsel %vm3151, %v3118, %v1995
  %v3184 = vsel %vm3151, %v3119, %v1997
  %v3185 = vsel %vm3151, %v3120, %v1999
  %v3186 = vsel %vm3151, %v3121, %v2001
  %v3187 = vsel %vm3151, %v3122, %v2003
  %v3188 = vsel %vm3151, %v3123, %v2005
  %v3189 = vsel %vm3151, %v3124, %v2007
  %v3190 = vsel %vm3151, %v3125, %v2009
  %v3191 = vsel %vm3151, %v3126, %v2011
  %v3192 = vsel %vm3151, %v3127, %v2013
  %v3193 = vsel %vm3151, %v3128, %v2015
  %v3194 = vsel %vm3151, %v3129, %v2017
  %v3195 = vsel %vm3151, %v3130, %v2019
  %v3196 = vsel %vm3151, %v3131, %v2021
  %v3197 = vsel %vm3151, %v3132, %v2023
  %v3198 = vsel %vm3151, %v3133, %v2025
  %v3199 = vsel %vm3151, %v3134, %v2027
  %v3200 = vsel %vm3151, %v3135, %v2029
  %v3201 = vsel %vm3151, %v3136, %v2031
  %v3202 = vsel %vm3151, %v3137, %v2033
  %v3203 = vsel %vm3151, %v3138, %v2035
  %v3204 = vsel %vm3151, %v3139, %v2037
  %v3205 = vsel %vm3151, %v3140, %v2039
  %v3206 = vsel %vm3151, %v3141, %v2041
  %v3207 = vsel %vm3151, %v3142, %v2043
  %v3208 = vsel %vm3151, %v3143, %v2045
  %v3209 = vsel %vm3151, %v3144, %v2047
  %v3210 = vsel %vm3151, %v3145, %v2049
  %v3211 = vsel %vm3151, %v3146, %v2051
  %v3212 = vsel %vm3151, %v3147, %v2053
  %v3213 = vsel %vm3151, %v3148, %v2055
  %v3214 = vsel %vm3151, %v3149, %v2057
  %v3215 = vsel %vm3151, %v3150, %v2059
  %vm3216 = vcmask 195584
  %v3217 = vsel %vm3216, %v3152, %v2189
  %v3218 = vsel %vm3216, %v3153, %v2191
  %v3219 = vsel %vm3216, %v3154, %v2193
  %v3220 = vsel %vm3216, %v3155, %v2195
  %v3221 = vsel %vm3216, %v3156, %v2197
  %v3222 = vsel %vm3216, %v3157, %v2199
  %v3223 = vsel %vm3216, %v3158, %v2201
  %v3224 = vsel %vm3216, %v3159, %v2203
  %v3225 = vsel %vm3216, %v3160, %v2205
  %v3226 = vsel %vm3216, %v3161, %v2207
  %v3227 = vsel %vm3216, %v3162, %v2209
  %v3228 = vsel %vm3216, %v3163, %v2211
  %v3229 = vsel %vm3216, %v3164, %v2213
  %v3230 = vsel %vm3216, %v3165, %v2215
  %v3231 = vsel %vm3216, %v3166, %v2217
  %v3232 = vsel %vm3216, %v3167, %v2219
  %v3233 = vsel %vm3216, %v3168, %v2221
  %v3234 = vsel %vm3216, %v3169, %v2223
  %v3235 = vsel %vm3216, %v3170, %v2225
  %v3236 = vsel %vm3216, %v3171, %v2227
  %v3237 = vsel %vm3216, %v3172, %v2229
  %v3238 = vsel %vm3216, %v3173, %v2231
  %v3239 = vsel %vm3216, %v3174, %v2233
  %v3240 = vsel %vm3216, %v3175, %v2235
  %v3241 = vsel %vm3216, %v3176, %v2237
  %v3242 = vsel %vm3216, %v3177, %v2239
  %v3243 = vsel %vm3216, %v3178, %v2241
  %v3244 = vsel %vm3216, %v3179, %v2243
  %v3245 = vsel %vm3216, %v3180, %v2245
  %v3246 = vsel %vm3216, %v3181, %v2247
  %v3247 = vsel %vm3216, %v3182, %v2249
  %v3248 = vsel %vm3216, %v3183, %v2251
  %v3249 = vsel %vm3216, %v3184, %v2253
  %v3250 = vsel %vm3216, %v3185, %v2255
  %v3251 = vsel %vm3216, %v3186, %v2257
  %v3252 = vsel %vm3216, %v3187, %v2259
  %v3253 = vsel %vm3216, %v3188, %v2261
  %v3254 = vsel %vm3216, %v3189, %v2263
  %v3255 = vsel %vm3216, %v3190, %v2265
  %v3256 = vsel %vm3216, %v3191, %v2267
  %v3257 = vsel %vm3216, %v3192, %v2269
  %v3258 = vsel %vm3216, %v3193, %v2271
  %v3259 = vsel %vm3216, %v3194, %v2273
  %v3260 = vsel %vm3216, %v3195, %v2275
  %v3261 = vsel %vm3216, %v3196, %v2277
  %v3262 = vsel %vm3216, %v3197, %v2279
  %v3263 = vsel %vm3216, %v3198, %v2281
  %v3264 = vsel %vm3216, %v3199, %v2283
  %v3265 = vsel %vm3216, %v3200, %v2285
  %v3266 = vsel %vm3216, %v3201, %v2287
  %v3267 = vsel %vm3216, %v3202, %v2289
  %v3268 = vsel %vm3216, %v3203, %v2291
  %v3269 = vsel %vm3216, %v3204, %v2293
  %v3270 = vsel %vm3216, %v3205, %v2295
  %v3271 = vsel %vm3216, %v3206, %v2297
  %v3272 = vsel %vm3216, %v3207, %v2299
  %v3273 = vsel %vm3216, %v3208, %v2301
  %v3274 = vsel %vm3216, %v3209, %v2303
  %v3275 = vsel %vm3216, %v3210, %v2305
  %v3276 = vsel %vm3216, %v3211, %v2307
  %v3277 = vsel %vm3216, %v3212, %v2309
  %v3278 = vsel %vm3216, %v3213, %v2311
  %v3279 = vsel %vm3216, %v3214, %v2313
  %v3280 = vsel %vm3216, %v3215, %v2315
  %vm3281 = vcmask 228352
  %v3282 = vsel %vm3281, %v3217, %v2445
  %v3283 = vsel %vm3281, %v3218, %v2447
  %v3284 = vsel %vm3281, %v3219, %v2449
  %v3285 = vsel %vm3281, %v3220, %v2451
  %v3286 = vsel %vm3281, %v3221, %v2453
  %v3287 = vsel %vm3281, %v3222, %v2455
  %v3288 = vsel %vm3281, %v3223, %v2457
  %v3289 = vsel %vm3281, %v3224, %v2459
  %v3290 = vsel %vm3281, %v3225, %v2461
  %v3291 = vsel %vm3281, %v3226, %v2463
  %v3292 = vsel %vm3281, %v3227, %v2465
  %v3293 = vsel %vm3281, %v3228, %v2467
  %v3294 = vsel %vm3281, %v3229, %v2469
  %v3295 = vsel %vm3281, %v3230, %v2471
  %v3296 = vsel %vm3281, %v3231, %v2473
  %v3297 = vsel %vm3281, %v3232, %v2475
  %v3298 = vsel %vm3281, %v3233, %v2477
  %v3299 = vsel %vm3281, %v3234, %v2479
  %v3300 = vsel %vm3281, %v3235, %v2481
  %v3301 = vsel %vm3281, %v3236, %v2483
  %v3302 = vsel %vm3281, %v3237, %v2485
  %v3303 = vsel %vm3281, %v3238, %v2487
  %v3304 = vsel %vm3281, %v3239, %v2489
  %v3305 = vsel %vm3281, %v3240, %v2491
  %v3306 = vsel %vm3281, %v3241, %v2493
  %v3307 = vsel %vm3281, %v3242, %v2495
  %v3308 = vsel %vm3281, %v3243, %v2497
  %v3309 = vsel %vm3281, %v3244, %v2499
  %v3310 = vsel %vm3281, %v3245, %v2501
  %v3311 = vsel %vm3281, %v3246, %v2503
  %v3312 = vsel %vm3281, %v3247, %v2505
  %v3313 = vsel %vm3281, %v3248, %v2507
  %v3314 = vsel %vm3281, %v3249, %v2509
  %v3315 = vsel %vm3281, %v3250, %v2511
  %v3316 = vsel %vm3281, %v3251, %v2513
  %v3317 = vsel %vm3281, %v3252, %v2515
  %v3318 = vsel %vm3281, %v3253, %v2517
  %v3319 = vsel %vm3281, %v3254, %v2519
  %v3320 = vsel %vm3281, %v3255, %v2521
  %v3321 = vsel %vm3281, %v3256, %v2523
  %v3322 = vsel %vm3281, %v3257, %v2525
  %v3323 = vsel %vm3281, %v3258, %v2527
  %v3324 = vsel %vm3281, %v3259, %v2529
  %v3325 = vsel %vm3281, %v3260, %v2531
  %v3326 = vsel %vm3281, %v3261, %v2533
  %v3327 = vsel %vm3281, %v3262, %v2535
  %v3328 = vsel %vm3281, %v3263, %v2537
  %v3329 = vsel %vm3281, %v3264, %v2539
  %v3330 = vsel %vm3281, %v3265, %v2541
  %v3331 = vsel %vm3281, %v3266, %v2543
  %v3332 = vsel %vm3281, %v3267, %v2545
  %v3333 = vsel %vm3281, %v3268, %v2547
  %v3334 = vsel %vm3281, %v3269, %v2549
  %v3335 = vsel %vm3281, %v3270, %v2551
  %v3336 = vsel %vm3281, %v3271, %v2553
  %v3337 = vsel %vm3281, %v3272, %v2555
  %v3338 = vsel %vm3281, %v3273, %v2557
  %v3339 = vsel %vm3281, %v3274, %v2559
  %v3340 = vsel %vm3281, %v3275, %v2561
  %v3341 = vsel %vm3281, %v3276, %v2563
  %v3342 = vsel %vm3281, %v3277, %v2565
  %v3343 = vsel %vm3281, %v3278, %v2567
  %v3344 = vsel %vm3281, %v3279, %v2569
  %v3345 = vsel %vm3281, %v3280, %v2571
  %vm3346 = vcmask 261120
  %v3347 = vsel %vm3346, %v3282, %v2701
  %v3348 = vsel %vm3346, %v3283, %v2703
  %v3349 = vsel %vm3346, %v3284, %v2705
  %v3350 = vsel %vm3346, %v3285, %v2707
  %v3351 = vsel %vm3346, %v3286, %v2709
  %v3352 = vsel %vm3346, %v3287, %v2711
  %v3353 = vsel %vm3346, %v3288, %v2713
  %v3354 = vsel %vm3346, %v3289, %v2715
  %v3355 = vsel %vm3346, %v3290, %v2717
  %v3356 = vsel %vm3346, %v3291, %v2719
  %v3357 = vsel %vm3346, %v3292, %v2721
  %v3358 = vsel %vm3346, %v3293, %v2723
  %v3359 = vsel %vm3346, %v3294, %v2725
  %v3360 = vsel %vm3346, %v3295, %v2727
  %v3361 = vsel %vm3346, %v3296, %v2729
  %v3362 = vsel %vm3346, %v3297, %v2731
  %v3363 = vsel %vm3346, %v3298, %v2733
  %v3364 = vsel %vm3346, %v3299, %v2735
  %v3365 = vsel %vm3346, %v3300, %v2737
  %v3366 = vsel %vm3346, %v3301, %v2739
  %v3367 = vsel %vm3346, %v3302, %v2741
  %v3368 = vsel %vm3346, %v3303, %v2743
  %v3369 = vsel %vm3346, %v3304, %v2745
  %v3370 = vsel %vm3346, %v3305, %v2747
  %v3371 = vsel %vm3346, %v3306, %v2749
  %v3372 = vsel %vm3346, %v3307, %v2751
  %v3373 = vsel %vm3346, %v3308, %v2753
  %v3374 = vsel %vm3346, %v3309, %v2755
  %v3375 = vsel %vm3346, %v3310, %v2757
  %v3376 = vsel %vm3346, %v3311, %v2759
  %v3377 = vsel %vm3346, %v3312, %v2761
  %v3378 = vsel %vm3346, %v3313, %v2763
  %v3379 = vsel %vm3346, %v3314, %v2765
  %v3380 = vsel %vm3346, %v3315, %v2767
  %v3381 = vsel %vm3346, %v3316, %v2769
  %v3382 = vsel %vm3346, %v3317, %v2771
  %v3383 = vsel %vm3346, %v3318, %v2773
  %v3384 = vsel %vm3346, %v3319, %v2775
  %v3385 = vsel %vm3346, %v3320, %v2777
  %v3386 = vsel %vm3346, %v3321, %v2779
  %v3387 = vsel %vm3346, %v3322, %v2781
  %v3388 = vsel %vm3346, %v3323, %v2783
  %v3389 = vsel %vm3346, %v3324, %v2785
  %v3390 = vsel %vm3346, %v3325, %v2787
  %v3391 = vsel %vm3346, %v3326, %v2789
  %v3392 = vsel %vm3346, %v3327, %v2791
  %v3393 = vsel %vm3346, %v3328, %v2793
  %v3394 = vsel %vm3346, %v3329, %v2795
  %v3395 = vsel %vm3346, %v3330, %v2797
  %v3396 = vsel %vm3346, %v3331, %v2799
  %v3397 = vsel %vm3346, %v3332, %v2801
  %v3398 = vsel %vm3346, %v3333, %v2803
  %v3399 = vsel %vm3346, %v3334, %v2805
  %v3400 = vsel %vm3346, %v3335, %v2807
  %v3401 = vsel %vm3346, %v3336, %v2809
  %v3402 = vsel %vm3346, %v3337, %v2811
  %v3403 = vsel %vm3346, %v3338, %v2813
  %v3404 = vsel %vm3346, %v3339, %v2815
  %v3405 = vsel %vm3346, %v3340, %v2817
  %v3406 = vsel %vm3346, %v3341, %v2819
  %v3407 = vsel %vm3346, %v3342, %v2821
  %v3408 = vsel %vm3346, %v3343, %v2823
  %v3409 = vsel %vm3346, %v3344, %v2825
  %v3410 = vsel %vm3346, %v3345, %v2827
  %v3411 = vld [vmem:[%s1] sm:$0xff]
  %v3412 = vld [vmem:[%s1 + $0x8] sm:$0xff]
  %v3413 = vld [vmem:[%s1 + $0x10] sm:$0xff]
  %v3414 = vld [vmem:[%s1 + $0x18] sm:$0xff]
  %v3415 = vld [vmem:[%s1 + $0x20] sm:$0xf]
  %vm3416 = vcmask 293888
  %v3418 = vsel %vm3416, %v3347, 0
  %v3421 = vsel %vm3416, %v3348, 0
  %v3424 = vsel %vm3416, %v3349, 0
  %v3427 = vsel %vm3416, %v3350, 0
  %v3430 = vsel %vm3416, %v3351, 0
  %v3433 = vsel %vm3416, %v3352, 0
  %v3436 = vsel %vm3416, %v3353, 0
  %v3439 = vsel %vm3416, %v3354, 0
  %v3442 = vsel %vm3416, %v3355, 0
  %v3445 = vsel %vm3416, %v3356, 0
  %v3448 = vsel %vm3416, %v3357, 0
  %v3451 = vsel %vm3416, %v3358, 0
  %v3454 = vsel %vm3416, %v3359, 0
  %v3457 = vsel %vm3416, %v3360, 0
  %v3460 = vsel %vm3416, %v3361, 0
  %v3463 = vsel %vm3416, %v3362, 0
  %v3466 = vsel %vm3416, %v3363, 0
  %v3469 = vsel %vm3416, %v3364, 0
  %v3472 = vsel %vm3416, %v3365, 0
  %v3475 = vsel %vm3416, %v3366, 0
  %v3478 = vsel %vm3416, %v3367, 0
  %v3481 = vsel %vm3416, %v3368, 0
  %v3484 = vsel %vm3416, %v3369, 0
  %v3487 = vsel %vm3416, %v3370, 0
  %v3490 = vsel %vm3416, %v3371, 0
  %v3493 = vsel %vm3416, %v3372, 0
  %v3496 = vsel %vm3416, %v3373, 0
  %v3499 = vsel %vm3416, %v3374, 0
  %v3502 = vsel %vm3416, %v3375, 0
  %v3505 = vsel %vm3416, %v3376, 0
  %v3508 = vsel %vm3416, %v3377, 0
  %v3511 = vsel %vm3416, %v3378, 0
  %v3514 = vsel %vm3416, %v3379, 0
  %v3517 = vsel %vm3416, %v3380, 0
  %v3520 = vsel %vm3416, %v3381, 0
  %v3523 = vsel %vm3416, %v3382, 0
  %v3526 = vsel %vm3416, %v3383, 0
  %v3529 = vsel %vm3416, %v3384, 0
  %v3532 = vsel %vm3416, %v3385, 0
  %v3535 = vsel %vm3416, %v3386, 0
  %v3538 = vsel %vm3416, %v3387, 0
  %v3541 = vsel %vm3416, %v3388, 0
  %v3544 = vsel %vm3416, %v3389, 0
  %v3547 = vsel %vm3416, %v3390, 0
  %v3550 = vsel %vm3416, %v3391, 0
  %v3553 = vsel %vm3416, %v3392, 0
  %v3556 = vsel %vm3416, %v3393, 0
  %v3559 = vsel %vm3416, %v3394, 0
  %v3562 = vsel %vm3416, %v3395, 0
  %v3565 = vsel %vm3416, %v3396, 0
  %v3568 = vsel %vm3416, %v3397, 0
  %v3571 = vsel %vm3416, %v3398, 0
  %v3574 = vsel %vm3416, %v3399, 0
  %v3577 = vsel %vm3416, %v3400, 0
  %v3580 = vsel %vm3416, %v3401, 0
  %v3583 = vsel %vm3416, %v3402, 0
  %v3586 = vsel %vm3416, %v3403, 0
  %v3589 = vsel %vm3416, %v3404, 0
  %v3592 = vsel %vm3416, %v3405, 0
  %v3595 = vsel %vm3416, %v3406, 0
  %v3598 = vsel %vm3416, %v3407, 0
  %v3601 = vsel %vm3416, %v3408, 0
  %v3604 = vsel %vm3416, %v3409, 0
  %v3607 = vsel %vm3416, %v3410, 0
  %vm3609 = vcmask 1043456
  %v3611 = vsel %vm3609, %v3415, 0
  %3613 = vmatprep.subr.mxu0 0.0
  %3614 = vmatpush1.msra.mxu0 0.0
  %3615 = vmatprep.subr.mxu0 0.0
  %3616 = vmatpush1.msra.mxu0 0.0
  %3617 = vmatprep.subr.mxu0 0.0
  %3618 = vmatpush1.msra.mxu0 0.0
  %3619 = vmatprep.subr.mxu0 0.0
  %3620 = vmatpush1.msra.mxu0 0.0
  %3621 = vmatprep.subr.mxu0 0.0
  %3622 = vmatpush1.msra.mxu0 0.0
  %3623 = vmatprep.subr.mxu0 0.0
  %3624 = vmatpush1.msra.mxu0 0.0
  %3625 = vmatprep.subr.mxu0 0.0
  %3626 = vmatpush1.msra.mxu0 0.0
  %3627 = vmatprep.subr.mxu0 0.0
  %3628 = vmatpush1.msra.mxu0 0.0
  %3629 = vmatprep.subr.mxu0 0.0
  %3630 = vmatpush1.msra.mxu0 0.0
  %3631 = vmatprep.subr.mxu0 0.0
  %3632 = vmatpush1.msra.mxu0 0.0
  %3633 = vmatprep.subr.mxu0 0.0
  %3634 = vmatpush1.msra.mxu0 0.0
  %3635 = vmatprep.subr.mxu0 0.0
  %3636 = vmatpush1.msra.mxu0 %v3611
  %3637 = vmatprep.subr.mxu0 0.0
  %3638 = vmatpush1.msra.mxu0 %v3414
  %3639 = vmatprep.subr.mxu0 0.0
  %3640 = vmatpush1.msra.mxu0 %v3413
  %3641 = vmatprep.subr.mxu0 0.0
  %3642 = vmatpush1.msra.mxu0 %v3412
  %3643 = vmatprep.subr.mxu0 0.0
  %3644 = vmatpush1.msra.mxu0 %v3411
  %3645 = vmatprep.subr.mxu0 0.0
  %3646 = vmatpush2.msra.mxu0 0.0
  %3647 = vmatprep.subr.mxu0 0.0
  %3648 = vmatpush2.msra.mxu0 0.0
  %3649 = vmatprep.subr.mxu0 0.0
  %3650 = vmatpush2.msra.mxu0 0.0
  %3651 = vmatprep.subr.mxu0 0.0
  %3652 = vmatpush2.msra.mxu0 0.0
  %3653 = vmatprep.subr.mxu0 0.0
  %3654 = vmatpush2.msra.mxu0 0.0
  %3655 = vmatprep.subr.mxu0 0.0
  %3656 = vmatpush2.msra.mxu0 0.0
  %3657 = vmatprep.subr.mxu0 0.0
  %3658 = vmatpush2.msra.mxu0 0.0
  %3659 = vmatprep.subr.mxu0 0.0
  %3660 = vmatpush2.msra.mxu0 0.0
  %3661 = vmatprep.subr.mxu0 0.0
  %3662 = vmatpush2.msra.mxu0 0.0
  %3663 = vmatprep.subr.mxu0 0.0
  %3664 = vmatpush2.msra.mxu0 0.0
  %3665 = vmatprep.subr.mxu0 0.0
  %3666 = vmatpush2.msra.mxu0 0.0
  %3667 = vmatprep.subr.mxu0 0.0
  %3668 = vmatpush2.msra.mxu0 0.0
  %3669 = vmatprep.subr.mxu0 0.0
  %3670 = vmatpush2.msra.mxu0 0.0
  %3671 = vmatprep.subr.mxu0 0.0
  %3672 = vmatpush2.msra.mxu0 0.0
  %3673 = vmatprep.subr.mxu0 0.0
  %3674 = vmatpush2.msra.mxu0 0.0
  %3675 = vmatprep.subr.mxu0 0.0
  %3676 = vmatpush2.msra.mxu0 0.0
  %3677 = vmatprep.mubr.f32.mxu0 0.0
  %3678 = vmatmul.mubr.f32.gmra.mxu0 %v3418
  %v3679 = vpop.f32.mrf.mxu0
  %v3680 = vadd.f32 0.0, %v3679
  %v3681 = vpop.f32.mrf.mxu0
  %3682 = vmatprep.mubr.f32.mxu0 0.0
  %3683 = vmatmul.mubr.f32.gmra.mxu0 %v3421
  %v3684 = vpop.f32.mrf.mxu0
  %v3685 = vadd.f32 0.0, %v3684
  %v3686 = vpop.f32.mrf.mxu0
  %3687 = vmatprep.mubr.f32.mxu0 0.0
  %3688 = vmatmul.mubr.f32.gmra.mxu0 %v3424
  %v3689 = vpop.f32.mrf.mxu0
  %v3690 = vadd.f32 0.0, %v3689
  %v3691 = vpop.f32.mrf.mxu0
  %3692 = vmatprep.mubr.f32.mxu0 0.0
  %3693 = vmatmul.mubr.f32.gmra.mxu0 %v3427
  %v3694 = vpop.f32.mrf.mxu0
  %v3695 = vadd.f32 0.0, %v3694
  %v3696 = vpop.f32.mrf.mxu0
  %3697 = vmatprep.mubr.f32.mxu0 0.0
  %3698 = vmatmul.mubr.f32.gmra.mxu0 %v3430
  %v3699 = vpop.f32.mrf.mxu0
  %v3700 = vadd.f32 0.0, %v3699
  %v3701 = vpop.f32.mrf.mxu0
  %3702 = vmatprep.mubr.f32.mxu0 0.0
  %3703 = vmatmul.mubr.f32.gmra.mxu0 %v3433
  %v3704 = vpop.f32.mrf.mxu0
  %v3705 = vadd.f32 0.0, %v3704
  %v3706 = vpop.f32.mrf.mxu0
  %3707 = vmatprep.mubr.f32.mxu0 0.0
  %3708 = vmatmul.mubr.f32.gmra.mxu0 %v3436
  %v3709 = vpop.f32.mrf.mxu0
  %v3710 = vadd.f32 0.0, %v3709
  %v3711 = vpop.f32.mrf.mxu0
  %3712 = vmatprep.mubr.f32.mxu0 0.0
  %3713 = vmatmul.mubr.f32.gmra.mxu0 %v3439
  %v3714 = vpop.f32.mrf.mxu0
  %v3715 = vadd.f32 0.0, %v3714
  %v3716 = vpop.f32.mrf.mxu0
  %3717 = vmatprep.mubr.f32.mxu0 0.0
  %3718 = vmatmul.mubr.f32.gmra.mxu0 %v3442
  %v3719 = vpop.f32.mrf.mxu0
  %v3720 = vadd.f32 0.0, %v3719
  %v3721 = vpop.f32.mrf.mxu0
  %3722 = vmatprep.mubr.f32.mxu0 0.0
  %3723 = vmatmul.mubr.f32.gmra.mxu0 %v3445
  %v3724 = vpop.f32.mrf.mxu0
  %v3725 = vadd.f32 0.0, %v3724
  %v3726 = vpop.f32.mrf.mxu0
  %3727 = vmatprep.mubr.f32.mxu0 0.0
  %3728 = vmatmul.mubr.f32.gmra.mxu0 %v3448
  %v3729 = vpop.f32.mrf.mxu0
  %v3730 = vadd.f32 0.0, %v3729
  %v3731 = vpop.f32.mrf.mxu0
  %3732 = vmatprep.mubr.f32.mxu0 0.0
  %3733 = vmatmul.mubr.f32.gmra.mxu0 %v3451
  %v3734 = vpop.f32.mrf.mxu0
  %v3735 = vadd.f32 0.0, %v3734
  %v3736 = vpop.f32.mrf.mxu0
  %3737 = vmatprep.mubr.f32.mxu0 0.0
  %3738 = vmatmul.mubr.f32.gmra.mxu0 %v3454
  %v3739 = vpop.f32.mrf.mxu0
  %v3740 = vadd.f32 0.0, %v3739
  %v3741 = vpop.f32.mrf.mxu0
  %3742 = vmatprep.mubr.f32.mxu0 0.0
  %3743 = vmatmul.mubr.f32.gmra.mxu0 %v3457
  %v3744 = vpop.f32.mrf.mxu0
  %v3745 = vadd.f32 0.0, %v3744
  %v3746 = vpop.f32.mrf.mxu0
  %3747 = vmatprep.mubr.f32.mxu0 0.0
  %3748 = vmatmul.mubr.f32.gmra.mxu0 %v3460
  %v3749 = vpop.f32.mrf.mxu0
  %v3750 = vadd.f32 0.0, %v3749
  %v3751 = vpop.f32.mrf.mxu0
  %3752 = vmatprep.mubr.f32.mxu0 0.0
  %3753 = vmatmul.mubr.f32.gmra.mxu0 %v3463
  %v3754 = vpop.f32.mrf.mxu0
  %v3755 = vadd.f32 0.0, %v3754
  %v3756 = vpop.f32.mrf.mxu0
  %3757 = vmatprep.mubr.f32.mxu0 0.0
  %3758 = vmatmul.mubr.f32.gmra.mxu0 %v3466
  %v3759 = vpop.f32.mrf.mxu0
  %v3760 = vadd.f32 0.0, %v3759
  %v3761 = vpop.f32.mrf.mxu0
  %3762 = vmatprep.mubr.f32.mxu0 0.0
  %3763 = vmatmul.mubr.f32.gmra.mxu0 %v3469
  %v3764 = vpop.f32.mrf.mxu0
  %v3765 = vadd.f32 0.0, %v3764
  %v3766 = vpop.f32.mrf.mxu0
  %3767 = vmatprep.mubr.f32.mxu0 0.0
  %3768 = vmatmul.mubr.f32.gmra.mxu0 %v3472
  %v3769 = vpop.f32.mrf.mxu0
  %v3770 = vadd.f32 0.0, %v3769
  %v3771 = vpop.f32.mrf.mxu0
  %3772 = vmatprep.mubr.f32.mxu0 0.0
  %3773 = vmatmul.mubr.f32.gmra.mxu0 %v3475
  %v3774 = vpop.f32.mrf.mxu0
  %v3775 = vadd.f32 0.0, %v3774
  %v3776 = vpop.f32.mrf.mxu0
  %3777 = vmatprep.mubr.f32.mxu0 0.0
  %3778 = vmatmul.mubr.f32.gmra.mxu0 %v3478
  %v3779 = vpop.f32.mrf.mxu0
  %v3780 = vadd.f32 0.0, %v3779
  %v3781 = vpop.f32.mrf.mxu0
  %3782 = vmatprep.mubr.f32.mxu0 0.0
  %3783 = vmatmul.mubr.f32.gmra.mxu0 %v3481
  %v3784 = vpop.f32.mrf.mxu0
  %v3785 = vadd.f32 0.0, %v3784
  %v3786 = vpop.f32.mrf.mxu0
  %3787 = vmatprep.mubr.f32.mxu0 0.0
  %3788 = vmatmul.mubr.f32.gmra.mxu0 %v3484
  %v3789 = vpop.f32.mrf.mxu0
  %v3790 = vadd.f32 0.0, %v3789
  %v3791 = vpop.f32.mrf.mxu0
  %3792 = vmatprep.mubr.f32.mxu0 0.0
  %3793 = vmatmul.mubr.f32.gmra.mxu0 %v3487
  %v3794 = vpop.f32.mrf.mxu0
  %v3795 = vadd.f32 0.0, %v3794
  %v3796 = vpop.f32.mrf.mxu0
  %3797 = vmatprep.mubr.f32.mxu0 0.0
  %3798 = vmatmul.mubr.f32.gmra.mxu0 %v3490
  %v3799 = vpop.f32.mrf.mxu0
  %v3800 = vadd.f32 0.0, %v3799
  %v3801 = vpop.f32.mrf.mxu0
  %3802 = vmatprep.mubr.f32.mxu0 0.0
  %3803 = vmatmul.mubr.f32.gmra.mxu0 %v3493
  %v3804 = vpop.f32.mrf.mxu0
  %v3805 = vadd.f32 0.0, %v3804
  %v3806 = vpop.f32.mrf.mxu0
  %3807 = vmatprep.mubr.f32.mxu0 0.0
  %3808 = vmatmul.mubr.f32.gmra.mxu0 %v3496
  %v3809 = vpop.f32.mrf.mxu0
  %v3810 = vadd.f32 0.0, %v3809
  %v3811 = vpop.f32.mrf.mxu0
  %3812 = vmatprep.mubr.f32.mxu0 0.0
  %3813 = vmatmul.mubr.f32.gmra.mxu0 %v3499
  %v3814 = vpop.f32.mrf.mxu0
  %v3815 = vadd.f32 0.0, %v3814
  %v3816 = vpop.f32.mrf.mxu0
  %3817 = vmatprep.mubr.f32.mxu0 0.0
  %3818 = vmatmul.mubr.f32.gmra.mxu0 %v3502
  %v3819 = vpop.f32.mrf.mxu0
  %v3820 = vadd.f32 0.0, %v3819
  %v3821 = vpop.f32.mrf.mxu0
  %3822 = vmatprep.mubr.f32.mxu0 0.0
  %3823 = vmatmul.mubr.f32.gmra.mxu0 %v3505
  %v3824 = vpop.f32.mrf.mxu0
  %v3825 = vadd.f32 0.0, %v3824
  %v3826 = vpop.f32.mrf.mxu0
  %3827 = vmatprep.mubr.f32.mxu0 0.0
  %3828 = vmatmul.mubr.f32.gmra.mxu0 %v3508
  %v3829 = vpop.f32.mrf.mxu0
  %v3830 = vadd.f32 0.0, %v3829
  %v3831 = vpop.f32.mrf.mxu0
  %3832 = vmatprep.mubr.f32.mxu0 0.0
  %3833 = vmatmul.mubr.f32.gmra.mxu0 %v3511
  %v3834 = vpop.f32.mrf.mxu0
  %v3835 = vadd.f32 0.0, %v3834
  %v3836 = vpop.f32.mrf.mxu0
  %3837 = vmatprep.mubr.f32.mxu0 0.0
  %3838 = vmatmul.mubr.f32.gmra.mxu0 %v3514
  %v3839 = vpop.f32.mrf.mxu0
  %v3840 = vadd.f32 0.0, %v3839
  %v3841 = vpop.f32.mrf.mxu0
  %3842 = vmatprep.mubr.f32.mxu0 0.0
  %3843 = vmatmul.mubr.f32.gmra.mxu0 %v3517
  %v3844 = vpop.f32.mrf.mxu0
  %v3845 = vadd.f32 0.0, %v3844
  %v3846 = vpop.f32.mrf.mxu0
  %3847 = vmatprep.mubr.f32.mxu0 0.0
  %3848 = vmatmul.mubr.f32.gmra.mxu0 %v3520
  %v3849 = vpop.f32.mrf.mxu0
  %v3850 = vadd.f32 0.0, %v3849
  %v3851 = vpop.f32.mrf.mxu0
  %3852 = vmatprep.mubr.f32.mxu0 0.0
  %3853 = vmatmul.mubr.f32.gmra.mxu0 %v3523
  %v3854 = vpop.f32.mrf.mxu0
  %v3855 = vadd.f32 0.0, %v3854
  %v3856 = vpop.f32.mrf.mxu0
  %3857 = vmatprep.mubr.f32.mxu0 0.0
  %3858 = vmatmul.mubr.f32.gmra.mxu0 %v3526
  %v3859 = vpop.f32.mrf.mxu0
  %v3860 = vadd.f32 0.0, %v3859
  %v3861 = vpop.f32.mrf.mxu0
  %3862 = vmatprep.mubr.f32.mxu0 0.0
  %3863 = vmatmul.mubr.f32.gmra.mxu0 %v3529
  %v3864 = vpop.f32.mrf.mxu0
  %v3865 = vadd.f32 0.0, %v3864
  %v3866 = vpop.f32.mrf.mxu0
  %3867 = vmatprep.mubr.f32.mxu0 0.0
  %3868 = vmatmul.mubr.f32.gmra.mxu0 %v3532
  %v3869 = vpop.f32.mrf.mxu0
  %v3870 = vadd.f32 0.0, %v3869
  %v3871 = vpop.f32.mrf.mxu0
  %3872 = vmatprep.mubr.f32.mxu0 0.0
  %3873 = vmatmul.mubr.f32.gmra.mxu0 %v3535
  %v3874 = vpop.f32.mrf.mxu0
  %v3875 = vadd.f32 0.0, %v3874
  %v3876 = vpop.f32.mrf.mxu0
  %3877 = vmatprep.mubr.f32.mxu0 0.0
  %3878 = vmatmul.mubr.f32.gmra.mxu0 %v3538
  %v3879 = vpop.f32.mrf.mxu0
  %v3880 = vadd.f32 0.0, %v3879
  %v3881 = vpop.f32.mrf.mxu0
  %3882 = vmatprep.mubr.f32.mxu0 0.0
  %3883 = vmatmul.mubr.f32.gmra.mxu0 %v3541
  %v3884 = vpop.f32.mrf.mxu0
  %v3885 = vadd.f32 0.0, %v3884
  %v3886 = vpop.f32.mrf.mxu0
  %3887 = vmatprep.mubr.f32.mxu0 0.0
  %3888 = vmatmul.mubr.f32.gmra.mxu0 %v3544
  %v3889 = vpop.f32.mrf.mxu0
  %v3890 = vadd.f32 0.0, %v3889
  %v3891 = vpop.f32.mrf.mxu0
  %3892 = vmatprep.mubr.f32.mxu0 0.0
  %3893 = vmatmul.mubr.f32.gmra.mxu0 %v3547
  %v3894 = vpop.f32.mrf.mxu0
  %v3895 = vadd.f32 0.0, %v3894
  %v3896 = vpop.f32.mrf.mxu0
  %3897 = vmatprep.mubr.f32.mxu0 0.0
  %3898 = vmatmul.mubr.f32.gmra.mxu0 %v3550
  %v3899 = vpop.f32.mrf.mxu0
  %v3900 = vadd.f32 0.0, %v3899
  %v3901 = vpop.f32.mrf.mxu0
  %3902 = vmatprep.mubr.f32.mxu0 0.0
  %3903 = vmatmul.mubr.f32.gmra.mxu0 %v3553
  %v3904 = vpop.f32.mrf.mxu0
  %v3905 = vadd.f32 0.0, %v3904
  %v3906 = vpop.f32.mrf.mxu0
  %3907 = vmatprep.mubr.f32.mxu0 0.0
  %3908 = vmatmul.mubr.f32.gmra.mxu0 %v3556
  %v3909 = vpop.f32.mrf.mxu0
  %v3910 = vadd.f32 0.0, %v3909
  %v3911 = vpop.f32.mrf.mxu0
  %3912 = vmatprep.mubr.f32.mxu0 0.0
  %3913 = vmatmul.mubr.f32.gmra.mxu0 %v3559
  %v3914 = vpop.f32.mrf.mxu0
  %v3915 = vadd.f32 0.0, %v3914
  %v3916 = vpop.f32.mrf.mxu0
  %3917 = vmatprep.mubr.f32.mxu0 0.0
  %3918 = vmatmul.mubr.f32.gmra.mxu0 %v3562
  %v3919 = vpop.f32.mrf.mxu0
  %v3920 = vadd.f32 0.0, %v3919
  %v3921 = vpop.f32.mrf.mxu0
  %3922 = vmatprep.mubr.f32.mxu0 0.0
  %3923 = vmatmul.mubr.f32.gmra.mxu0 %v3565
  %v3924 = vpop.f32.mrf.mxu0
  %v3925 = vadd.f32 0.0, %v3924
  %v3926 = vpop.f32.mrf.mxu0
  %3927 = vmatprep.mubr.f32.mxu0 0.0
  %3928 = vmatmul.mubr.f32.gmra.mxu0 %v3568
  %v3929 = vpop.f32.mrf.mxu0
  %v3930 = vadd.f32 0.0, %v3929
  %v3931 = vpop.f32.mrf.mxu0
  %3932 = vmatprep.mubr.f32.mxu0 0.0
  %3933 = vmatmul.mubr.f32.gmra.mxu0 %v3571
  %v3934 = vpop.f32.mrf.mxu0
  %v3935 = vadd.f32 0.0, %v3934
  %v3936 = vpop.f32.mrf.mxu0
  %3937 = vmatprep.mubr.f32.mxu0 0.0
  %3938 = vmatmul.mubr.f32.gmra.mxu0 %v3574
  %v3939 = vpop.f32.mrf.mxu0
  %v3940 = vadd.f32 0.0, %v3939
  %v3941 = vpop.f32.mrf.mxu0
  %3942 = vmatprep.mubr.f32.mxu0 0.0
  %3943 = vmatmul.mubr.f32.gmra.mxu0 %v3577
  %v3944 = vpop.f32.mrf.mxu0
  %v3945 = vadd.f32 0.0, %v3944
  %v3946 = vpop.f32.mrf.mxu0
  %3947 = vmatprep.mubr.f32.mxu0 0.0
  %3948 = vmatmul.mubr.f32.gmra.mxu0 %v3580
  %v3949 = vpop.f32.mrf.mxu0
  %v3950 = vadd.f32 0.0, %v3949
  %v3951 = vpop.f32.mrf.mxu0
  %3952 = vmatprep.mubr.f32.mxu0 0.0
  %3953 = vmatmul.mubr.f32.gmra.mxu0 %v3583
  %v3954 = vpop.f32.mrf.mxu0
  %v3955 = vadd.f32 0.0, %v3954
  %v3956 = vpop.f32.mrf.mxu0
  %3957 = vmatprep.mubr.f32.mxu0 0.0
  %3958 = vmatmul.mubr.f32.gmra.mxu0 %v3586
  %v3959 = vpop.f32.mrf.mxu0
  %v3960 = vadd.f32 0.0, %v3959
  %v3961 = vpop.f32.mrf.mxu0
  %3962 = vmatprep.mubr.f32.mxu0 0.0
  %3963 = vmatmul.mubr.f32.gmra.mxu0 %v3589
  %v3964 = vpop.f32.mrf.mxu0
  %v3965 = vadd.f32 0.0, %v3964
  %v3966 = vpop.f32.mrf.mxu0
  %3967 = vmatprep.mubr.f32.mxu0 0.0
  %3968 = vmatmul.mubr.f32.gmra.mxu0 %v3592
  %v3969 = vpop.f32.mrf.mxu0
  %v3970 = vadd.f32 0.0, %v3969
  %v3971 = vpop.f32.mrf.mxu0
  %3972 = vmatprep.mubr.f32.mxu0 0.0
  %3973 = vmatmul.mubr.f32.gmra.mxu0 %v3595
  %v3974 = vpop.f32.mrf.mxu0
  %v3975 = vadd.f32 0.0, %v3974
  %v3976 = vpop.f32.mrf.mxu0
  %3977 = vmatprep.mubr.f32.mxu0 0.0
  %3978 = vmatmul.mubr.f32.gmra.mxu0 %v3598
  %v3979 = vpop.f32.mrf.mxu0
  %v3980 = vadd.f32 0.0, %v3979
  %v3981 = vpop.f32.mrf.mxu0
  %3982 = vmatprep.mubr.f32.mxu0 0.0
  %3983 = vmatmul.mubr.f32.gmra.mxu0 %v3601
  %v3984 = vpop.f32.mrf.mxu0
  %v3985 = vadd.f32 0.0, %v3984
  %v3986 = vpop.f32.mrf.mxu0
  %3987 = vmatprep.mubr.f32.mxu0 0.0
  %3988 = vmatmul.mubr.f32.gmra.mxu0 %v3604
  %v3989 = vpop.f32.mrf.mxu0
  %v3990 = vadd.f32 0.0, %v3989
  %v3991 = vpop.f32.mrf.mxu0
  %3992 = vmatprep.mubr.f32.mxu0 0.0
  %3993 = vmatmul.mubr.f32.gmra.mxu0 %v3607
  %v3994 = vpop.f32.mrf.mxu0
  %v3995 = vadd.f32 0.0, %v3994
  %v3996 = vpop.f32.mrf.mxu0
  %3997 = vdwg.mxu0
  %v3998 = vmax.f32 %v3680, 0.0
  %v3999 = vmax.f32 %v3685, 0.0
  %v4000 = vmax.f32 %v3690, 0.0
  %v4001 = vmax.f32 %v3695, 0.0
  %v4002 = vmax.f32 %v3700, 0.0
  %v4003 = vmax.f32 %v3705, 0.0
  %v4004 = vmax.f32 %v3710, 0.0
  %v4005 = vmax.f32 %v3715, 0.0
  %v4006 = vmax.f32 %v3720, 0.0
  %v4007 = vmax.f32 %v3725, 0.0
  %v4008 = vmax.f32 %v3730, 0.0
  %v4009 = vmax.f32 %v3735, 0.0
  %v4010 = vmax.f32 %v3740, 0.0
  %v4011 = vmax.f32 %v3745, 0.0
  %v4012 = vmax.f32 %v3750, 0.0
  %v4013 = vmax.f32 %v3755, 0.0
  %v4014 = vmax.f32 %v3760, 0.0
  %v4015 = vmax.f32 %v3765, 0.0
  %v4016 = vmax.f32 %v3770, 0.0
  %v4017 = vmax.f32 %v3775, 0.0
  %v4018 = vmax.f32 %v3780, 0.0
  %v4019 = vmax.f32 %v3785, 0.0
  %v4020 = vmax.f32 %v3790, 0.0
  %v4021 = vmax.f32 %v3795, 0.0
  %v4022 = vmax.f32 %v3800, 0.0
  %v4023 = vmax.f32 %v3805, 0.0
  %v4024 = vmax.f32 %v3810, 0.0
  %v4025 = vmax.f32 %v3815, 0.0
  %v4026 = vmax.f32 %v3820, 0.0
  %v4027 = vmax.f32 %v3825, 0.0
  %v4028 = vmax.f32 %v3830, 0.0
  %v4029 = vmax.f32 %v3835, 0.0
  %v4030 = vmax.f32 %v3840, 0.0
  %v4031 = vmax.f32 %v3845, 0.0
  %v4032 = vmax.f32 %v3850, 0.0
  %v4033 = vmax.f32 %v3855, 0.0
  %v4034 = vmax.f32 %v3860, 0.0
  %v4035 = vmax.f32 %v3865, 0.0
  %v4036 = vmax.f32 %v3870, 0.0
  %v4037 = vmax.f32 %v3875, 0.0
  %v4038 = vmax.f32 %v3880, 0.0
  %v4039 = vmax.f32 %v3885, 0.0
  %v4040 = vmax.f32 %v3890, 0.0
  %v4041 = vmax.f32 %v3895, 0.0
  %v4042 = vmax.f32 %v3900, 0.0
  %v4043 = vmax.f32 %v3905, 0.0
  %v4044 = vmax.f32 %v3910, 0.0
  %v4045 = vmax.f32 %v3915, 0.0
  %v4046 = vmax.f32 %v3920, 0.0
  %v4047 = vmax.f32 %v3925, 0.0
  %v4048 = vmax.f32 %v3930, 0.0
  %v4049 = vmax.f32 %v3935, 0.0
  %v4050 = vmax.f32 %v3940, 0.0
  %v4051 = vmax.f32 %v3945, 0.0
  %v4052 = vmax.f32 %v3950, 0.0
  %v4053 = vmax.f32 %v3955, 0.0
  %v4054 = vmax.f32 %v3960, 0.0
  %v4055 = vmax.f32 %v3965, 0.0
  %v4056 = vmax.f32 %v3970, 0.0
  %v4057 = vmax.f32 %v3975, 0.0
  %v4058 = vmax.f32 %v3980, 0.0
  %v4059 = vmax.f32 %v3985, 0.0
  %v4060 = vmax.f32 %v3990, 0.0
  %v4061 = vmax.f32 %v3995, 0.0
  %v4062 = vsel %vm26, %v3998, 0.0
  %v4063 = vsel %vm26, %v3999, 0.0
  %v4064 = vadd.f32 %v4062, %v4063
  %v4065 = vsel %vm26, %v4000, 0.0
  %v4066 = vadd.f32 %v4064, %v4065
  %v4067 = vsel %vm26, %v4001, 0.0
  %v4068 = vadd.f32 %v4066, %v4067
  %v4069 = vsel %vm26, %v4002, 0.0
  %v4070 = vadd.f32 %v4068, %v4069
  %v4071 = vsel %vm26, %v4003, 0.0
  %v4072 = vadd.f32 %v4070, %v4071
  %v4073 = vsel %vm26, %v4004, 0.0
  %v4074 = vadd.f32 %v4072, %v4073
  %v4075 = vsel %vm26, %v4005, 0.0
  %v4076 = vadd.f32 %v4074, %v4075
  %v4077 = vsel %vm26, %v4006, 0.0
  %v4078 = vadd.f32 %v4076, %v4077
  %v4079 = vsel %vm26, %v4007, 0.0
  %v4080 = vadd.f32 %v4078, %v4079
  %v4081 = vsel %vm26, %v4008, 0.0
  %v4082 = vadd.f32 %v4080, %v4081
  %v4083 = vsel %vm26, %v4009, 0.0
  %v4084 = vadd.f32 %v4082, %v4083
  %v4085 = vsel %vm26, %v4010, 0.0
  %v4086 = vadd.f32 %v4084, %v4085
  %v4087 = vsel %vm26, %v4011, 0.0
  %v4088 = vadd.f32 %v4086, %v4087
  %v4089 = vsel %vm26, %v4012, 0.0
  %v4090 = vadd.f32 %v4088, %v4089
  %v4091 = vsel %vm26, %v4013, 0.0
  %v4092 = vadd.f32 %v4090, %v4091
  %v4093 = vsel %vm26, %v4014, 0.0
  %v4094 = vadd.f32 %v4092, %v4093
  %v4095 = vsel %vm26, %v4015, 0.0
  %v4096 = vadd.f32 %v4094, %v4095
  %v4097 = vsel %vm26, %v4016, 0.0
  %v4098 = vadd.f32 %v4096, %v4097
  %v4099 = vsel %vm26, %v4017, 0.0
  %v4100 = vadd.f32 %v4098, %v4099
  %v4101 = vsel %vm26, %v4018, 0.0
  %v4102 = vadd.f32 %v4100, %v4101
  %v4103 = vsel %vm26, %v4019, 0.0
  %v4104 = vadd.f32 %v4102, %v4103
  %v4105 = vsel %vm26, %v4020, 0.0
  %v4106 = vadd.f32 %v4104, %v4105
  %v4107 = vsel %vm26, %v4021, 0.0
  %v4108 = vadd.f32 %v4106, %v4107
  %v4109 = vsel %vm26, %v4022, 0.0
  %v4110 = vadd.f32 %v4108, %v4109
  %v4111 = vsel %vm26, %v4023, 0.0
  %v4112 = vadd.f32 %v4110, %v4111
  %v4113 = vsel %vm26, %v4024, 0.0
  %v4114 = vadd.f32 %v4112, %v4113
  %v4115 = vsel %vm26, %v4025, 0.0
  %v4116 = vadd.f32 %v4114, %v4115
  %v4117 = vsel %vm26, %v4026, 0.0
  %v4118 = vadd.f32 %v4116, %v4117
  %v4119 = vsel %vm26, %v4027, 0.0
  %v4120 = vadd.f32 %v4118, %v4119
  %v4121 = vsel %vm26, %v4028, 0.0
  %v4122 = vadd.f32 %v4120, %v4121
  %v4123 = vsel %vm26, %v4029, 0.0
  %v4124 = vadd.f32 %v4122, %v4123
  %v4125 = vsel %vm26, %v4030, 0.0
  %v4126 = vadd.f32 %v4124, %v4125
  %v4127 = vsel %vm26, %v4031, 0.0
  %v4128 = vadd.f32 %v4126, %v4127
  %v4129 = vsel %vm26, %v4032, 0.0
  %v4130 = vadd.f32 %v4128, %v4129
  %v4131 = vsel %vm26, %v4033, 0.0
  %v4132 = vadd.f32 %v4130, %v4131
  %v4133 = vsel %vm26, %v4034, 0.0
  %v4134 = vadd.f32 %v4132, %v4133
  %v4135 = vsel %vm26, %v4035, 0.0
  %v4136 = vadd.f32 %v4134, %v4135
  %v4137 = vsel %vm26, %v4036, 0.0
  %v4138 = vadd.f32 %v4136, %v4137
  %v4139 = vsel %vm26, %v4037, 0.0
  %v4140 = vadd.f32 %v4138, %v4139
  %v4141 = vsel %vm26, %v4038, 0.0
  %v4142 = vadd.f32 %v4140, %v4141
  %v4143 = vsel %vm26, %v4039, 0.0
  %v4144 = vadd.f32 %v4142, %v4143
  %v4145 = vsel %vm26, %v4040, 0.0
  %v4146 = vadd.f32 %v4144, %v4145
  %v4147 = vsel %vm26, %v4041, 0.0
  %v4148 = vadd.f32 %v4146, %v4147
  %v4149 = vsel %vm26, %v4042, 0.0
  %v4150 = vadd.f32 %v4148, %v4149
  %v4151 = vsel %vm26, %v4043, 0.0
  %v4152 = vadd.f32 %v4150, %v4151
  %v4153 = vsel %vm26, %v4044, 0.0
  %v4154 = vadd.f32 %v4152, %v4153
  %v4155 = vsel %vm26, %v4045, 0.0
  %v4156 = vadd.f32 %v4154, %v4155
  %v4157 = vsel %vm26, %v4046, 0.0
  %v4158 = vadd.f32 %v4156, %v4157
  %v4159 = vsel %vm26, %v4047, 0.0
  %v4160 = vadd.f32 %v4158, %v4159
  %v4161 = vsel %vm26, %v4048, 0.0
  %v4162 = vadd.f32 %v4160, %v4161
  %v4163 = vsel %vm26, %v4049, 0.0
  %v4164 = vadd.f32 %v4162, %v4163
  %v4165 = vsel %vm26, %v4050, 0.0
  %v4166 = vadd.f32 %v4164, %v4165
  %v4167 = vsel %vm26, %v4051, 0.0
  %v4168 = vadd.f32 %v4166, %v4167
  %v4169 = vsel %vm26, %v4052, 0.0
  %v4170 = vadd.f32 %v4168, %v4169
  %v4171 = vsel %vm26, %v4053, 0.0
  %v4172 = vadd.f32 %v4170, %v4171
  %v4173 = vsel %vm26, %v4054, 0.0
  %v4174 = vadd.f32 %v4172, %v4173
  %v4175 = vsel %vm26, %v4055, 0.0
  %v4176 = vadd.f32 %v4174, %v4175
  %v4177 = vsel %vm26, %v4056, 0.0
  %v4178 = vadd.f32 %v4176, %v4177
  %v4179 = vsel %vm26, %v4057, 0.0
  %v4180 = vadd.f32 %v4178, %v4179
  %v4181 = vsel %vm26, %v4058, 0.0
  %v4182 = vadd.f32 %v4180, %v4181
  %v4183 = vsel %vm26, %v4059, 0.0
  %v4184 = vadd.f32 %v4182, %v4183
  %v4185 = vsel %vm26, %v4060, 0.0
  %v4186 = vadd.f32 %v4184, %v4185
  %v4187 = vsel %vm26, %v4061, 0.0
  %v4188 = vadd.f32 %v4186, %v4187
  %v4189 = vrot.slane %v4188, 4
  %v4190 = vadd.f32 %v4188, %v4189
  %v4191 = vrot.slane %v4190, 2
  %v4192 = vadd.f32 %v4190, %v4191
  %v4193 = vrot.slane %v4192, 1
  %v4194 = vadd.f32 %v4192, %v4193
  %v4195 = vmul.f32 %v3998, %v3998
  %v4196 = vmul.f32 %v3999, %v3999
  %v4197 = vmul.f32 %v4000, %v4000
  %v4198 = vmul.f32 %v4001, %v4001
  %v4199 = vmul.f32 %v4002, %v4002
  %v4200 = vmul.f32 %v4003, %v4003
  %v4201 = vmul.f32 %v4004, %v4004
  %v4202 = vmul.f32 %v4005, %v4005
  %v4203 = vmul.f32 %v4006, %v4006
  %v4204 = vmul.f32 %v4007, %v4007
  %v4205 = vmul.f32 %v4008, %v4008
  %v4206 = vmul.f32 %v4009, %v4009
  %v4207 = vmul.f32 %v4010, %v4010
  %v4208 = vmul.f32 %v4011, %v4011
  %v4209 = vmul.f32 %v4012, %v4012
  %v4210 = vmul.f32 %v4013, %v4013
  %v4211 = vmul.f32 %v4014, %v4014
  %v4212 = vmul.f32 %v4015, %v4015
  %v4213 = vmul.f32 %v4016, %v4016
  %v4214 = vmul.f32 %v4017, %v4017
  %v4215 = vmul.f32 %v4018, %v4018
  %v4216 = vmul.f32 %v4019, %v4019
  %v4217 = vmul.f32 %v4020, %v4020
  %v4218 = vmul.f32 %v4021, %v4021
  %v4219 = vmul.f32 %v4022, %v4022
  %v4220 = vmul.f32 %v4023, %v4023
  %v4221 = vmul.f32 %v4024, %v4024
  %v4222 = vmul.f32 %v4025, %v4025
  %v4223 = vmul.f32 %v4026, %v4026
  %v4224 = vmul.f32 %v4027, %v4027
  %v4225 = vmul.f32 %v4028, %v4028
  %v4226 = vmul.f32 %v4029, %v4029
  %v4227 = vmul.f32 %v4030, %v4030
  %v4228 = vmul.f32 %v4031, %v4031
  %v4229 = vmul.f32 %v4032, %v4032
  %v4230 = vmul.f32 %v4033, %v4033
  %v4231 = vmul.f32 %v4034, %v4034
  %v4232 = vmul.f32 %v4035, %v4035
  %v4233 = vmul.f32 %v4036, %v4036
  %v4234 = vmul.f32 %v4037, %v4037
  %v4235 = vmul.f32 %v4038, %v4038
  %v4236 = vmul.f32 %v4039, %v4039
  %v4237 = vmul.f32 %v4040, %v4040
  %v4238 = vmul.f32 %v4041, %v4041
  %v4239 = vmul.f32 %v4042, %v4042
  %v4240 = vmul.f32 %v4043, %v4043
  %v4241 = vmul.f32 %v4044, %v4044
  %v4242 = vmul.f32 %v4045, %v4045
  %v4243 = vmul.f32 %v4046, %v4046
  %v4244 = vmul.f32 %v4047, %v4047
  %v4245 = vmul.f32 %v4048, %v4048
  %v4246 = vmul.f32 %v4049, %v4049
  %v4247 = vmul.f32 %v4050, %v4050
  %v4248 = vmul.f32 %v4051, %v4051
  %v4249 = vmul.f32 %v4052, %v4052
  %v4250 = vmul.f32 %v4053, %v4053
  %v4251 = vmul.f32 %v4054, %v4054
  %v4252 = vmul.f32 %v4055, %v4055
  %v4253 = vmul.f32 %v4056, %v4056
  %v4254 = vmul.f32 %v4057, %v4057
  %v4255 = vmul.f32 %v4058, %v4058
  %v4256 = vmul.f32 %v4059, %v4059
  %v4257 = vmul.f32 %v4060, %v4060
  %v4258 = vmul.f32 %v4061, %v4061
  %v4259 = vsel %vm26, %v4195, 0.0
  %v4260 = vsel %vm26, %v4196, 0.0
  %v4261 = vadd.f32 %v4259, %v4260
  %v4262 = vsel %vm26, %v4197, 0.0
  %v4263 = vadd.f32 %v4261, %v4262
  %v4264 = vsel %vm26, %v4198, 0.0
  %v4265 = vadd.f32 %v4263, %v4264
  %v4266 = vsel %vm26, %v4199, 0.0
  %v4267 = vadd.f32 %v4265, %v4266
  %v4268 = vsel %vm26, %v4200, 0.0
  %v4269 = vadd.f32 %v4267, %v4268
  %v4270 = vsel %vm26, %v4201, 0.0
  %v4271 = vadd.f32 %v4269, %v4270
  %v4272 = vsel %vm26, %v4202, 0.0
  %v4273 = vadd.f32 %v4271, %v4272
  %v4274 = vsel %vm26, %v4203, 0.0
  %v4275 = vadd.f32 %v4273, %v4274
  %v4276 = vsel %vm26, %v4204, 0.0
  %v4277 = vadd.f32 %v4275, %v4276
  %v4278 = vsel %vm26, %v4205, 0.0
  %v4279 = vadd.f32 %v4277, %v4278
  %v4280 = vsel %vm26, %v4206, 0.0
  %v4281 = vadd.f32 %v4279, %v4280
  %v4282 = vsel %vm26, %v4207, 0.0
  %v4283 = vadd.f32 %v4281, %v4282
  %v4284 = vsel %vm26, %v4208, 0.0
  %v4285 = vadd.f32 %v4283, %v4284
  %v4286 = vsel %vm26, %v4209, 0.0
  %v4287 = vadd.f32 %v4285, %v4286
  %v4288 = vsel %vm26, %v4210, 0.0
  %v4289 = vadd.f32 %v4287, %v4288
  %v4290 = vsel %vm26, %v4211, 0.0
  %v4291 = vadd.f32 %v4289, %v4290
  %v4292 = vsel %vm26, %v4212, 0.0
  %v4293 = vadd.f32 %v4291, %v4292
  %v4294 = vsel %vm26, %v4213, 0.0
  %v4295 = vadd.f32 %v4293, %v4294
  %v4296 = vsel %vm26, %v4214, 0.0
  %v4297 = vadd.f32 %v4295, %v4296
  %v4298 = vsel %vm26, %v4215, 0.0
  %v4299 = vadd.f32 %v4297, %v4298
  %v4300 = vsel %vm26, %v4216, 0.0
  %v4301 = vadd.f32 %v4299, %v4300
  %v4302 = vsel %vm26, %v4217, 0.0
  %v4303 = vadd.f32 %v4301, %v4302
  %v4304 = vsel %vm26, %v4218, 0.0
  %v4305 = vadd.f32 %v4303, %v4304
  %v4306 = vsel %vm26, %v4219, 0.0
  %v4307 = vadd.f32 %v4305, %v4306
  %v4308 = vsel %vm26, %v4220, 0.0
  %v4309 = vadd.f32 %v4307, %v4308
  %v4310 = vsel %vm26, %v4221, 0.0
  %v4311 = vadd.f32 %v4309, %v4310
  %v4312 = vsel %vm26, %v4222, 0.0
  %v4313 = vadd.f32 %v4311, %v4312
  %v4314 = vsel %vm26, %v4223, 0.0
  %v4315 = vadd.f32 %v4313, %v4314
  %v4316 = vsel %vm26, %v4224, 0.0
  %v4317 = vadd.f32 %v4315, %v4316
  %v4318 = vsel %vm26, %v4225, 0.0
  %v4319 = vadd.f32 %v4317, %v4318
  %v4320 = vsel %vm26, %v4226, 0.0
  %v4321 = vadd.f32 %v4319, %v4320
  %v4322 = vsel %vm26, %v4227, 0.0
  %v4323 = vadd.f32 %v4321, %v4322
  %v4324 = vsel %vm26, %v4228, 0.0
  %v4325 = vadd.f32 %v4323, %v4324
  %v4326 = vsel %vm26, %v4229, 0.0
  %v4327 = vadd.f32 %v4325, %v4326
  %v4328 = vsel %vm26, %v4230, 0.0
  %v4329 = vadd.f32 %v4327, %v4328
  %v4330 = vsel %vm26, %v4231, 0.0
  %v4331 = vadd.f32 %v4329, %v4330
  %v4332 = vsel %vm26, %v4232, 0.0
  %v4333 = vadd.f32 %v4331, %v4332
  %v4334 = vsel %vm26, %v4233, 0.0
  %v4335 = vadd.f32 %v4333, %v4334
  %v4336 = vsel %vm26, %v4234, 0.0
  %v4337 = vadd.f32 %v4335, %v4336
  %v4338 = vsel %vm26, %v4235, 0.0
  %v4339 = vadd.f32 %v4337, %v4338
  %v4340 = vsel %vm26, %v4236, 0.0
  %v4341 = vadd.f32 %v4339, %v4340
  %v4342 = vsel %vm26, %v4237, 0.0
  %v4343 = vadd.f32 %v4341, %v4342
  %v4344 = vsel %vm26, %v4238, 0.0
  %v4345 = vadd.f32 %v4343, %v4344
  %v4346 = vsel %vm26, %v4239, 0.0
  %v4347 = vadd.f32 %v4345, %v4346
  %v4348 = vsel %vm26, %v4240, 0.0
  %v4349 = vadd.f32 %v4347, %v4348
  %v4350 = vsel %vm26, %v4241, 0.0
  %v4351 = vadd.f32 %v4349, %v4350
  %v4352 = vsel %vm26, %v4242, 0.0
  %v4353 = vadd.f32 %v4351, %v4352
  %v4354 = vsel %vm26, %v4243, 0.0
  %v4355 = vadd.f32 %v4353, %v4354
  %v4356 = vsel %vm26, %v4244, 0.0
  %v4357 = vadd.f32 %v4355, %v4356
  %v4358 = vsel %vm26, %v4245, 0.0
  %v4359 = vadd.f32 %v4357, %v4358
  %v4360 = vsel %vm26, %v4246, 0.0
  %v4361 = vadd.f32 %v4359, %v4360
  %v4362 = vsel %vm26, %v4247, 0.0
  %v4363 = vadd.f32 %v4361, %v4362
  %v4364 = vsel %vm26, %v4248, 0.0
  %v4365 = vadd.f32 %v4363, %v4364
  %v4366 = vsel %vm26, %v4249, 0.0
  %v4367 = vadd.f32 %v4365, %v4366
  %v4368 = vsel %vm26, %v4250, 0.0
  %v4369 = vadd.f32 %v4367, %v4368
  %v4370 = vsel %vm26, %v4251, 0.0
  %v4371 = vadd.f32 %v4369, %v4370
  %v4372 = vsel %vm26, %v4252, 0.0
  %v4373 = vadd.f32 %v4371, %v4372
  %v4374 = vsel %vm26, %v4253, 0.0
  %v4375 = vadd.f32 %v4373, %v4374
  %v4376 = vsel %vm26, %v4254, 0.0
  %v4377 = vadd.f32 %v4375, %v4376
  %v4378 = vsel %vm26, %v4255, 0.0
  %v4379 = vadd.f32 %v4377, %v4378
  %v4380 = vsel %vm26, %v4256, 0.0
  %v4381 = vadd.f32 %v4379, %v4380
  %v4382 = vsel %vm26, %v4257, 0.0
  %v4383 = vadd.f32 %v4381, %v4382
  %v4384 = vsel %vm26, %v4258, 0.0
  %v4385 = vadd.f32 %v4383, %v4384
  %v4386 = vrot.slane %v4385, 4
  %v4387 = vadd.f32 %v4385, %v4386
  %v4388 = vrot.slane %v4387, 2
  %v4389 = vadd.f32 %v4387, %v4388
  %v4390 = vrot.slane %v4389, 1
  %v4391 = vadd.f32 %v4389, %v4390
  %v4392 = vmul.f32 %v4194, 0.001953125
  %v4393 = vmul.f32 %v4391, 0.001953125
  %v4394 = vmul.f32 %v4392, %v4392
  %v4395 = vsub.f32 %v4393, %v4394
  %v4396 = vmax.f32 %v4395, 0.0
  %v4397 = vadd.f32 %v4396, 1e-05
  %v4398 = vrsqrt.pop %v4397
  %v4399 = vmul.f32 %v200, %v4398
  %v4400 = vmul.f32 %v4392, %v4399
  %v4401 = vsub.f32 %v201, %v4400
  %v4403 = vlaneseq
  %v4404 = vshrl.u32 %v4403, 7
  %v4405 = vsub.s32 0, %v4404
  %v4406 = vrot.slane %v4399, %v4405
  %v4408 = vmul.f32 %v3998, %v4406
  %v4409 = vmul.f32 %v3999, %v4406
  %v4410 = vmul.f32 %v4000, %v4406
  %v4411 = vmul.f32 %v4001, %v4406
  %v4412 = vmul.f32 %v4002, %v4406
  %v4413 = vmul.f32 %v4003, %v4406
  %v4414 = vmul.f32 %v4004, %v4406
  %v4415 = vmul.f32 %v4005, %v4406
  %v4416 = vmul.f32 %v4006, %v4406
  %v4417 = vmul.f32 %v4007, %v4406
  %v4418 = vmul.f32 %v4008, %v4406
  %v4419 = vmul.f32 %v4009, %v4406
  %v4420 = vmul.f32 %v4010, %v4406
  %v4421 = vmul.f32 %v4011, %v4406
  %v4422 = vmul.f32 %v4012, %v4406
  %v4423 = vmul.f32 %v4013, %v4406
  %v4424 = vmul.f32 %v4014, %v4406
  %v4425 = vmul.f32 %v4015, %v4406
  %v4426 = vmul.f32 %v4016, %v4406
  %v4427 = vmul.f32 %v4017, %v4406
  %v4428 = vmul.f32 %v4018, %v4406
  %v4429 = vmul.f32 %v4019, %v4406
  %v4430 = vmul.f32 %v4020, %v4406
  %v4431 = vmul.f32 %v4021, %v4406
  %v4432 = vmul.f32 %v4022, %v4406
  %v4433 = vmul.f32 %v4023, %v4406
  %v4434 = vmul.f32 %v4024, %v4406
  %v4435 = vmul.f32 %v4025, %v4406
  %v4436 = vmul.f32 %v4026, %v4406
  %v4437 = vmul.f32 %v4027, %v4406
  %v4438 = vmul.f32 %v4028, %v4406
  %v4439 = vmul.f32 %v4029, %v4406
  %v4440 = vmul.f32 %v4030, %v4406
  %v4441 = vmul.f32 %v4031, %v4406
  %v4442 = vmul.f32 %v4032, %v4406
  %v4443 = vmul.f32 %v4033, %v4406
  %v4444 = vmul.f32 %v4034, %v4406
  %v4445 = vmul.f32 %v4035, %v4406
  %v4446 = vmul.f32 %v4036, %v4406
  %v4447 = vmul.f32 %v4037, %v4406
  %v4448 = vmul.f32 %v4038, %v4406
  %v4449 = vmul.f32 %v4039, %v4406
  %v4450 = vmul.f32 %v4040, %v4406
  %v4451 = vmul.f32 %v4041, %v4406
  %v4452 = vmul.f32 %v4042, %v4406
  %v4453 = vmul.f32 %v4043, %v4406
  %v4454 = vmul.f32 %v4044, %v4406
  %v4455 = vmul.f32 %v4045, %v4406
  %v4456 = vmul.f32 %v4046, %v4406
  %v4457 = vmul.f32 %v4047, %v4406
  %v4458 = vmul.f32 %v4048, %v4406
  %v4459 = vmul.f32 %v4049, %v4406
  %v4460 = vmul.f32 %v4050, %v4406
  %v4461 = vmul.f32 %v4051, %v4406
  %v4462 = vmul.f32 %v4052, %v4406
  %v4463 = vmul.f32 %v4053, %v4406
  %v4464 = vmul.f32 %v4054, %v4406
  %v4465 = vmul.f32 %v4055, %v4406
  %v4466 = vmul.f32 %v4056, %v4406
  %v4467 = vmul.f32 %v4057, %v4406
  %v4468 = vmul.f32 %v4058, %v4406
  %v4469 = vmul.f32 %v4059, %v4406
  %v4470 = vmul.f32 %v4060, %v4406
  %v4471 = vmul.f32 %v4061, %v4406
  %v4473 = vlaneseq
  %v4474 = vshrl.u32 %v4473, 7
  %v4475 = vsub.s32 0, %v4474
  %v4476 = vrot.slane %v4401, %v4475
  %v4478 = vadd.f32 %v4408, %v4476
  %v4479 = vadd.f32 %v4409, %v4476
  %v4480 = vadd.f32 %v4410, %v4476
  %v4481 = vadd.f32 %v4411, %v4476
  %v4482 = vadd.f32 %v4412, %v4476
  %v4483 = vadd.f32 %v4413, %v4476
  %v4484 = vadd.f32 %v4414, %v4476
  %v4485 = vadd.f32 %v4415, %v4476
  %v4486 = vadd.f32 %v4416, %v4476
  %v4487 = vadd.f32 %v4417, %v4476
  %v4488 = vadd.f32 %v4418, %v4476
  %v4489 = vadd.f32 %v4419, %v4476
  %v4490 = vadd.f32 %v4420, %v4476
  %v4491 = vadd.f32 %v4421, %v4476
  %v4492 = vadd.f32 %v4422, %v4476
  %v4493 = vadd.f32 %v4423, %v4476
  %v4494 = vadd.f32 %v4424, %v4476
  %v4495 = vadd.f32 %v4425, %v4476
  %v4496 = vadd.f32 %v4426, %v4476
  %v4497 = vadd.f32 %v4427, %v4476
  %v4498 = vadd.f32 %v4428, %v4476
  %v4499 = vadd.f32 %v4429, %v4476
  %v4500 = vadd.f32 %v4430, %v4476
  %v4501 = vadd.f32 %v4431, %v4476
  %v4502 = vadd.f32 %v4432, %v4476
  %v4503 = vadd.f32 %v4433, %v4476
  %v4504 = vadd.f32 %v4434, %v4476
  %v4505 = vadd.f32 %v4435, %v4476
  %v4506 = vadd.f32 %v4436, %v4476
  %v4507 = vadd.f32 %v4437, %v4476
  %v4508 = vadd.f32 %v4438, %v4476
  %v4509 = vadd.f32 %v4439, %v4476
  %v4510 = vadd.f32 %v4440, %v4476
  %v4511 = vadd.f32 %v4441, %v4476
  %v4512 = vadd.f32 %v4442, %v4476
  %v4513 = vadd.f32 %v4443, %v4476
  %v4514 = vadd.f32 %v4444, %v4476
  %v4515 = vadd.f32 %v4445, %v4476
  %v4516 = vadd.f32 %v4446, %v4476
  %v4517 = vadd.f32 %v4447, %v4476
  %v4518 = vadd.f32 %v4448, %v4476
  %v4519 = vadd.f32 %v4449, %v4476
  %v4520 = vadd.f32 %v4450, %v4476
  %v4521 = vadd.f32 %v4451, %v4476
  %v4522 = vadd.f32 %v4452, %v4476
  %v4523 = vadd.f32 %v4453, %v4476
  %v4524 = vadd.f32 %v4454, %v4476
  %v4525 = vadd.f32 %v4455, %v4476
  %v4526 = vadd.f32 %v4456, %v4476
  %v4527 = vadd.f32 %v4457, %v4476
  %v4528 = vadd.f32 %v4458, %v4476
  %v4529 = vadd.f32 %v4459, %v4476
  %v4530 = vadd.f32 %v4460, %v4476
  %v4531 = vadd.f32 %v4461, %v4476
  %v4532 = vadd.f32 %v4462, %v4476
  %v4533 = vadd.f32 %v4463, %v4476
  %v4534 = vadd.f32 %v4464, %v4476
  %v4535 = vadd.f32 %v4465, %v4476
  %v4536 = vadd.f32 %v4466, %v4476
  %v4537 = vadd.f32 %v4467, %v4476
  %v4538 = vadd.f32 %v4468, %v4476
  %v4539 = vadd.f32 %v4469, %v4476
  %v4540 = vadd.f32 %v4470, %v4476
  %v4541 = vadd.f32 %v4471, %v4476
  %v4542 = vld [vmem:[%s5] sm:$0x1]
  %v4543 = vld [vmem:[%s6] sm:$0x1]
  %4544 = vst.msk [vmem:[%s202 + $0x1] sm:$0xff] %vm26, %v4478
  %4545 = vst.msk [vmem:[%s202 + $0x9] sm:$0xff] %vm26, %v4479
  %4546 = vst.msk [vmem:[%s202 + $0x19] sm:$0xff] %vm26, %v4480
  %4547 = vst.msk [vmem:[%s202 + $0x21] sm:$0xff] %vm26, %v4481
  %4548 = vst.msk [vmem:[%s202 + $0x31] sm:$0xff] %vm26, %v4482
  %4549 = vst.msk [vmem:[%s202 + $0x39] sm:$0xff] %vm26, %v4483
  %4550 = vst.msk [vmem:[%s202 + $0x49] sm:$0xff] %vm26, %v4484
  %4551 = vst.msk [vmem:[%s202 + $0x51] sm:$0xff] %vm26, %v4485
  %4552 = vst.msk [vmem:[%s202 + $0x61] sm:$0xff] %vm26, %v4486
  %4553 = vst.msk [vmem:[%s202 + $0x69] sm:$0xff] %vm26, %v4487
  %4554 = vst.msk [vmem:[%s202 + $0x79] sm:$0xff] %vm26, %v4488
  %4555 = vst.msk [vmem:[%s202 + $0x81] sm:$0xff] %vm26, %v4489
  %4556 = vst.msk [vmem:[%s202 + $0x91] sm:$0xff] %vm26, %v4490
  %4557 = vst.msk [vmem:[%s202 + $0x99] sm:$0xff] %vm26, %v4491
  %4558 = vst.msk [vmem:[%s202 + $0xa9] sm:$0xff] %vm26, %v4492
  %4559 = vst.msk [vmem:[%s202 + $0xb1] sm:$0xff] %vm26, %v4493
  %4560 = vst.msk [vmem:[%s202 + $0xc1] sm:$0xff] %vm26, %v4494
  %4561 = vst.msk [vmem:[%s202 + $0xc9] sm:$0xff] %vm26, %v4495
  %4562 = vst.msk [vmem:[%s202 + $0xd9] sm:$0xff] %vm26, %v4496
  %4563 = vst.msk [vmem:[%s202 + $0xe1] sm:$0xff] %vm26, %v4497
  %4564 = vst.msk [vmem:[%s202 + $0xf1] sm:$0xff] %vm26, %v4498
  %4565 = vst.msk [vmem:[%s202 + $0xf9] sm:$0xff] %vm26, %v4499
  %4566 = vst.msk [vmem:[%s202 + $0x109] sm:$0xff] %vm26, %v4500
  %4567 = vst.msk [vmem:[%s202 + $0x111] sm:$0xff] %vm26, %v4501
  %4568 = vst.msk [vmem:[%s202 + $0x121] sm:$0xff] %vm26, %v4502
  %4569 = vst.msk [vmem:[%s202 + $0x129] sm:$0xff] %vm26, %v4503
  %4570 = vst.msk [vmem:[%s202 + $0x139] sm:$0xff] %vm26, %v4504
  %4571 = vst.msk [vmem:[%s202 + $0x141] sm:$0xff] %vm26, %v4505
  %4572 = vst.msk [vmem:[%s202 + $0x151] sm:$0xff] %vm26, %v4506
  %4573 = vst.msk [vmem:[%s202 + $0x159] sm:$0xff] %vm26, %v4507
  %4574 = vst.msk [vmem:[%s202 + $0x169] sm:$0xff] %vm26, %v4508
  %4575 = vst.msk [vmem:[%s202 + $0x171] sm:$0xff] %vm26, %v4509
  %4576 = vst.msk [vmem:[%s202 + $0x1b1] sm:$0xff] %vm26, %v4510
  %4577 = vst.msk [vmem:[%s202 + $0x1b9] sm:$0xff] %vm26, %v4511
  %4578 = vst.msk [vmem:[%s202 + $0x1c9] sm:$0xff] %vm26, %v4512
  %4579 = vst.msk [vmem:[%s202 + $0x1d1] sm:$0xff] %vm26, %v4513
  %4580 = vst.msk [vmem:[%s202 + $0x1e1] sm:$0xff] %vm26, %v4514
  %4581 = vst.msk [vmem:[%s202 + $0x1e9] sm:$0xff] %vm26, %v4515
  %4582 = vst.msk [vmem:[%s202 + $0x1f9] sm:$0xff] %vm26, %v4516
  %4583 = vst.msk [vmem:[%s202 + $0x201] sm:$0xff] %vm26, %v4517
  %4584 = vst.msk [vmem:[%s202 + $0x211] sm:$0xff] %vm26, %v4518
  %4585 = vst.msk [vmem:[%s202 + $0x219] sm:$0xff] %vm26, %v4519
  %4586 = vst.msk [vmem:[%s202 + $0x229] sm:$0xff] %vm26, %v4520
  %4587 = vst.msk [vmem:[%s202 + $0x231] sm:$0xff] %vm26, %v4521
  %4588 = vst.msk [vmem:[%s202 + $0x241] sm:$0xff] %vm26, %v4522
  %4589 = vst.msk [vmem:[%s202 + $0x249] sm:$0xff] %vm26, %v4523
  %4590 = vst.msk [vmem:[%s202 + $0x259] sm:$0xff] %vm26, %v4524
  %4591 = vst.msk [vmem:[%s202 + $0x261] sm:$0xff] %vm26, %v4525
  %4592 = vst.msk [vmem:[%s202 + $0x271] sm:$0xff] %vm26, %v4526
  %4593 = vst.msk [vmem:[%s202 + $0x279] sm:$0xff] %vm26, %v4527
  %4594 = vst.msk [vmem:[%s202 + $0x289] sm:$0xff] %vm26, %v4528
  %4595 = vst.msk [vmem:[%s202 + $0x291] sm:$0xff] %vm26, %v4529
  %4596 = vst.msk [vmem:[%s202 + $0x2a1] sm:$0xff] %vm26, %v4530
  %4597 = vst.msk [vmem:[%s202 + $0x2a9] sm:$0xff] %vm26, %v4531
  %4598 = vst.msk [vmem:[%s202 + $0x2b9] sm:$0xff] %vm26, %v4532
  %4599 = vst.msk [vmem:[%s202 + $0x2c1] sm:$0xff] %vm26, %v4533
  %4600 = vst.msk [vmem:[%s202 + $0x2d1] sm:$0xff] %vm26, %v4534
  %4601 = vst.msk [vmem:[%s202 + $0x2d9] sm:$0xff] %vm26, %v4535
  %4602 = vst.msk [vmem:[%s202 + $0x2e9] sm:$0xff] %vm26, %v4536
  %4603 = vst.msk [vmem:[%s202 + $0x2f1] sm:$0xff] %vm26, %v4537
  %4604 = vst.msk [vmem:[%s202 + $0x301] sm:$0xff] %vm26, %v4538
  %4605 = vst.msk [vmem:[%s202 + $0x309] sm:$0xff] %vm26, %v4539
  %4606 = vst.msk [vmem:[%s202 + $0x319] sm:$0xff] %vm26, %v4540
  %4607 = vst.msk [vmem:[%s202 + $0x321] sm:$0xff] %vm26, %v4541
  %v4608 = vld [vmem:[#allocation2] sm:$0xff]
  %v4609 = vld [vmem:[#allocation2 + $0x8] sm:$0xff]
  %v4610 = vld [vmem:[#allocation2 + $0x18] sm:$0xff]
  %v4611 = vld [vmem:[#allocation2 + $0x20] sm:$0xff]
  %v4612 = vld [vmem:[#allocation2 + $0x30] sm:$0xff]
  %v4613 = vld [vmem:[#allocation2 + $0x38] sm:$0xff]
  %v4614 = vld [vmem:[#allocation2 + $0x48] sm:$0xff]
  %v4615 = vld [vmem:[#allocation2 + $0x50] sm:$0xff]
  %v4616 = vld [vmem:[#allocation2 + $0x60] sm:$0xff]
  %v4617 = vld [vmem:[#allocation2 + $0x68] sm:$0xff]
  %v4618 = vld [vmem:[#allocation2 + $0x78] sm:$0xff]
  %v4619 = vld [vmem:[#allocation2 + $0x80] sm:$0xff]
  %v4620 = vld [vmem:[#allocation2 + $0x90] sm:$0xff]
  %v4621 = vld [vmem:[#allocation2 + $0x98] sm:$0xff]
  %v4622 = vld [vmem:[#allocation2 + $0xa8] sm:$0xff]
  %v4623 = vld [vmem:[#allocation2 + $0xb0] sm:$0xff]
  %v4624 = vld [vmem:[#allocation2 + $0xc0] sm:$0xff]
  %v4625 = vld [vmem:[#allocation2 + $0xc8] sm:$0xff]
  %v4626 = vld [vmem:[#allocation2 + $0xd8] sm:$0xff]
  %v4627 = vld [vmem:[#allocation2 + $0xe0] sm:$0xff]
  %v4628 = vld [vmem:[#allocation2 + $0xf0] sm:$0xff]
  %v4629 = vld [vmem:[#allocation2 + $0xf8] sm:$0xff]
  %v4630 = vld [vmem:[#allocation2 + $0x108] sm:$0xff]
  %v4631 = vld [vmem:[#allocation2 + $0x110] sm:$0xff]
  %v4632 = vld [vmem:[#allocation2 + $0x120] sm:$0xff]
  %v4633 = vld [vmem:[#allocation2 + $0x128] sm:$0xff]
  %v4634 = vld [vmem:[#allocation2 + $0x138] sm:$0xff]
  %v4635 = vld [vmem:[#allocation2 + $0x140] sm:$0xff]
  %v4636 = vld [vmem:[#allocation2 + $0x150] sm:$0xff]
  %v4637 = vld [vmem:[#allocation2 + $0x158] sm:$0xff]
  %v4638 = vld [vmem:[#allocation2 + $0x168] sm:$0xff]
  %v4639 = vld [vmem:[#allocation2 + $0x170] sm:$0xff]
  %v4640 = vld [vmem:[#allocation2 + $0x1b0] sm:$0xff]
  %v4641 = vld [vmem:[#allocation2 + $0x1b8] sm:$0xff]
  %v4642 = vld [vmem:[#allocation2 + $0x1c8] sm:$0xff]
  %v4643 = vld [vmem:[#allocation2 + $0x1d0] sm:$0xff]
  %v4644 = vld [vmem:[#allocation2 + $0x1e0] sm:$0xff]
  %v4645 = vld [vmem:[#allocation2 + $0x1e8] sm:$0xff]
  %v4646 = vld [vmem:[#allocation2 + $0x1f8] sm:$0xff]
  %v4647 = vld [vmem:[#allocation2 + $0x200] sm:$0xff]
  %v4648 = vld [vmem:[#allocation2 + $0x210] sm:$0xff]
  %v4649 = vld [vmem:[#allocation2 + $0x218] sm:$0xff]
  %v4650 = vld [vmem:[#allocation2 + $0x228] sm:$0xff]
  %v4651 = vld [vmem:[#allocation2 + $0x230] sm:$0xff]
  %v4652 = vld [vmem:[#allocation2 + $0x240] sm:$0xff]
  %v4653 = vld [vmem:[#allocation2 + $0x248] sm:$0xff]
  %v4654 = vld [vmem:[#allocation2 + $0x258] sm:$0xff]
  %v4655 = vld [vmem:[#allocation2 + $0x260] sm:$0xff]
  %v4656 = vld [vmem:[#allocation2 + $0x270] sm:$0xff]
  %v4657 = vld [vmem:[#allocation2 + $0x278] sm:$0xff]
  %v4658 = vld [vmem:[#allocation2 + $0x288] sm:$0xff]
  %v4659 = vld [vmem:[#allocation2 + $0x290] sm:$0xff]
  %v4660 = vld [vmem:[#allocation2 + $0x2a0] sm:$0xff]
  %v4661 = vld [vmem:[#allocation2 + $0x2a8] sm:$0xff]
  %v4662 = vld [vmem:[#allocation2 + $0x2b8] sm:$0xff]
  %v4663 = vld [vmem:[#allocation2 + $0x2c0] sm:$0xff]
  %v4664 = vld [vmem:[#allocation2 + $0x2d0] sm:$0xff]
  %v4665 = vld [vmem:[#allocation2 + $0x2d8] sm:$0xff]
  %v4666 = vld [vmem:[#allocation2 + $0x2e8] sm:$0xff]
  %v4667 = vld [vmem:[#allocation2 + $0x2f0] sm:$0xff]
  %v4668 = vld [vmem:[#allocation2 + $0x300] sm:$0xff]
  %v4669 = vld [vmem:[#allocation2 + $0x308] sm:$0xff]
  %v4670 = vld [vmem:[#allocation2 + $0x318] sm:$0xff]
  %v4671 = vld [vmem:[#allocation2 + $0x320] sm:$0xff]
  %v4672 = vld [vmem:[#allocation2 + $0x1] sm:$0xff]
  %v4673 = vld [vmem:[#allocation2 + $0x9] sm:$0xff]
  %v4674 = vld [vmem:[#allocation2 + $0x19] sm:$0xff]
  %v4675 = vld [vmem:[#allocation2 + $0x21] sm:$0xff]
  %v4676 = vld [vmem:[#allocation2 + $0x31] sm:$0xff]
  %v4677 = vld [vmem:[#allocation2 + $0x39] sm:$0xff]
  %v4678 = vld [vmem:[#allocation2 + $0x49] sm:$0xff]
  %v4679 = vld [vmem:[#allocation2 + $0x51] sm:$0xff]
  %v4680 = vld [vmem:[#allocation2 + $0x61] sm:$0xff]
  %v4681 = vld [vmem:[#allocation2 + $0x69] sm:$0xff]
  %v4682 = vld [vmem:[#allocation2 + $0x79] sm:$0xff]
  %v4683 = vld [vmem:[#allocation2 + $0x81] sm:$0xff]
  %v4684 = vld [vmem:[#allocation2 + $0x91] sm:$0xff]
  %v4685 = vld [vmem:[#allocation2 + $0x99] sm:$0xff]
  %v4686 = vld [vmem:[#allocation2 + $0xa9] sm:$0xff]
  %v4687 = vld [vmem:[#allocation2 + $0xb1] sm:$0xff]
  %v4688 = vld [vmem:[#allocation2 + $0xc1] sm:$0xff]
  %v4689 = vld [vmem:[#allocation2 + $0xc9] sm:$0xff]
  %v4690 = vld [vmem:[#allocation2 + $0xd9] sm:$0xff]
  %v4691 = vld [vmem:[#allocation2 + $0xe1] sm:$0xff]
  %v4692 = vld [vmem:[#allocation2 + $0xf1] sm:$0xff]
  %v4693 = vld [vmem:[#allocation2 + $0xf9] sm:$0xff]
  %v4694 = vld [vmem:[#allocation2 + $0x109] sm:$0xff]
  %v4695 = vld [vmem:[#allocation2 + $0x111] sm:$0xff]
  %v4696 = vld [vmem:[#allocation2 + $0x121] sm:$0xff]
  %v4697 = vld [vmem:[#allocation2 + $0x129] sm:$0xff]
  %v4698 = vld [vmem:[#allocation2 + $0x139] sm:$0xff]
  %v4699 = vld [vmem:[#allocation2 + $0x141] sm:$0xff]
  %v4700 = vld [vmem:[#allocation2 + $0x151] sm:$0xff]
  %v4701 = vld [vmem:[#allocation2 + $0x159] sm:$0xff]
  %v4702 = vld [vmem:[#allocation2 + $0x169] sm:$0xff]
  %v4703 = vld [vmem:[#allocation2 + $0x171] sm:$0xff]
  %v4704 = vld [vmem:[#allocation2 + $0x1b1] sm:$0xff]
  %v4705 = vld [vmem:[#allocation2 + $0x1b9] sm:$0xff]
  %v4706 = vld [vmem:[#allocation2 + $0x1c9] sm:$0xff]
  %v4707 = vld [vmem:[#allocation2 + $0x1d1] sm:$0xff]
  %v4708 = vld [vmem:[#allocation2 + $0x1e1] sm:$0xff]
  %v4709 = vld [vmem:[#allocation2 + $0x1e9] sm:$0xff]
  %v4710 = vld [vmem:[#allocation2 + $0x1f9] sm:$0xff]
  %v4711 = vld [vmem:[#allocation2 + $0x201] sm:$0xff]
  %v4712 = vld [vmem:[#allocation2 + $0x211] sm:$0xff]
  %v4713 = vld [vmem:[#allocation2 + $0x219] sm:$0xff]
  %v4714 = vld [vmem:[#allocation2 + $0x229] sm:$0xff]
  %v4715 = vld [vmem:[#allocation2 + $0x231] sm:$0xff]
  %v4716 = vld [vmem:[#allocation2 + $0x241] sm:$0xff]
  %v4717 = vld [vmem:[#allocation2 + $0x249] sm:$0xff]
  %v4718 = vld [vmem:[#allocation2 + $0x259] sm:$0xff]
  %v4719 = vld [vmem:[#allocation2 + $0x261] sm:$0xff]
  %v4720 = vld [vmem:[#allocation2 + $0x271] sm:$0xff]
  %v4721 = vld [vmem:[#allocation2 + $0x279] sm:$0xff]
  %v4722 = vld [vmem:[#allocation2 + $0x289] sm:$0xff]
  %v4723 = vld [vmem:[#allocation2 + $0x291] sm:$0xff]
  %v4724 = vld [vmem:[#allocation2 + $0x2a1] sm:$0xff]
  %v4725 = vld [vmem:[#allocation2 + $0x2a9] sm:$0xff]
  %v4726 = vld [vmem:[#allocation2 + $0x2b9] sm:$0xff]
  %v4727 = vld [vmem:[#allocation2 + $0x2c1] sm:$0xff]
  %v4728 = vld [vmem:[#allocation2 + $0x2d1] sm:$0xff]
  %v4729 = vld [vmem:[#allocation2 + $0x2d9] sm:$0xff]
  %v4730 = vld [vmem:[#allocation2 + $0x2e9] sm:$0xff]
  %v4731 = vld [vmem:[#allocation2 + $0x2f1] sm:$0xff]
  %v4732 = vld [vmem:[#allocation2 + $0x301] sm:$0xff]
  %v4733 = vld [vmem:[#allocation2 + $0x309] sm:$0xff]
  %v4734 = vld [vmem:[#allocation2 + $0x319] sm:$0xff]
  %v4735 = vld [vmem:[#allocation2 + $0x321] sm:$0xff]
  %v4736 = vld [vmem:[#allocation2 + $0x2] sm:$0xff]
  %v4737 = vld [vmem:[#allocation2 + $0xa] sm:$0xff]
  %v4738 = vld [vmem:[#allocation2 + $0x1a] sm:$0xff]
  %v4739 = vld [vmem:[#allocation2 + $0x22] sm:$0xff]
  %v4740 = vld [vmem:[#allocation2 + $0x32] sm:$0xff]
  %v4741 = vld [vmem:[#allocation2 + $0x3a] sm:$0xff]
  %v4742 = vld [vmem:[#allocation2 + $0x4a] sm:$0xff]
  %v4743 = vld [vmem:[#allocation2 + $0x52] sm:$0xff]
  %v4744 = vld [vmem:[#allocation2 + $0x62] sm:$0xff]
  %v4745 = vld [vmem:[#allocation2 + $0x6a] sm:$0xff]
  %v4746 = vld [vmem:[#allocation2 + $0x7a] sm:$0xff]
  %v4747 = vld [vmem:[#allocation2 + $0x82] sm:$0xff]
  %v4748 = vld [vmem:[#allocation2 + $0x92] sm:$0xff]
  %v4749 = vld [vmem:[#allocation2 + $0x9a] sm:$0xff]
  %v4750 = vld [vmem:[#allocation2 + $0xaa] sm:$0xff]
  %v4751 = vld [vmem:[#allocation2 + $0xb2] sm:$0xff]
  %v4752 = vld [vmem:[#allocation2 + $0xc2] sm:$0xff]
  %v4753 = vld [vmem:[#allocation2 + $0xca] sm:$0xff]
  %v4754 = vld [vmem:[#allocation2 + $0xda] sm:$0xff]
  %v4755 = vld [vmem:[#allocation2 + $0xe2] sm:$0xff]
  %v4756 = vld [vmem:[#allocation2 + $0xf2] sm:$0xff]
  %v4757 = vld [vmem:[#allocation2 + $0xfa] sm:$0xff]
  %v4758 = vld [vmem:[#allocation2 + $0x10a] sm:$0xff]
  %v4759 = vld [vmem:[#allocation2 + $0x112] sm:$0xff]
  %v4760 = vld [vmem:[#allocation2 + $0x122] sm:$0xff]
  %v4761 = vld [vmem:[#allocation2 + $0x12a] sm:$0xff]
  %v4762 = vld [vmem:[#allocation2 + $0x13a] sm:$0xff]
  %v4763 = vld [vmem:[#allocation2 + $0x142] sm:$0xff]
  %v4764 = vld [vmem:[#allocation2 + $0x152] sm:$0xff]
  %v4765 = vld [vmem:[#allocation2 + $0x15a] sm:$0xff]
  %v4766 = vld [vmem:[#allocation2 + $0x16a] sm:$0xff]
  %v4767 = vld [vmem:[#allocation2 + $0x172] sm:$0xff]
  %v4768 = vld [vmem:[#allocation2 + $0x1b2] sm:$0xff]
  %v4769 = vld [vmem:[#allocation2 + $0x1ba] sm:$0xff]
  %v4770 = vld [vmem:[#allocation2 + $0x1ca] sm:$0xff]
  %v4771 = vld [vmem:[#allocation2 + $0x1d2] sm:$0xff]
  %v4772 = vld [vmem:[#allocation2 + $0x1e2] sm:$0xff]
  %v4773 = vld [vmem:[#allocation2 + $0x1ea] sm:$0xff]
  %v4774 = vld [vmem:[#allocation2 + $0x1fa] sm:$0xff]
  %v4775 = vld [vmem:[#allocation2 + $0x202] sm:$0xff]
  %v4776 = vld [vmem:[#allocation2 + $0x212] sm:$0xff]
  %v4777 = vld [vmem:[#allocation2 + $0x21a] sm:$0xff]
  %v4778 = vld [vmem:[#allocation2 + $0x22a] sm:$0xff]
  %v4779 = vld [vmem:[#allocation2 + $0x232] sm:$0xff]
  %v4780 = vld [vmem:[#allocation2 + $0x242] sm:$0xff]
  %v4781 = vld [vmem:[#allocation2 + $0x24a] sm:$0xff]
  %v4782 = vld [vmem:[#allocation2 + $0x25a] sm:$0xff]
  %v4783 = vld [vmem:[#allocation2 + $0x262] sm:$0xff]
  %v4784 = vld [vmem:[#allocation2 + $0x272] sm:$0xff]
  %v4785 = vld [vmem:[#allocation2 + $0x27a] sm:$0xff]
  %v4786 = vld [vmem:[#allocation2 + $0x28a] sm:$0xff]
  %v4787 = vld [vmem:[#allocation2 + $0x292] sm:$0xff]
  %v4788 = vld [vmem:[#allocation2 + $0x2a2] sm:$0xff]
  %v4789 = vld [vmem:[#allocation2 + $0x2aa] sm:$0xff]
  %v4790 = vld [vmem:[#allocation2 + $0x2ba] sm:$0xff]
  %v4791 = vld [vmem:[#allocation2 + $0x2c2] sm:$0xff]
  %v4792 = vld [vmem:[#allocation2 + $0x2d2] sm:$0xff]
  %v4793 = vld [vmem:[#allocation2 + $0x2da] sm:$0xff]
  %v4794 = vld [vmem:[#allocation2 + $0x2ea] sm:$0xff]
  %v4795 = vld [vmem:[#allocation2 + $0x2f2] sm:$0xff]
  %v4796 = vld [vmem:[#allocation2 + $0x302] sm:$0xff]
  %v4797 = vld [vmem:[#allocation2 + $0x30a] sm:$0xff]
  %v4798 = vld [vmem:[#allocation2 + $0x31a] sm:$0xff]
  %v4799 = vld [vmem:[#allocation2 + $0x322] sm:$0xff]
  %v4800 = vld [vmem:[%s202] sm:$0xff]
  %v4801 = vld [vmem:[%s202 + $0x8] sm:$0xff]
  %v4802 = vld [vmem:[%s202 + $0x18] sm:$0xff]
  %v4803 = vld [vmem:[%s202 + $0x20] sm:$0xff]
  %v4804 = vld [vmem:[%s202 + $0x30] sm:$0xff]
  %v4805 = vld [vmem:[%s202 + $0x38] sm:$0xff]
  %v4806 = vld [vmem:[%s202 + $0x48] sm:$0xff]
  %v4807 = vld [vmem:[%s202 + $0x50] sm:$0xff]
  %v4808 = vld [vmem:[%s202 + $0x60] sm:$0xff]
  %v4809 = vld [vmem:[%s202 + $0x68] sm:$0xff]
  %v4810 = vld [vmem:[%s202 + $0x78] sm:$0xff]
  %v4811 = vld [vmem:[%s202 + $0x80] sm:$0xff]
  %v4812 = vld [vmem:[%s202 + $0x90] sm:$0xff]
  %v4813 = vld [vmem:[%s202 + $0x98] sm:$0xff]
  %v4814 = vld [vmem:[%s202 + $0xa8] sm:$0xff]
  %v4815 = vld [vmem:[%s202 + $0xb0] sm:$0xff]
  %v4816 = vld [vmem:[%s202 + $0xc0] sm:$0xff]
  %v4817 = vld [vmem:[%s202 + $0xc8] sm:$0xff]
  %v4818 = vld [vmem:[%s202 + $0xd8] sm:$0xff]
  %v4819 = vld [vmem:[%s202 + $0xe0] sm:$0xff]
  %v4820 = vld [vmem:[%s202 + $0xf0] sm:$0xff]
  %v4821 = vld [vmem:[%s202 + $0xf8] sm:$0xff]
  %v4822 = vld [vmem:[%s202 + $0x108] sm:$0xff]
  %v4823 = vld [vmem:[%s202 + $0x110] sm:$0xff]
  %v4824 = vld [vmem:[%s202 + $0x120] sm:$0xff]
  %v4825 = vld [vmem:[%s202 + $0x128] sm:$0xff]
  %v4826 = vld [vmem:[%s202 + $0x138] sm:$0xff]
  %v4827 = vld [vmem:[%s202 + $0x140] sm:$0xff]
  %v4828 = vld [vmem:[%s202 + $0x150] sm:$0xff]
  %v4829 = vld [vmem:[%s202 + $0x158] sm:$0xff]
  %v4830 = vld [vmem:[%s202 + $0x168] sm:$0xff]
  %v4831 = vld [vmem:[%s202 + $0x170] sm:$0xff]
  %v4832 = vld [vmem:[%s202 + $0x1b0] sm:$0xff]
  %v4833 = vld [vmem:[%s202 + $0x1b8] sm:$0xff]
  %v4834 = vld [vmem:[%s202 + $0x1c8] sm:$0xff]
  %v4835 = vld [vmem:[%s202 + $0x1d0] sm:$0xff]
  %v4836 = vld [vmem:[%s202 + $0x1e0] sm:$0xff]
  %v4837 = vld [vmem:[%s202 + $0x1e8] sm:$0xff]
  %v4838 = vld [vmem:[%s202 + $0x1f8] sm:$0xff]
  %v4839 = vld [vmem:[%s202 + $0x200] sm:$0xff]
  %v4840 = vld [vmem:[%s202 + $0x210] sm:$0xff]
  %v4841 = vld [vmem:[%s202 + $0x218] sm:$0xff]
  %v4842 = vld [vmem:[%s202 + $0x228] sm:$0xff]
  %v4843 = vld [vmem:[%s202 + $0x230] sm:$0xff]
  %v4844 = vld [vmem:[%s202 + $0x240] sm:$0xff]
  %v4845 = vld [vmem:[%s202 + $0x248] sm:$0xff]
  %v4846 = vld [vmem:[%s202 + $0x258] sm:$0xff]
  %v4847 = vld [vmem:[%s202 + $0x260] sm:$0xff]
  %v4848 = vld [vmem:[%s202 + $0x270] sm:$0xff]
  %v4849 = vld [vmem:[%s202 + $0x278] sm:$0xff]
  %v4850 = vld [vmem:[%s202 + $0x288] sm:$0xff]
  %v4851 = vld [vmem:[%s202 + $0x290] sm:$0xff]
  %v4852 = vld [vmem:[%s202 + $0x2a0] sm:$0xff]
  %v4853 = vld [vmem:[%s202 + $0x2a8] sm:$0xff]
  %v4854 = vld [vmem:[%s202 + $0x2b8] sm:$0xff]
  %v4855 = vld [vmem:[%s202 + $0x2c0] sm:$0xff]
  %v4856 = vld [vmem:[%s202 + $0x2d0] sm:$0xff]
  %v4857 = vld [vmem:[%s202 + $0x2d8] sm:$0xff]
  %v4858 = vld [vmem:[%s202 + $0x2e8] sm:$0xff]
  %v4859 = vld [vmem:[%s202 + $0x2f0] sm:$0xff]
  %v4860 = vld [vmem:[%s202 + $0x300] sm:$0xff]
  %v4861 = vld [vmem:[%s202 + $0x308] sm:$0xff]
  %v4862 = vld [vmem:[%s202 + $0x318] sm:$0xff]
  %v4863 = vld [vmem:[%s202 + $0x320] sm:$0xff]
  %v4864 = vld [vmem:[%s202 + $0x1] sm:$0xff]
  %v4865 = vld [vmem:[%s202 + $0x9] sm:$0xff]
  %v4866 = vld [vmem:[%s202 + $0x19] sm:$0xff]
  %v4867 = vld [vmem:[%s202 + $0x21] sm:$0xff]
  %v4868 = vld [vmem:[%s202 + $0x31] sm:$0xff]
  %v4869 = vld [vmem:[%s202 + $0x39] sm:$0xff]
  %v4870 = vld [vmem:[%s202 + $0x49] sm:$0xff]
  %v4871 = vld [vmem:[%s202 + $0x51] sm:$0xff]
  %v4872 = vld [vmem:[%s202 + $0x61] sm:$0xff]
  %v4873 = vld [vmem:[%s202 + $0x69] sm:$0xff]
  %v4874 = vld [vmem:[%s202 + $0x79] sm:$0xff]
  %v4875 = vld [vmem:[%s202 + $0x81] sm:$0xff]
  %v4876 = vld [vmem:[%s202 + $0x91] sm:$0xff]
  %v4877 = vld [vmem:[%s202 + $0x99] sm:$0xff]
  %v4878 = vld [vmem:[%s202 + $0xa9] sm:$0xff]
  %v4879 = vld [vmem:[%s202 + $0xb1] sm:$0xff]
  %v4880 = vld [vmem:[%s202 + $0xc1] sm:$0xff]
  %v4881 = vld [vmem:[%s202 + $0xc9] sm:$0xff]
  %v4882 = vld [vmem:[%s202 + $0xd9] sm:$0xff]
  %v4883 = vld [vmem:[%s202 + $0xe1] sm:$0xff]
  %v4884 = vld [vmem:[%s202 + $0xf1] sm:$0xff]
  %v4885 = vld [vmem:[%s202 + $0xf9] sm:$0xff]
  %v4886 = vld [vmem:[%s202 + $0x109] sm:$0xff]
  %v4887 = vld [vmem:[%s202 + $0x111] sm:$0xff]
  %v4888 = vld [vmem:[%s202 + $0x121] sm:$0xff]
  %v4889 = vld [vmem:[%s202 + $0x129] sm:$0xff]
  %v4890 = vld [vmem:[%s202 + $0x139] sm:$0xff]
  %v4891 = vld [vmem:[%s202 + $0x141] sm:$0xff]
  %v4892 = vld [vmem:[%s202 + $0x151] sm:$0xff]
  %v4893 = vld [vmem:[%s202 + $0x159] sm:$0xff]
  %v4894 = vld [vmem:[%s202 + $0x169] sm:$0xff]
  %v4895 = vld [vmem:[%s202 + $0x171] sm:$0xff]
  %v4896 = vld [vmem:[%s202 + $0x1b1] sm:$0xff]
  %v4897 = vld [vmem:[%s202 + $0x1b9] sm:$0xff]
  %v4898 = vld [vmem:[%s202 + $0x1c9] sm:$0xff]
  %v4899 = vld [vmem:[%s202 + $0x1d1] sm:$0xff]
  %v4900 = vld [vmem:[%s202 + $0x1e1] sm:$0xff]
  %v4901 = vld [vmem:[%s202 + $0x1e9] sm:$0xff]
  %v4902 = vld [vmem:[%s202 + $0x1f9] sm:$0xff]
  %v4903 = vld [vmem:[%s202 + $0x201] sm:$0xff]
  %v4904 = vld [vmem:[%s202 + $0x211] sm:$0xff]
  %v4905 = vld [vmem:[%s202 + $0x219] sm:$0xff]
  %v4906 = vld [vmem:[%s202 + $0x229] sm:$0xff]
  %v4907 = vld [vmem:[%s202 + $0x231] sm:$0xff]
  %v4908 = vld [vmem:[%s202 + $0x241] sm:$0xff]
  %v4909 = vld [vmem:[%s202 + $0x249] sm:$0xff]
  %v4910 = vld [vmem:[%s202 + $0x259] sm:$0xff]
  %v4911 = vld [vmem:[%s202 + $0x261] sm:$0xff]
  %v4912 = vld [vmem:[%s202 + $0x271] sm:$0xff]
  %v4913 = vld [vmem:[%s202 + $0x279] sm:$0xff]
  %v4914 = vld [vmem:[%s202 + $0x289] sm:$0xff]
  %v4915 = vld [vmem:[%s202 + $0x291] sm:$0xff]
  %v4916 = vld [vmem:[%s202 + $0x2a1] sm:$0xff]
  %v4917 = vld [vmem:[%s202 + $0x2a9] sm:$0xff]
  %v4918 = vld [vmem:[%s202 + $0x2b9] sm:$0xff]
  %v4919 = vld [vmem:[%s202 + $0x2c1] sm:$0xff]
  %v4920 = vld [vmem:[%s202 + $0x2d1] sm:$0xff]
  %v4921 = vld [vmem:[%s202 + $0x2d9] sm:$0xff]
  %v4922 = vld [vmem:[%s202 + $0x2e9] sm:$0xff]
  %v4923 = vld [vmem:[%s202 + $0x2f1] sm:$0xff]
  %v4924 = vld [vmem:[%s202 + $0x301] sm:$0xff]
  %v4925 = vld [vmem:[%s202 + $0x309] sm:$0xff]
  %v4926 = vld [vmem:[%s202 + $0x319] sm:$0xff]
  %v4927 = vld [vmem:[%s202 + $0x321] sm:$0xff]
  %v4928 = vld [vmem:[%s202 + $0x2] sm:$0xff]
  %v4929 = vld [vmem:[%s202 + $0xa] sm:$0xff]
  %v4930 = vld [vmem:[%s202 + $0x1a] sm:$0xff]
  %v4931 = vld [vmem:[%s202 + $0x22] sm:$0xff]
  %v4932 = vld [vmem:[%s202 + $0x32] sm:$0xff]
  %v4933 = vld [vmem:[%s202 + $0x3a] sm:$0xff]
  %v4934 = vld [vmem:[%s202 + $0x4a] sm:$0xff]
  %v4935 = vld [vmem:[%s202 + $0x52] sm:$0xff]
  %v4936 = vld [vmem:[%s202 + $0x62] sm:$0xff]
  %v4937 = vld [vmem:[%s202 + $0x6a] sm:$0xff]
  %v4938 = vld [vmem:[%s202 + $0x7a] sm:$0xff]
  %v4939 = vld [vmem:[%s202 + $0x82] sm:$0xff]
  %v4940 = vld [vmem:[%s202 + $0x92] sm:$0xff]
  %v4941 = vld [vmem:[%s202 + $0x9a] sm:$0xff]
  %v4942 = vld [vmem:[%s202 + $0xaa] sm:$0xff]
  %v4943 = vld [vmem:[%s202 + $0xb2] sm:$0xff]
  %v4944 = vld [vmem:[%s202 + $0xc2] sm:$0xff]
  %v4945 = vld [vmem:[%s202 + $0xca] sm:$0xff]
  %v4946 = vld [vmem:[%s202 + $0xda] sm:$0xff]
  %v4947 = vld [vmem:[%s202 + $0xe2] sm:$0xff]
  %v4948 = vld [vmem:[%s202 + $0xf2] sm:$0xff]
  %v4949 = vld [vmem:[%s202 + $0xfa] sm:$0xff]
  %v4950 = vld [vmem:[%s202 + $0x10a] sm:$0xff]
  %v4951 = vld [vmem:[%s202 + $0x112] sm:$0xff]
  %v4952 = vld [vmem:[%s202 + $0x122] sm:$0xff]
  %v4953 = vld [vmem:[%s202 + $0x12a] sm:$0xff]
  %v4954 = vld [vmem:[%s202 + $0x13a] sm:$0xff]
  %v4955 = vld [vmem:[%s202 + $0x142] sm:$0xff]
  %v4956 = vld [vmem:[%s202 + $0x152] sm:$0xff]
  %v4957 = vld [vmem:[%s202 + $0x15a] sm:$0xff]
  %v4958 = vld [vmem:[%s202 + $0x16a] sm:$0xff]
  %v4959 = vld [vmem:[%s202 + $0x172] sm:$0xff]
  %v4960 = vld [vmem:[%s202 + $0x1b2] sm:$0xff]
  %v4961 = vld [vmem:[%s202 + $0x1ba] sm:$0xff]
  %v4962 = vld [vmem:[%s202 + $0x1ca] sm:$0xff]
  %v4963 = vld [vmem:[%s202 + $0x1d2] sm:$0xff]
  %v4964 = vld [vmem:[%s202 + $0x1e2] sm:$0xff]
  %v4965 = vld [vmem:[%s202 + $0x1ea] sm:$0xff]
  %v4966 = vld [vmem:[%s202 + $0x1fa] sm:$0xff]
  %v4967 = vld [vmem:[%s202 + $0x202] sm:$0xff]
  %v4968 = vld [vmem:[%s202 + $0x212] sm:$0xff]
  %v4969 = vld [vmem:[%s202 + $0x21a] sm:$0xff]
  %v4970 = vld [vmem:[%s202 + $0x22a] sm:$0xff]
  %v4971 = vld [vmem:[%s202 + $0x232] sm:$0xff]
  %v4972 = vld [vmem:[%s202 + $0x242] sm:$0xff]
  %v4973 = vld [vmem:[%s202 + $0x24a] sm:$0xff]
  %v4974 = vld [vmem:[%s202 + $0x25a] sm:$0xff]
  %v4975 = vld [vmem:[%s202 + $0x262] sm:$0xff]
  %v4976 = vld [vmem:[%s202 + $0x272] sm:$0xff]
  %v4977 = vld [vmem:[%s202 + $0x27a] sm:$0xff]
  %v4978 = vld [vmem:[%s202 + $0x28a] sm:$0xff]
  %v4979 = vld [vmem:[%s202 + $0x292] sm:$0xff]
  %v4980 = vld [vmem:[%s202 + $0x2a2] sm:$0xff]
  %v4981 = vld [vmem:[%s202 + $0x2aa] sm:$0xff]
  %v4982 = vld [vmem:[%s202 + $0x2ba] sm:$0xff]
  %v4983 = vld [vmem:[%s202 + $0x2c2] sm:$0xff]
  %v4984 = vld [vmem:[%s202 + $0x2d2] sm:$0xff]
  %v4985 = vld [vmem:[%s202 + $0x2da] sm:$0xff]
  %v4986 = vld [vmem:[%s202 + $0x2ea] sm:$0xff]
  %v4987 = vld [vmem:[%s202 + $0x2f2] sm:$0xff]
  %v4988 = vld [vmem:[%s202 + $0x302] sm:$0xff]
  %v4989 = vld [vmem:[%s202 + $0x30a] sm:$0xff]
  %v4990 = vld [vmem:[%s202 + $0x31a] sm:$0xff]
  %v4991 = vld [vmem:[%s202 + $0x322] sm:$0xff]
  %v4992 = vld [vmem:[%s651] sm:$0xff]
  %v4993 = vld [vmem:[%s651 + $0x8] sm:$0xff]
  %v4994 = vld [vmem:[%s651 + $0x18] sm:$0xff]
  %v4995 = vld [vmem:[%s651 + $0x20] sm:$0xff]
  %v4996 = vld [vmem:[%s651 + $0x30] sm:$0xff]
  %v4997 = vld [vmem:[%s651 + $0x38] sm:$0xff]
  %v4998 = vld [vmem:[%s651 + $0x48] sm:$0xff]
  %v4999 = vld [vmem:[%s651 + $0x50] sm:$0xff]
  %v5000 = vld [vmem:[%s651 + $0x60] sm:$0xff]
  %v5001 = vld [vmem:[%s651 + $0x68] sm:$0xff]
  %v5002 = vld [vmem:[%s651 + $0x78] sm:$0xff]
  %v5003 = vld [vmem:[%s651 + $0x80] sm:$0xff]
  %v5004 = vld [vmem:[%s651 + $0x90] sm:$0xff]
  %v5005 = vld [vmem:[%s651 + $0x98] sm:$0xff]
  %v5006 = vld [vmem:[%s651 + $0xa8] sm:$0xff]
  %v5007 = vld [vmem:[%s651 + $0xb0] sm:$0xff]
  %v5008 = vld [vmem:[%s651 + $0xc0] sm:$0xff]
  %v5009 = vld [vmem:[%s651 + $0xc8] sm:$0xff]
  %v5010 = vld [vmem:[%s651 + $0xd8] sm:$0xff]
  %v5011 = vld [vmem:[%s651 + $0xe0] sm:$0xff]
  %v5012 = vld [vmem:[%s651 + $0xf0] sm:$0xff]
  %v5013 = vld [vmem:[%s651 + $0xf8] sm:$0xff]
  %v5014 = vld [vmem:[%s651 + $0x108] sm:$0xff]
  %v5015 = vld [vmem:[%s651 + $0x110] sm:$0xff]
  %v5016 = vld [vmem:[%s651 + $0x120] sm:$0xff]
  %v5017 = vld [vmem:[%s651 + $0x128] sm:$0xff]
  %v5018 = vld [vmem:[%s651 + $0x138] sm:$0xff]
  %v5019 = vld [vmem:[%s651 + $0x140] sm:$0xff]
  %v5020 = vld [vmem:[%s651 + $0x150] sm:$0xff]
  %v5021 = vld [vmem:[%s651 + $0x158] sm:$0xff]
  %v5022 = vld [vmem:[%s651 + $0x168] sm:$0xff]
  %v5023 = vld [vmem:[%s651 + $0x170] sm:$0xff]
  %v5024 = vld [vmem:[%s651 + $0x1b0] sm:$0xff]
  %v5025 = vld [vmem:[%s651 + $0x1b8] sm:$0xff]
  %v5026 = vld [vmem:[%s651 + $0x1c8] sm:$0xff]
  %v5027 = vld [vmem:[%s651 + $0x1d0] sm:$0xff]
  %v5028 = vld [vmem:[%s651 + $0x1e0] sm:$0xff]
  %v5029 = vld [vmem:[%s651 + $0x1e8] sm:$0xff]
  %v5030 = vld [vmem:[%s651 + $0x1f8] sm:$0xff]
  %v5031 = vld [vmem:[%s651 + $0x200] sm:$0xff]
  %v5032 = vld [vmem:[%s651 + $0x210] sm:$0xff]
  %v5033 = vld [vmem:[%s651 + $0x218] sm:$0xff]
  %v5034 = vld [vmem:[%s651 + $0x228] sm:$0xff]
  %v5035 = vld [vmem:[%s651 + $0x230] sm:$0xff]
  %v5036 = vld [vmem:[%s651 + $0x240] sm:$0xff]
  %v5037 = vld [vmem:[%s651 + $0x248] sm:$0xff]
  %v5038 = vld [vmem:[%s651 + $0x258] sm:$0xff]
  %v5039 = vld [vmem:[%s651 + $0x260] sm:$0xff]
  %v5040 = vld [vmem:[%s651 + $0x270] sm:$0xff]
  %v5041 = vld [vmem:[%s651 + $0x278] sm:$0xff]
  %v5042 = vld [vmem:[%s651 + $0x288] sm:$0xff]
  %v5043 = vld [vmem:[%s651 + $0x290] sm:$0xff]
  %v5044 = vld [vmem:[%s651 + $0x2a0] sm:$0xff]
  %v5045 = vld [vmem:[%s651 + $0x2a8] sm:$0xff]
  %v5046 = vld [vmem:[%s651 + $0x2b8] sm:$0xff]
  %v5047 = vld [vmem:[%s651 + $0x2c0] sm:$0xff]
  %v5048 = vld [vmem:[%s651 + $0x2d0] sm:$0xff]
  %v5049 = vld [vmem:[%s651 + $0x2d8] sm:$0xff]
  %v5050 = vld [vmem:[%s651 + $0x2e8] sm:$0xff]
  %v5051 = vld [vmem:[%s651 + $0x2f0] sm:$0xff]
  %v5052 = vld [vmem:[%s651 + $0x300] sm:$0xff]
  %v5053 = vld [vmem:[%s651 + $0x308] sm:$0xff]
  %v5054 = vld [vmem:[%s651 + $0x318] sm:$0xff]
  %v5055 = vld [vmem:[%s651 + $0x320] sm:$0xff]
  %v5056 = vld [vmem:[%s651 + $0x1] sm:$0xff]
  %v5057 = vld [vmem:[%s651 + $0x9] sm:$0xff]
  %v5058 = vld [vmem:[%s651 + $0x19] sm:$0xff]
  %v5059 = vld [vmem:[%s651 + $0x21] sm:$0xff]
  %v5060 = vld [vmem:[%s651 + $0x31] sm:$0xff]
  %v5061 = vld [vmem:[%s651 + $0x39] sm:$0xff]
  %v5062 = vld [vmem:[%s651 + $0x49] sm:$0xff]
  %v5063 = vld [vmem:[%s651 + $0x51] sm:$0xff]
  %v5064 = vld [vmem:[%s651 + $0x61] sm:$0xff]
  %v5065 = vld [vmem:[%s651 + $0x69] sm:$0xff]
  %v5066 = vld [vmem:[%s651 + $0x79] sm:$0xff]
  %v5067 = vld [vmem:[%s651 + $0x81] sm:$0xff]
  %v5068 = vld [vmem:[%s651 + $0x91] sm:$0xff]
  %v5069 = vld [vmem:[%s651 + $0x99] sm:$0xff]
  %v5070 = vld [vmem:[%s651 + $0xa9] sm:$0xff]
  %v5071 = vld [vmem:[%s651 + $0xb1] sm:$0xff]
  %v5072 = vld [vmem:[%s651 + $0xc1] sm:$0xff]
  %v5073 = vld [vmem:[%s651 + $0xc9] sm:$0xff]
  %v5074 = vld [vmem:[%s651 + $0xd9] sm:$0xff]
  %v5075 = vld [vmem:[%s651 + $0xe1] sm:$0xff]
  %v5076 = vld [vmem:[%s651 + $0xf1] sm:$0xff]
  %v5077 = vld [vmem:[%s651 + $0xf9] sm:$0xff]
  %v5078 = vld [vmem:[%s651 + $0x109] sm:$0xff]
  %v5079 = vld [vmem:[%s651 + $0x111] sm:$0xff]
  %v5080 = vld [vmem:[%s651 + $0x121] sm:$0xff]
  %v5081 = vld [vmem:[%s651 + $0x129] sm:$0xff]
  %v5082 = vld [vmem:[%s651 + $0x139] sm:$0xff]
  %v5083 = vld [vmem:[%s651 + $0x141] sm:$0xff]
  %v5084 = vld [vmem:[%s651 + $0x151] sm:$0xff]
  %v5085 = vld [vmem:[%s651 + $0x159] sm:$0xff]
  %v5086 = vld [vmem:[%s651 + $0x169] sm:$0xff]
  %v5087 = vld [vmem:[%s651 + $0x171] sm:$0xff]
  %v5088 = vld [vmem:[%s651 + $0x1b1] sm:$0xff]
  %v5089 = vld [vmem:[%s651 + $0x1b9] sm:$0xff]
  %v5090 = vld [vmem:[%s651 + $0x1c9] sm:$0xff]
  %v5091 = vld [vmem:[%s651 + $0x1d1] sm:$0xff]
  %v5092 = vld [vmem:[%s651 + $0x1e1] sm:$0xff]
  %v5093 = vld [vmem:[%s651 + $0x1e9] sm:$0xff]
  %v5094 = vld [vmem:[%s651 + $0x1f9] sm:$0xff]
  %v5095 = vld [vmem:[%s651 + $0x201] sm:$0xff]
  %v5096 = vld [vmem:[%s651 + $0x211] sm:$0xff]
  %v5097 = vld [vmem:[%s651 + $0x219] sm:$0xff]
  %v5098 = vld [vmem:[%s651 + $0x229] sm:$0xff]
  %v5099 = vld [vmem:[%s651 + $0x231] sm:$0xff]
  %v5100 = vld [vmem:[%s651 + $0x241] sm:$0xff]
  %v5101 = vld [vmem:[%s651 + $0x249] sm:$0xff]
  %v5102 = vld [vmem:[%s651 + $0x259] sm:$0xff]
  %v5103 = vld [vmem:[%s651 + $0x261] sm:$0xff]
  %v5104 = vld [vmem:[%s651 + $0x271] sm:$0xff]
  %v5105 = vld [vmem:[%s651 + $0x279] sm:$0xff]
  %v5106 = vld [vmem:[%s651 + $0x289] sm:$0xff]
  %v5107 = vld [vmem:[%s651 + $0x291] sm:$0xff]
  %v5108 = vld [vmem:[%s651 + $0x2a1] sm:$0xff]
  %v5109 = vld [vmem:[%s651 + $0x2a9] sm:$0xff]
  %v5110 = vld [vmem:[%s651 + $0x2b9] sm:$0xff]
  %v5111 = vld [vmem:[%s651 + $0x2c1] sm:$0xff]
  %v5112 = vld [vmem:[%s651 + $0x2d1] sm:$0xff]
  %v5113 = vld [vmem:[%s651 + $0x2d9] sm:$0xff]
  %v5114 = vld [vmem:[%s651 + $0x2e9] sm:$0xff]
  %v5115 = vld [vmem:[%s651 + $0x2f1] sm:$0xff]
  %v5116 = vld [vmem:[%s651 + $0x301] sm:$0xff]
  %v5117 = vld [vmem:[%s651 + $0x309] sm:$0xff]
  %v5118 = vld [vmem:[%s651 + $0x319] sm:$0xff]
  %v5119 = vld [vmem:[%s651 + $0x321] sm:$0xff]
  %v5120 = vld [vmem:[%s651 + $0x2] sm:$0xff]
  %v5121 = vld [vmem:[%s651 + $0xa] sm:$0xff]
  %v5122 = vld [vmem:[%s651 + $0x1a] sm:$0xff]
  %v5123 = vld [vmem:[%s651 + $0x22] sm:$0xff]
  %v5124 = vld [vmem:[%s651 + $0x32] sm:$0xff]
  %v5125 = vld [vmem:[%s651 + $0x3a] sm:$0xff]
  %v5126 = vld [vmem:[%s651 + $0x4a] sm:$0xff]
  %v5127 = vld [vmem:[%s651 + $0x52] sm:$0xff]
  %v5128 = vld [vmem:[%s651 + $0x62] sm:$0xff]
  %v5129 = vld [vmem:[%s651 + $0x6a] sm:$0xff]
  %v5130 = vld [vmem:[%s651 + $0x7a] sm:$0xff]
  %v5131 = vld [vmem:[%s651 + $0x82] sm:$0xff]
  %v5132 = vld [vmem:[%s651 + $0x92] sm:$0xff]
  %v5133 = vld [vmem:[%s651 + $0x9a] sm:$0xff]
  %v5134 = vld [vmem:[%s651 + $0xaa] sm:$0xff]
  %v5135 = vld [vmem:[%s651 + $0xb2] sm:$0xff]
  %v5136 = vld [vmem:[%s651 + $0xc2] sm:$0xff]
  %v5137 = vld [vmem:[%s651 + $0xca] sm:$0xff]
  %v5138 = vld [vmem:[%s651 + $0xda] sm:$0xff]
  %v5139 = vld [vmem:[%s651 + $0xe2] sm:$0xff]
  %v5140 = vld [vmem:[%s651 + $0xf2] sm:$0xff]
  %v5141 = vld [vmem:[%s651 + $0xfa] sm:$0xff]
  %v5142 = vld [vmem:[%s651 + $0x10a] sm:$0xff]
  %v5143 = vld [vmem:[%s651 + $0x112] sm:$0xff]
  %v5144 = vld [vmem:[%s651 + $0x122] sm:$0xff]
  %v5145 = vld [vmem:[%s651 + $0x12a] sm:$0xff]
  %v5146 = vld [vmem:[%s651 + $0x13a] sm:$0xff]
  %v5147 = vld [vmem:[%s651 + $0x142] sm:$0xff]
  %v5148 = vld [vmem:[%s651 + $0x152] sm:$0xff]
  %v5149 = vld [vmem:[%s651 + $0x15a] sm:$0xff]
  %v5150 = vld [vmem:[%s651 + $0x16a] sm:$0xff]
  %v5151 = vld [vmem:[%s651 + $0x172] sm:$0xff]
  %v5152 = vld [vmem:[%s651 + $0x1b2] sm:$0xff]
  %v5153 = vld [vmem:[%s651 + $0x1ba] sm:$0xff]
  %v5154 = vld [vmem:[%s651 + $0x1ca] sm:$0xff]
  %v5155 = vld [vmem:[%s651 + $0x1d2] sm:$0xff]
  %v5156 = vld [vmem:[%s651 + $0x1e2] sm:$0xff]
  %v5157 = vld [vmem:[%s651 + $0x1ea] sm:$0xff]
  %v5158 = vld [vmem:[%s651 + $0x1fa] sm:$0xff]
  %v5159 = vld [vmem:[%s651 + $0x202] sm:$0xff]
  %v5160 = vld [vmem:[%s651 + $0x212] sm:$0xff]
  %v5161 = vld [vmem:[%s651 + $0x21a] sm:$0xff]
  %v5162 = vld [vmem:[%s651 + $0x22a] sm:$0xff]
  %v5163 = vld [vmem:[%s651 + $0x232] sm:$0xff]
  %v5164 = vld [vmem:[%s651 + $0x242] sm:$0xff]
  %v5165 = vld [vmem:[%s651 + $0x24a] sm:$0xff]
  %v5166 = vld [vmem:[%s651 + $0x25a] sm:$0xff]
  %v5167 = vld [vmem:[%s651 + $0x262] sm:$0xff]
  %v5168 = vld [vmem:[%s651 + $0x272] sm:$0xff]
  %v5169 = vld [vmem:[%s651 + $0x27a] sm:$0xff]
  %v5170 = vld [vmem:[%s651 + $0x28a] sm:$0xff]
  %v5171 = vld [vmem:[%s651 + $0x292] sm:$0xff]
  %v5172 = vld [vmem:[%s651 + $0x2a2] sm:$0xff]
  %v5173 = vld [vmem:[%s651 + $0x2aa] sm:$0xff]
  %v5174 = vld [vmem:[%s651 + $0x2ba] sm:$0xff]
  %v5175 = vld [vmem:[%s651 + $0x2c2] sm:$0xff]
  %v5176 = vld [vmem:[%s651 + $0x2d2] sm:$0xff]
  %v5177 = vld [vmem:[%s651 + $0x2da] sm:$0xff]
  %v5178 = vld [vmem:[%s651 + $0x2ea] sm:$0xff]
  %v5179 = vld [vmem:[%s651 + $0x2f2] sm:$0xff]
  %v5180 = vld [vmem:[%s651 + $0x302] sm:$0xff]
  %v5181 = vld [vmem:[%s651 + $0x30a] sm:$0xff]
  %v5182 = vld [vmem:[%s651 + $0x31a] sm:$0xff]
  %v5183 = vld [vmem:[%s651 + $0x322] sm:$0xff]
  %5248 = vrot.lane.b32.xlu0 %v4672, 4
  %v5249 = vpop.permute.xlu0 %5248
  %5250 = vrot.lane.b32.xlu0 %v4673, 4
  %v5251 = vpop.permute.xlu0 %5250
  %5252 = vrot.lane.b32.xlu0 %v4674, 4
  %v5253 = vpop.permute.xlu0 %5252
  %5254 = vrot.lane.b32.xlu0 %v4675, 4
  %v5255 = vpop.permute.xlu0 %5254
  %5256 = vrot.lane.b32.xlu0 %v4676, 4
  %v5257 = vpop.permute.xlu0 %5256
  %5258 = vrot.lane.b32.xlu0 %v4677, 4
  %v5259 = vpop.permute.xlu0 %5258
  %5260 = vrot.lane.b32.xlu0 %v4678, 4
  %v5261 = vpop.permute.xlu0 %5260
  %5262 = vrot.lane.b32.xlu0 %v4679, 4
  %v5263 = vpop.permute.xlu0 %5262
  %5264 = vrot.lane.b32.xlu0 %v4680, 4
  %v5265 = vpop.permute.xlu0 %5264
  %5266 = vrot.lane.b32.xlu0 %v4681, 4
  %v5267 = vpop.permute.xlu0 %5266
  %5268 = vrot.lane.b32.xlu0 %v4682, 4
  %v5269 = vpop.permute.xlu0 %5268
  %5270 = vrot.lane.b32.xlu0 %v4683, 4
  %v5271 = vpop.permute.xlu0 %5270
  %5272 = vrot.lane.b32.xlu0 %v4684, 4
  %v5273 = vpop.permute.xlu0 %5272
  %5274 = vrot.lane.b32.xlu0 %v4685, 4
  %v5275 = vpop.permute.xlu0 %5274
  %5276 = vrot.lane.b32.xlu0 %v4686, 4
  %v5277 = vpop.permute.xlu0 %5276
  %5278 = vrot.lane.b32.xlu0 %v4687, 4
  %v5279 = vpop.permute.xlu0 %5278
  %5280 = vrot.lane.b32.xlu0 %v4688, 4
  %v5281 = vpop.permute.xlu0 %5280
  %5282 = vrot.lane.b32.xlu0 %v4689, 4
  %v5283 = vpop.permute.xlu0 %5282
  %5284 = vrot.lane.b32.xlu0 %v4690, 4
  %v5285 = vpop.permute.xlu0 %5284
  %5286 = vrot.lane.b32.xlu0 %v4691, 4
  %v5287 = vpop.permute.xlu0 %5286
  %5288 = vrot.lane.b32.xlu0 %v4692, 4
  %v5289 = vpop.permute.xlu0 %5288
  %5290 = vrot.lane.b32.xlu0 %v4693, 4
  %v5291 = vpop.permute.xlu0 %5290
  %5292 = vrot.lane.b32.xlu0 %v4694, 4
  %v5293 = vpop.permute.xlu0 %5292
  %5294 = vrot.lane.b32.xlu0 %v4695, 4
  %v5295 = vpop.permute.xlu0 %5294
  %5296 = vrot.lane.b32.xlu0 %v4696, 4
  %v5297 = vpop.permute.xlu0 %5296
  %5298 = vrot.lane.b32.xlu0 %v4697, 4
  %v5299 = vpop.permute.xlu0 %5298
  %5300 = vrot.lane.b32.xlu0 %v4698, 4
  %v5301 = vpop.permute.xlu0 %5300
  %5302 = vrot.lane.b32.xlu0 %v4699, 4
  %v5303 = vpop.permute.xlu0 %5302
  %5304 = vrot.lane.b32.xlu0 %v4700, 4
  %v5305 = vpop.permute.xlu0 %5304
  %5306 = vrot.lane.b32.xlu0 %v4701, 4
  %v5307 = vpop.permute.xlu0 %5306
  %5308 = vrot.lane.b32.xlu0 %v4702, 4
  %v5309 = vpop.permute.xlu0 %5308
  %5310 = vrot.lane.b32.xlu0 %v4703, 4
  %v5311 = vpop.permute.xlu0 %5310
  %5312 = vrot.lane.b32.xlu0 %v4704, 4
  %v5313 = vpop.permute.xlu0 %5312
  %5314 = vrot.lane.b32.xlu0 %v4705, 4
  %v5315 = vpop.permute.xlu0 %5314
  %5316 = vrot.lane.b32.xlu0 %v4706, 4
  %v5317 = vpop.permute.xlu0 %5316
  %5318 = vrot.lane.b32.xlu0 %v4707, 4
  %v5319 = vpop.permute.xlu0 %5318
  %5320 = vrot.lane.b32.xlu0 %v4708, 4
  %v5321 = vpop.permute.xlu0 %5320
  %5322 = vrot.lane.b32.xlu0 %v4709, 4
  %v5323 = vpop.permute.xlu0 %5322
  %5324 = vrot.lane.b32.xlu0 %v4710, 4
  %v5325 = vpop.permute.xlu0 %5324
  %5326 = vrot.lane.b32.xlu0 %v4711, 4
  %v5327 = vpop.permute.xlu0 %5326
  %5328 = vrot.lane.b32.xlu0 %v4712, 4
  %v5329 = vpop.permute.xlu0 %5328
  %5330 = vrot.lane.b32.xlu0 %v4713, 4
  %v5331 = vpop.permute.xlu0 %5330
  %5332 = vrot.lane.b32.xlu0 %v4714, 4
  %v5333 = vpop.permute.xlu0 %5332
  %5334 = vrot.lane.b32.xlu0 %v4715, 4
  %v5335 = vpop.permute.xlu0 %5334
  %5336 = vrot.lane.b32.xlu0 %v4716, 4
  %v5337 = vpop.permute.xlu0 %5336
  %5338 = vrot.lane.b32.xlu0 %v4717, 4
  %v5339 = vpop.permute.xlu0 %5338
  %5340 = vrot.lane.b32.xlu0 %v4718, 4
  %v5341 = vpop.permute.xlu0 %5340
  %5342 = vrot.lane.b32.xlu0 %v4719, 4
  %v5343 = vpop.permute.xlu0 %5342
  %5344 = vrot.lane.b32.xlu0 %v4720, 4
  %v5345 = vpop.permute.xlu0 %5344
  %5346 = vrot.lane.b32.xlu0 %v4721, 4
  %v5347 = vpop.permute.xlu0 %5346
  %5348 = vrot.lane.b32.xlu0 %v4722, 4
  %v5349 = vpop.permute.xlu0 %5348
  %5350 = vrot.lane.b32.xlu0 %v4723, 4
  %v5351 = vpop.permute.xlu0 %5350
  %5352 = vrot.lane.b32.xlu0 %v4724, 4
  %v5353 = vpop.permute.xlu0 %5352
  %5354 = vrot.lane.b32.xlu0 %v4725, 4
  %v5355 = vpop.permute.xlu0 %5354
  %5356 = vrot.lane.b32.xlu0 %v4726, 4
  %v5357 = vpop.permute.xlu0 %5356
  %5358 = vrot.lane.b32.xlu0 %v4727, 4
  %v5359 = vpop.permute.xlu0 %5358
  %5360 = vrot.lane.b32.xlu0 %v4728, 4
  %v5361 = vpop.permute.xlu0 %5360
  %5362 = vrot.lane.b32.xlu0 %v4729, 4
  %v5363 = vpop.permute.xlu0 %5362
  %5364 = vrot.lane.b32.xlu0 %v4730, 4
  %v5365 = vpop.permute.xlu0 %5364
  %5366 = vrot.lane.b32.xlu0 %v4731, 4
  %v5367 = vpop.permute.xlu0 %5366
  %5368 = vrot.lane.b32.xlu0 %v4732, 4
  %v5369 = vpop.permute.xlu0 %5368
  %5370 = vrot.lane.b32.xlu0 %v4733, 4
  %v5371 = vpop.permute.xlu0 %5370
  %5372 = vrot.lane.b32.xlu0 %v4734, 4
  %v5373 = vpop.permute.xlu0 %5372
  %5374 = vrot.lane.b32.xlu0 %v4735, 4
  %v5375 = vpop.permute.xlu0 %5374
  %5504 = vrot.lane.b32.xlu0 %v4736, 8
  %v5505 = vpop.permute.xlu0 %5504
  %5506 = vrot.lane.b32.xlu0 %v4737, 8
  %v5507 = vpop.permute.xlu0 %5506
  %5508 = vrot.lane.b32.xlu0 %v4738, 8
  %v5509 = vpop.permute.xlu0 %5508
  %5510 = vrot.lane.b32.xlu0 %v4739, 8
  %v5511 = vpop.permute.xlu0 %5510
  %5512 = vrot.lane.b32.xlu0 %v4740, 8
  %v5513 = vpop.permute.xlu0 %5512
  %5514 = vrot.lane.b32.xlu0 %v4741, 8
  %v5515 = vpop.permute.xlu0 %5514
  %5516 = vrot.lane.b32.xlu0 %v4742, 8
  %v5517 = vpop.permute.xlu0 %5516
  %5518 = vrot.lane.b32.xlu0 %v4743, 8
  %v5519 = vpop.permute.xlu0 %5518
  %5520 = vrot.lane.b32.xlu0 %v4744, 8
  %v5521 = vpop.permute.xlu0 %5520
  %5522 = vrot.lane.b32.xlu0 %v4745, 8
  %v5523 = vpop.permute.xlu0 %5522
  %5524 = vrot.lane.b32.xlu0 %v4746, 8
  %v5525 = vpop.permute.xlu0 %5524
  %5526 = vrot.lane.b32.xlu0 %v4747, 8
  %v5527 = vpop.permute.xlu0 %5526
  %5528 = vrot.lane.b32.xlu0 %v4748, 8
  %v5529 = vpop.permute.xlu0 %5528
  %5530 = vrot.lane.b32.xlu0 %v4749, 8
  %v5531 = vpop.permute.xlu0 %5530
  %5532 = vrot.lane.b32.xlu0 %v4750, 8
  %v5533 = vpop.permute.xlu0 %5532
  %5534 = vrot.lane.b32.xlu0 %v4751, 8
  %v5535 = vpop.permute.xlu0 %5534
  %5536 = vrot.lane.b32.xlu0 %v4752, 8
  %v5537 = vpop.permute.xlu0 %5536
  %5538 = vrot.lane.b32.xlu0 %v4753, 8
  %v5539 = vpop.permute.xlu0 %5538
  %5540 = vrot.lane.b32.xlu0 %v4754, 8
  %v5541 = vpop.permute.xlu0 %5540
  %5542 = vrot.lane.b32.xlu0 %v4755, 8
  %v5543 = vpop.permute.xlu0 %5542
  %5544 = vrot.lane.b32.xlu0 %v4756, 8
  %v5545 = vpop.permute.xlu0 %5544
  %5546 = vrot.lane.b32.xlu0 %v4757, 8
  %v5547 = vpop.permute.xlu0 %5546
  %5548 = vrot.lane.b32.xlu0 %v4758, 8
  %v5549 = vpop.permute.xlu0 %5548
  %5550 = vrot.lane.b32.xlu0 %v4759, 8
  %v5551 = vpop.permute.xlu0 %5550
  %5552 = vrot.lane.b32.xlu0 %v4760, 8
  %v5553 = vpop.permute.xlu0 %5552
  %5554 = vrot.lane.b32.xlu0 %v4761, 8
  %v5555 = vpop.permute.xlu0 %5554
  %5556 = vrot.lane.b32.xlu0 %v4762, 8
  %v5557 = vpop.permute.xlu0 %5556
  %5558 = vrot.lane.b32.xlu0 %v4763, 8
  %v5559 = vpop.permute.xlu0 %5558
  %5560 = vrot.lane.b32.xlu0 %v4764, 8
  %v5561 = vpop.permute.xlu0 %5560
  %5562 = vrot.lane.b32.xlu0 %v4765, 8
  %v5563 = vpop.permute.xlu0 %5562
  %5564 = vrot.lane.b32.xlu0 %v4766, 8
  %v5565 = vpop.permute.xlu0 %5564
  %5566 = vrot.lane.b32.xlu0 %v4767, 8
  %v5567 = vpop.permute.xlu0 %5566
  %5568 = vrot.lane.b32.xlu0 %v4768, 8
  %v5569 = vpop.permute.xlu0 %5568
  %5570 = vrot.lane.b32.xlu0 %v4769, 8
  %v5571 = vpop.permute.xlu0 %5570
  %5572 = vrot.lane.b32.xlu0 %v4770, 8
  %v5573 = vpop.permute.xlu0 %5572
  %5574 = vrot.lane.b32.xlu0 %v4771, 8
  %v5575 = vpop.permute.xlu0 %5574
  %5576 = vrot.lane.b32.xlu0 %v4772, 8
  %v5577 = vpop.permute.xlu0 %5576
  %5578 = vrot.lane.b32.xlu0 %v4773, 8
  %v5579 = vpop.permute.xlu0 %5578
  %5580 = vrot.lane.b32.xlu0 %v4774, 8
  %v5581 = vpop.permute.xlu0 %5580
  %5582 = vrot.lane.b32.xlu0 %v4775, 8
  %v5583 = vpop.permute.xlu0 %5582
  %5584 = vrot.lane.b32.xlu0 %v4776, 8
  %v5585 = vpop.permute.xlu0 %5584
  %5586 = vrot.lane.b32.xlu0 %v4777, 8
  %v5587 = vpop.permute.xlu0 %5586
  %5588 = vrot.lane.b32.xlu0 %v4778, 8
  %v5589 = vpop.permute.xlu0 %5588
  %5590 = vrot.lane.b32.xlu0 %v4779, 8
  %v5591 = vpop.permute.xlu0 %5590
  %5592 = vrot.lane.b32.xlu0 %v4780, 8
  %v5593 = vpop.permute.xlu0 %5592
  %5594 = vrot.lane.b32.xlu0 %v4781, 8
  %v5595 = vpop.permute.xlu0 %5594
  %5596 = vrot.lane.b32.xlu0 %v4782, 8
  %v5597 = vpop.permute.xlu0 %5596
  %5598 = vrot.lane.b32.xlu0 %v4783, 8
  %v5599 = vpop.permute.xlu0 %5598
  %5600 = vrot.lane.b32.xlu0 %v4784, 8
  %v5601 = vpop.permute.xlu0 %5600
  %5602 = vrot.lane.b32.xlu0 %v4785, 8
  %v5603 = vpop.permute.xlu0 %5602
  %5604 = vrot.lane.b32.xlu0 %v4786, 8
  %v5605 = vpop.permute.xlu0 %5604
  %5606 = vrot.lane.b32.xlu0 %v4787, 8
  %v5607 = vpop.permute.xlu0 %5606
  %5608 = vrot.lane.b32.xlu0 %v4788, 8
  %v5609 = vpop.permute.xlu0 %5608
  %5610 = vrot.lane.b32.xlu0 %v4789, 8
  %v5611 = vpop.permute.xlu0 %5610
  %5612 = vrot.lane.b32.xlu0 %v4790, 8
  %v5613 = vpop.permute.xlu0 %5612
  %5614 = vrot.lane.b32.xlu0 %v4791, 8
  %v5615 = vpop.permute.xlu0 %5614
  %5616 = vrot.lane.b32.xlu0 %v4792, 8
  %v5617 = vpop.permute.xlu0 %5616
  %5618 = vrot.lane.b32.xlu0 %v4793, 8
  %v5619 = vpop.permute.xlu0 %5618
  %5620 = vrot.lane.b32.xlu0 %v4794, 8
  %v5621 = vpop.permute.xlu0 %5620
  %5622 = vrot.lane.b32.xlu0 %v4795, 8
  %v5623 = vpop.permute.xlu0 %5622
  %5624 = vrot.lane.b32.xlu0 %v4796, 8
  %v5625 = vpop.permute.xlu0 %5624
  %5626 = vrot.lane.b32.xlu0 %v4797, 8
  %v5627 = vpop.permute.xlu0 %5626
  %5628 = vrot.lane.b32.xlu0 %v4798, 8
  %v5629 = vpop.permute.xlu0 %5628
  %5630 = vrot.lane.b32.xlu0 %v4799, 8
  %v5631 = vpop.permute.xlu0 %5630
  %5760 = vrot.lane.b32.xlu0 %v4800, 12
  %v5761 = vpop.permute.xlu0 %5760
  %5762 = vrot.lane.b32.xlu0 %v4801, 12
  %v5763 = vpop.permute.xlu0 %5762
  %5764 = vrot.lane.b32.xlu0 %v4802, 12
  %v5765 = vpop.permute.xlu0 %5764
  %5766 = vrot.lane.b32.xlu0 %v4803, 12
  %v5767 = vpop.permute.xlu0 %5766
  %5768 = vrot.lane.b32.xlu0 %v4804, 12
  %v5769 = vpop.permute.xlu0 %5768
  %5770 = vrot.lane.b32.xlu0 %v4805, 12
  %v5771 = vpop.permute.xlu0 %5770
  %5772 = vrot.lane.b32.xlu0 %v4806, 12
  %v5773 = vpop.permute.xlu0 %5772
  %5774 = vrot.lane.b32.xlu0 %v4807, 12
  %v5775 = vpop.permute.xlu0 %5774
  %5776 = vrot.lane.b32.xlu0 %v4808, 12
  %v5777 = vpop.permute.xlu0 %5776
  %5778 = vrot.lane.b32.xlu0 %v4809, 12
  %v5779 = vpop.permute.xlu0 %5778
  %5780 = vrot.lane.b32.xlu0 %v4810, 12
  %v5781 = vpop.permute.xlu0 %5780
  %5782 = vrot.lane.b32.xlu0 %v4811, 12
  %v5783 = vpop.permute.xlu0 %5782
  %5784 = vrot.lane.b32.xlu0 %v4812, 12
  %v5785 = vpop.permute.xlu0 %5784
  %5786 = vrot.lane.b32.xlu0 %v4813, 12
  %v5787 = vpop.permute.xlu0 %5786
  %5788 = vrot.lane.b32.xlu0 %v4814, 12
  %v5789 = vpop.permute.xlu0 %5788
  %5790 = vrot.lane.b32.xlu0 %v4815, 12
  %v5791 = vpop.permute.xlu0 %5790
  %5792 = vrot.lane.b32.xlu0 %v4816, 12
  %v5793 = vpop.permute.xlu0 %5792
  %5794 = vrot.lane.b32.xlu0 %v4817, 12
  %v5795 = vpop.permute.xlu0 %5794
  %5796 = vrot.lane.b32.xlu0 %v4818, 12
  %v5797 = vpop.permute.xlu0 %5796
  %5798 = vrot.lane.b32.xlu0 %v4819, 12
  %v5799 = vpop.permute.xlu0 %5798
  %5800 = vrot.lane.b32.xlu0 %v4820, 12
  %v5801 = vpop.permute.xlu0 %5800
  %5802 = vrot.lane.b32.xlu0 %v4821, 12
  %v5803 = vpop.permute.xlu0 %5802
  %5804 = vrot.lane.b32.xlu0 %v4822, 12
  %v5805 = vpop.permute.xlu0 %5804
  %5806 = vrot.lane.b32.xlu0 %v4823, 12
  %v5807 = vpop.permute.xlu0 %5806
  %5808 = vrot.lane.b32.xlu0 %v4824, 12
  %v5809 = vpop.permute.xlu0 %5808
  %5810 = vrot.lane.b32.xlu0 %v4825, 12
  %v5811 = vpop.permute.xlu0 %5810
  %5812 = vrot.lane.b32.xlu0 %v4826, 12
  %v5813 = vpop.permute.xlu0 %5812
  %5814 = vrot.lane.b32.xlu0 %v4827, 12
  %v5815 = vpop.permute.xlu0 %5814
  %5816 = vrot.lane.b32.xlu0 %v4828, 12
  %v5817 = vpop.permute.xlu0 %5816
  %5818 = vrot.lane.b32.xlu0 %v4829, 12
  %v5819 = vpop.permute.xlu0 %5818
  %5820 = vrot.lane.b32.xlu0 %v4830, 12
  %v5821 = vpop.permute.xlu0 %5820
  %5822 = vrot.lane.b32.xlu0 %v4831, 12
  %v5823 = vpop.permute.xlu0 %5822
  %5824 = vrot.lane.b32.xlu0 %v4832, 12
  %v5825 = vpop.permute.xlu0 %5824
  %5826 = vrot.lane.b32.xlu0 %v4833, 12
  %v5827 = vpop.permute.xlu0 %5826
  %5828 = vrot.lane.b32.xlu0 %v4834, 12
  %v5829 = vpop.permute.xlu0 %5828
  %5830 = vrot.lane.b32.xlu0 %v4835, 12
  %v5831 = vpop.permute.xlu0 %5830
  %5832 = vrot.lane.b32.xlu0 %v4836, 12
  %v5833 = vpop.permute.xlu0 %5832
  %5834 = vrot.lane.b32.xlu0 %v4837, 12
  %v5835 = vpop.permute.xlu0 %5834
  %5836 = vrot.lane.b32.xlu0 %v4838, 12
  %v5837 = vpop.permute.xlu0 %5836
  %5838 = vrot.lane.b32.xlu0 %v4839, 12
  %v5839 = vpop.permute.xlu0 %5838
  %5840 = vrot.lane.b32.xlu0 %v4840, 12
  %v5841 = vpop.permute.xlu0 %5840
  %5842 = vrot.lane.b32.xlu0 %v4841, 12
  %v5843 = vpop.permute.xlu0 %5842
  %5844 = vrot.lane.b32.xlu0 %v4842, 12
  %v5845 = vpop.permute.xlu0 %5844
  %5846 = vrot.lane.b32.xlu0 %v4843, 12
  %v5847 = vpop.permute.xlu0 %5846
  %5848 = vrot.lane.b32.xlu0 %v4844, 12
  %v5849 = vpop.permute.xlu0 %5848
  %5850 = vrot.lane.b32.xlu0 %v4845, 12
  %v5851 = vpop.permute.xlu0 %5850
  %5852 = vrot.lane.b32.xlu0 %v4846, 12
  %v5853 = vpop.permute.xlu0 %5852
  %5854 = vrot.lane.b32.xlu0 %v4847, 12
  %v5855 = vpop.permute.xlu0 %5854
  %5856 = vrot.lane.b32.xlu0 %v4848, 12
  %v5857 = vpop.permute.xlu0 %5856
  %5858 = vrot.lane.b32.xlu0 %v4849, 12
  %v5859 = vpop.permute.xlu0 %5858
  %5860 = vrot.lane.b32.xlu0 %v4850, 12
  %v5861 = vpop.permute.xlu0 %5860
  %5862 = vrot.lane.b32.xlu0 %v4851, 12
  %v5863 = vpop.permute.xlu0 %5862
  %5864 = vrot.lane.b32.xlu0 %v4852, 12
  %v5865 = vpop.permute.xlu0 %5864
  %5866 = vrot.lane.b32.xlu0 %v4853, 12
  %v5867 = vpop.permute.xlu0 %5866
  %5868 = vrot.lane.b32.xlu0 %v4854, 12
  %v5869 = vpop.permute.xlu0 %5868
  %5870 = vrot.lane.b32.xlu0 %v4855, 12
  %v5871 = vpop.permute.xlu0 %5870
  %5872 = vrot.lane.b32.xlu0 %v4856, 12
  %v5873 = vpop.permute.xlu0 %5872
  %5874 = vrot.lane.b32.xlu0 %v4857, 12
  %v5875 = vpop.permute.xlu0 %5874
  %5876 = vrot.lane.b32.xlu0 %v4858, 12
  %v5877 = vpop.permute.xlu0 %5876
  %5878 = vrot.lane.b32.xlu0 %v4859, 12
  %v5879 = vpop.permute.xlu0 %5878
  %5880 = vrot.lane.b32.xlu0 %v4860, 12
  %v5881 = vpop.permute.xlu0 %5880
  %5882 = vrot.lane.b32.xlu0 %v4861, 12
  %v5883 = vpop.permute.xlu0 %5882
  %5884 = vrot.lane.b32.xlu0 %v4862, 12
  %v5885 = vpop.permute.xlu0 %5884
  %5886 = vrot.lane.b32.xlu0 %v4863, 12
  %v5887 = vpop.permute.xlu0 %5886
  %6016 = vrot.lane.b32.xlu0 %v4864, 16
  %v6017 = vpop.permute.xlu0 %6016
  %6018 = vrot.lane.b32.xlu0 %v4865, 16
  %v6019 = vpop.permute.xlu0 %6018
  %6020 = vrot.lane.b32.xlu0 %v4866, 16
  %v6021 = vpop.permute.xlu0 %6020
  %6022 = vrot.lane.b32.xlu0 %v4867, 16
  %v6023 = vpop.permute.xlu0 %6022
  %6024 = vrot.lane.b32.xlu0 %v4868, 16
  %v6025 = vpop.permute.xlu0 %6024
  %6026 = vrot.lane.b32.xlu0 %v4869, 16
  %v6027 = vpop.permute.xlu0 %6026
  %6028 = vrot.lane.b32.xlu0 %v4870, 16
  %v6029 = vpop.permute.xlu0 %6028
  %6030 = vrot.lane.b32.xlu0 %v4871, 16
  %v6031 = vpop.permute.xlu0 %6030
  %6032 = vrot.lane.b32.xlu0 %v4872, 16
  %v6033 = vpop.permute.xlu0 %6032
  %6034 = vrot.lane.b32.xlu0 %v4873, 16
  %v6035 = vpop.permute.xlu0 %6034
  %6036 = vrot.lane.b32.xlu0 %v4874, 16
  %v6037 = vpop.permute.xlu0 %6036
  %6038 = vrot.lane.b32.xlu0 %v4875, 16
  %v6039 = vpop.permute.xlu0 %6038
  %6040 = vrot.lane.b32.xlu0 %v4876, 16
  %v6041 = vpop.permute.xlu0 %6040
  %6042 = vrot.lane.b32.xlu0 %v4877, 16
  %v6043 = vpop.permute.xlu0 %6042
  %6044 = vrot.lane.b32.xlu0 %v4878, 16
  %v6045 = vpop.permute.xlu0 %6044
  %6046 = vrot.lane.b32.xlu0 %v4879, 16
  %v6047 = vpop.permute.xlu0 %6046
  %6048 = vrot.lane.b32.xlu0 %v4880, 16
  %v6049 = vpop.permute.xlu0 %6048
  %6050 = vrot.lane.b32.xlu0 %v4881, 16
  %v6051 = vpop.permute.xlu0 %6050
  %6052 = vrot.lane.b32.xlu0 %v4882, 16
  %v6053 = vpop.permute.xlu0 %6052
  %6054 = vrot.lane.b32.xlu0 %v4883, 16
  %v6055 = vpop.permute.xlu0 %6054
  %6056 = vrot.lane.b32.xlu0 %v4884, 16
  %v6057 = vpop.permute.xlu0 %6056
  %6058 = vrot.lane.b32.xlu0 %v4885, 16
  %v6059 = vpop.permute.xlu0 %6058
  %6060 = vrot.lane.b32.xlu0 %v4886, 16
  %v6061 = vpop.permute.xlu0 %6060
  %6062 = vrot.lane.b32.xlu0 %v4887, 16
  %v6063 = vpop.permute.xlu0 %6062
  %6064 = vrot.lane.b32.xlu0 %v4888, 16
  %v6065 = vpop.permute.xlu0 %6064
  %6066 = vrot.lane.b32.xlu0 %v4889, 16
  %v6067 = vpop.permute.xlu0 %6066
  %6068 = vrot.lane.b32.xlu0 %v4890, 16
  %v6069 = vpop.permute.xlu0 %6068
  %6070 = vrot.lane.b32.xlu0 %v4891, 16
  %v6071 = vpop.permute.xlu0 %6070
  %6072 = vrot.lane.b32.xlu0 %v4892, 16
  %v6073 = vpop.permute.xlu0 %6072
  %6074 = vrot.lane.b32.xlu0 %v4893, 16
  %v6075 = vpop.permute.xlu0 %6074
  %6076 = vrot.lane.b32.xlu0 %v4894, 16
  %v6077 = vpop.permute.xlu0 %6076
  %6078 = vrot.lane.b32.xlu0 %v4895, 16
  %v6079 = vpop.permute.xlu0 %6078
  %6080 = vrot.lane.b32.xlu0 %v4896, 16
  %v6081 = vpop.permute.xlu0 %6080
  %6082 = vrot.lane.b32.xlu0 %v4897, 16
  %v6083 = vpop.permute.xlu0 %6082
  %6084 = vrot.lane.b32.xlu0 %v4898, 16
  %v6085 = vpop.permute.xlu0 %6084
  %6086 = vrot.lane.b32.xlu0 %v4899, 16
  %v6087 = vpop.permute.xlu0 %6086
  %6088 = vrot.lane.b32.xlu0 %v4900, 16
  %v6089 = vpop.permute.xlu0 %6088
  %6090 = vrot.lane.b32.xlu0 %v4901, 16
  %v6091 = vpop.permute.xlu0 %6090
  %6092 = vrot.lane.b32.xlu0 %v4902, 16
  %v6093 = vpop.permute.xlu0 %6092
  %6094 = vrot.lane.b32.xlu0 %v4903, 16
  %v6095 = vpop.permute.xlu0 %6094
  %6096 = vrot.lane.b32.xlu0 %v4904, 16
  %v6097 = vpop.permute.xlu0 %6096
  %6098 = vrot.lane.b32.xlu0 %v4905, 16
  %v6099 = vpop.permute.xlu0 %6098
  %6100 = vrot.lane.b32.xlu0 %v4906, 16
  %v6101 = vpop.permute.xlu0 %6100
  %6102 = vrot.lane.b32.xlu0 %v4907, 16
  %v6103 = vpop.permute.xlu0 %6102
  %6104 = vrot.lane.b32.xlu0 %v4908, 16
  %v6105 = vpop.permute.xlu0 %6104
  %6106 = vrot.lane.b32.xlu0 %v4909, 16
  %v6107 = vpop.permute.xlu0 %6106
  %6108 = vrot.lane.b32.xlu0 %v4910, 16
  %v6109 = vpop.permute.xlu0 %6108
  %6110 = vrot.lane.b32.xlu0 %v4911, 16
  %v6111 = vpop.permute.xlu0 %6110
  %6112 = vrot.lane.b32.xlu0 %v4912, 16
  %v6113 = vpop.permute.xlu0 %6112
  %6114 = vrot.lane.b32.xlu0 %v4913, 16
  %v6115 = vpop.permute.xlu0 %6114
  %6116 = vrot.lane.b32.xlu0 %v4914, 16
  %v6117 = vpop.permute.xlu0 %6116
  %6118 = vrot.lane.b32.xlu0 %v4915, 16
  %v6119 = vpop.permute.xlu0 %6118
  %6120 = vrot.lane.b32.xlu0 %v4916, 16
  %v6121 = vpop.permute.xlu0 %6120
  %6122 = vrot.lane.b32.xlu0 %v4917, 16
  %v6123 = vpop.permute.xlu0 %6122
  %6124 = vrot.lane.b32.xlu0 %v4918, 16
  %v6125 = vpop.permute.xlu0 %6124
  %6126 = vrot.lane.b32.xlu0 %v4919, 16
  %v6127 = vpop.permute.xlu0 %6126
  %6128 = vrot.lane.b32.xlu0 %v4920, 16
  %v6129 = vpop.permute.xlu0 %6128
  %6130 = vrot.lane.b32.xlu0 %v4921, 16
  %v6131 = vpop.permute.xlu0 %6130
  %6132 = vrot.lane.b32.xlu0 %v4922, 16
  %v6133 = vpop.permute.xlu0 %6132
  %6134 = vrot.lane.b32.xlu0 %v4923, 16
  %v6135 = vpop.permute.xlu0 %6134
  %6136 = vrot.lane.b32.xlu0 %v4924, 16
  %v6137 = vpop.permute.xlu0 %6136
  %6138 = vrot.lane.b32.xlu0 %v4925, 16
  %v6139 = vpop.permute.xlu0 %6138
  %6140 = vrot.lane.b32.xlu0 %v4926, 16
  %v6141 = vpop.permute.xlu0 %6140
  %6142 = vrot.lane.b32.xlu0 %v4927, 16
  %v6143 = vpop.permute.xlu0 %6142
  %6272 = vrot.lane.b32.xlu0 %v4928, 20
  %v6273 = vpop.permute.xlu0 %6272
  %6274 = vrot.lane.b32.xlu0 %v4929, 20
  %v6275 = vpop.permute.xlu0 %6274
  %6276 = vrot.lane.b32.xlu0 %v4930, 20
  %v6277 = vpop.permute.xlu0 %6276
  %6278 = vrot.lane.b32.xlu0 %v4931, 20
  %v6279 = vpop.permute.xlu0 %6278
  %6280 = vrot.lane.b32.xlu0 %v4932, 20
  %v6281 = vpop.permute.xlu0 %6280
  %6282 = vrot.lane.b32.xlu0 %v4933, 20
  %v6283 = vpop.permute.xlu0 %6282
  %6284 = vrot.lane.b32.xlu0 %v4934, 20
  %v6285 = vpop.permute.xlu0 %6284
  %6286 = vrot.lane.b32.xlu0 %v4935, 20
  %v6287 = vpop.permute.xlu0 %6286
  %6288 = vrot.lane.b32.xlu0 %v4936, 20
  %v6289 = vpop.permute.xlu0 %6288
  %6290 = vrot.lane.b32.xlu0 %v4937, 20
  %v6291 = vpop.permute.xlu0 %6290
  %6292 = vrot.lane.b32.xlu0 %v4938, 20
  %v6293 = vpop.permute.xlu0 %6292
  %6294 = vrot.lane.b32.xlu0 %v4939, 20
  %v6295 = vpop.permute.xlu0 %6294
  %6296 = vrot.lane.b32.xlu0 %v4940, 20
  %v6297 = vpop.permute.xlu0 %6296
  %6298 = vrot.lane.b32.xlu0 %v4941, 20
  %v6299 = vpop.permute.xlu0 %6298
  %6300 = vrot.lane.b32.xlu0 %v4942, 20
  %v6301 = vpop.permute.xlu0 %6300
  %6302 = vrot.lane.b32.xlu0 %v4943, 20
  %v6303 = vpop.permute.xlu0 %6302
  %6304 = vrot.lane.b32.xlu0 %v4944, 20
  %v6305 = vpop.permute.xlu0 %6304
  %6306 = vrot.lane.b32.xlu0 %v4945, 20
  %v6307 = vpop.permute.xlu0 %6306
  %6308 = vrot.lane.b32.xlu0 %v4946, 20
  %v6309 = vpop.permute.xlu0 %6308
  %6310 = vrot.lane.b32.xlu0 %v4947, 20
  %v6311 = vpop.permute.xlu0 %6310
  %6312 = vrot.lane.b32.xlu0 %v4948, 20
  %v6313 = vpop.permute.xlu0 %6312
  %6314 = vrot.lane.b32.xlu0 %v4949, 20
  %v6315 = vpop.permute.xlu0 %6314
  %6316 = vrot.lane.b32.xlu0 %v4950, 20
  %v6317 = vpop.permute.xlu0 %6316
  %6318 = vrot.lane.b32.xlu0 %v4951, 20
  %v6319 = vpop.permute.xlu0 %6318
  %6320 = vrot.lane.b32.xlu0 %v4952, 20
  %v6321 = vpop.permute.xlu0 %6320
  %6322 = vrot.lane.b32.xlu0 %v4953, 20
  %v6323 = vpop.permute.xlu0 %6322
  %6324 = vrot.lane.b32.xlu0 %v4954, 20
  %v6325 = vpop.permute.xlu0 %6324
  %6326 = vrot.lane.b32.xlu0 %v4955, 20
  %v6327 = vpop.permute.xlu0 %6326
  %6328 = vrot.lane.b32.xlu0 %v4956, 20
  %v6329 = vpop.permute.xlu0 %6328
  %6330 = vrot.lane.b32.xlu0 %v4957, 20
  %v6331 = vpop.permute.xlu0 %6330
  %6332 = vrot.lane.b32.xlu0 %v4958, 20
  %v6333 = vpop.permute.xlu0 %6332
  %6334 = vrot.lane.b32.xlu0 %v4959, 20
  %v6335 = vpop.permute.xlu0 %6334
  %6336 = vrot.lane.b32.xlu0 %v4960, 20
  %v6337 = vpop.permute.xlu0 %6336
  %6338 = vrot.lane.b32.xlu0 %v4961, 20
  %v6339 = vpop.permute.xlu0 %6338
  %6340 = vrot.lane.b32.xlu0 %v4962, 20
  %v6341 = vpop.permute.xlu0 %6340
  %6342 = vrot.lane.b32.xlu0 %v4963, 20
  %v6343 = vpop.permute.xlu0 %6342
  %6344 = vrot.lane.b32.xlu0 %v4964, 20
  %v6345 = vpop.permute.xlu0 %6344
  %6346 = vrot.lane.b32.xlu0 %v4965, 20
  %v6347 = vpop.permute.xlu0 %6346
  %6348 = vrot.lane.b32.xlu0 %v4966, 20
  %v6349 = vpop.permute.xlu0 %6348
  %6350 = vrot.lane.b32.xlu0 %v4967, 20
  %v6351 = vpop.permute.xlu0 %6350
  %6352 = vrot.lane.b32.xlu0 %v4968, 20
  %v6353 = vpop.permute.xlu0 %6352
  %6354 = vrot.lane.b32.xlu0 %v4969, 20
  %v6355 = vpop.permute.xlu0 %6354
  %6356 = vrot.lane.b32.xlu0 %v4970, 20
  %v6357 = vpop.permute.xlu0 %6356
  %6358 = vrot.lane.b32.xlu0 %v4971, 20
  %v6359 = vpop.permute.xlu0 %6358
  %6360 = vrot.lane.b32.xlu0 %v4972, 20
  %v6361 = vpop.permute.xlu0 %6360
  %6362 = vrot.lane.b32.xlu0 %v4973, 20
  %v6363 = vpop.permute.xlu0 %6362
  %6364 = vrot.lane.b32.xlu0 %v4974, 20
  %v6365 = vpop.permute.xlu0 %6364
  %6366 = vrot.lane.b32.xlu0 %v4975, 20
  %v6367 = vpop.permute.xlu0 %6366
  %6368 = vrot.lane.b32.xlu0 %v4976, 20
  %v6369 = vpop.permute.xlu0 %6368
  %6370 = vrot.lane.b32.xlu0 %v4977, 20
  %v6371 = vpop.permute.xlu0 %6370
  %6372 = vrot.lane.b32.xlu0 %v4978, 20
  %v6373 = vpop.permute.xlu0 %6372
  %6374 = vrot.lane.b32.xlu0 %v4979, 20
  %v6375 = vpop.permute.xlu0 %6374
  %6376 = vrot.lane.b32.xlu0 %v4980, 20
  %v6377 = vpop.permute.xlu0 %6376
  %6378 = vrot.lane.b32.xlu0 %v4981, 20
  %v6379 = vpop.permute.xlu0 %6378
  %6380 = vrot.lane.b32.xlu0 %v4982, 20
  %v6381 = vpop.permute.xlu0 %6380
  %6382 = vrot.lane.b32.xlu0 %v4983, 20
  %v6383 = vpop.permute.xlu0 %6382
  %6384 = vrot.lane.b32.xlu0 %v4984, 20
  %v6385 = vpop.permute.xlu0 %6384
  %6386 = vrot.lane.b32.xlu0 %v4985, 20
  %v6387 = vpop.permute.xlu0 %6386
  %6388 = vrot.lane.b32.xlu0 %v4986, 20
  %v6389 = vpop.permute.xlu0 %6388
  %6390 = vrot.lane.b32.xlu0 %v4987, 20
  %v6391 = vpop.permute.xlu0 %6390
  %6392 = vrot.lane.b32.xlu0 %v4988, 20
  %v6393 = vpop.permute.xlu0 %6392
  %6394 = vrot.lane.b32.xlu0 %v4989, 20
  %v6395 = vpop.permute.xlu0 %6394
  %6396 = vrot.lane.b32.xlu0 %v4990, 20
  %v6397 = vpop.permute.xlu0 %6396
  %6398 = vrot.lane.b32.xlu0 %v4991, 20
  %v6399 = vpop.permute.xlu0 %6398
  %6528 = vrot.lane.b32.xlu0 %v4992, 24
  %v6529 = vpop.permute.xlu0 %6528
  %6530 = vrot.lane.b32.xlu0 %v4993, 24
  %v6531 = vpop.permute.xlu0 %6530
  %6532 = vrot.lane.b32.xlu0 %v4994, 24
  %v6533 = vpop.permute.xlu0 %6532
  %6534 = vrot.lane.b32.xlu0 %v4995, 24
  %v6535 = vpop.permute.xlu0 %6534
  %6536 = vrot.lane.b32.xlu0 %v4996, 24
  %v6537 = vpop.permute.xlu0 %6536
  %6538 = vrot.lane.b32.xlu0 %v4997, 24
  %v6539 = vpop.permute.xlu0 %6538
  %6540 = vrot.lane.b32.xlu0 %v4998, 24
  %v6541 = vpop.permute.xlu0 %6540
  %6542 = vrot.lane.b32.xlu0 %v4999, 24
  %v6543 = vpop.permute.xlu0 %6542
  %6544 = vrot.lane.b32.xlu0 %v5000, 24
  %v6545 = vpop.permute.xlu0 %6544
  %6546 = vrot.lane.b32.xlu0 %v5001, 24
  %v6547 = vpop.permute.xlu0 %6546
  %6548 = vrot.lane.b32.xlu0 %v5002, 24
  %v6549 = vpop.permute.xlu0 %6548
  %6550 = vrot.lane.b32.xlu0 %v5003, 24
  %v6551 = vpop.permute.xlu0 %6550
  %6552 = vrot.lane.b32.xlu0 %v5004, 24
  %v6553 = vpop.permute.xlu0 %6552
  %6554 = vrot.lane.b32.xlu0 %v5005, 24
  %v6555 = vpop.permute.xlu0 %6554
  %6556 = vrot.lane.b32.xlu0 %v5006, 24
  %v6557 = vpop.permute.xlu0 %6556
  %6558 = vrot.lane.b32.xlu0 %v5007, 24
  %v6559 = vpop.permute.xlu0 %6558
  %6560 = vrot.lane.b32.xlu0 %v5008, 24
  %v6561 = vpop.permute.xlu0 %6560
  %6562 = vrot.lane.b32.xlu0 %v5009, 24
  %v6563 = vpop.permute.xlu0 %6562
  %6564 = vrot.lane.b32.xlu0 %v5010, 24
  %v6565 = vpop.permute.xlu0 %6564
  %6566 = vrot.lane.b32.xlu0 %v5011, 24
  %v6567 = vpop.permute.xlu0 %6566
  %6568 = vrot.lane.b32.xlu0 %v5012, 24
  %v6569 = vpop.permute.xlu0 %6568
  %6570 = vrot.lane.b32.xlu0 %v5013, 24
  %v6571 = vpop.permute.xlu0 %6570
  %6572 = vrot.lane.b32.xlu0 %v5014, 24
  %v6573 = vpop.permute.xlu0 %6572
  %6574 = vrot.lane.b32.xlu0 %v5015, 24
  %v6575 = vpop.permute.xlu0 %6574
  %6576 = vrot.lane.b32.xlu0 %v5016, 24
  %v6577 = vpop.permute.xlu0 %6576
  %6578 = vrot.lane.b32.xlu0 %v5017, 24
  %v6579 = vpop.permute.xlu0 %6578
  %6580 = vrot.lane.b32.xlu0 %v5018, 24
  %v6581 = vpop.permute.xlu0 %6580
  %6582 = vrot.lane.b32.xlu0 %v5019, 24
  %v6583 = vpop.permute.xlu0 %6582
  %6584 = vrot.lane.b32.xlu0 %v5020, 24
  %v6585 = vpop.permute.xlu0 %6584
  %6586 = vrot.lane.b32.xlu0 %v5021, 24
  %v6587 = vpop.permute.xlu0 %6586
  %6588 = vrot.lane.b32.xlu0 %v5022, 24
  %v6589 = vpop.permute.xlu0 %6588
  %6590 = vrot.lane.b32.xlu0 %v5023, 24
  %v6591 = vpop.permute.xlu0 %6590
  %6592 = vrot.lane.b32.xlu0 %v5024, 24
  %v6593 = vpop.permute.xlu0 %6592
  %6594 = vrot.lane.b32.xlu0 %v5025, 24
  %v6595 = vpop.permute.xlu0 %6594
  %6596 = vrot.lane.b32.xlu0 %v5026, 24
  %v6597 = vpop.permute.xlu0 %6596
  %6598 = vrot.lane.b32.xlu0 %v5027, 24
  %v6599 = vpop.permute.xlu0 %6598
  %6600 = vrot.lane.b32.xlu0 %v5028, 24
  %v6601 = vpop.permute.xlu0 %6600
  %6602 = vrot.lane.b32.xlu0 %v5029, 24
  %v6603 = vpop.permute.xlu0 %6602
  %6604 = vrot.lane.b32.xlu0 %v5030, 24
  %v6605 = vpop.permute.xlu0 %6604
  %6606 = vrot.lane.b32.xlu0 %v5031, 24
  %v6607 = vpop.permute.xlu0 %6606
  %6608 = vrot.lane.b32.xlu0 %v5032, 24
  %v6609 = vpop.permute.xlu0 %6608
  %6610 = vrot.lane.b32.xlu0 %v5033, 24
  %v6611 = vpop.permute.xlu0 %6610
  %6612 = vrot.lane.b32.xlu0 %v5034, 24
  %v6613 = vpop.permute.xlu0 %6612
  %6614 = vrot.lane.b32.xlu0 %v5035, 24
  %v6615 = vpop.permute.xlu0 %6614
  %6616 = vrot.lane.b32.xlu0 %v5036, 24
  %v6617 = vpop.permute.xlu0 %6616
  %6618 = vrot.lane.b32.xlu0 %v5037, 24
  %v6619 = vpop.permute.xlu0 %6618
  %6620 = vrot.lane.b32.xlu0 %v5038, 24
  %v6621 = vpop.permute.xlu0 %6620
  %6622 = vrot.lane.b32.xlu0 %v5039, 24
  %v6623 = vpop.permute.xlu0 %6622
  %6624 = vrot.lane.b32.xlu0 %v5040, 24
  %v6625 = vpop.permute.xlu0 %6624
  %6626 = vrot.lane.b32.xlu0 %v5041, 24
  %v6627 = vpop.permute.xlu0 %6626
  %6628 = vrot.lane.b32.xlu0 %v5042, 24
  %v6629 = vpop.permute.xlu0 %6628
  %6630 = vrot.lane.b32.xlu0 %v5043, 24
  %v6631 = vpop.permute.xlu0 %6630
  %6632 = vrot.lane.b32.xlu0 %v5044, 24
  %v6633 = vpop.permute.xlu0 %6632
  %6634 = vrot.lane.b32.xlu0 %v5045, 24
  %v6635 = vpop.permute.xlu0 %6634
  %6636 = vrot.lane.b32.xlu0 %v5046, 24
  %v6637 = vpop.permute.xlu0 %6636
  %6638 = vrot.lane.b32.xlu0 %v5047, 24
  %v6639 = vpop.permute.xlu0 %6638
  %6640 = vrot.lane.b32.xlu0 %v5048, 24
  %v6641 = vpop.permute.xlu0 %6640
  %6642 = vrot.lane.b32.xlu0 %v5049, 24
  %v6643 = vpop.permute.xlu0 %6642
  %6644 = vrot.lane.b32.xlu0 %v5050, 24
  %v6645 = vpop.permute.xlu0 %6644
  %6646 = vrot.lane.b32.xlu0 %v5051, 24
  %v6647 = vpop.permute.xlu0 %6646
  %6648 = vrot.lane.b32.xlu0 %v5052, 24
  %v6649 = vpop.permute.xlu0 %6648
  %6650 = vrot.lane.b32.xlu0 %v5053, 24
  %v6651 = vpop.permute.xlu0 %6650
  %6652 = vrot.lane.b32.xlu0 %v5054, 24
  %v6653 = vpop.permute.xlu0 %6652
  %6654 = vrot.lane.b32.xlu0 %v5055, 24
  %v6655 = vpop.permute.xlu0 %6654
  %6784 = vrot.lane.b32.xlu0 %v5056, 28
  %v6785 = vpop.permute.xlu0 %6784
  %6786 = vrot.lane.b32.xlu0 %v5057, 28
  %v6787 = vpop.permute.xlu0 %6786
  %6788 = vrot.lane.b32.xlu0 %v5058, 28
  %v6789 = vpop.permute.xlu0 %6788
  %6790 = vrot.lane.b32.xlu0 %v5059, 28
  %v6791 = vpop.permute.xlu0 %6790
  %6792 = vrot.lane.b32.xlu0 %v5060, 28
  %v6793 = vpop.permute.xlu0 %6792
  %6794 = vrot.lane.b32.xlu0 %v5061, 28
  %v6795 = vpop.permute.xlu0 %6794
  %6796 = vrot.lane.b32.xlu0 %v5062, 28
  %v6797 = vpop.permute.xlu0 %6796
  %6798 = vrot.lane.b32.xlu0 %v5063, 28
  %v6799 = vpop.permute.xlu0 %6798
  %6800 = vrot.lane.b32.xlu0 %v5064, 28
  %v6801 = vpop.permute.xlu0 %6800
  %6802 = vrot.lane.b32.xlu0 %v5065, 28
  %v6803 = vpop.permute.xlu0 %6802
  %6804 = vrot.lane.b32.xlu0 %v5066, 28
  %v6805 = vpop.permute.xlu0 %6804
  %6806 = vrot.lane.b32.xlu0 %v5067, 28
  %v6807 = vpop.permute.xlu0 %6806
  %6808 = vrot.lane.b32.xlu0 %v5068, 28
  %v6809 = vpop.permute.xlu0 %6808
  %6810 = vrot.lane.b32.xlu0 %v5069, 28
  %v6811 = vpop.permute.xlu0 %6810
  %6812 = vrot.lane.b32.xlu0 %v5070, 28
  %v6813 = vpop.permute.xlu0 %6812
  %6814 = vrot.lane.b32.xlu0 %v5071, 28
  %v6815 = vpop.permute.xlu0 %6814
  %6816 = vrot.lane.b32.xlu0 %v5072, 28
  %v6817 = vpop.permute.xlu0 %6816
  %6818 = vrot.lane.b32.xlu0 %v5073, 28
  %v6819 = vpop.permute.xlu0 %6818
  %6820 = vrot.lane.b32.xlu0 %v5074, 28
  %v6821 = vpop.permute.xlu0 %6820
  %6822 = vrot.lane.b32.xlu0 %v5075, 28
  %v6823 = vpop.permute.xlu0 %6822
  %6824 = vrot.lane.b32.xlu0 %v5076, 28
  %v6825 = vpop.permute.xlu0 %6824
  %6826 = vrot.lane.b32.xlu0 %v5077, 28
  %v6827 = vpop.permute.xlu0 %6826
  %6828 = vrot.lane.b32.xlu0 %v5078, 28
  %v6829 = vpop.permute.xlu0 %6828
  %6830 = vrot.lane.b32.xlu0 %v5079, 28
  %v6831 = vpop.permute.xlu0 %6830
  %6832 = vrot.lane.b32.xlu0 %v5080, 28
  %v6833 = vpop.permute.xlu0 %6832
  %6834 = vrot.lane.b32.xlu0 %v5081, 28
  %v6835 = vpop.permute.xlu0 %6834
  %6836 = vrot.lane.b32.xlu0 %v5082, 28
  %v6837 = vpop.permute.xlu0 %6836
  %6838 = vrot.lane.b32.xlu0 %v5083, 28
  %v6839 = vpop.permute.xlu0 %6838
  %6840 = vrot.lane.b32.xlu0 %v5084, 28
  %v6841 = vpop.permute.xlu0 %6840
  %6842 = vrot.lane.b32.xlu0 %v5085, 28
  %v6843 = vpop.permute.xlu0 %6842
  %6844 = vrot.lane.b32.xlu0 %v5086, 28
  %v6845 = vpop.permute.xlu0 %6844
  %6846 = vrot.lane.b32.xlu0 %v5087, 28
  %v6847 = vpop.permute.xlu0 %6846
  %6848 = vrot.lane.b32.xlu0 %v5088, 28
  %v6849 = vpop.permute.xlu0 %6848
  %6850 = vrot.lane.b32.xlu0 %v5089, 28
  %v6851 = vpop.permute.xlu0 %6850
  %6852 = vrot.lane.b32.xlu0 %v5090, 28
  %v6853 = vpop.permute.xlu0 %6852
  %6854 = vrot.lane.b32.xlu0 %v5091, 28
  %v6855 = vpop.permute.xlu0 %6854
  %6856 = vrot.lane.b32.xlu0 %v5092, 28
  %v6857 = vpop.permute.xlu0 %6856
  %6858 = vrot.lane.b32.xlu0 %v5093, 28
  %v6859 = vpop.permute.xlu0 %6858
  %6860 = vrot.lane.b32.xlu0 %v5094, 28
  %v6861 = vpop.permute.xlu0 %6860
  %6862 = vrot.lane.b32.xlu0 %v5095, 28
  %v6863 = vpop.permute.xlu0 %6862
  %6864 = vrot.lane.b32.xlu0 %v5096, 28
  %v6865 = vpop.permute.xlu0 %6864
  %6866 = vrot.lane.b32.xlu0 %v5097, 28
  %v6867 = vpop.permute.xlu0 %6866
  %6868 = vrot.lane.b32.xlu0 %v5098, 28
  %v6869 = vpop.permute.xlu0 %6868
  %6870 = vrot.lane.b32.xlu0 %v5099, 28
  %v6871 = vpop.permute.xlu0 %6870
  %6872 = vrot.lane.b32.xlu0 %v5100, 28
  %v6873 = vpop.permute.xlu0 %6872
  %6874 = vrot.lane.b32.xlu0 %v5101, 28
  %v6875 = vpop.permute.xlu0 %6874
  %6876 = vrot.lane.b32.xlu0 %v5102, 28
  %v6877 = vpop.permute.xlu0 %6876
  %6878 = vrot.lane.b32.xlu0 %v5103, 28
  %v6879 = vpop.permute.xlu0 %6878
  %6880 = vrot.lane.b32.xlu0 %v5104, 28
  %v6881 = vpop.permute.xlu0 %6880
  %6882 = vrot.lane.b32.xlu0 %v5105, 28
  %v6883 = vpop.permute.xlu0 %6882
  %6884 = vrot.lane.b32.xlu0 %v5106, 28
  %v6885 = vpop.permute.xlu0 %6884
  %6886 = vrot.lane.b32.xlu0 %v5107, 28
  %v6887 = vpop.permute.xlu0 %6886
  %6888 = vrot.lane.b32.xlu0 %v5108, 28
  %v6889 = vpop.permute.xlu0 %6888
  %6890 = vrot.lane.b32.xlu0 %v5109, 28
  %v6891 = vpop.permute.xlu0 %6890
  %6892 = vrot.lane.b32.xlu0 %v5110, 28
  %v6893 = vpop.permute.xlu0 %6892
  %6894 = vrot.lane.b32.xlu0 %v5111, 28
  %v6895 = vpop.permute.xlu0 %6894
  %6896 = vrot.lane.b32.xlu0 %v5112, 28
  %v6897 = vpop.permute.xlu0 %6896
  %6898 = vrot.lane.b32.xlu0 %v5113, 28
  %v6899 = vpop.permute.xlu0 %6898
  %6900 = vrot.lane.b32.xlu0 %v5114, 28
  %v6901 = vpop.permute.xlu0 %6900
  %6902 = vrot.lane.b32.xlu0 %v5115, 28
  %v6903 = vpop.permute.xlu0 %6902
  %6904 = vrot.lane.b32.xlu0 %v5116, 28
  %v6905 = vpop.permute.xlu0 %6904
  %6906 = vrot.lane.b32.xlu0 %v5117, 28
  %v6907 = vpop.permute.xlu0 %6906
  %6908 = vrot.lane.b32.xlu0 %v5118, 28
  %v6909 = vpop.permute.xlu0 %6908
  %6910 = vrot.lane.b32.xlu0 %v5119, 28
  %v6911 = vpop.permute.xlu0 %6910
  %7040 = vrot.lane.b32.xlu0 %v5120, 32
  %v7041 = vpop.permute.xlu0 %7040
  %7042 = vrot.lane.b32.xlu0 %v5121, 32
  %v7043 = vpop.permute.xlu0 %7042
  %7044 = vrot.lane.b32.xlu0 %v5122, 32
  %v7045 = vpop.permute.xlu0 %7044
  %7046 = vrot.lane.b32.xlu0 %v5123, 32
  %v7047 = vpop.permute.xlu0 %7046
  %7048 = vrot.lane.b32.xlu0 %v5124, 32
  %v7049 = vpop.permute.xlu0 %7048
  %7050 = vrot.lane.b32.xlu0 %v5125, 32
  %v7051 = vpop.permute.xlu0 %7050
  %7052 = vrot.lane.b32.xlu0 %v5126, 32
  %v7053 = vpop.permute.xlu0 %7052
  %7054 = vrot.lane.b32.xlu0 %v5127, 32
  %v7055 = vpop.permute.xlu0 %7054
  %7056 = vrot.lane.b32.xlu0 %v5128, 32
  %v7057 = vpop.permute.xlu0 %7056
  %7058 = vrot.lane.b32.xlu0 %v5129, 32
  %v7059 = vpop.permute.xlu0 %7058
  %7060 = vrot.lane.b32.xlu0 %v5130, 32
  %v7061 = vpop.permute.xlu0 %7060
  %7062 = vrot.lane.b32.xlu0 %v5131, 32
  %v7063 = vpop.permute.xlu0 %7062
  %7064 = vrot.lane.b32.xlu0 %v5132, 32
  %v7065 = vpop.permute.xlu0 %7064
  %7066 = vrot.lane.b32.xlu0 %v5133, 32
  %v7067 = vpop.permute.xlu0 %7066
  %7068 = vrot.lane.b32.xlu0 %v5134, 32
  %v7069 = vpop.permute.xlu0 %7068
  %7070 = vrot.lane.b32.xlu0 %v5135, 32
  %v7071 = vpop.permute.xlu0 %7070
  %7072 = vrot.lane.b32.xlu0 %v5136, 32
  %v7073 = vpop.permute.xlu0 %7072
  %7074 = vrot.lane.b32.xlu0 %v5137, 32
  %v7075 = vpop.permute.xlu0 %7074
  %7076 = vrot.lane.b32.xlu0 %v5138, 32
  %v7077 = vpop.permute.xlu0 %7076
  %7078 = vrot.lane.b32.xlu0 %v5139, 32
  %v7079 = vpop.permute.xlu0 %7078
  %7080 = vrot.lane.b32.xlu0 %v5140, 32
  %v7081 = vpop.permute.xlu0 %7080
  %7082 = vrot.lane.b32.xlu0 %v5141, 32
  %v7083 = vpop.permute.xlu0 %7082
  %7084 = vrot.lane.b32.xlu0 %v5142, 32
  %v7085 = vpop.permute.xlu0 %7084
  %7086 = vrot.lane.b32.xlu0 %v5143, 32
  %v7087 = vpop.permute.xlu0 %7086
  %7088 = vrot.lane.b32.xlu0 %v5144, 32
  %v7089 = vpop.permute.xlu0 %7088
  %7090 = vrot.lane.b32.xlu0 %v5145, 32
  %v7091 = vpop.permute.xlu0 %7090
  %7092 = vrot.lane.b32.xlu0 %v5146, 32
  %v7093 = vpop.permute.xlu0 %7092
  %7094 = vrot.lane.b32.xlu0 %v5147, 32
  %v7095 = vpop.permute.xlu0 %7094
  %7096 = vrot.lane.b32.xlu0 %v5148, 32
  %v7097 = vpop.permute.xlu0 %7096
  %7098 = vrot.lane.b32.xlu0 %v5149, 32
  %v7099 = vpop.permute.xlu0 %7098
  %7100 = vrot.lane.b32.xlu0 %v5150, 32
  %v7101 = vpop.permute.xlu0 %7100
  %7102 = vrot.lane.b32.xlu0 %v5151, 32
  %v7103 = vpop.permute.xlu0 %7102
  %7104 = vrot.lane.b32.xlu0 %v5152, 32
  %v7105 = vpop.permute.xlu0 %7104
  %7106 = vrot.lane.b32.xlu0 %v5153, 32
  %v7107 = vpop.permute.xlu0 %7106
  %7108 = vrot.lane.b32.xlu0 %v5154, 32
  %v7109 = vpop.permute.xlu0 %7108
  %7110 = vrot.lane.b32.xlu0 %v5155, 32
  %v7111 = vpop.permute.xlu0 %7110
  %7112 = vrot.lane.b32.xlu0 %v5156, 32
  %v7113 = vpop.permute.xlu0 %7112
  %7114 = vrot.lane.b32.xlu0 %v5157, 32
  %v7115 = vpop.permute.xlu0 %7114
  %7116 = vrot.lane.b32.xlu0 %v5158, 32
  %v7117 = vpop.permute.xlu0 %7116
  %7118 = vrot.lane.b32.xlu0 %v5159, 32
  %v7119 = vpop.permute.xlu0 %7118
  %7120 = vrot.lane.b32.xlu0 %v5160, 32
  %v7121 = vpop.permute.xlu0 %7120
  %7122 = vrot.lane.b32.xlu0 %v5161, 32
  %v7123 = vpop.permute.xlu0 %7122
  %7124 = vrot.lane.b32.xlu0 %v5162, 32
  %v7125 = vpop.permute.xlu0 %7124
  %7126 = vrot.lane.b32.xlu0 %v5163, 32
  %v7127 = vpop.permute.xlu0 %7126
  %7128 = vrot.lane.b32.xlu0 %v5164, 32
  %v7129 = vpop.permute.xlu0 %7128
  %7130 = vrot.lane.b32.xlu0 %v5165, 32
  %v7131 = vpop.permute.xlu0 %7130
  %7132 = vrot.lane.b32.xlu0 %v5166, 32
  %v7133 = vpop.permute.xlu0 %7132
  %7134 = vrot.lane.b32.xlu0 %v5167, 32
  %v7135 = vpop.permute.xlu0 %7134
  %7136 = vrot.lane.b32.xlu0 %v5168, 32
  %v7137 = vpop.permute.xlu0 %7136
  %7138 = vrot.lane.b32.xlu0 %v5169, 32
  %v7139 = vpop.permute.xlu0 %7138
  %7140 = vrot.lane.b32.xlu0 %v5170, 32
  %v7141 = vpop.permute.xlu0 %7140
  %7142 = vrot.lane.b32.xlu0 %v5171, 32
  %v7143 = vpop.permute.xlu0 %7142
  %7144 = vrot.lane.b32.xlu0 %v5172, 32
  %v7145 = vpop.permute.xlu0 %7144
  %7146 = vrot.lane.b32.xlu0 %v5173, 32
  %v7147 = vpop.permute.xlu0 %7146
  %7148 = vrot.lane.b32.xlu0 %v5174, 32
  %v7149 = vpop.permute.xlu0 %7148
  %7150 = vrot.lane.b32.xlu0 %v5175, 32
  %v7151 = vpop.permute.xlu0 %7150
  %7152 = vrot.lane.b32.xlu0 %v5176, 32
  %v7153 = vpop.permute.xlu0 %7152
  %7154 = vrot.lane.b32.xlu0 %v5177, 32
  %v7155 = vpop.permute.xlu0 %7154
  %7156 = vrot.lane.b32.xlu0 %v5178, 32
  %v7157 = vpop.permute.xlu0 %7156
  %7158 = vrot.lane.b32.xlu0 %v5179, 32
  %v7159 = vpop.permute.xlu0 %7158
  %7160 = vrot.lane.b32.xlu0 %v5180, 32
  %v7161 = vpop.permute.xlu0 %7160
  %7162 = vrot.lane.b32.xlu0 %v5181, 32
  %v7163 = vpop.permute.xlu0 %7162
  %7164 = vrot.lane.b32.xlu0 %v5182, 32
  %v7165 = vpop.permute.xlu0 %7164
  %7166 = vrot.lane.b32.xlu0 %v5183, 32
  %v7167 = vpop.permute.xlu0 %7166
  %v7232 = vsel %vm26, %v4608, %v5249
  %v7233 = vsel %vm26, %v4609, %v5251
  %v7234 = vsel %vm26, %v4610, %v5253
  %v7235 = vsel %vm26, %v4611, %v5255
  %v7236 = vsel %vm26, %v4612, %v5257
  %v7237 = vsel %vm26, %v4613, %v5259
  %v7238 = vsel %vm26, %v4614, %v5261
  %v7239 = vsel %vm26, %v4615, %v5263
  %v7240 = vsel %vm26, %v4616, %v5265
  %v7241 = vsel %vm26, %v4617, %v5267
  %v7242 = vsel %vm26, %v4618, %v5269
  %v7243 = vsel %vm26, %v4619, %v5271
  %v7244 = vsel %vm26, %v4620, %v5273
  %v7245 = vsel %vm26, %v4621, %v5275
  %v7246 = vsel %vm26, %v4622, %v5277
  %v7247 = vsel %vm26, %v4623, %v5279
  %v7248 = vsel %vm26, %v4624, %v5281
  %v7249 = vsel %vm26, %v4625, %v5283
  %v7250 = vsel %vm26, %v4626, %v5285
  %v7251 = vsel %vm26, %v4627, %v5287
  %v7252 = vsel %vm26, %v4628, %v5289
  %v7253 = vsel %vm26, %v4629, %v5291
  %v7254 = vsel %vm26, %v4630, %v5293
  %v7255 = vsel %vm26, %v4631, %v5295
  %v7256 = vsel %vm26, %v4632, %v5297
  %v7257 = vsel %vm26, %v4633, %v5299
  %v7258 = vsel %vm26, %v4634, %v5301
  %v7259 = vsel %vm26, %v4635, %v5303
  %v7260 = vsel %vm26, %v4636, %v5305
  %v7261 = vsel %vm26, %v4637, %v5307
  %v7262 = vsel %vm26, %v4638, %v5309
  %v7263 = vsel %vm26, %v4639, %v5311
  %v7264 = vsel %vm26, %v4640, %v5313
  %v7265 = vsel %vm26, %v4641, %v5315
  %v7266 = vsel %vm26, %v4642, %v5317
  %v7267 = vsel %vm26, %v4643, %v5319
  %v7268 = vsel %vm26, %v4644, %v5321
  %v7269 = vsel %vm26, %v4645, %v5323
  %v7270 = vsel %vm26, %v4646, %v5325
  %v7271 = vsel %vm26, %v4647, %v5327
  %v7272 = vsel %vm26, %v4648, %v5329
  %v7273 = vsel %vm26, %v4649, %v5331
  %v7274 = vsel %vm26, %v4650, %v5333
  %v7275 = vsel %vm26, %v4651, %v5335
  %v7276 = vsel %vm26, %v4652, %v5337
  %v7277 = vsel %vm26, %v4653, %v5339
  %v7278 = vsel %vm26, %v4654, %v5341
  %v7279 = vsel %vm26, %v4655, %v5343
  %v7280 = vsel %vm26, %v4656, %v5345
  %v7281 = vsel %vm26, %v4657, %v5347
  %v7282 = vsel %vm26, %v4658, %v5349
  %v7283 = vsel %vm26, %v4659, %v5351
  %v7284 = vsel %vm26, %v4660, %v5353
  %v7285 = vsel %vm26, %v4661, %v5355
  %v7286 = vsel %vm26, %v4662, %v5357
  %v7287 = vsel %vm26, %v4663, %v5359
  %v7288 = vsel %vm26, %v4664, %v5361
  %v7289 = vsel %vm26, %v4665, %v5363
  %v7290 = vsel %vm26, %v4666, %v5365
  %v7291 = vsel %vm26, %v4667, %v5367
  %v7292 = vsel %vm26, %v4668, %v5369
  %v7293 = vsel %vm26, %v4669, %v5371
  %v7294 = vsel %vm26, %v4670, %v5373
  %v7295 = vsel %vm26, %v4671, %v5375
  %v7296 = vsel %vm2956, %v7232, %v5505
  %v7297 = vsel %vm2956, %v7233, %v5507
  %v7298 = vsel %vm2956, %v7234, %v5509
  %v7299 = vsel %vm2956, %v7235, %v5511
  %v7300 = vsel %vm2956, %v7236, %v5513
  %v7301 = vsel %vm2956, %v7237, %v5515
  %v7302 = vsel %vm2956, %v7238, %v5517
  %v7303 = vsel %vm2956, %v7239, %v5519
  %v7304 = vsel %vm2956, %v7240, %v5521
  %v7305 = vsel %vm2956, %v7241, %v5523
  %v7306 = vsel %vm2956, %v7242, %v5525
  %v7307 = vsel %vm2956, %v7243, %v5527
  %v7308 = vsel %vm2956, %v7244, %v5529
  %v7309 = vsel %vm2956, %v7245, %v5531
  %v7310 = vsel %vm2956, %v7246, %v5533
  %v7311 = vsel %vm2956, %v7247, %v5535
  %v7312 = vsel %vm2956, %v7248, %v5537
  %v7313 = vsel %vm2956, %v7249, %v5539
  %v7314 = vsel %vm2956, %v7250, %v5541
  %v7315 = vsel %vm2956, %v7251, %v5543
  %v7316 = vsel %vm2956, %v7252, %v5545
  %v7317 = vsel %vm2956, %v7253, %v5547
  %v7318 = vsel %vm2956, %v7254, %v5549
  %v7319 = vsel %vm2956, %v7255, %v5551
  %v7320 = vsel %vm2956, %v7256, %v5553
  %v7321 = vsel %vm2956, %v7257, %v5555
  %v7322 = vsel %vm2956, %v7258, %v5557
  %v7323 = vsel %vm2956, %v7259, %v5559
  %v7324 = vsel %vm2956, %v7260, %v5561
  %v7325 = vsel %vm2956, %v7261, %v5563
  %v7326 = vsel %vm2956, %v7262, %v5565
  %v7327 = vsel %vm2956, %v7263, %v5567
  %v7328 = vsel %vm2956, %v7264, %v5569
  %v7329 = vsel %vm2956, %v7265, %v5571
  %v7330 = vsel %vm2956, %v7266, %v5573
  %v7331 = vsel %vm2956, %v7267, %v5575
  %v7332 = vsel %vm2956, %v7268, %v5577
  %v7333 = vsel %vm2956, %v7269, %v5579
  %v7334 = vsel %vm2956, %v7270, %v5581
  %v7335 = vsel %vm2956, %v7271, %v5583
  %v7336 = vsel %vm2956, %v7272, %v5585
  %v7337 = vsel %vm2956, %v7273, %v5587
  %v7338 = vsel %vm2956, %v7274, %v5589
  %v7339 = vsel %vm2956, %v7275, %v5591
  %v7340 = vsel %vm2956, %v7276, %v5593
  %v7341 = vsel %vm2956, %v7277, %v5595
  %v7342 = vsel %vm2956, %v7278, %v5597
  %v7343 = vsel %vm2956, %v7279, %v5599
  %v7344 = vsel %vm2956, %v7280, %v5601
  %v7345 = vsel %vm2956, %v7281, %v5603
  %v7346 = vsel %vm2956, %v7282, %v5605
  %v7347 = vsel %vm2956, %v7283, %v5607
  %v7348 = vsel %vm2956, %v7284, %v5609
  %v7349 = vsel %vm2956, %v7285, %v5611
  %v7350 = vsel %vm2956, %v7286, %v5613
  %v7351 = vsel %vm2956, %v7287, %v5615
  %v7352 = vsel %vm2956, %v7288, %v5617
  %v7353 = vsel %vm2956, %v7289, %v5619
  %v7354 = vsel %vm2956, %v7290, %v5621
  %v7355 = vsel %vm2956, %v7291, %v5623
  %v7356 = vsel %vm2956, %v7292, %v5625
  %v7357 = vsel %vm2956, %v7293, %v5627
  %v7358 = vsel %vm2956, %v7294, %v5629
  %v7359 = vsel %vm2956, %v7295, %v5631
  %v7360 = vsel %vm3021, %v7296, %v5761
  %v7361 = vsel %vm3021, %v7297, %v5763
  %v7362 = vsel %vm3021, %v7298, %v5765
  %v7363 = vsel %vm3021, %v7299, %v5767
  %v7364 = vsel %vm3021, %v7300, %v5769
  %v7365 = vsel %vm3021, %v7301, %v5771
  %v7366 = vsel %vm3021, %v7302, %v5773
  %v7367 = vsel %vm3021, %v7303, %v5775
  %v7368 = vsel %vm3021, %v7304, %v5777
  %v7369 = vsel %vm3021, %v7305, %v5779
  %v7370 = vsel %vm3021, %v7306, %v5781
  %v7371 = vsel %vm3021, %v7307, %v5783
  %v7372 = vsel %vm3021, %v7308, %v5785
  %v7373 = vsel %vm3021, %v7309, %v5787
  %v7374 = vsel %vm3021, %v7310, %v5789
  %v7375 = vsel %vm3021, %v7311, %v5791
  %v7376 = vsel %vm3021, %v7312, %v5793
  %v7377 = vsel %vm3021, %v7313, %v5795
  %v7378 = vsel %vm3021, %v7314, %v5797
  %v7379 = vsel %vm3021, %v7315, %v5799
  %v7380 = vsel %vm3021, %v7316, %v5801
  %v7381 = vsel %vm3021, %v7317, %v5803
  %v7382 = vsel %vm3021, %v7318, %v5805
  %v7383 = vsel %vm3021, %v7319, %v5807
  %v7384 = vsel %vm3021, %v7320, %v5809
  %v7385 = vsel %vm3021, %v7321, %v5811
  %v7386 = vsel %vm3021, %v7322, %v5813
  %v7387 = vsel %vm3021, %v7323, %v5815
  %v7388 = vsel %vm3021, %v7324, %v5817
  %v7389 = vsel %vm3021, %v7325, %v5819
  %v7390 = vsel %vm3021, %v7326, %v5821
  %v7391 = vsel %vm3021, %v7327, %v5823
  %v7392 = vsel %vm3021, %v7328, %v5825
  %v7393 = vsel %vm3021, %v7329, %v5827
  %v7394 = vsel %vm3021, %v7330, %v5829
  %v7395 = vsel %vm3021, %v7331, %v5831
  %v7396 = vsel %vm3021, %v7332, %v5833
  %v7397 = vsel %vm3021, %v7333, %v5835
  %v7398 = vsel %vm3021, %v7334, %v5837
  %v7399 = vsel %vm3021, %v7335, %v5839
  %v7400 = vsel %vm3021, %v7336, %v5841
  %v7401 = vsel %vm3021, %v7337, %v5843
  %v7402 = vsel %vm3021, %v7338, %v5845
  %v7403 = vsel %vm3021, %v7339, %v5847
  %v7404 = vsel %vm3021, %v7340, %v5849
  %v7405 = vsel %vm3021, %v7341, %v5851
  %v7406 = vsel %vm3021, %v7342, %v5853
  %v7407 = vsel %vm3021, %v7343, %v5855
  %v7408 = vsel %vm3021, %v7344, %v5857
  %v7409 = vsel %vm3021, %v7345, %v5859
  %v7410 = vsel %vm3021, %v7346, %v5861
  %v7411 = vsel %vm3021, %v7347, %v5863
  %v7412 = vsel %vm3021, %v7348, %v5865
  %v7413 = vsel %vm3021, %v7349, %v5867
  %v7414 = vsel %vm3021, %v7350, %v5869
  %v7415 = vsel %vm3021, %v7351, %v5871
  %v7416 = vsel %vm3021, %v7352, %v5873
  %v7417 = vsel %vm3021, %v7353, %v5875
  %v7418 = vsel %vm3021, %v7354, %v5877
  %v7419 = vsel %vm3021, %v7355, %v5879
  %v7420 = vsel %vm3021, %v7356, %v5881
  %v7421 = vsel %vm3021, %v7357, %v5883
  %v7422 = vsel %vm3021, %v7358, %v5885
  %v7423 = vsel %vm3021, %v7359, %v5887
  %v7424 = vsel %vm3086, %v7360, %v6017
  %v7425 = vsel %vm3086, %v7361, %v6019
  %v7426 = vsel %vm3086, %v7362, %v6021
  %v7427 = vsel %vm3086, %v7363, %v6023
  %v7428 = vsel %vm3086, %v7364, %v6025
  %v7429 = vsel %vm3086, %v7365, %v6027
  %v7430 = vsel %vm3086, %v7366, %v6029
  %v7431 = vsel %vm3086, %v7367, %v6031
  %v7432 = vsel %vm3086, %v7368, %v6033
  %v7433 = vsel %vm3086, %v7369, %v6035
  %v7434 = vsel %vm3086, %v7370, %v6037
  %v7435 = vsel %vm3086, %v7371, %v6039
  %v7436 = vsel %vm3086, %v7372, %v6041
  %v7437 = vsel %vm3086, %v7373, %v6043
  %v7438 = vsel %vm3086, %v7374, %v6045
  %v7439 = vsel %vm3086, %v7375, %v6047
  %v7440 = vsel %vm3086, %v7376, %v6049
  %v7441 = vsel %vm3086, %v7377, %v6051
  %v7442 = vsel %vm3086, %v7378, %v6053
  %v7443 = vsel %vm3086, %v7379, %v6055
  %v7444 = vsel %vm3086, %v7380, %v6057
  %v7445 = vsel %vm3086, %v7381, %v6059
  %v7446 = vsel %vm3086, %v7382, %v6061
  %v7447 = vsel %vm3086, %v7383, %v6063
  %v7448 = vsel %vm3086, %v7384, %v6065
  %v7449 = vsel %vm3086, %v7385, %v6067
  %v7450 = vsel %vm3086, %v7386, %v6069
  %v7451 = vsel %vm3086, %v7387, %v6071
  %v7452 = vsel %vm3086, %v7388, %v6073
  %v7453 = vsel %vm3086, %v7389, %v6075
  %v7454 = vsel %vm3086, %v7390, %v6077
  %v7455 = vsel %vm3086, %v7391, %v6079
  %v7456 = vsel %vm3086, %v7392, %v6081
  %v7457 = vsel %vm3086, %v7393, %v6083
  %v7458 = vsel %vm3086, %v7394, %v6085
  %v7459 = vsel %vm3086, %v7395, %v6087
  %v7460 = vsel %vm3086, %v7396, %v6089
  %v7461 = vsel %vm3086, %v7397, %v6091
  %v7462 = vsel %vm3086, %v7398, %v6093
  %v7463 = vsel %vm3086, %v7399, %v6095
  %v7464 = vsel %vm3086, %v7400, %v6097
  %v7465 = vsel %vm3086, %v7401, %v6099
  %v7466 = vsel %vm3086, %v7402, %v6101
  %v7467 = vsel %vm3086, %v7403, %v6103
  %v7468 = vsel %vm3086, %v7404, %v6105
  %v7469 = vsel %vm3086, %v7405, %v6107
  %v7470 = vsel %vm3086, %v7406, %v6109
  %v7471 = vsel %vm3086, %v7407, %v6111
  %v7472 = vsel %vm3086, %v7408, %v6113
  %v7473 = vsel %vm3086, %v7409, %v6115
  %v7474 = vsel %vm3086, %v7410, %v6117
  %v7475 = vsel %vm3086, %v7411, %v6119
  %v7476 = vsel %vm3086, %v7412, %v6121
  %v7477 = vsel %vm3086, %v7413, %v6123
  %v7478 = vsel %vm3086, %v7414, %v6125
  %v7479 = vsel %vm3086, %v7415, %v6127
  %v7480 = vsel %vm3086, %v7416, %v6129
  %v7481 = vsel %vm3086, %v7417, %v6131
  %v7482 = vsel %vm3086, %v7418, %v6133
  %v7483 = vsel %vm3086, %v7419, %v6135
  %v7484 = vsel %vm3086, %v7420, %v6137
  %v7485 = vsel %vm3086, %v7421, %v6139
  %v7486 = vsel %vm3086, %v7422, %v6141
  %v7487 = vsel %vm3086, %v7423, %v6143
  %v7488 = vsel %vm3151, %v7424, %v6273
  %v7489 = vsel %vm3151, %v7425, %v6275
  %v7490 = vsel %vm3151, %v7426, %v6277
  %v7491 = vsel %vm3151, %v7427, %v6279
  %v7492 = vsel %vm3151, %v7428, %v6281
  %v7493 = vsel %vm3151, %v7429, %v6283
  %v7494 = vsel %vm3151, %v7430, %v6285
  %v7495 = vsel %vm3151, %v7431, %v6287
  %v7496 = vsel %vm3151, %v7432, %v6289
  %v7497 = vsel %vm3151, %v7433, %v6291
  %v7498 = vsel %vm3151, %v7434, %v6293
  %v7499 = vsel %vm3151, %v7435, %v6295
  %v7500 = vsel %vm3151, %v7436, %v6297
  %v7501 = vsel %vm3151, %v7437, %v6299
  %v7502 = vsel %vm3151, %v7438, %v6301
  %v7503 = vsel %vm3151, %v7439, %v6303
  %v7504 = vsel %vm3151, %v7440, %v6305
  %v7505 = vsel %vm3151, %v7441, %v6307
  %v7506 = vsel %vm3151, %v7442, %v6309
  %v7507 = vsel %vm3151, %v7443, %v6311
  %v7508 = vsel %vm3151, %v7444, %v6313
  %v7509 = vsel %vm3151, %v7445, %v6315
  %v7510 = vsel %vm3151, %v7446, %v6317
  %v7511 = vsel %vm3151, %v7447, %v6319
  %v7512 = vsel %vm3151, %v7448, %v6321
  %v7513 = vsel %vm3151, %v7449, %v6323
  %v7514 = vsel %vm3151, %v7450, %v6325
  %v7515 = vsel %vm3151, %v7451, %v6327
  %v7516 = vsel %vm3151, %v7452, %v6329
  %v7517 = vsel %vm3151, %v7453, %v6331
  %v7518 = vsel %vm3151, %v7454, %v6333
  %v7519 = vsel %vm3151, %v7455, %v6335
  %v7520 = vsel %vm3151, %v7456, %v6337
  %v7521 = vsel %vm3151, %v7457, %v6339
  %v7522 = vsel %vm3151, %v7458, %v6341
  %v7523 = vsel %vm3151, %v7459, %v6343
  %v7524 = vsel %vm3151, %v7460, %v6345
  %v7525 = vsel %vm3151, %v7461, %v6347
  %v7526 = vsel %vm3151, %v7462, %v6349
  %v7527 = vsel %vm3151, %v7463, %v6351
  %v7528 = vsel %vm3151, %v7464, %v6353
  %v7529 = vsel %vm3151, %v7465, %v6355
  %v7530 = vsel %vm3151, %v7466, %v6357
  %v7531 = vsel %vm3151, %v7467, %v6359
  %v7532 = vsel %vm3151, %v7468, %v6361
  %v7533 = vsel %vm3151, %v7469, %v6363
  %v7534 = vsel %vm3151, %v7470, %v6365
  %v7535 = vsel %vm3151, %v7471, %v6367
  %v7536 = vsel %vm3151, %v7472, %v6369
  %v7537 = vsel %vm3151, %v7473, %v6371
  %v7538 = vsel %vm3151, %v7474, %v6373
  %v7539 = vsel %vm3151, %v7475, %v6375
  %v7540 = vsel %vm3151, %v7476, %v6377
  %v7541 = vsel %vm3151, %v7477, %v6379
  %v7542 = vsel %vm3151, %v7478, %v6381
  %v7543 = vsel %vm3151, %v7479, %v6383
  %v7544 = vsel %vm3151, %v7480, %v6385
  %v7545 = vsel %vm3151, %v7481, %v6387
  %v7546 = vsel %vm3151, %v7482, %v6389
  %v7547 = vsel %vm3151, %v7483, %v6391
  %v7548 = vsel %vm3151, %v7484, %v6393
  %v7549 = vsel %vm3151, %v7485, %v6395
  %v7550 = vsel %vm3151, %v7486, %v6397
  %v7551 = vsel %vm3151, %v7487, %v6399
  %v7552 = vsel %vm3216, %v7488, %v6529
  %v7553 = vsel %vm3216, %v7489, %v6531
  %v7554 = vsel %vm3216, %v7490, %v6533
  %v7555 = vsel %vm3216, %v7491, %v6535
  %v7556 = vsel %vm3216, %v7492, %v6537
  %v7557 = vsel %vm3216, %v7493, %v6539
  %v7558 = vsel %vm3216, %v7494, %v6541
  %v7559 = vsel %vm3216, %v7495, %v6543
  %v7560 = vsel %vm3216, %v7496, %v6545
  %v7561 = vsel %vm3216, %v7497, %v6547
  %v7562 = vsel %vm3216, %v7498, %v6549
  %v7563 = vsel %vm3216, %v7499, %v6551
  %v7564 = vsel %vm3216, %v7500, %v6553
  %v7565 = vsel %vm3216, %v7501, %v6555
  %v7566 = vsel %vm3216, %v7502, %v6557
  %v7567 = vsel %vm3216, %v7503, %v6559
  %v7568 = vsel %vm3216, %v7504, %v6561
  %v7569 = vsel %vm3216, %v7505, %v6563
  %v7570 = vsel %vm3216, %v7506, %v6565
  %v7571 = vsel %vm3216, %v7507, %v6567
  %v7572 = vsel %vm3216, %v7508, %v6569
  %v7573 = vsel %vm3216, %v7509, %v6571
  %v7574 = vsel %vm3216, %v7510, %v6573
  %v7575 = vsel %vm3216, %v7511, %v6575
  %v7576 = vsel %vm3216, %v7512, %v6577
  %v7577 = vsel %vm3216, %v7513, %v6579
  %v7578 = vsel %vm3216, %v7514, %v6581
  %v7579 = vsel %vm3216, %v7515, %v6583
  %v7580 = vsel %vm3216, %v7516, %v6585
  %v7581 = vsel %vm3216, %v7517, %v6587
  %v7582 = vsel %vm3216, %v7518, %v6589
  %v7583 = vsel %vm3216, %v7519, %v6591
  %v7584 = vsel %vm3216, %v7520, %v6593
  %v7585 = vsel %vm3216, %v7521, %v6595
  %v7586 = vsel %vm3216, %v7522, %v6597
  %v7587 = vsel %vm3216, %v7523, %v6599
  %v7588 = vsel %vm3216, %v7524, %v6601
  %v7589 = vsel %vm3216, %v7525, %v6603
  %v7590 = vsel %vm3216, %v7526, %v6605
  %v7591 = vsel %vm3216, %v7527, %v6607
  %v7592 = vsel %vm3216, %v7528, %v6609
  %v7593 = vsel %vm3216, %v7529, %v6611
  %v7594 = vsel %vm3216, %v7530, %v6613
  %v7595 = vsel %vm3216, %v7531, %v6615
  %v7596 = vsel %vm3216, %v7532, %v6617
  %v7597 = vsel %vm3216, %v7533, %v6619
  %v7598 = vsel %vm3216, %v7534, %v6621
  %v7599 = vsel %vm3216, %v7535, %v6623
  %v7600 = vsel %vm3216, %v7536, %v6625
  %v7601 = vsel %vm3216, %v7537, %v6627
  %v7602 = vsel %vm3216, %v7538, %v6629
  %v7603 = vsel %vm3216, %v7539, %v6631
  %v7604 = vsel %vm3216, %v7540, %v6633
  %v7605 = vsel %vm3216, %v7541, %v6635
  %v7606 = vsel %vm3216, %v7542, %v6637
  %v7607 = vsel %vm3216, %v7543, %v6639
  %v7608 = vsel %vm3216, %v7544, %v6641
  %v7609 = vsel %vm3216, %v7545, %v6643
  %v7610 = vsel %vm3216, %v7546, %v6645
  %v7611 = vsel %vm3216, %v7547, %v6647
  %v7612 = vsel %vm3216, %v7548, %v6649
  %v7613 = vsel %vm3216, %v7549, %v6651
  %v7614 = vsel %vm3216, %v7550, %v6653
  %v7615 = vsel %vm3216, %v7551, %v6655
  %v7616 = vsel %vm3281, %v7552, %v6785
  %v7617 = vsel %vm3281, %v7553, %v6787
  %v7618 = vsel %vm3281, %v7554, %v6789
  %v7619 = vsel %vm3281, %v7555, %v6791
  %v7620 = vsel %vm3281, %v7556, %v6793
  %v7621 = vsel %vm3281, %v7557, %v6795
  %v7622 = vsel %vm3281, %v7558, %v6797
  %v7623 = vsel %vm3281, %v7559, %v6799
  %v7624 = vsel %vm3281, %v7560, %v6801
  %v7625 = vsel %vm3281, %v7561, %v6803
  %v7626 = vsel %vm3281, %v7562, %v6805
  %v7627 = vsel %vm3281, %v7563, %v6807
  %v7628 = vsel %vm3281, %v7564, %v6809
  %v7629 = vsel %vm3281, %v7565, %v6811
  %v7630 = vsel %vm3281, %v7566, %v6813
  %v7631 = vsel %vm3281, %v7567, %v6815
  %v7632 = vsel %vm3281, %v7568, %v6817
  %v7633 = vsel %vm3281, %v7569, %v6819
  %v7634 = vsel %vm3281, %v7570, %v6821
  %v7635 = vsel %vm3281, %v7571, %v6823
  %v7636 = vsel %vm3281, %v7572, %v6825
  %v7637 = vsel %vm3281, %v7573, %v6827
  %v7638 = vsel %vm3281, %v7574, %v6829
  %v7639 = vsel %vm3281, %v7575, %v6831
  %v7640 = vsel %vm3281, %v7576, %v6833
  %v7641 = vsel %vm3281, %v7577, %v6835
  %v7642 = vsel %vm3281, %v7578, %v6837
  %v7643 = vsel %vm3281, %v7579, %v6839
  %v7644 = vsel %vm3281, %v7580, %v6841
  %v7645 = vsel %vm3281, %v7581, %v6843
  %v7646 = vsel %vm3281, %v7582, %v6845
  %v7647 = vsel %vm3281, %v7583, %v6847
  %v7648 = vsel %vm3281, %v7584, %v6849
  %v7649 = vsel %vm3281, %v7585, %v6851
  %v7650 = vsel %vm3281, %v7586, %v6853
  %v7651 = vsel %vm3281, %v7587, %v6855
  %v7652 = vsel %vm3281, %v7588, %v6857
  %v7653 = vsel %vm3281, %v7589, %v6859
  %v7654 = vsel %vm3281, %v7590, %v6861
  %v7655 = vsel %vm3281, %v7591, %v6863
  %v7656 = vsel %vm3281, %v7592, %v6865
  %v7657 = vsel %vm3281, %v7593, %v6867
  %v7658 = vsel %vm3281, %v7594, %v6869
  %v7659 = vsel %vm3281, %v7595, %v6871
  %v7660 = vsel %vm3281, %v7596, %v6873
  %v7661 = vsel %vm3281, %v7597, %v6875
  %v7662 = vsel %vm3281, %v7598, %v6877
  %v7663 = vsel %vm3281, %v7599, %v6879
  %v7664 = vsel %vm3281, %v7600, %v6881
  %v7665 = vsel %vm3281, %v7601, %v6883
  %v7666 = vsel %vm3281, %v7602, %v6885
  %v7667 = vsel %vm3281, %v7603, %v6887
  %v7668 = vsel %vm3281, %v7604, %v6889
  %v7669 = vsel %vm3281, %v7605, %v6891
  %v7670 = vsel %vm3281, %v7606, %v6893
  %v7671 = vsel %vm3281, %v7607, %v6895
  %v7672 = vsel %vm3281, %v7608, %v6897
  %v7673 = vsel %vm3281, %v7609, %v6899
  %v7674 = vsel %vm3281, %v7610, %v6901
  %v7675 = vsel %vm3281, %v7611, %v6903
  %v7676 = vsel %vm3281, %v7612, %v6905
  %v7677 = vsel %vm3281, %v7613, %v6907
  %v7678 = vsel %vm3281, %v7614, %v6909
  %v7679 = vsel %vm3281, %v7615, %v6911
  %v7680 = vsel %vm3346, %v7616, %v7041
  %v7681 = vsel %vm3346, %v7617, %v7043
  %v7682 = vsel %vm3346, %v7618, %v7045
  %v7683 = vsel %vm3346, %v7619, %v7047
  %v7684 = vsel %vm3346, %v7620, %v7049
  %v7685 = vsel %vm3346, %v7621, %v7051
  %v7686 = vsel %vm3346, %v7622, %v7053
  %v7687 = vsel %vm3346, %v7623, %v7055
  %v7688 = vsel %vm3346, %v7624, %v7057
  %v7689 = vsel %vm3346, %v7625, %v7059
  %v7690 = vsel %vm3346, %v7626, %v7061
  %v7691 = vsel %vm3346, %v7627, %v7063
  %v7692 = vsel %vm3346, %v7628, %v7065
  %v7693 = vsel %vm3346, %v7629, %v7067
  %v7694 = vsel %vm3346, %v7630, %v7069
  %v7695 = vsel %vm3346, %v7631, %v7071
  %v7696 = vsel %vm3346, %v7632, %v7073
  %v7697 = vsel %vm3346, %v7633, %v7075
  %v7698 = vsel %vm3346, %v7634, %v7077
  %v7699 = vsel %vm3346, %v7635, %v7079
  %v7700 = vsel %vm3346, %v7636, %v7081
  %v7701 = vsel %vm3346, %v7637, %v7083
  %v7702 = vsel %vm3346, %v7638, %v7085
  %v7703 = vsel %vm3346, %v7639, %v7087
  %v7704 = vsel %vm3346, %v7640, %v7089
  %v7705 = vsel %vm3346, %v7641, %v7091
  %v7706 = vsel %vm3346, %v7642, %v7093
  %v7707 = vsel %vm3346, %v7643, %v7095
  %v7708 = vsel %vm3346, %v7644, %v7097
  %v7709 = vsel %vm3346, %v7645, %v7099
  %v7710 = vsel %vm3346, %v7646, %v7101
  %v7711 = vsel %vm3346, %v7647, %v7103
  %v7712 = vsel %vm3346, %v7648, %v7105
  %v7713 = vsel %vm3346, %v7649, %v7107
  %v7714 = vsel %vm3346, %v7650, %v7109
  %v7715 = vsel %vm3346, %v7651, %v7111
  %v7716 = vsel %vm3346, %v7652, %v7113
  %v7717 = vsel %vm3346, %v7653, %v7115
  %v7718 = vsel %vm3346, %v7654, %v7117
  %v7719 = vsel %vm3346, %v7655, %v7119
  %v7720 = vsel %vm3346, %v7656, %v7121
  %v7721 = vsel %vm3346, %v7657, %v7123
  %v7722 = vsel %vm3346, %v7658, %v7125
  %v7723 = vsel %vm3346, %v7659, %v7127
  %v7724 = vsel %vm3346, %v7660, %v7129
  %v7725 = vsel %vm3346, %v7661, %v7131
  %v7726 = vsel %vm3346, %v7662, %v7133
  %v7727 = vsel %vm3346, %v7663, %v7135
  %v7728 = vsel %vm3346, %v7664, %v7137
  %v7729 = vsel %vm3346, %v7665, %v7139
  %v7730 = vsel %vm3346, %v7666, %v7141
  %v7731 = vsel %vm3346, %v7667, %v7143
  %v7732 = vsel %vm3346, %v7668, %v7145
  %v7733 = vsel %vm3346, %v7669, %v7147
  %v7734 = vsel %vm3346, %v7670, %v7149
  %v7735 = vsel %vm3346, %v7671, %v7151
  %v7736 = vsel %vm3346, %v7672, %v7153
  %v7737 = vsel %vm3346, %v7673, %v7155
  %v7738 = vsel %vm3346, %v7674, %v7157
  %v7739 = vsel %vm3346, %v7675, %v7159
  %v7740 = vsel %vm3346, %v7676, %v7161
  %v7741 = vsel %vm3346, %v7677, %v7163
  %v7742 = vsel %vm3346, %v7678, %v7165
  %v7743 = vsel %vm3346, %v7679, %v7167
  %v7744 = vld [vmem:[%s2] sm:$0xff]
  %v7745 = vld [vmem:[%s2 + $0x8] sm:$0xff]
  %v7746 = vld [vmem:[%s2 + $0x10] sm:$0xff]
  %v7747 = vld [vmem:[%s2 + $0x18] sm:$0xff]
  %v7748 = vld [vmem:[%s2 + $0x20] sm:$0xf]
  %v7750 = vsel %vm3416, %v7680, 0
  %v7753 = vsel %vm3416, %v7681, 0
  %v7756 = vsel %vm3416, %v7682, 0
  %v7759 = vsel %vm3416, %v7683, 0
  %v7762 = vsel %vm3416, %v7684, 0
  %v7765 = vsel %vm3416, %v7685, 0
  %v7768 = vsel %vm3416, %v7686, 0
  %v7771 = vsel %vm3416, %v7687, 0
  %v7774 = vsel %vm3416, %v7688, 0
  %v7777 = vsel %vm3416, %v7689, 0
  %v7780 = vsel %vm3416, %v7690, 0
  %v7783 = vsel %vm3416, %v7691, 0
  %v7786 = vsel %vm3416, %v7692, 0
  %v7789 = vsel %vm3416, %v7693, 0
  %v7792 = vsel %vm3416, %v7694, 0
  %v7795 = vsel %vm3416, %v7695, 0
  %v7798 = vsel %vm3416, %v7696, 0
  %v7801 = vsel %vm3416, %v7697, 0
  %v7804 = vsel %vm3416, %v7698, 0
  %v7807 = vsel %vm3416, %v7699, 0
  %v7810 = vsel %vm3416, %v7700, 0
  %v7813 = vsel %vm3416, %v7701, 0
  %v7816 = vsel %vm3416, %v7702, 0
  %v7819 = vsel %vm3416, %v7703, 0
  %v7822 = vsel %vm3416, %v7704, 0
  %v7825 = vsel %vm3416, %v7705, 0
  %v7828 = vsel %vm3416, %v7706, 0
  %v7831 = vsel %vm3416, %v7707, 0
  %v7834 = vsel %vm3416, %v7708, 0
  %v7837 = vsel %vm3416, %v7709, 0
  %v7840 = vsel %vm3416, %v7710, 0
  %v7843 = vsel %vm3416, %v7711, 0
  %v7846 = vsel %vm3416, %v7712, 0
  %v7849 = vsel %vm3416, %v7713, 0
  %v7852 = vsel %vm3416, %v7714, 0
  %v7855 = vsel %vm3416, %v7715, 0
  %v7858 = vsel %vm3416, %v7716, 0
  %v7861 = vsel %vm3416, %v7717, 0
  %v7864 = vsel %vm3416, %v7718, 0
  %v7867 = vsel %vm3416, %v7719, 0
  %v7870 = vsel %vm3416, %v7720, 0
  %v7873 = vsel %vm3416, %v7721, 0
  %v7876 = vsel %vm3416, %v7722, 0
  %v7879 = vsel %vm3416, %v7723, 0
  %v7882 = vsel %vm3416, %v7724, 0
  %v7885 = vsel %vm3416, %v7725, 0
  %v7888 = vsel %vm3416, %v7726, 0
  %v7891 = vsel %vm3416, %v7727, 0
  %v7894 = vsel %vm3416, %v7728, 0
  %v7897 = vsel %vm3416, %v7729, 0
  %v7900 = vsel %vm3416, %v7730, 0
  %v7903 = vsel %vm3416, %v7731, 0
  %v7906 = vsel %vm3416, %v7732, 0
  %v7909 = vsel %vm3416, %v7733, 0
  %v7912 = vsel %vm3416, %v7734, 0
  %v7915 = vsel %vm3416, %v7735, 0
  %v7918 = vsel %vm3416, %v7736, 0
  %v7921 = vsel %vm3416, %v7737, 0
  %v7924 = vsel %vm3416, %v7738, 0
  %v7927 = vsel %vm3416, %v7739, 0
  %v7930 = vsel %vm3416, %v7740, 0
  %v7933 = vsel %vm3416, %v7741, 0
  %v7936 = vsel %vm3416, %v7742, 0
  %v7939 = vsel %vm3416, %v7743, 0
  %v7942 = vsel %vm3609, %v7748, 0
  %7944 = vmatprep.subr.mxu0 0.0
  %7945 = vmatpush1.msra.mxu0 0.0
  %7946 = vmatprep.subr.mxu0 0.0
  %7947 = vmatpush1.msra.mxu0 0.0
  %7948 = vmatprep.subr.mxu0 0.0
  %7949 = vmatpush1.msra.mxu0 0.0
  %7950 = vmatprep.subr.mxu0 0.0
  %7951 = vmatpush1.msra.mxu0 0.0
  %7952 = vmatprep.subr.mxu0 0.0
  %7953 = vmatpush1.msra.mxu0 0.0
  %7954 = vmatprep.subr.mxu0 0.0
  %7955 = vmatpush1.msra.mxu0 0.0
  %7956 = vmatprep.subr.mxu0 0.0
  %7957 = vmatpush1.msra.mxu0 0.0
  %7958 = vmatprep.subr.mxu0 0.0
  %7959 = vmatpush1.msra.mxu0 0.0
  %7960 = vmatprep.subr.mxu0 0.0
  %7961 = vmatpush1.msra.mxu0 0.0
  %7962 = vmatprep.subr.mxu0 0.0
  %7963 = vmatpush1.msra.mxu0 0.0
  %7964 = vmatprep.subr.mxu0 0.0
  %7965 = vmatpush1.msra.mxu0 0.0
  %7966 = vmatprep.subr.mxu0 0.0
  %7967 = vmatpush1.msra.mxu0 %v7942
  %7968 = vmatprep.subr.mxu0 0.0
  %7969 = vmatpush1.msra.mxu0 %v7747
  %7970 = vmatprep.subr.mxu0 0.0
  %7971 = vmatpush1.msra.mxu0 %v7746
  %7972 = vmatprep.subr.mxu0 0.0
  %7973 = vmatpush1.msra.mxu0 %v7745
  %7974 = vmatprep.subr.mxu0 0.0
  %7975 = vmatpush1.msra.mxu0 %v7744
  %7976 = vmatprep.subr.mxu0 0.0
  %7977 = vmatpush2.msra.mxu0 0.0
  %7978 = vmatprep.subr.mxu0 0.0
  %7979 = vmatpush2.msra.mxu0 0.0
  %7980 = vmatprep.subr.mxu0 0.0
  %7981 = vmatpush2.msra.mxu0 0.0
  %7982 = vmatprep.subr.mxu0 0.0
  %7983 = vmatpush2.msra.mxu0 0.0
  %7984 = vmatprep.subr.mxu0 0.0
  %7985 = vmatpush2.msra.mxu0 0.0
  %7986 = vmatprep.subr.mxu0 0.0
  %7987 = vmatpush2.msra.mxu0 0.0
  %7988 = vmatprep.subr.mxu0 0.0
  %7989 = vmatpush2.msra.mxu0 0.0
  %7990 = vmatprep.subr.mxu0 0.0
  %7991 = vmatpush2.msra.mxu0 0.0
  %7992 = vmatprep.subr.mxu0 0.0
  %7993 = vmatpush2.msra.mxu0 0.0
  %7994 = vmatprep.subr.mxu0 0.0
  %7995 = vmatpush2.msra.mxu0 0.0
  %7996 = vmatprep.subr.mxu0 0.0
  %7997 = vmatpush2.msra.mxu0 0.0
  %7998 = vmatprep.subr.mxu0 0.0
  %7999 = vmatpush2.msra.mxu0 0.0
  %8000 = vmatprep.subr.mxu0 0.0
  %8001 = vmatpush2.msra.mxu0 0.0
  %8002 = vmatprep.subr.mxu0 0.0
  %8003 = vmatpush2.msra.mxu0 0.0
  %8004 = vmatprep.subr.mxu0 0.0
  %8005 = vmatpush2.msra.mxu0 0.0
  %8006 = vmatprep.subr.mxu0 0.0
  %8007 = vmatpush2.msra.mxu0 0.0
  %8008 = vmatprep.mubr.f32.mxu0 0.0
  %8009 = vmatmul.mubr.f32.gmra.mxu0 %v7750
  %v8010 = vpop.f32.mrf.mxu0
  %v8011 = vadd.f32 0.0, %v8010
  %v8012 = vpop.f32.mrf.mxu0
  %8013 = vmatprep.mubr.f32.mxu0 0.0
  %8014 = vmatmul.mubr.f32.gmra.mxu0 %v7753
  %v8015 = vpop.f32.mrf.mxu0
  %v8016 = vadd.f32 0.0, %v8015
  %v8017 = vpop.f32.mrf.mxu0
  %8018 = vmatprep.mubr.f32.mxu0 0.0
  %8019 = vmatmul.mubr.f32.gmra.mxu0 %v7756
  %v8020 = vpop.f32.mrf.mxu0
  %v8021 = vadd.f32 0.0, %v8020
  %v8022 = vpop.f32.mrf.mxu0
  %8023 = vmatprep.mubr.f32.mxu0 0.0
  %8024 = vmatmul.mubr.f32.gmra.mxu0 %v7759
  %v8025 = vpop.f32.mrf.mxu0
  %v8026 = vadd.f32 0.0, %v8025
  %v8027 = vpop.f32.mrf.mxu0
  %8028 = vmatprep.mubr.f32.mxu0 0.0
  %8029 = vmatmul.mubr.f32.gmra.mxu0 %v7762
  %v8030 = vpop.f32.mrf.mxu0
  %v8031 = vadd.f32 0.0, %v8030
  %v8032 = vpop.f32.mrf.mxu0
  %8033 = vmatprep.mubr.f32.mxu0 0.0
  %8034 = vmatmul.mubr.f32.gmra.mxu0 %v7765
  %v8035 = vpop.f32.mrf.mxu0
  %v8036 = vadd.f32 0.0, %v8035
  %v8037 = vpop.f32.mrf.mxu0
  %8038 = vmatprep.mubr.f32.mxu0 0.0
  %8039 = vmatmul.mubr.f32.gmra.mxu0 %v7768
  %v8040 = vpop.f32.mrf.mxu0
  %v8041 = vadd.f32 0.0, %v8040
  %v8042 = vpop.f32.mrf.mxu0
  %8043 = vmatprep.mubr.f32.mxu0 0.0
  %8044 = vmatmul.mubr.f32.gmra.mxu0 %v7771
  %v8045 = vpop.f32.mrf.mxu0
  %v8046 = vadd.f32 0.0, %v8045
  %v8047 = vpop.f32.mrf.mxu0
  %8048 = vmatprep.mubr.f32.mxu0 0.0
  %8049 = vmatmul.mubr.f32.gmra.mxu0 %v7774
  %v8050 = vpop.f32.mrf.mxu0
  %v8051 = vadd.f32 0.0, %v8050
  %v8052 = vpop.f32.mrf.mxu0
  %8053 = vmatprep.mubr.f32.mxu0 0.0
  %8054 = vmatmul.mubr.f32.gmra.mxu0 %v7777
  %v8055 = vpop.f32.mrf.mxu0
  %v8056 = vadd.f32 0.0, %v8055
  %v8057 = vpop.f32.mrf.mxu0
  %8058 = vmatprep.mubr.f32.mxu0 0.0
  %8059 = vmatmul.mubr.f32.gmra.mxu0 %v7780
  %v8060 = vpop.f32.mrf.mxu0
  %v8061 = vadd.f32 0.0, %v8060
  %v8062 = vpop.f32.mrf.mxu0
  %8063 = vmatprep.mubr.f32.mxu0 0.0
  %8064 = vmatmul.mubr.f32.gmra.mxu0 %v7783
  %v8065 = vpop.f32.mrf.mxu0
  %v8066 = vadd.f32 0.0, %v8065
  %v8067 = vpop.f32.mrf.mxu0
  %8068 = vmatprep.mubr.f32.mxu0 0.0
  %8069 = vmatmul.mubr.f32.gmra.mxu0 %v7786
  %v8070 = vpop.f32.mrf.mxu0
  %v8071 = vadd.f32 0.0, %v8070
  %v8072 = vpop.f32.mrf.mxu0
  %8073 = vmatprep.mubr.f32.mxu0 0.0
  %8074 = vmatmul.mubr.f32.gmra.mxu0 %v7789
  %v8075 = vpop.f32.mrf.mxu0
  %v8076 = vadd.f32 0.0, %v8075
  %v8077 = vpop.f32.mrf.mxu0
  %8078 = vmatprep.mubr.f32.mxu0 0.0
  %8079 = vmatmul.mubr.f32.gmra.mxu0 %v7792
  %v8080 = vpop.f32.mrf.mxu0
  %v8081 = vadd.f32 0.0, %v8080
  %v8082 = vpop.f32.mrf.mxu0
  %8083 = vmatprep.mubr.f32.mxu0 0.0
  %8084 = vmatmul.mubr.f32.gmra.mxu0 %v7795
  %v8085 = vpop.f32.mrf.mxu0
  %v8086 = vadd.f32 0.0, %v8085
  %v8087 = vpop.f32.mrf.mxu0
  %8088 = vmatprep.mubr.f32.mxu0 0.0
  %8089 = vmatmul.mubr.f32.gmra.mxu0 %v7798
  %v8090 = vpop.f32.mrf.mxu0
  %v8091 = vadd.f32 0.0, %v8090
  %v8092 = vpop.f32.mrf.mxu0
  %8093 = vmatprep.mubr.f32.mxu0 0.0
  %8094 = vmatmul.mubr.f32.gmra.mxu0 %v7801
  %v8095 = vpop.f32.mrf.mxu0
  %v8096 = vadd.f32 0.0, %v8095
  %v8097 = vpop.f32.mrf.mxu0
  %8098 = vmatprep.mubr.f32.mxu0 0.0
  %8099 = vmatmul.mubr.f32.gmra.mxu0 %v7804
  %v8100 = vpop.f32.mrf.mxu0
  %v8101 = vadd.f32 0.0, %v8100
  %v8102 = vpop.f32.mrf.mxu0
  %8103 = vmatprep.mubr.f32.mxu0 0.0
  %8104 = vmatmul.mubr.f32.gmra.mxu0 %v7807
  %v8105 = vpop.f32.mrf.mxu0
  %v8106 = vadd.f32 0.0, %v8105
  %v8107 = vpop.f32.mrf.mxu0
  %8108 = vmatprep.mubr.f32.mxu0 0.0
  %8109 = vmatmul.mubr.f32.gmra.mxu0 %v7810
  %v8110 = vpop.f32.mrf.mxu0
  %v8111 = vadd.f32 0.0, %v8110
  %v8112 = vpop.f32.mrf.mxu0
  %8113 = vmatprep.mubr.f32.mxu0 0.0
  %8114 = vmatmul.mubr.f32.gmra.mxu0 %v7813
  %v8115 = vpop.f32.mrf.mxu0
  %v8116 = vadd.f32 0.0, %v8115
  %v8117 = vpop.f32.mrf.mxu0
  %8118 = vmatprep.mubr.f32.mxu0 0.0
  %8119 = vmatmul.mubr.f32.gmra.mxu0 %v7816
  %v8120 = vpop.f32.mrf.mxu0
  %v8121 = vadd.f32 0.0, %v8120
  %v8122 = vpop.f32.mrf.mxu0
  %8123 = vmatprep.mubr.f32.mxu0 0.0
  %8124 = vmatmul.mubr.f32.gmra.mxu0 %v7819
  %v8125 = vpop.f32.mrf.mxu0
  %v8126 = vadd.f32 0.0, %v8125
  %v8127 = vpop.f32.mrf.mxu0
  %8128 = vmatprep.mubr.f32.mxu0 0.0
  %8129 = vmatmul.mubr.f32.gmra.mxu0 %v7822
  %v8130 = vpop.f32.mrf.mxu0
  %v8131 = vadd.f32 0.0, %v8130
  %v8132 = vpop.f32.mrf.mxu0
  %8133 = vmatprep.mubr.f32.mxu0 0.0
  %8134 = vmatmul.mubr.f32.gmra.mxu0 %v7825
  %v8135 = vpop.f32.mrf.mxu0
  %v8136 = vadd.f32 0.0, %v8135
  %v8137 = vpop.f32.mrf.mxu0
  %8138 = vmatprep.mubr.f32.mxu0 0.0
  %8139 = vmatmul.mubr.f32.gmra.mxu0 %v7828
  %v8140 = vpop.f32.mrf.mxu0
  %v8141 = vadd.f32 0.0, %v8140
  %v8142 = vpop.f32.mrf.mxu0
  %8143 = vmatprep.mubr.f32.mxu0 0.0
  %8144 = vmatmul.mubr.f32.gmra.mxu0 %v7831
  %v8145 = vpop.f32.mrf.mxu0
  %v8146 = vadd.f32 0.0, %v8145
  %v8147 = vpop.f32.mrf.mxu0
  %8148 = vmatprep.mubr.f32.mxu0 0.0
  %8149 = vmatmul.mubr.f32.gmra.mxu0 %v7834
  %v8150 = vpop.f32.mrf.mxu0
  %v8151 = vadd.f32 0.0, %v8150
  %v8152 = vpop.f32.mrf.mxu0
  %8153 = vmatprep.mubr.f32.mxu0 0.0
  %8154 = vmatmul.mubr.f32.gmra.mxu0 %v7837
  %v8155 = vpop.f32.mrf.mxu0
  %v8156 = vadd.f32 0.0, %v8155
  %v8157 = vpop.f32.mrf.mxu0
  %8158 = vmatprep.mubr.f32.mxu0 0.0
  %8159 = vmatmul.mubr.f32.gmra.mxu0 %v7840
  %v8160 = vpop.f32.mrf.mxu0
  %v8161 = vadd.f32 0.0, %v8160
  %v8162 = vpop.f32.mrf.mxu0
  %8163 = vmatprep.mubr.f32.mxu0 0.0
  %8164 = vmatmul.mubr.f32.gmra.mxu0 %v7843
  %v8165 = vpop.f32.mrf.mxu0
  %v8166 = vadd.f32 0.0, %v8165
  %v8167 = vpop.f32.mrf.mxu0
  %8168 = vmatprep.mubr.f32.mxu0 0.0
  %8169 = vmatmul.mubr.f32.gmra.mxu0 %v7846
  %v8170 = vpop.f32.mrf.mxu0
  %v8171 = vadd.f32 0.0, %v8170
  %v8172 = vpop.f32.mrf.mxu0
  %8173 = vmatprep.mubr.f32.mxu0 0.0
  %8174 = vmatmul.mubr.f32.gmra.mxu0 %v7849
  %v8175 = vpop.f32.mrf.mxu0
  %v8176 = vadd.f32 0.0, %v8175
  %v8177 = vpop.f32.mrf.mxu0
  %8178 = vmatprep.mubr.f32.mxu0 0.0
  %8179 = vmatmul.mubr.f32.gmra.mxu0 %v7852
  %v8180 = vpop.f32.mrf.mxu0
  %v8181 = vadd.f32 0.0, %v8180
  %v8182 = vpop.f32.mrf.mxu0
  %8183 = vmatprep.mubr.f32.mxu0 0.0
  %8184 = vmatmul.mubr.f32.gmra.mxu0 %v7855
  %v8185 = vpop.f32.mrf.mxu0
  %v8186 = vadd.f32 0.0, %v8185
  %v8187 = vpop.f32.mrf.mxu0
  %8188 = vmatprep.mubr.f32.mxu0 0.0
  %8189 = vmatmul.mubr.f32.gmra.mxu0 %v7858
  %v8190 = vpop.f32.mrf.mxu0
  %v8191 = vadd.f32 0.0, %v8190
  %v8192 = vpop.f32.mrf.mxu0
  %8193 = vmatprep.mubr.f32.mxu0 0.0
  %8194 = vmatmul.mubr.f32.gmra.mxu0 %v7861
  %v8195 = vpop.f32.mrf.mxu0
  %v8196 = vadd.f32 0.0, %v8195
  %v8197 = vpop.f32.mrf.mxu0
  %8198 = vmatprep.mubr.f32.mxu0 0.0
  %8199 = vmatmul.mubr.f32.gmra.mxu0 %v7864
  %v8200 = vpop.f32.mrf.mxu0
  %v8201 = vadd.f32 0.0, %v8200
  %v8202 = vpop.f32.mrf.mxu0
  %8203 = vmatprep.mubr.f32.mxu0 0.0
  %8204 = vmatmul.mubr.f32.gmra.mxu0 %v7867
  %v8205 = vpop.f32.mrf.mxu0
  %v8206 = vadd.f32 0.0, %v8205
  %v8207 = vpop.f32.mrf.mxu0
  %8208 = vmatprep.mubr.f32.mxu0 0.0
  %8209 = vmatmul.mubr.f32.gmra.mxu0 %v7870
  %v8210 = vpop.f32.mrf.mxu0
  %v8211 = vadd.f32 0.0, %v8210
  %v8212 = vpop.f32.mrf.mxu0
  %8213 = vmatprep.mubr.f32.mxu0 0.0
  %8214 = vmatmul.mubr.f32.gmra.mxu0 %v7873
  %v8215 = vpop.f32.mrf.mxu0
  %v8216 = vadd.f32 0.0, %v8215
  %v8217 = vpop.f32.mrf.mxu0
  %8218 = vmatprep.mubr.f32.mxu0 0.0
  %8219 = vmatmul.mubr.f32.gmra.mxu0 %v7876
  %v8220 = vpop.f32.mrf.mxu0
  %v8221 = vadd.f32 0.0, %v8220
  %v8222 = vpop.f32.mrf.mxu0
  %8223 = vmatprep.mubr.f32.mxu0 0.0
  %8224 = vmatmul.mubr.f32.gmra.mxu0 %v7879
  %v8225 = vpop.f32.mrf.mxu0
  %v8226 = vadd.f32 0.0, %v8225
  %v8227 = vpop.f32.mrf.mxu0
  %8228 = vmatprep.mubr.f32.mxu0 0.0
  %8229 = vmatmul.mubr.f32.gmra.mxu0 %v7882
  %v8230 = vpop.f32.mrf.mxu0
  %v8231 = vadd.f32 0.0, %v8230
  %v8232 = vpop.f32.mrf.mxu0
  %8233 = vmatprep.mubr.f32.mxu0 0.0
  %8234 = vmatmul.mubr.f32.gmra.mxu0 %v7885
  %v8235 = vpop.f32.mrf.mxu0
  %v8236 = vadd.f32 0.0, %v8235
  %v8237 = vpop.f32.mrf.mxu0
  %8238 = vmatprep.mubr.f32.mxu0 0.0
  %8239 = vmatmul.mubr.f32.gmra.mxu0 %v7888
  %v8240 = vpop.f32.mrf.mxu0
  %v8241 = vadd.f32 0.0, %v8240
  %v8242 = vpop.f32.mrf.mxu0
  %8243 = vmatprep.mubr.f32.mxu0 0.0
  %8244 = vmatmul.mubr.f32.gmra.mxu0 %v7891
  %v8245 = vpop.f32.mrf.mxu0
  %v8246 = vadd.f32 0.0, %v8245
  %v8247 = vpop.f32.mrf.mxu0
  %8248 = vmatprep.mubr.f32.mxu0 0.0
  %8249 = vmatmul.mubr.f32.gmra.mxu0 %v7894
  %v8250 = vpop.f32.mrf.mxu0
  %v8251 = vadd.f32 0.0, %v8250
  %v8252 = vpop.f32.mrf.mxu0
  %8253 = vmatprep.mubr.f32.mxu0 0.0
  %8254 = vmatmul.mubr.f32.gmra.mxu0 %v7897
  %v8255 = vpop.f32.mrf.mxu0
  %v8256 = vadd.f32 0.0, %v8255
  %v8257 = vpop.f32.mrf.mxu0
  %8258 = vmatprep.mubr.f32.mxu0 0.0
  %8259 = vmatmul.mubr.f32.gmra.mxu0 %v7900
  %v8260 = vpop.f32.mrf.mxu0
  %v8261 = vadd.f32 0.0, %v8260
  %v8262 = vpop.f32.mrf.mxu0
  %8263 = vmatprep.mubr.f32.mxu0 0.0
  %8264 = vmatmul.mubr.f32.gmra.mxu0 %v7903
  %v8265 = vpop.f32.mrf.mxu0
  %v8266 = vadd.f32 0.0, %v8265
  %v8267 = vpop.f32.mrf.mxu0
  %8268 = vmatprep.mubr.f32.mxu0 0.0
  %8269 = vmatmul.mubr.f32.gmra.mxu0 %v7906
  %v8270 = vpop.f32.mrf.mxu0
  %v8271 = vadd.f32 0.0, %v8270
  %v8272 = vpop.f32.mrf.mxu0
  %8273 = vmatprep.mubr.f32.mxu0 0.0
  %8274 = vmatmul.mubr.f32.gmra.mxu0 %v7909
  %v8275 = vpop.f32.mrf.mxu0
  %v8276 = vadd.f32 0.0, %v8275
  %v8277 = vpop.f32.mrf.mxu0
  %8278 = vmatprep.mubr.f32.mxu0 0.0
  %8279 = vmatmul.mubr.f32.gmra.mxu0 %v7912
  %v8280 = vpop.f32.mrf.mxu0
  %v8281 = vadd.f32 0.0, %v8280
  %v8282 = vpop.f32.mrf.mxu0
  %8283 = vmatprep.mubr.f32.mxu0 0.0
  %8284 = vmatmul.mubr.f32.gmra.mxu0 %v7915
  %v8285 = vpop.f32.mrf.mxu0
  %v8286 = vadd.f32 0.0, %v8285
  %v8287 = vpop.f32.mrf.mxu0
  %8288 = vmatprep.mubr.f32.mxu0 0.0
  %8289 = vmatmul.mubr.f32.gmra.mxu0 %v7918
  %v8290 = vpop.f32.mrf.mxu0
  %v8291 = vadd.f32 0.0, %v8290
  %v8292 = vpop.f32.mrf.mxu0
  %8293 = vmatprep.mubr.f32.mxu0 0.0
  %8294 = vmatmul.mubr.f32.gmra.mxu0 %v7921
  %v8295 = vpop.f32.mrf.mxu0
  %v8296 = vadd.f32 0.0, %v8295
  %v8297 = vpop.f32.mrf.mxu0
  %8298 = vmatprep.mubr.f32.mxu0 0.0
  %8299 = vmatmul.mubr.f32.gmra.mxu0 %v7924
  %v8300 = vpop.f32.mrf.mxu0
  %v8301 = vadd.f32 0.0, %v8300
  %v8302 = vpop.f32.mrf.mxu0
  %8303 = vmatprep.mubr.f32.mxu0 0.0
  %8304 = vmatmul.mubr.f32.gmra.mxu0 %v7927
  %v8305 = vpop.f32.mrf.mxu0
  %v8306 = vadd.f32 0.0, %v8305
  %v8307 = vpop.f32.mrf.mxu0
  %8308 = vmatprep.mubr.f32.mxu0 0.0
  %8309 = vmatmul.mubr.f32.gmra.mxu0 %v7930
  %v8310 = vpop.f32.mrf.mxu0
  %v8311 = vadd.f32 0.0, %v8310
  %v8312 = vpop.f32.mrf.mxu0
  %8313 = vmatprep.mubr.f32.mxu0 0.0
  %8314 = vmatmul.mubr.f32.gmra.mxu0 %v7933
  %v8315 = vpop.f32.mrf.mxu0
  %v8316 = vadd.f32 0.0, %v8315
  %v8317 = vpop.f32.mrf.mxu0
  %8318 = vmatprep.mubr.f32.mxu0 0.0
  %8319 = vmatmul.mubr.f32.gmra.mxu0 %v7936
  %v8320 = vpop.f32.mrf.mxu0
  %v8321 = vadd.f32 0.0, %v8320
  %v8322 = vpop.f32.mrf.mxu0
  %8323 = vmatprep.mubr.f32.mxu0 0.0
  %8324 = vmatmul.mubr.f32.gmra.mxu0 %v7939
  %v8325 = vpop.f32.mrf.mxu0
  %v8326 = vadd.f32 0.0, %v8325
  %v8327 = vpop.f32.mrf.mxu0
  %8328 = vdwg.mxu0
  %v8329 = vmax.f32 %v8011, 0.0
  %v8330 = vmax.f32 %v8016, 0.0
  %v8331 = vmax.f32 %v8021, 0.0
  %v8332 = vmax.f32 %v8026, 0.0
  %v8333 = vmax.f32 %v8031, 0.0
  %v8334 = vmax.f32 %v8036, 0.0
  %v8335 = vmax.f32 %v8041, 0.0
  %v8336 = vmax.f32 %v8046, 0.0
  %v8337 = vmax.f32 %v8051, 0.0
  %v8338 = vmax.f32 %v8056, 0.0
  %v8339 = vmax.f32 %v8061, 0.0
  %v8340 = vmax.f32 %v8066, 0.0
  %v8341 = vmax.f32 %v8071, 0.0
  %v8342 = vmax.f32 %v8076, 0.0
  %v8343 = vmax.f32 %v8081, 0.0
  %v8344 = vmax.f32 %v8086, 0.0
  %v8345 = vmax.f32 %v8091, 0.0
  %v8346 = vmax.f32 %v8096, 0.0
  %v8347 = vmax.f32 %v8101, 0.0
  %v8348 = vmax.f32 %v8106, 0.0
  %v8349 = vmax.f32 %v8111, 0.0
  %v8350 = vmax.f32 %v8116, 0.0
  %v8351 = vmax.f32 %v8121, 0.0
  %v8352 = vmax.f32 %v8126, 0.0
  %v8353 = vmax.f32 %v8131, 0.0
  %v8354 = vmax.f32 %v8136, 0.0
  %v8355 = vmax.f32 %v8141, 0.0
  %v8356 = vmax.f32 %v8146, 0.0
  %v8357 = vmax.f32 %v8151, 0.0
  %v8358 = vmax.f32 %v8156, 0.0
  %v8359 = vmax.f32 %v8161, 0.0
  %v8360 = vmax.f32 %v8166, 0.0
  %v8361 = vmax.f32 %v8171, 0.0
  %v8362 = vmax.f32 %v8176, 0.0
  %v8363 = vmax.f32 %v8181, 0.0
  %v8364 = vmax.f32 %v8186, 0.0
  %v8365 = vmax.f32 %v8191, 0.0
  %v8366 = vmax.f32 %v8196, 0.0
  %v8367 = vmax.f32 %v8201, 0.0
  %v8368 = vmax.f32 %v8206, 0.0
  %v8369 = vmax.f32 %v8211, 0.0
  %v8370 = vmax.f32 %v8216, 0.0
  %v8371 = vmax.f32 %v8221, 0.0
  %v8372 = vmax.f32 %v8226, 0.0
  %v8373 = vmax.f32 %v8231, 0.0
  %v8374 = vmax.f32 %v8236, 0.0
  %v8375 = vmax.f32 %v8241, 0.0
  %v8376 = vmax.f32 %v8246, 0.0
  %v8377 = vmax.f32 %v8251, 0.0
  %v8378 = vmax.f32 %v8256, 0.0
  %v8379 = vmax.f32 %v8261, 0.0
  %v8380 = vmax.f32 %v8266, 0.0
  %v8381 = vmax.f32 %v8271, 0.0
  %v8382 = vmax.f32 %v8276, 0.0
  %v8383 = vmax.f32 %v8281, 0.0
  %v8384 = vmax.f32 %v8286, 0.0
  %v8385 = vmax.f32 %v8291, 0.0
  %v8386 = vmax.f32 %v8296, 0.0
  %v8387 = vmax.f32 %v8301, 0.0
  %v8388 = vmax.f32 %v8306, 0.0
  %v8389 = vmax.f32 %v8311, 0.0
  %v8390 = vmax.f32 %v8316, 0.0
  %v8391 = vmax.f32 %v8321, 0.0
  %v8392 = vmax.f32 %v8326, 0.0
  %v8393 = vsel %vm26, %v8329, 0.0
  %v8394 = vsel %vm26, %v8330, 0.0
  %v8395 = vadd.f32 %v8393, %v8394
  %v8396 = vsel %vm26, %v8331, 0.0
  %v8397 = vadd.f32 %v8395, %v8396
  %v8398 = vsel %vm26, %v8332, 0.0
  %v8399 = vadd.f32 %v8397, %v8398
  %v8400 = vsel %vm26, %v8333, 0.0
  %v8401 = vadd.f32 %v8399, %v8400
  %v8402 = vsel %vm26, %v8334, 0.0
  %v8403 = vadd.f32 %v8401, %v8402
  %v8404 = vsel %vm26, %v8335, 0.0
  %v8405 = vadd.f32 %v8403, %v8404
  %v8406 = vsel %vm26, %v8336, 0.0
  %v8407 = vadd.f32 %v8405, %v8406
  %v8408 = vsel %vm26, %v8337, 0.0
  %v8409 = vadd.f32 %v8407, %v8408
  %v8410 = vsel %vm26, %v8338, 0.0
  %v8411 = vadd.f32 %v8409, %v8410
  %v8412 = vsel %vm26, %v8339, 0.0
  %v8413 = vadd.f32 %v8411, %v8412
  %v8414 = vsel %vm26, %v8340, 0.0
  %v8415 = vadd.f32 %v8413, %v8414
  %v8416 = vsel %vm26, %v8341, 0.0
  %v8417 = vadd.f32 %v8415, %v8416
  %v8418 = vsel %vm26, %v8342, 0.0
  %v8419 = vadd.f32 %v8417, %v8418
  %v8420 = vsel %vm26, %v8343, 0.0
  %v8421 = vadd.f32 %v8419, %v8420
  %v8422 = vsel %vm26, %v8344, 0.0
  %v8423 = vadd.f32 %v8421, %v8422
  %v8424 = vsel %vm26, %v8345, 0.0
  %v8425 = vadd.f32 %v8423, %v8424
  %v8426 = vsel %vm26, %v8346, 0.0
  %v8427 = vadd.f32 %v8425, %v8426
  %v8428 = vsel %vm26, %v8347, 0.0
  %v8429 = vadd.f32 %v8427, %v8428
  %v8430 = vsel %vm26, %v8348, 0.0
  %v8431 = vadd.f32 %v8429, %v8430
  %v8432 = vsel %vm26, %v8349, 0.0
  %v8433 = vadd.f32 %v8431, %v8432
  %v8434 = vsel %vm26, %v8350, 0.0
  %v8435 = vadd.f32 %v8433, %v8434
  %v8436 = vsel %vm26, %v8351, 0.0
  %v8437 = vadd.f32 %v8435, %v8436
  %v8438 = vsel %vm26, %v8352, 0.0
  %v8439 = vadd.f32 %v8437, %v8438
  %v8440 = vsel %vm26, %v8353, 0.0
  %v8441 = vadd.f32 %v8439, %v8440
  %v8442 = vsel %vm26, %v8354, 0.0
  %v8443 = vadd.f32 %v8441, %v8442
  %v8444 = vsel %vm26, %v8355, 0.0
  %v8445 = vadd.f32 %v8443, %v8444
  %v8446 = vsel %vm26, %v8356, 0.0
  %v8447 = vadd.f32 %v8445, %v8446
  %v8448 = vsel %vm26, %v8357, 0.0
  %v8449 = vadd.f32 %v8447, %v8448
  %v8450 = vsel %vm26, %v8358, 0.0
  %v8451 = vadd.f32 %v8449, %v8450
  %v8452 = vsel %vm26, %v8359, 0.0
  %v8453 = vadd.f32 %v8451, %v8452
  %v8454 = vsel %vm26, %v8360, 0.0
  %v8455 = vadd.f32 %v8453, %v8454
  %v8456 = vsel %vm26, %v8361, 0.0
  %v8457 = vadd.f32 %v8455, %v8456
  %v8458 = vsel %vm26, %v8362, 0.0
  %v8459 = vadd.f32 %v8457, %v8458
  %v8460 = vsel %vm26, %v8363, 0.0
  %v8461 = vadd.f32 %v8459, %v8460
  %v8462 = vsel %vm26, %v8364, 0.0
  %v8463 = vadd.f32 %v8461, %v8462
  %v8464 = vsel %vm26, %v8365, 0.0
  %v8465 = vadd.f32 %v8463, %v8464
  %v8466 = vsel %vm26, %v8366, 0.0
  %v8467 = vadd.f32 %v8465, %v8466
  %v8468 = vsel %vm26, %v8367, 0.0
  %v8469 = vadd.f32 %v8467, %v8468
  %v8470 = vsel %vm26, %v8368, 0.0
  %v8471 = vadd.f32 %v8469, %v8470
  %v8472 = vsel %vm26, %v8369, 0.0
  %v8473 = vadd.f32 %v8471, %v8472
  %v8474 = vsel %vm26, %v8370, 0.0
  %v8475 = vadd.f32 %v8473, %v8474
  %v8476 = vsel %vm26, %v8371, 0.0
  %v8477 = vadd.f32 %v8475, %v8476
  %v8478 = vsel %vm26, %v8372, 0.0
  %v8479 = vadd.f32 %v8477, %v8478
  %v8480 = vsel %vm26, %v8373, 0.0
  %v8481 = vadd.f32 %v8479, %v8480
  %v8482 = vsel %vm26, %v8374, 0.0
  %v8483 = vadd.f32 %v8481, %v8482
  %v8484 = vsel %vm26, %v8375, 0.0
  %v8485 = vadd.f32 %v8483, %v8484
  %v8486 = vsel %vm26, %v8376, 0.0
  %v8487 = vadd.f32 %v8485, %v8486
  %v8488 = vsel %vm26, %v8377, 0.0
  %v8489 = vadd.f32 %v8487, %v8488
  %v8490 = vsel %vm26, %v8378, 0.0
  %v8491 = vadd.f32 %v8489, %v8490
  %v8492 = vsel %vm26, %v8379, 0.0
  %v8493 = vadd.f32 %v8491, %v8492
  %v8494 = vsel %vm26, %v8380, 0.0
  %v8495 = vadd.f32 %v8493, %v8494
  %v8496 = vsel %vm26, %v8381, 0.0
  %v8497 = vadd.f32 %v8495, %v8496
  %v8498 = vsel %vm26, %v8382, 0.0
  %v8499 = vadd.f32 %v8497, %v8498
  %v8500 = vsel %vm26, %v8383, 0.0
  %v8501 = vadd.f32 %v8499, %v8500
  %v8502 = vsel %vm26, %v8384, 0.0
  %v8503 = vadd.f32 %v8501, %v8502
  %v8504 = vsel %vm26, %v8385, 0.0
  %v8505 = vadd.f32 %v8503, %v8504
  %v8506 = vsel %vm26, %v8386, 0.0
  %v8507 = vadd.f32 %v8505, %v8506
  %v8508 = vsel %vm26, %v8387, 0.0
  %v8509 = vadd.f32 %v8507, %v8508
  %v8510 = vsel %vm26, %v8388, 0.0
  %v8511 = vadd.f32 %v8509, %v8510
  %v8512 = vsel %vm26, %v8389, 0.0
  %v8513 = vadd.f32 %v8511, %v8512
  %v8514 = vsel %vm26, %v8390, 0.0
  %v8515 = vadd.f32 %v8513, %v8514
  %v8516 = vsel %vm26, %v8391, 0.0
  %v8517 = vadd.f32 %v8515, %v8516
  %v8518 = vsel %vm26, %v8392, 0.0
  %v8519 = vadd.f32 %v8517, %v8518
  %v8520 = vrot.slane %v8519, 4
  %v8521 = vadd.f32 %v8519, %v8520
  %v8522 = vrot.slane %v8521, 2
  %v8523 = vadd.f32 %v8521, %v8522
  %v8524 = vrot.slane %v8523, 1
  %v8525 = vadd.f32 %v8523, %v8524
  %v8526 = vmul.f32 %v8329, %v8329
  %v8527 = vmul.f32 %v8330, %v8330
  %v8528 = vmul.f32 %v8331, %v8331
  %v8529 = vmul.f32 %v8332, %v8332
  %v8530 = vmul.f32 %v8333, %v8333
  %v8531 = vmul.f32 %v8334, %v8334
  %v8532 = vmul.f32 %v8335, %v8335
  %v8533 = vmul.f32 %v8336, %v8336
  %v8534 = vmul.f32 %v8337, %v8337
  %v8535 = vmul.f32 %v8338, %v8338
  %v8536 = vmul.f32 %v8339, %v8339
  %v8537 = vmul.f32 %v8340, %v8340
  %v8538 = vmul.f32 %v8341, %v8341
  %v8539 = vmul.f32 %v8342, %v8342
  %v8540 = vmul.f32 %v8343, %v8343
  %v8541 = vmul.f32 %v8344, %v8344
  %v8542 = vmul.f32 %v8345, %v8345
  %v8543 = vmul.f32 %v8346, %v8346
  %v8544 = vmul.f32 %v8347, %v8347
  %v8545 = vmul.f32 %v8348, %v8348
  %v8546 = vmul.f32 %v8349, %v8349
  %v8547 = vmul.f32 %v8350, %v8350
  %v8548 = vmul.f32 %v8351, %v8351
  %v8549 = vmul.f32 %v8352, %v8352
  %v8550 = vmul.f32 %v8353, %v8353
  %v8551 = vmul.f32 %v8354, %v8354
  %v8552 = vmul.f32 %v8355, %v8355
  %v8553 = vmul.f32 %v8356, %v8356
  %v8554 = vmul.f32 %v8357, %v8357
  %v8555 = vmul.f32 %v8358, %v8358
  %v8556 = vmul.f32 %v8359, %v8359
  %v8557 = vmul.f32 %v8360, %v8360
  %v8558 = vmul.f32 %v8361, %v8361
  %v8559 = vmul.f32 %v8362, %v8362
  %v8560 = vmul.f32 %v8363, %v8363
  %v8561 = vmul.f32 %v8364, %v8364
  %v8562 = vmul.f32 %v8365, %v8365
  %v8563 = vmul.f32 %v8366, %v8366
  %v8564 = vmul.f32 %v8367, %v8367
  %v8565 = vmul.f32 %v8368, %v8368
  %v8566 = vmul.f32 %v8369, %v8369
  %v8567 = vmul.f32 %v8370, %v8370
  %v8568 = vmul.f32 %v8371, %v8371
  %v8569 = vmul.f32 %v8372, %v8372
  %v8570 = vmul.f32 %v8373, %v8373
  %v8571 = vmul.f32 %v8374, %v8374
  %v8572 = vmul.f32 %v8375, %v8375
  %v8573 = vmul.f32 %v8376, %v8376
  %v8574 = vmul.f32 %v8377, %v8377
  %v8575 = vmul.f32 %v8378, %v8378
  %v8576 = vmul.f32 %v8379, %v8379
  %v8577 = vmul.f32 %v8380, %v8380
  %v8578 = vmul.f32 %v8381, %v8381
  %v8579 = vmul.f32 %v8382, %v8382
  %v8580 = vmul.f32 %v8383, %v8383
  %v8581 = vmul.f32 %v8384, %v8384
  %v8582 = vmul.f32 %v8385, %v8385
  %v8583 = vmul.f32 %v8386, %v8386
  %v8584 = vmul.f32 %v8387, %v8387
  %v8585 = vmul.f32 %v8388, %v8388
  %v8586 = vmul.f32 %v8389, %v8389
  %v8587 = vmul.f32 %v8390, %v8390
  %v8588 = vmul.f32 %v8391, %v8391
  %v8589 = vmul.f32 %v8392, %v8392
  %v8590 = vsel %vm26, %v8526, 0.0
  %v8591 = vsel %vm26, %v8527, 0.0
  %v8592 = vadd.f32 %v8590, %v8591
  %v8593 = vsel %vm26, %v8528, 0.0
  %v8594 = vadd.f32 %v8592, %v8593
  %v8595 = vsel %vm26, %v8529, 0.0
  %v8596 = vadd.f32 %v8594, %v8595
  %v8597 = vsel %vm26, %v8530, 0.0
  %v8598 = vadd.f32 %v8596, %v8597
  %v8599 = vsel %vm26, %v8531, 0.0
  %v8600 = vadd.f32 %v8598, %v8599
  %v8601 = vsel %vm26, %v8532, 0.0
  %v8602 = vadd.f32 %v8600, %v8601
  %v8603 = vsel %vm26, %v8533, 0.0
  %v8604 = vadd.f32 %v8602, %v8603
  %v8605 = vsel %vm26, %v8534, 0.0
  %v8606 = vadd.f32 %v8604, %v8605
  %v8607 = vsel %vm26, %v8535, 0.0
  %v8608 = vadd.f32 %v8606, %v8607
  %v8609 = vsel %vm26, %v8536, 0.0
  %v8610 = vadd.f32 %v8608, %v8609
  %v8611 = vsel %vm26, %v8537, 0.0
  %v8612 = vadd.f32 %v8610, %v8611
  %v8613 = vsel %vm26, %v8538, 0.0
  %v8614 = vadd.f32 %v8612, %v8613
  %v8615 = vsel %vm26, %v8539, 0.0
  %v8616 = vadd.f32 %v8614, %v8615
  %v8617 = vsel %vm26, %v8540, 0.0
  %v8618 = vadd.f32 %v8616, %v8617
  %v8619 = vsel %vm26, %v8541, 0.0
  %v8620 = vadd.f32 %v8618, %v8619
  %v8621 = vsel %vm26, %v8542, 0.0
  %v8622 = vadd.f32 %v8620, %v8621
  %v8623 = vsel %vm26, %v8543, 0.0
  %v8624 = vadd.f32 %v8622, %v8623
  %v8625 = vsel %vm26, %v8544, 0.0
  %v8626 = vadd.f32 %v8624, %v8625
  %v8627 = vsel %vm26, %v8545, 0.0
  %v8628 = vadd.f32 %v8626, %v8627
  %v8629 = vsel %vm26, %v8546, 0.0
  %v8630 = vadd.f32 %v8628, %v8629
  %v8631 = vsel %vm26, %v8547, 0.0
  %v8632 = vadd.f32 %v8630, %v8631
  %v8633 = vsel %vm26, %v8548, 0.0
  %v8634 = vadd.f32 %v8632, %v8633
  %v8635 = vsel %vm26, %v8549, 0.0
  %v8636 = vadd.f32 %v8634, %v8635
  %v8637 = vsel %vm26, %v8550, 0.0
  %v8638 = vadd.f32 %v8636, %v8637
  %v8639 = vsel %vm26, %v8551, 0.0
  %v8640 = vadd.f32 %v8638, %v8639
  %v8641 = vsel %vm26, %v8552, 0.0
  %v8642 = vadd.f32 %v8640, %v8641
  %v8643 = vsel %vm26, %v8553, 0.0
  %v8644 = vadd.f32 %v8642, %v8643
  %v8645 = vsel %vm26, %v8554, 0.0
  %v8646 = vadd.f32 %v8644, %v8645
  %v8647 = vsel %vm26, %v8555, 0.0
  %v8648 = vadd.f32 %v8646, %v8647
  %v8649 = vsel %vm26, %v8556, 0.0
  %v8650 = vadd.f32 %v8648, %v8649
  %v8651 = vsel %vm26, %v8557, 0.0
  %v8652 = vadd.f32 %v8650, %v8651
  %v8653 = vsel %vm26, %v8558, 0.0
  %v8654 = vadd.f32 %v8652, %v8653
  %v8655 = vsel %vm26, %v8559, 0.0
  %v8656 = vadd.f32 %v8654, %v8655
  %v8657 = vsel %vm26, %v8560, 0.0
  %v8658 = vadd.f32 %v8656, %v8657
  %v8659 = vsel %vm26, %v8561, 0.0
  %v8660 = vadd.f32 %v8658, %v8659
  %v8661 = vsel %vm26, %v8562, 0.0
  %v8662 = vadd.f32 %v8660, %v8661
  %v8663 = vsel %vm26, %v8563, 0.0
  %v8664 = vadd.f32 %v8662, %v8663
  %v8665 = vsel %vm26, %v8564, 0.0
  %v8666 = vadd.f32 %v8664, %v8665
  %v8667 = vsel %vm26, %v8565, 0.0
  %v8668 = vadd.f32 %v8666, %v8667
  %v8669 = vsel %vm26, %v8566, 0.0
  %v8670 = vadd.f32 %v8668, %v8669
  %v8671 = vsel %vm26, %v8567, 0.0
  %v8672 = vadd.f32 %v8670, %v8671
  %v8673 = vsel %vm26, %v8568, 0.0
  %v8674 = vadd.f32 %v8672, %v8673
  %v8675 = vsel %vm26, %v8569, 0.0
  %v8676 = vadd.f32 %v8674, %v8675
  %v8677 = vsel %vm26, %v8570, 0.0
  %v8678 = vadd.f32 %v8676, %v8677
  %v8679 = vsel %vm26, %v8571, 0.0
  %v8680 = vadd.f32 %v8678, %v8679
  %v8681 = vsel %vm26, %v8572, 0.0
  %v8682 = vadd.f32 %v8680, %v8681
  %v8683 = vsel %vm26, %v8573, 0.0
  %v8684 = vadd.f32 %v8682, %v8683
  %v8685 = vsel %vm26, %v8574, 0.0
  %v8686 = vadd.f32 %v8684, %v8685
  %v8687 = vsel %vm26, %v8575, 0.0
  %v8688 = vadd.f32 %v8686, %v8687
  %v8689 = vsel %vm26, %v8576, 0.0
  %v8690 = vadd.f32 %v8688, %v8689
  %v8691 = vsel %vm26, %v8577, 0.0
  %v8692 = vadd.f32 %v8690, %v8691
  %v8693 = vsel %vm26, %v8578, 0.0
  %v8694 = vadd.f32 %v8692, %v8693
  %v8695 = vsel %vm26, %v8579, 0.0
  %v8696 = vadd.f32 %v8694, %v8695
  %v8697 = vsel %vm26, %v8580, 0.0
  %v8698 = vadd.f32 %v8696, %v8697
  %v8699 = vsel %vm26, %v8581, 0.0
  %v8700 = vadd.f32 %v8698, %v8699
  %v8701 = vsel %vm26, %v8582, 0.0
  %v8702 = vadd.f32 %v8700, %v8701
  %v8703 = vsel %vm26, %v8583, 0.0
  %v8704 = vadd.f32 %v8702, %v8703
  %v8705 = vsel %vm26, %v8584, 0.0
  %v8706 = vadd.f32 %v8704, %v8705
  %v8707 = vsel %vm26, %v8585, 0.0
  %v8708 = vadd.f32 %v8706, %v8707
  %v8709 = vsel %vm26, %v8586, 0.0
  %v8710 = vadd.f32 %v8708, %v8709
  %v8711 = vsel %vm26, %v8587, 0.0
  %v8712 = vadd.f32 %v8710, %v8711
  %v8713 = vsel %vm26, %v8588, 0.0
  %v8714 = vadd.f32 %v8712, %v8713
  %v8715 = vsel %vm26, %v8589, 0.0
  %v8716 = vadd.f32 %v8714, %v8715
  %v8717 = vrot.slane %v8716, 4
  %v8718 = vadd.f32 %v8716, %v8717
  %v8719 = vrot.slane %v8718, 2
  %v8720 = vadd.f32 %v8718, %v8719
  %v8721 = vrot.slane %v8720, 1
  %v8722 = vadd.f32 %v8720, %v8721
  %v8723 = vmul.f32 %v8525, 0.001953125
  %v8724 = vmul.f32 %v8722, 0.001953125
  %v8725 = vmul.f32 %v8723, %v8723
  %v8726 = vsub.f32 %v8724, %v8725
  %v8727 = vmax.f32 %v8726, 0.0
  %v8728 = vadd.f32 %v8727, 1e-05
  %v8729 = vrsqrt.pop %v8728
  %v8730 = vmul.f32 %v4542, %v8729
  %v8731 = vmul.f32 %v8723, %v8730
  %v8732 = vsub.f32 %v4543, %v8731
  %v8734 = vlaneseq
  %v8735 = vshrl.u32 %v8734, 7
  %v8736 = vsub.s32 0, %v8735
  %v8737 = vrot.slane %v8730, %v8736
  %v8739 = vmul.f32 %v8329, %v8737
  %v8740 = vmul.f32 %v8330, %v8737
  %v8741 = vmul.f32 %v8331, %v8737
  %v8742 = vmul.f32 %v8332, %v8737
  %v8743 = vmul.f32 %v8333, %v8737
  %v8744 = vmul.f32 %v8334, %v8737
  %v8745 = vmul.f32 %v8335, %v8737
  %v8746 = vmul.f32 %v8336, %v8737
  %v8747 = vmul.f32 %v8337, %v8737
  %v8748 = vmul.f32 %v8338, %v8737
  %v8749 = vmul.f32 %v8339, %v8737
  %v8750 = vmul.f32 %v8340, %v8737
  %v8751 = vmul.f32 %v8341, %v8737
  %v8752 = vmul.f32 %v8342, %v8737
  %v8753 = vmul.f32 %v8343, %v8737
  %v8754 = vmul.f32 %v8344, %v8737
  %v8755 = vmul.f32 %v8345, %v8737
  %v8756 = vmul.f32 %v8346, %v8737
  %v8757 = vmul.f32 %v8347, %v8737
  %v8758 = vmul.f32 %v8348, %v8737
  %v8759 = vmul.f32 %v8349, %v8737
  %v8760 = vmul.f32 %v8350, %v8737
  %v8761 = vmul.f32 %v8351, %v8737
  %v8762 = vmul.f32 %v8352, %v8737
  %v8763 = vmul.f32 %v8353, %v8737
  %v8764 = vmul.f32 %v8354, %v8737
  %v8765 = vmul.f32 %v8355, %v8737
  %v8766 = vmul.f32 %v8356, %v8737
  %v8767 = vmul.f32 %v8357, %v8737
  %v8768 = vmul.f32 %v8358, %v8737
  %v8769 = vmul.f32 %v8359, %v8737
  %v8770 = vmul.f32 %v8360, %v8737
  %v8771 = vmul.f32 %v8361, %v8737
  %v8772 = vmul.f32 %v8362, %v8737
  %v8773 = vmul.f32 %v8363, %v8737
  %v8774 = vmul.f32 %v8364, %v8737
  %v8775 = vmul.f32 %v8365, %v8737
  %v8776 = vmul.f32 %v8366, %v8737
  %v8777 = vmul.f32 %v8367, %v8737
  %v8778 = vmul.f32 %v8368, %v8737
  %v8779 = vmul.f32 %v8369, %v8737
  %v8780 = vmul.f32 %v8370, %v8737
  %v8781 = vmul.f32 %v8371, %v8737
  %v8782 = vmul.f32 %v8372, %v8737
  %v8783 = vmul.f32 %v8373, %v8737
  %v8784 = vmul.f32 %v8374, %v8737
  %v8785 = vmul.f32 %v8375, %v8737
  %v8786 = vmul.f32 %v8376, %v8737
  %v8787 = vmul.f32 %v8377, %v8737
  %v8788 = vmul.f32 %v8378, %v8737
  %v8789 = vmul.f32 %v8379, %v8737
  %v8790 = vmul.f32 %v8380, %v8737
  %v8791 = vmul.f32 %v8381, %v8737
  %v8792 = vmul.f32 %v8382, %v8737
  %v8793 = vmul.f32 %v8383, %v8737
  %v8794 = vmul.f32 %v8384, %v8737
  %v8795 = vmul.f32 %v8385, %v8737
  %v8796 = vmul.f32 %v8386, %v8737
  %v8797 = vmul.f32 %v8387, %v8737
  %v8798 = vmul.f32 %v8388, %v8737
  %v8799 = vmul.f32 %v8389, %v8737
  %v8800 = vmul.f32 %v8390, %v8737
  %v8801 = vmul.f32 %v8391, %v8737
  %v8802 = vmul.f32 %v8392, %v8737
  %v8804 = vlaneseq
  %v8805 = vshrl.u32 %v8804, 7
  %v8806 = vsub.s32 0, %v8805
  %v8807 = vrot.slane %v8732, %v8806
  %v8809 = vadd.f32 %v8739, %v8807
  %v8810 = vadd.f32 %v8740, %v8807
  %v8811 = vadd.f32 %v8741, %v8807
  %v8812 = vadd.f32 %v8742, %v8807
  %v8813 = vadd.f32 %v8743, %v8807
  %v8814 = vadd.f32 %v8744, %v8807
  %v8815 = vadd.f32 %v8745, %v8807
  %v8816 = vadd.f32 %v8746, %v8807
  %v8817 = vadd.f32 %v8747, %v8807
  %v8818 = vadd.f32 %v8748, %v8807
  %v8819 = vadd.f32 %v8749, %v8807
  %v8820 = vadd.f32 %v8750, %v8807
  %v8821 = vadd.f32 %v8751, %v8807
  %v8822 = vadd.f32 %v8752, %v8807
  %v8823 = vadd.f32 %v8753, %v8807
  %v8824 = vadd.f32 %v8754, %v8807
  %v8825 = vadd.f32 %v8755, %v8807
  %v8826 = vadd.f32 %v8756, %v8807
  %v8827 = vadd.f32 %v8757, %v8807
  %v8828 = vadd.f32 %v8758, %v8807
  %v8829 = vadd.f32 %v8759, %v8807
  %v8830 = vadd.f32 %v8760, %v8807
  %v8831 = vadd.f32 %v8761, %v8807
  %v8832 = vadd.f32 %v8762, %v8807
  %v8833 = vadd.f32 %v8763, %v8807
  %v8834 = vadd.f32 %v8764, %v8807
  %v8835 = vadd.f32 %v8765, %v8807
  %v8836 = vadd.f32 %v8766, %v8807
  %v8837 = vadd.f32 %v8767, %v8807
  %v8838 = vadd.f32 %v8768, %v8807
  %v8839 = vadd.f32 %v8769, %v8807
  %v8840 = vadd.f32 %v8770, %v8807
  %v8841 = vadd.f32 %v8771, %v8807
  %v8842 = vadd.f32 %v8772, %v8807
  %v8843 = vadd.f32 %v8773, %v8807
  %v8844 = vadd.f32 %v8774, %v8807
  %v8845 = vadd.f32 %v8775, %v8807
  %v8846 = vadd.f32 %v8776, %v8807
  %v8847 = vadd.f32 %v8777, %v8807
  %v8848 = vadd.f32 %v8778, %v8807
  %v8849 = vadd.f32 %v8779, %v8807
  %v8850 = vadd.f32 %v8780, %v8807
  %v8851 = vadd.f32 %v8781, %v8807
  %v8852 = vadd.f32 %v8782, %v8807
  %v8853 = vadd.f32 %v8783, %v8807
  %v8854 = vadd.f32 %v8784, %v8807
  %v8855 = vadd.f32 %v8785, %v8807
  %v8856 = vadd.f32 %v8786, %v8807
  %v8857 = vadd.f32 %v8787, %v8807
  %v8858 = vadd.f32 %v8788, %v8807
  %v8859 = vadd.f32 %v8789, %v8807
  %v8860 = vadd.f32 %v8790, %v8807
  %v8861 = vadd.f32 %v8791, %v8807
  %v8862 = vadd.f32 %v8792, %v8807
  %v8863 = vadd.f32 %v8793, %v8807
  %v8864 = vadd.f32 %v8794, %v8807
  %v8865 = vadd.f32 %v8795, %v8807
  %v8866 = vadd.f32 %v8796, %v8807
  %v8867 = vadd.f32 %v8797, %v8807
  %v8868 = vadd.f32 %v8798, %v8807
  %v8869 = vadd.f32 %v8799, %v8807
  %v8870 = vadd.f32 %v8800, %v8807
  %v8871 = vadd.f32 %v8801, %v8807
  %v8872 = vadd.f32 %v8802, %v8807
  %v8873 = vadd.f32 %v8809, %v136
  %v8874 = vadd.f32 %v8810, %v137
  %v8875 = vadd.f32 %v8811, %v138
  %v8876 = vadd.f32 %v8812, %v139
  %v8877 = vadd.f32 %v8813, %v140
  %v8878 = vadd.f32 %v8814, %v141
  %v8879 = vadd.f32 %v8815, %v142
  %v8880 = vadd.f32 %v8816, %v143
  %v8881 = vadd.f32 %v8817, %v144
  %v8882 = vadd.f32 %v8818, %v145
  %v8883 = vadd.f32 %v8819, %v146
  %v8884 = vadd.f32 %v8820, %v147
  %v8885 = vadd.f32 %v8821, %v148
  %v8886 = vadd.f32 %v8822, %v149
  %v8887 = vadd.f32 %v8823, %v150
  %v8888 = vadd.f32 %v8824, %v151
  %v8889 = vadd.f32 %v8825, %v152
  %v8890 = vadd.f32 %v8826, %v153
  %v8891 = vadd.f32 %v8827, %v154
  %v8892 = vadd.f32 %v8828, %v155
  %v8893 = vadd.f32 %v8829, %v156
  %v8894 = vadd.f32 %v8830, %v157
  %v8895 = vadd.f32 %v8831, %v158
  %v8896 = vadd.f32 %v8832, %v159
  %v8897 = vadd.f32 %v8833, %v160
  %v8898 = vadd.f32 %v8834, %v161
  %v8899 = vadd.f32 %v8835, %v162
  %v8900 = vadd.f32 %v8836, %v163
  %v8901 = vadd.f32 %v8837, %v164
  %v8902 = vadd.f32 %v8838, %v165
  %v8903 = vadd.f32 %v8839, %v166
  %v8904 = vadd.f32 %v8840, %v167
  %v8905 = vadd.f32 %v8841, %v168
  %v8906 = vadd.f32 %v8842, %v169
  %v8907 = vadd.f32 %v8843, %v170
  %v8908 = vadd.f32 %v8844, %v171
  %v8909 = vadd.f32 %v8845, %v172
  %v8910 = vadd.f32 %v8846, %v173
  %v8911 = vadd.f32 %v8847, %v174
  %v8912 = vadd.f32 %v8848, %v175
  %v8913 = vadd.f32 %v8849, %v176
  %v8914 = vadd.f32 %v8850, %v177
  %v8915 = vadd.f32 %v8851, %v178
  %v8916 = vadd.f32 %v8852, %v179
  %v8917 = vadd.f32 %v8853, %v180
  %v8918 = vadd.f32 %v8854, %v181
  %v8919 = vadd.f32 %v8855, %v182
  %v8920 = vadd.f32 %v8856, %v183
  %v8921 = vadd.f32 %v8857, %v184
  %v8922 = vadd.f32 %v8858, %v185
  %v8923 = vadd.f32 %v8859, %v186
  %v8924 = vadd.f32 %v8860, %v187
  %v8925 = vadd.f32 %v8861, %v188
  %v8926 = vadd.f32 %v8862, %v189
  %v8927 = vadd.f32 %v8863, %v190
  %v8928 = vadd.f32 %v8864, %v191
  %v8929 = vadd.f32 %v8865, %v192
  %v8930 = vadd.f32 %v8866, %v193
  %v8931 = vadd.f32 %v8867, %v194
  %v8932 = vadd.f32 %v8868, %v195
  %v8933 = vadd.f32 %v8869, %v196
  %v8934 = vadd.f32 %v8870, %v197
  %v8935 = vadd.f32 %v8871, %v198
  %v8936 = vadd.f32 %v8872, %v199
  %8937 = vst.msk [vmem:[%s7] sm:$0xff] %vm26, %v8873
  %8938 = vst.msk [vmem:[%s7 + $0x8] sm:$0xff] %vm26, %v8874
  %8939 = vst.msk [vmem:[%s7 + $0x10] sm:$0xff] %vm26, %v8875
  %8940 = vst.msk [vmem:[%s7 + $0x18] sm:$0xff] %vm26, %v8876
  %8941 = vst.msk [vmem:[%s7 + $0x20] sm:$0xff] %vm26, %v8877
  %8942 = vst.msk [vmem:[%s7 + $0x28] sm:$0xff] %vm26, %v8878
  %8943 = vst.msk [vmem:[%s7 + $0x30] sm:$0xff] %vm26, %v8879
  %8944 = vst.msk [vmem:[%s7 + $0x38] sm:$0xff] %vm26, %v8880
  %8945 = vst.msk [vmem:[%s7 + $0x40] sm:$0xff] %vm26, %v8881
  %8946 = vst.msk [vmem:[%s7 + $0x48] sm:$0xff] %vm26, %v8882
  %8947 = vst.msk [vmem:[%s7 + $0x50] sm:$0xff] %vm26, %v8883
  %8948 = vst.msk [vmem:[%s7 + $0x58] sm:$0xff] %vm26, %v8884
  %8949 = vst.msk [vmem:[%s7 + $0x60] sm:$0xff] %vm26, %v8885
  %8950 = vst.msk [vmem:[%s7 + $0x68] sm:$0xff] %vm26, %v8886
  %8951 = vst.msk [vmem:[%s7 + $0x70] sm:$0xff] %vm26, %v8887
  %8952 = vst.msk [vmem:[%s7 + $0x78] sm:$0xff] %vm26, %v8888
  %8953 = vst.msk [vmem:[%s7 + $0x80] sm:$0xff] %vm26, %v8889
  %8954 = vst.msk [vmem:[%s7 + $0x88] sm:$0xff] %vm26, %v8890
  %8955 = vst.msk [vmem:[%s7 + $0x90] sm:$0xff] %vm26, %v8891
  %8956 = vst.msk [vmem:[%s7 + $0x98] sm:$0xff] %vm26, %v8892
  %8957 = vst.msk [vmem:[%s7 + $0xa0] sm:$0xff] %vm26, %v8893
  %8958 = vst.msk [vmem:[%s7 + $0xa8] sm:$0xff] %vm26, %v8894
  %8959 = vst.msk [vmem:[%s7 + $0xb0] sm:$0xff] %vm26, %v8895
  %8960 = vst.msk [vmem:[%s7 + $0xb8] sm:$0xff] %vm26, %v8896
  %8961 = vst.msk [vmem:[%s7 + $0xc0] sm:$0xff] %vm26, %v8897
  %8962 = vst.msk [vmem:[%s7 + $0xc8] sm:$0xff] %vm26, %v8898
  %8963 = vst.msk [vmem:[%s7 + $0xd0] sm:$0xff] %vm26, %v8899
  %8964 = vst.msk [vmem:[%s7 + $0xd8] sm:$0xff] %vm26, %v8900
  %8965 = vst.msk [vmem:[%s7 + $0xe0] sm:$0xff] %vm26, %v8901
  %8966 = vst.msk [vmem:[%s7 + $0xe8] sm:$0xff] %vm26, %v8902
  %8967 = vst.msk [vmem:[%s7 + $0xf0] sm:$0xff] %vm26, %v8903
  %8968 = vst.msk [vmem:[%s7 + $0xf8] sm:$0xff] %vm26, %v8904
  %8969 = vst.msk [vmem:[%s7 + $0x100] sm:$0xff] %vm26, %v8905
  %8970 = vst.msk [vmem:[%s7 + $0x108] sm:$0xff] %vm26, %v8906
  %8971 = vst.msk [vmem:[%s7 + $0x110] sm:$0xff] %vm26, %v8907
  %8972 = vst.msk [vmem:[%s7 + $0x118] sm:$0xff] %vm26, %v8908
  %8973 = vst.msk [vmem:[%s7 + $0x120] sm:$0xff] %vm26, %v8909
  %8974 = vst.msk [vmem:[%s7 + $0x128] sm:$0xff] %vm26, %v8910
  %8975 = vst.msk [vmem:[%s7 + $0x130] sm:$0xff] %vm26, %v8911
  %8976 = vst.msk [vmem:[%s7 + $0x138] sm:$0xff] %vm26, %v8912
  %8977 = vst.msk [vmem:[%s7 + $0x140] sm:$0xff] %vm26, %v8913
  %8978 = vst.msk [vmem:[%s7 + $0x148] sm:$0xff] %vm26, %v8914
  %8979 = vst.msk [vmem:[%s7 + $0x150] sm:$0xff] %vm26, %v8915
  %8980 = vst.msk [vmem:[%s7 + $0x158] sm:$0xff] %vm26, %v8916
  %8981 = vst.msk [vmem:[%s7 + $0x160] sm:$0xff] %vm26, %v8917
  %8982 = vst.msk [vmem:[%s7 + $0x168] sm:$0xff] %vm26, %v8918
  %8983 = vst.msk [vmem:[%s7 + $0x170] sm:$0xff] %vm26, %v8919
  %8984 = vst.msk [vmem:[%s7 + $0x178] sm:$0xff] %vm26, %v8920
  %8985 = vst.msk [vmem:[%s7 + $0x180] sm:$0xff] %vm26, %v8921
  %8986 = vst.msk [vmem:[%s7 + $0x188] sm:$0xff] %vm26, %v8922
  %8987 = vst.msk [vmem:[%s7 + $0x190] sm:$0xff] %vm26, %v8923
  %8988 = vst.msk [vmem:[%s7 + $0x198] sm:$0xff] %vm26, %v8924
  %8989 = vst.msk [vmem:[%s7 + $0x1a0] sm:$0xff] %vm26, %v8925
  %8990 = vst.msk [vmem:[%s7 + $0x1a8] sm:$0xff] %vm26, %v8926
  %8991 = vst.msk [vmem:[%s7 + $0x1b0] sm:$0xff] %vm26, %v8927
  %8992 = vst.msk [vmem:[%s7 + $0x1b8] sm:$0xff] %vm26, %v8928
  %8993 = vst.msk [vmem:[%s7 + $0x1c0] sm:$0xff] %vm26, %v8929
  %8994 = vst.msk [vmem:[%s7 + $0x1c8] sm:$0xff] %vm26, %v8930
  %8995 = vst.msk [vmem:[%s7 + $0x1d0] sm:$0xff] %vm26, %v8931
  %8996 = vst.msk [vmem:[%s7 + $0x1d8] sm:$0xff] %vm26, %v8932
  %8997 = vst.msk [vmem:[%s7 + $0x1e0] sm:$0xff] %vm26, %v8933
  %8998 = vst.msk [vmem:[%s7 + $0x1e8] sm:$0xff] %vm26, %v8934
  %8999 = vst.msk [vmem:[%s7 + $0x1f0] sm:$0xff] %vm26, %v8935
  %9000 = vst.msk [vmem:[%s7 + $0x1f8] sm:$0xff] %vm26, %v8936
  // Predicated region
  $region30: #{block_forward.2} parent=0 // pred_check
    _
  $region31: #{block_forward.2} parent=0 // pred_check_branch
    %9002 = sbr.rel (0) target = $region33
  $region32: #{block_forward.2} parent=0 // pred_region
    _
  $region33: #{block_forward.2} parent=0 // pred_fallthru
    _
  // Predicated region
  $region34: #{block_forward.2} parent=0 // pred_check
    _
  $region35: #{block_forward.2} parent=0 // pred_check_branch
    %9004 = sbr.rel (0) target = $region37
  $region36: #{block_forward.2} parent=0 // pred_region
    _
  $region37: #{block_forward.2} parent=0 // pred_fallthru
    _

</llo_original>
